<compile_context>
chip_gen: v7x
topology: tpu7x:2x2x1
jax: 0.10.0
libtpu: 0.0.40
codegen_flags: <defaults>
</compile_context>

<pallas_src>
import functools

import jax
import jax.numpy as jnp
from jax.experimental import pallas as pl
from jax.experimental.pallas import tpu as pltpu

INPUT_DIM = 64
PADDED_IN = 128          # lane-dense feature padding (zeros)
ENCODING_DIM = 512
HIDDEN_DIM = 1024


def _round_up(x, m):
    return (x + m - 1) // m * m


def _autoencoder_kernel(x_ref,
                        w1_ref, b1_ref,
                        w2_ref, b2_ref,
                        w3_ref, b3_ref,
                        w4_ref, b4_ref,
                        o_ref):
    """Fused 4-layer MLP (encoder + decoder) for one batch tile.

    x_ref: (block_b, PADDED_IN) bf16; weights bf16; biases f32; output bf16.
    The tile is split into two independent row halves so the scheduler can
    overlap MXU work of one half with the VPU/EUP epilogue of the other.
    All matmuls accumulate in f32 on the MXU.
    """
    block_b = x_ref.shape[0]
    half = block_b // 2

    def relu_layer(h, w_ref, b_ref):
        y = jnp.dot(h, w_ref[...], preferred_element_type=jnp.float32) + b_ref[...]
        return jnp.maximum(y, 0.0).astype(jnp.bfloat16)   # bf16 for next MXU pass

    a = x_ref[pl.ds(0, half), :]          # half A (bf16)
    b = x_ref[pl.ds(half, half), :]       # half B (bf16)

    # Two independent chains, interleaved layer-by-layer in one basic block.
    for w_ref, b_ref in ((w1_ref, b1_ref), (w2_ref, b2_ref), (w3_ref, b3_ref)):
        a = relu_layer(a, w_ref, b_ref)
        b = relu_layer(b, w_ref, b_ref)

    ya = jnp.dot(a, w4_ref[...], preferred_element_type=jnp.float32) + b4_ref[...]
    yb = jnp.dot(b, w4_ref[...], preferred_element_type=jnp.float32) + b4_ref[...]
    o_ref[pl.ds(0, half), :] = jax.nn.sigmoid(ya).astype(o_ref.dtype)
    o_ref[pl.ds(half, half), :] = jax.nn.sigmoid(yb).astype(o_ref.dtype)


def prepare_params(params):
    """One-time weight preparation (pad feature dims 64 -> 128, cast to bf16).

    Hoisted out of the per-call path so a forward call never re-reads the f32
    weights from HBM. Biases stay f32 for the f32 bias add on the VPU.
    """
    prep = {
        "w1": jnp.pad(params["w1"], ((0, PADDED_IN - INPUT_DIM), (0, 0))).astype(jnp.bfloat16),
        "w2": params["w2"].astype(jnp.bfloat16),
        "w3": params["w3"].astype(jnp.bfloat16),
        "w4": jnp.pad(params["w4"], ((0, 0), (0, PADDED_IN - INPUT_DIM))).astype(jnp.bfloat16),
        "b1": params["b1"].astype(jnp.float32),
        "b2": params["b2"].astype(jnp.float32),
        "b3": params["b3"].astype(jnp.float32),
        "b4": jnp.pad(params["b4"], ((0, 0), (0, PADDED_IN - INPUT_DIM))).astype(jnp.float32),
    }
    return jax.tree_util.tree_map(jnp.asarray, prep)


@functools.partial(jax.jit, static_argnames=("block_b",))
def autoencoder_forward(x, prep, block_b=256):
    """x: (B, INPUT_DIM) float32.  prep: output of prepare_params().

    Returns (B, INPUT_DIM) bf16 (sigmoid outputs; f32 MXU accumulation).
    """
    B, D = x.shape
    assert D == INPUT_DIM

    # Tile: default 256 rows (full MXU M pass on v6e/v7x), clamped for tiny
    # batches so we don't pad/compute hundreds of dead rows.  Always a
    # multiple of 128 (M-aligned on v5e too).
    eff_block = min(block_b, _round_up(max(B, 1), 128))
    Bp = _round_up(max(B, 1), eff_block)
    grid = (Bp // eff_block,)

    # Pad batch up to the tile; pad features 64 -> 128 (zeros); cast bf16.
    xp = jnp.pad(x, ((0, Bp - B), (0, PADDED_IN - INPUT_DIM))).astype(jnp.bfloat16)

    # Weights/biases: whole-array VMEM residency, no pipelining/double buffer.
    resident = pl.BlockSpec(memory_space=pltpu.MemorySpace.VMEM)

    flops_per_row = 2 * (PADDED_IN * HIDDEN_DIM + HIDDEN_DIM * ENCODING_DIM
                         + ENCODING_DIM * HIDDEN_DIM + HIDDEN_DIM * PADDED_IN)
    weight_bytes = 2 * (PADDED_IN * HIDDEN_DIM + HIDDEN_DIM * ENCODING_DIM
                        + ENCODING_DIM * HIDDEN_DIM + HIDDEN_DIM * PADDED_IN)
    bias_bytes = 4 * (HIDDEN_DIM + ENCODING_DIM + HIDDEN_DIM + PADDED_IN)
    io_bytes = Bp * PADDED_IN * (2 + 2)   # bf16 in, bf16 out
    cost = pl.CostEstimate(
        flops=Bp * flops_per_row,
        transcendentals=Bp * PADDED_IN,
        bytes_accessed=weight_bytes + bias_bytes + io_bytes,
    )

    out = pl.pallas_call(
        _autoencoder_kernel,
        out_shape=jax.ShapeDtypeStruct((Bp, PADDED_IN), jnp.bfloat16),
        grid=grid,
        in_specs=[
            pl.BlockSpec((eff_block, PADDED_IN), lambda i: (i, 0)),   # x tile
            resident, resident,                                       # w1, b1
            resident, resident,                                       # w2, b2
            resident, resident,                                       # w3, b3
            resident, resident,                                       # w4, b4
        ],
        out_specs=pl.BlockSpec((eff_block, PADDED_IN), lambda i: (i, 0)),
        compiler_params=pltpu.CompilerParams(
            dimension_semantics=("parallel",),
            vmem_limit_bytes=32 * 1024 * 1024,
        ),
        cost_estimate=cost,
    )(xp, prep["w1"], prep["b1"], prep["w2"], prep["b2"],
      prep["w3"], prep["b3"], prep["w4"], prep["b4"])

    return out[:B, :INPUT_DIM]


def init_params(key):
    """Deterministic init mimicking PyTorch nn.Linear default:
    U(-1/sqrt(fan_in), 1/sqrt(fan_in)) for both weight and bias.
    Weights stored as (in_features, out_features)."""
    dims = [
        (INPUT_DIM, HIDDEN_DIM),      # encoder Linear 1
        (HIDDEN_DIM, ENCODING_DIM),   # encoder Linear 2
        (ENCODING_DIM, HIDDEN_DIM),   # decoder Linear 1
        (HIDDEN_DIM, INPUT_DIM),      # decoder Linear 2
    ]
    params = {}
    keys = jax.random.split(key, 2 * len(dims))
    for idx, (fan_in, fan_out) in enumerate(dims):
        bound = 1.0 / (fan_in ** 0.5)
        w = jax.random.uniform(keys[2 * idx], (fan_in, fan_out),
                               dtype=jnp.float32, minval=-bound, maxval=bound)
        b = jax.random.uniform(keys[2 * idx + 1], (1, fan_out),
                               dtype=jnp.float32, minval=-bound, maxval=bound)
        params[f"w{idx + 1}"] = w
        params[f"b{idx + 1}"] = b
    return params


def reference_forward(x, params):
    """Pure-JAX f32 reference for correctness checking."""
    h = jnp.maximum(x @ params["w1"] + params["b1"], 0.0)
    h = jnp.maximum(h @ params["w2"] + params["b2"], 0.0)
    h = jnp.maximum(h @ params["w3"] + params["b3"], 0.0)
    return jax.nn.sigmoid(h @ params["w4"] + params["b4"])


if __name__ == "__main__":
    key = jax.random.PRNGKey(0)
    k_params, k_x = jax.random.split(key)

    params = init_params(k_params)
    prep = prepare_params(params)           # one-time pad + bf16 cast

    batch = 16
    x = jax.random.normal(k_x, (batch, INPUT_DIM), dtype=jnp.float32)

    out = autoencoder_forward(x, prep)
    out = jax.block_until_ready(out)

    ref = reference_forward(x, params)
    assert out.shape == (batch, INPUT_DIM)
    # bf16 weights/activations/output with f32 MXU accumulation -> relaxed
    # tolerance (intentional inference-precision trade vs. the f32 module).
    assert jnp.allclose(out.astype(jnp.float32), ref, atol=3e-2, rtol=3e-2), \
        "mismatch vs reference"

    print("KERNEL_OK")
</pallas_src>

<mosaic_0001>
module attributes {stable_mosaic.version = 11 : i64} {
  func.func @_autoencoder_kernel(%arg0: i32, %arg1: memref<128x128xbf16, #tpu.memory_space<vmem>>, %arg2: memref<128x1024xbf16, #tpu.memory_space<vmem>>, %arg3: memref<1x1024xf32, #tpu.memory_space<vmem>>, %arg4: memref<1024x512xbf16, #tpu.memory_space<vmem>>, %arg5: memref<1x512xf32, #tpu.memory_space<vmem>>, %arg6: memref<512x1024xbf16, #tpu.memory_space<vmem>>, %arg7: memref<1x1024xf32, #tpu.memory_space<vmem>>, %arg8: memref<1024x128xbf16, #tpu.memory_space<vmem>>, %arg9: memref<1x128xf32, #tpu.memory_space<vmem>>, %arg10: memref<128x128xbf16, #tpu.memory_space<vmem>>) attributes {dimension_semantics = [#tpu.dimension_semantics<parallel>], iteration_bounds = array<i64: 1>, scalar_prefetch = 0 : i64, scratch_operands = 0 : i64, tpu.core_type = #tpu.core_type<tc>, window_params = [{transform_indices = @transform_0, window_bounds = array<i64: 128, 128>}, {pipeline_mode = #tpu.pipeline_mode<synchronous>, transform_indices = @transform_1, window_bounds = array<i64: 128, 1024>}, {pipeline_mode = #tpu.pipeline_mode<synchronous>, transform_indices = @transform_2, window_bounds = array<i64: 1, 1024>}, {pipeline_mode = #tpu.pipeline_mode<synchronous>, transform_indices = @transform_3, window_bounds = array<i64: 1024, 512>}, {pipeline_mode = #tpu.pipeline_mode<synchronous>, transform_indices = @transform_4, window_bounds = array<i64: 1, 512>}, {pipeline_mode = #tpu.pipeline_mode<synchronous>, transform_indices = @transform_5, window_bounds = array<i64: 512, 1024>}, {pipeline_mode = #tpu.pipeline_mode<synchronous>, transform_indices = @transform_6, window_bounds = array<i64: 1, 1024>}, {pipeline_mode = #tpu.pipeline_mode<synchronous>, transform_indices = @transform_7, window_bounds = array<i64: 1024, 128>}, {pipeline_mode = #tpu.pipeline_mode<synchronous>, transform_indices = @transform_8, window_bounds = array<i64: 1, 128>}, {transform_indices = @transform_9, window_bounds = array<i64: 128, 128>}]} {
    %c0 = arith.constant 0 : index
    %c0_0 = arith.constant 0 : index
    %0 = vector.load %arg1[%c0, %c0_0] : memref<128x128xbf16, #tpu.memory_space<vmem>>, vector<64x128xbf16>
    %c64 = arith.constant 64 : index
    %c0_1 = arith.constant 0 : index
    %1 = vector.load %arg1[%c64, %c0_1] : memref<128x128xbf16, #tpu.memory_space<vmem>>, vector<64x128xbf16>
    %c0_2 = arith.constant 0 : index
    %c0_3 = arith.constant 0 : index
    %2 = vector.load %arg2[%c0_2, %c0_3] : memref<128x1024xbf16, #tpu.memory_space<vmem>>, vector<128x1024xbf16>
    %cst = arith.constant dense<0.000000e+00> : vector<64x1024xf32>
    %3 = tpu.matmul %0, %2, %cst {dimension_numbers = #tpu.dot_dimension_numbers<[1], [0], [0], [1], [0, 0, 1, 1], [], []>} : vector<64x128xbf16>, vector<128x1024xbf16>, vector<64x1024xf32> -> vector<64x1024xf32>
    %c0_4 = arith.constant 0 : index
    %c0_5 = arith.constant 0 : index
    %4 = vector.load %arg3[%c0_4, %c0_5] : memref<1x1024xf32, #tpu.memory_space<vmem>>, vector<1x1024xf32>
    %5 = vector.broadcast %4 : vector<1x1024xf32> to vector<64x1024xf32>
    %6 = arith.addf %3, %5 : vector<64x1024xf32>
    %cst_6 = arith.constant 0.000000e+00 : f32
    %7 = vector.broadcast %cst_6 : f32 to vector<64x1024xf32>
    %8 = arith.maximumf %6, %7 : vector<64x1024xf32>
    %9 = arith.truncf %8 : vector<64x1024xf32> to vector<64x1024xbf16>
    %c0_7 = arith.constant 0 : index
    %c0_8 = arith.constant 0 : index
    %10 = vector.load %arg2[%c0_7, %c0_8] : memref<128x1024xbf16, #tpu.memory_space<vmem>>, vector<128x1024xbf16>
    %cst_9 = arith.constant dense<0.000000e+00> : vector<64x1024xf32>
    %11 = tpu.matmul %1, %10, %cst_9 {dimension_numbers = #tpu.dot_dimension_numbers<[1], [0], [0], [1], [0, 0, 1, 1], [], []>} : vector<64x128xbf16>, vector<128x1024xbf16>, vector<64x1024xf32> -> vector<64x1024xf32>
    %c0_10 = arith.constant 0 : index
    %c0_11 = arith.constant 0 : index
    %12 = vector.load %arg3[%c0_10, %c0_11] : memref<1x1024xf32, #tpu.memory_space<vmem>>, vector<1x1024xf32>
    %13 = vector.broadcast %12 : vector<1x1024xf32> to vector<64x1024xf32>
    %14 = arith.addf %11, %13 : vector<64x1024xf32>
    %cst_12 = arith.constant 0.000000e+00 : f32
    %15 = vector.broadcast %cst_12 : f32 to vector<64x1024xf32>
    %16 = arith.maximumf %14, %15 : vector<64x1024xf32>
    %17 = arith.truncf %16 : vector<64x1024xf32> to vector<64x1024xbf16>
    %c0_13 = arith.constant 0 : index
    %c0_14 = arith.constant 0 : index
    %18 = vector.load %arg4[%c0_13, %c0_14] : memref<1024x512xbf16, #tpu.memory_space<vmem>>, vector<1024x512xbf16>
    %cst_15 = arith.constant dense<0.000000e+00> : vector<64x512xf32>
    %19 = tpu.matmul %9, %18, %cst_15 {dimension_numbers = #tpu.dot_dimension_numbers<[1], [0], [0], [1], [0, 0, 1, 1], [], []>} : vector<64x1024xbf16>, vector<1024x512xbf16>, vector<64x512xf32> -> vector<64x512xf32>
    %c0_16 = arith.constant 0 : index
    %c0_17 = arith.constant 0 : index
    %20 = vector.load %arg5[%c0_16, %c0_17] : memref<1x512xf32, #tpu.memory_space<vmem>>, vector<1x512xf32>
    %21 = vector.broadcast %20 : vector<1x512xf32> to vector<64x512xf32>
    %22 = arith.addf %19, %21 : vector<64x512xf32>
    %cst_18 = arith.constant 0.000000e+00 : f32
    %23 = vector.broadcast %cst_18 : f32 to vector<64x512xf32>
    %24 = arith.maximumf %22, %23 : vector<64x512xf32>
    %25 = arith.truncf %24 : vector<64x512xf32> to vector<64x512xbf16>
    %c0_19 = arith.constant 0 : index
    %c0_20 = arith.constant 0 : index
    %26 = vector.load %arg4[%c0_19, %c0_20] : memref<1024x512xbf16, #tpu.memory_space<vmem>>, vector<1024x512xbf16>
    %cst_21 = arith.constant dense<0.000000e+00> : vector<64x512xf32>
    %27 = tpu.matmul %17, %26, %cst_21 {dimension_numbers = #tpu.dot_dimension_numbers<[1], [0], [0], [1], [0, 0, 1, 1], [], []>} : vector<64x1024xbf16>, vector<1024x512xbf16>, vector<64x512xf32> -> vector<64x512xf32>
    %c0_22 = arith.constant 0 : index
    %c0_23 = arith.constant 0 : index
    %28 = vector.load %arg5[%c0_22, %c0_23] : memref<1x512xf32, #tpu.memory_space<vmem>>, vector<1x512xf32>
    %29 = vector.broadcast %28 : vector<1x512xf32> to vector<64x512xf32>
    %30 = arith.addf %27, %29 : vector<64x512xf32>
    %cst_24 = arith.constant 0.000000e+00 : f32
    %31 = vector.broadcast %cst_24 : f32 to vector<64x512xf32>
    %32 = arith.maximumf %30, %31 : vector<64x512xf32>
    %33 = arith.truncf %32 : vector<64x512xf32> to vector<64x512xbf16>
    %c0_25 = arith.constant 0 : index
    %c0_26 = arith.constant 0 : index
    %34 = vector.load %arg6[%c0_25, %c0_26] : memref<512x1024xbf16, #tpu.memory_space<vmem>>, vector<512x1024xbf16>
    %cst_27 = arith.constant dense<0.000000e+00> : vector<64x1024xf32>
    %35 = tpu.matmul %25, %34, %cst_27 {dimension_numbers = #tpu.dot_dimension_numbers<[1], [0], [0], [1], [0, 0, 1, 1], [], []>} : vector<64x512xbf16>, vector<512x1024xbf16>, vector<64x1024xf32> -> vector<64x1024xf32>
    %c0_28 = arith.constant 0 : index
    %c0_29 = arith.constant 0 : index
    %36 = vector.load %arg7[%c0_28, %c0_29] : memref<1x1024xf32, #tpu.memory_space<vmem>>, vector<1x1024xf32>
    %37 = vector.broadcast %36 : vector<1x1024xf32> to vector<64x1024xf32>
    %38 = arith.addf %35, %37 : vector<64x1024xf32>
    %cst_30 = arith.constant 0.000000e+00 : f32
    %39 = vector.broadcast %cst_30 : f32 to vector<64x1024xf32>
    %40 = arith.maximumf %38, %39 : vector<64x1024xf32>
    %41 = arith.truncf %40 : vector<64x1024xf32> to vector<64x1024xbf16>
    %c0_31 = arith.constant 0 : index
    %c0_32 = arith.constant 0 : index
    %42 = vector.load %arg6[%c0_31, %c0_32] : memref<512x1024xbf16, #tpu.memory_space<vmem>>, vector<512x1024xbf16>
    %cst_33 = arith.constant dense<0.000000e+00> : vector<64x1024xf32>
    %43 = tpu.matmul %33, %42, %cst_33 {dimension_numbers = #tpu.dot_dimension_numbers<[1], [0], [0], [1], [0, 0, 1, 1], [], []>} : vector<64x512xbf16>, vector<512x1024xbf16>, vector<64x1024xf32> -> vector<64x1024xf32>
    %c0_34 = arith.constant 0 : index
    %c0_35 = arith.constant 0 : index
    %44 = vector.load %arg7[%c0_34, %c0_35] : memref<1x1024xf32, #tpu.memory_space<vmem>>, vector<1x1024xf32>
    %45 = vector.broadcast %44 : vector<1x1024xf32> to vector<64x1024xf32>
    %46 = arith.addf %43, %45 : vector<64x1024xf32>
    %cst_36 = arith.constant 0.000000e+00 : f32
    %47 = vector.broadcast %cst_36 : f32 to vector<64x1024xf32>
    %48 = arith.maximumf %46, %47 : vector<64x1024xf32>
    %49 = arith.truncf %48 : vector<64x1024xf32> to vector<64x1024xbf16>
    %c0_37 = arith.constant 0 : index
    %c0_38 = arith.constant 0 : index
    %50 = vector.load %arg8[%c0_37, %c0_38] : memref<1024x128xbf16, #tpu.memory_space<vmem>>, vector<1024x128xbf16>
    %cst_39 = arith.constant dense<0.000000e+00> : vector<64x128xf32>
    %51 = tpu.matmul %41, %50, %cst_39 {dimension_numbers = #tpu.dot_dimension_numbers<[1], [0], [0], [1], [0, 0, 1, 1], [], []>} : vector<64x1024xbf16>, vector<1024x128xbf16>, vector<64x128xf32> -> vector<64x128xf32>
    %c0_40 = arith.constant 0 : index
    %c0_41 = arith.constant 0 : index
    %52 = vector.load %arg9[%c0_40, %c0_41] : memref<1x128xf32, #tpu.memory_space<vmem>>, vector<1x128xf32>
    %53 = vector.broadcast %52 : vector<1x128xf32> to vector<64x128xf32>
    %54 = arith.addf %51, %53 : vector<64x128xf32>
    %c0_42 = arith.constant 0 : index
    %c0_43 = arith.constant 0 : index
    %55 = vector.load %arg8[%c0_42, %c0_43] : memref<1024x128xbf16, #tpu.memory_space<vmem>>, vector<1024x128xbf16>
    %cst_44 = arith.constant dense<0.000000e+00> : vector<64x128xf32>
    %56 = tpu.matmul %49, %55, %cst_44 {dimension_numbers = #tpu.dot_dimension_numbers<[1], [0], [0], [1], [0, 0, 1, 1], [], []>} : vector<64x1024xbf16>, vector<1024x128xbf16>, vector<64x128xf32> -> vector<64x128xf32>
    %c0_45 = arith.constant 0 : index
    %c0_46 = arith.constant 0 : index
    %57 = vector.load %arg9[%c0_45, %c0_46] : memref<1x128xf32, #tpu.memory_space<vmem>>, vector<1x128xf32>
    %58 = vector.broadcast %57 : vector<1x128xf32> to vector<64x128xf32>
    %59 = arith.addf %56, %58 : vector<64x128xf32>
    %60 = arith.negf %54 : vector<64x128xf32>
    %61 = math.exp %60 : vector<64x128xf32>
    %cst_47 = arith.constant 1.000000e+00 : f32
    %62 = vector.broadcast %cst_47 : f32 to vector<64x128xf32>
    %63 = arith.addf %62, %61 : vector<64x128xf32>
    %64 = arith.divf %62, %63 : vector<64x128xf32>
    %65 = arith.truncf %64 : vector<64x128xf32> to vector<64x128xbf16>
    %c0_48 = arith.constant 0 : index
    %c0_49 = arith.constant 0 : index
    %66 = vector.load %arg10[%c0_48, %c0_49] : memref<128x128xbf16, #tpu.memory_space<vmem>>, vector<64x128xbf16>
    tpu.vector_store %arg10[%c0_48, %c0_49], %65 {strides = array<i32>} : memref<128x128xbf16, #tpu.memory_space<vmem>>, vector<64x128xbf16>,
    %67 = arith.negf %59 : vector<64x128xf32>
    %68 = math.exp %67 : vector<64x128xf32>
    %cst_50 = arith.constant 1.000000e+00 : f32
    %69 = vector.broadcast %cst_50 : f32 to vector<64x128xf32>
    %70 = arith.addf %69, %68 : vector<64x128xf32>
    %71 = arith.divf %69, %70 : vector<64x128xf32>
    %72 = arith.truncf %71 : vector<64x128xf32> to vector<64x128xbf16>
    %c64_51 = arith.constant 64 : index
    %c0_52 = arith.constant 0 : index
    %73 = vector.load %arg10[%c64_51, %c0_52] : memref<128x128xbf16, #tpu.memory_space<vmem>>, vector<64x128xbf16>
    tpu.vector_store %arg10[%c64_51, %c0_52], %72 {strides = array<i32>} : memref<128x128xbf16, #tpu.memory_space<vmem>>, vector<64x128xbf16>,
    return
  }
  func.func @transform_0(%arg0: i32) -> (i32, i32) {
    %c0_i32 = arith.constant 0 : i32
    %c0_i32_0 = arith.constant 0 : i32
    return %arg0, %c0_i32 : i32, i32
  }
  func.func @transform_1(%arg0: i32) -> (i32, i32) {
    %c0_i32 = arith.constant 0 : i32
    %c0_i32_0 = arith.constant 0 : i32
    %c0_i32_1 = arith.constant 0 : i32
    return %c0_i32, %c0_i32_0 : i32, i32
  }
  func.func @transform_2(%arg0: i32) -> (i32, i32) {
    %c0_i32 = arith.constant 0 : i32
    %c0_i32_0 = arith.constant 0 : i32
    %c0_i32_1 = arith.constant 0 : i32
    return %c0_i32, %c0_i32_0 : i32, i32
  }
  func.func @transform_3(%arg0: i32) -> (i32, i32) {
    %c0_i32 = arith.constant 0 : i32
    %c0_i32_0 = arith.constant 0 : i32
    %c0_i32_1 = arith.constant 0 : i32
    return %c0_i32, %c0_i32_0 : i32, i32
  }
  func.func @transform_4(%arg0: i32) -> (i32, i32) {
    %c0_i32 = arith.constant 0 : i32
    %c0_i32_0 = arith.constant 0 : i32
    %c0_i32_1 = arith.constant 0 : i32
    return %c0_i32, %c0_i32_0 : i32, i32
  }
  func.func @transform_5(%arg0: i32) -> (i32, i32) {
    %c0_i32 = arith.constant 0 : i32
    %c0_i32_0 = arith.constant 0 : i32
    %c0_i32_1 = arith.constant 0 : i32
    return %c0_i32, %c0_i32_0 : i32, i32
  }
  func.func @transform_6(%arg0: i32) -> (i32, i32) {
    %c0_i32 = arith.constant 0 : i32
    %c0_i32_0 = arith.constant 0 : i32
    %c0_i32_1 = arith.constant 0 : i32
    return %c0_i32, %c0_i32_0 : i32, i32
  }
  func.func @transform_7(%arg0: i32) -> (i32, i32) {
    %c0_i32 = arith.constant 0 : i32
    %c0_i32_0 = arith.constant 0 : i32
    %c0_i32_1 = arith.constant 0 : i32
    return %c0_i32, %c0_i32_0 : i32, i32
  }
  func.func @transform_8(%arg0: i32) -> (i32, i32) {
    %c0_i32 = arith.constant 0 : i32
    %c0_i32_0 = arith.constant 0 : i32
    %c0_i32_1 = arith.constant 0 : i32
    return %c0_i32, %c0_i32_0 : i32, i32
  }
  func.func @transform_9(%arg0: i32) -> (i32, i32) {
    %c0_i32 = arith.constant 0 : i32
    %c0_i32_0 = arith.constant 0 : i32
    return %arg0, %c0_i32 : i32, i32
  }
}

</mosaic_0001>

<llo_original>
// kernel: autoencoder_forward.1
$region0: #{autoencoder_forward.1}
  #allocation0 [shape = 'u32[]', space=smem, size = 0x4, offset = 0x4, fixed_abs, tag = 'smem constant byte address 0x4 - core index']
  #allocation1 [shape = 'u32[144,128]{1,0:T(1,128)}', space=vmem, size = 0x12000, scoped, tag = 'internal scratch']
  %s0 = inlined_call_operand.vmem [shape: bf16[128,128], index: 0, kind: input, shape index: {}]
  %s1 = inlined_call_operand.hbm [shape: bf16[128,1024], index: 1, kind: input, shape index: {}]
  %s2 = inlined_call_operand.vmem [shape: f32[1,1024], index: 2, kind: input, shape index: {}]
  %s3 = inlined_call_operand.hbm [shape: bf16[1024,512], index: 3, kind: input, shape index: {}]
  %s4 = inlined_call_operand.vmem [shape: f32[1,512], index: 4, kind: input, shape index: {}]
  %s5 = inlined_call_operand.hbm [shape: bf16[512,1024], index: 5, kind: input, shape index: {}]
  %s6 = inlined_call_operand.vmem [shape: f32[1,1024], index: 6, kind: input, shape index: {}]
  %s7 = inlined_call_operand.hbm [shape: bf16[1024,128], index: 7, kind: input, shape index: {}]
  %s8 = inlined_call_operand.vmem [shape: f32[1,128], index: 8, kind: input, shape index: {}]
  %s9 = inlined_call_operand.vmem [shape: bf16[128,128], index: 9, kind: output, shape index: {}]
  %s10 = sld [smem:[#allocation0]]
  $region62: #{autoencoder_forward.1} parent=0
    _
  %s12 = ssub.s32 1, %s10
  %s13 = scalar_select 0, %s12, %s10
  $region1: #{autoencoder_forward.1} parent=0
    #allocation2 [shape = 'u8[262144]{0}', space=vmem, size = 0x40000, scoped, tag = 'input window, operand 1, single buffered']
    #allocation3 [shape = 's32[1]{0}', space=sflag, size = 0x4, scoped, tag = 'scoped memory for autoencoder_forward.1']
    #allocation4 [shape = 'u8[1048576]{0}', space=vmem, size = 0x100000, scoped, tag = 'input window, operand 3, single buffered']
    #allocation5 [shape = 's32[1]{0}', space=sflag, size = 0x4, scoped, tag = 'scoped memory for autoencoder_forward.1']
    #allocation6 [shape = 'u8[1048576]{0}', space=vmem, size = 0x100000, scoped, tag = 'input window, operand 5, single buffered']
    #allocation7 [shape = 'u8[262144]{0}', space=vmem, size = 0x40000, scoped, tag = 'input window, operand 7, single buffered']
    #allocation8 [shape = 's32[1]{0}', space=sflag, size = 0x4, scoped, tag = 'scoped memory for autoencoder_forward.1']
    %14 = vsyncpa [#allocation3], 0
    %15 = vsyncpa [#allocation5], 0
    %16 = vsyncpa [#allocation8], 0
    // Predicated region
    $region2: #{autoencoder_forward.1} parent=1 // pred_check
      _
    $region3: #{autoencoder_forward.1} parent=1 // pred_check_branch
      %18 = sbr.rel (0) target = $region5
    $region4: #{autoencoder_forward.1} parent=1 // pred_region
      _
    $region5: #{autoencoder_forward.1} parent=1 // pred_fallthru
      _
    // Predicated region
    $region6: #{autoencoder_forward.1} parent=1 // pred_check
      _
    $region7: #{autoencoder_forward.1} parent=1 // pred_check_branch
      %20 = sbr.rel (0) target = $region9
    $region8: #{autoencoder_forward.1} parent=1 // pred_region
      %s22 = ssub.s32 8192, 8192
      %23 = vsyncadd [#allocation3], %s22
      %s24 = sshll.u32 [#allocation2], 4
      %s25 = int_to_ptr.vmem [resolvable:$true] %s24
      %30 = dma.hbm_to_vmem [thread:$0]  %s1, 8192, %s25, [#allocation3], 512, 512, 32
    $region9: #{autoencoder_forward.1} parent=1 // pred_fallthru
      _
    // Predicated region
    $region10: #{autoencoder_forward.1} parent=1 // pred_check
      _
    $region11: #{autoencoder_forward.1} parent=1 // pred_check_branch
      %32 = sbr.rel (0) target = $region13
    $region12: #{autoencoder_forward.1} parent=1 // pred_region
      _
    $region13: #{autoencoder_forward.1} parent=1 // pred_fallthru
      _
    // Predicated region
    $region14: #{autoencoder_forward.1} parent=1 // pred_check
      _
    $region15: #{autoencoder_forward.1} parent=1 // pred_check_branch
      %34 = sbr.rel (0) target = $region17
    $region16: #{autoencoder_forward.1} parent=1 // pred_region
      %s36 = ssub.s32 32768, 32768
      %37 = vsyncadd [#allocation5], %s36
      %s38 = sshll.u32 [#allocation4], 4
      %s39 = int_to_ptr.vmem [resolvable:$true] %s38
      %44 = dma.hbm_to_vmem [thread:$0]  %s3, 32768, %s39, [#allocation5], 256, 256, 16
    $region17: #{autoencoder_forward.1} parent=1 // pred_fallthru
      _
    // Predicated region
    $region18: #{autoencoder_forward.1} parent=1 // pred_check
      _
    $region19: #{autoencoder_forward.1} parent=1 // pred_check_branch
      %46 = sbr.rel (0) target = $region21
    $region20: #{autoencoder_forward.1} parent=1 // pred_region
      _
    $region21: #{autoencoder_forward.1} parent=1 // pred_fallthru
      _
    // Predicated region
    $region22: #{autoencoder_forward.1} parent=1 // pred_check
      _
    $region23: #{autoencoder_forward.1} parent=1 // pred_check_branch
      %48 = sbr.rel (0) target = $region25
    $region24: #{autoencoder_forward.1} parent=1 // pred_region
      %s50 = ssub.s32 32768, 32768
      %51 = vsyncadd [#allocation5], %s50
      %s52 = sshll.u32 [#allocation6], 4
      %s53 = int_to_ptr.vmem [resolvable:$true] %s52
      %58 = dma.hbm_to_vmem [thread:$0]  %s5, 32768, %s53, [#allocation5], 512, 512, 32
    $region25: #{autoencoder_forward.1} parent=1 // pred_fallthru
      _
    // Predicated region
    $region26: #{autoencoder_forward.1} parent=1 // pred_check
      _
    $region27: #{autoencoder_forward.1} parent=1 // pred_check_branch
      %60 = sbr.rel (0) target = $region29
    $region28: #{autoencoder_forward.1} parent=1 // pred_region
      _
    $region29: #{autoencoder_forward.1} parent=1 // pred_fallthru
      _
    // Predicated region
    $region30: #{autoencoder_forward.1} parent=1 // pred_check
      _
    $region31: #{autoencoder_forward.1} parent=1 // pred_check_branch
      %62 = sbr.rel (0) target = $region33
    $region32: #{autoencoder_forward.1} parent=1 // pred_region
      %s64 = ssub.s32 8192, 8192
      %65 = vsyncadd [#allocation8], %s64
      %s66 = sshll.u32 [#allocation7], 4
      %s67 = int_to_ptr.vmem [resolvable:$true] %s66
      %72 = dma.hbm_to_vmem [thread:$0]  %s7, 8192, %s67, [#allocation8], 64, 64, 4
    $region33: #{autoencoder_forward.1} parent=1 // pred_fallthru
      _
    // Predicated region
    $region34: #{autoencoder_forward.1} parent=1 // pred_check
      _
    $region35: #{autoencoder_forward.1} parent=1 // pred_check_branch
      %74 = sbr.rel (0) target = $region37
    $region36: #{autoencoder_forward.1} parent=1 // pred_region
      _
    $region37: #{autoencoder_forward.1} parent=1 // pred_fallthru
      _
    // Predicated region
    $region38: #{autoencoder_forward.1} parent=1 // pred_check
      _
    $region39: #{autoencoder_forward.1} parent=1 // pred_check_branch
      %76 = sbr.rel (0) target = $region41
    $region40: #{autoencoder_forward.1} parent=1 // pred_region
      %77 = dma.done [#allocation3], 8192
    $region41: #{autoencoder_forward.1} parent=1 // pred_fallthru
      _
    // Predicated region
    $region42: #{autoencoder_forward.1} parent=1 // pred_check
      _
    $region43: #{autoencoder_forward.1} parent=1 // pred_check_branch
      %79 = sbr.rel (0) target = $region45
    $region44: #{autoencoder_forward.1} parent=1 // pred_region
      %80 = dma.done [#allocation5], 32768
    $region45: #{autoencoder_forward.1} parent=1 // pred_fallthru
      _
    // Predicated region
    $region46: #{autoencoder_forward.1} parent=1 // pred_check
      _
    $region47: #{autoencoder_forward.1} parent=1 // pred_check_branch
      %82 = sbr.rel (0) target = $region49
    $region48: #{autoencoder_forward.1} parent=1 // pred_region
      %83 = dma.done [#allocation5], 32768
    $region49: #{autoencoder_forward.1} parent=1 // pred_fallthru
      _
    // Predicated region
    $region50: #{autoencoder_forward.1} parent=1 // pred_check
      _
    $region51: #{autoencoder_forward.1} parent=1 // pred_check_branch
      %85 = sbr.rel (0) target = $region53
    $region52: #{autoencoder_forward.1} parent=1 // pred_region
      %86 = dma.done [#allocation8], 8192
    $region53: #{autoencoder_forward.1} parent=1 // pred_fallthru
      _
    %v88 = vld [vmem:[%s0] sm:$0xf]
    %v89 = vld [vmem:[%s0 + $0x4] sm:$0xf]
    %v90 = vld [vmem:[%s0 + $0x8] sm:$0xf]
    %v91 = vld [vmem:[%s0 + $0xc] sm:$0xf]
    %v92 = vld [vmem:[%s0 + $0x10] sm:$0xf]
    %v93 = vld [vmem:[%s0 + $0x14] sm:$0xf]
    %v94 = vld [vmem:[%s0 + $0x18] sm:$0xf]
    %v95 = vld [vmem:[%s0 + $0x1c] sm:$0xf]
    %v96 = vld [vmem:[%s0 + $0x20] sm:$0xf]
    %v97 = vld [vmem:[%s0 + $0x24] sm:$0xf]
    %v98 = vld [vmem:[%s0 + $0x28] sm:$0xf]
    %v99 = vld [vmem:[%s0 + $0x2c] sm:$0xf]
    %v100 = vld [vmem:[%s0 + $0x30] sm:$0xf]
    %v101 = vld [vmem:[%s0 + $0x34] sm:$0xf]
    %v102 = vld [vmem:[%s0 + $0x38] sm:$0xf]
    %v103 = vld [vmem:[%s0 + $0x3c] sm:$0xf]
    %v104 = vld [vmem:[#allocation2] sm:$0xff]
    %v105 = vld [vmem:[#allocation2 + $0x8] sm:$0xff]
    %v106 = vld [vmem:[#allocation2 + $0x10] sm:$0xff]
    %v107 = vld [vmem:[#allocation2 + $0x18] sm:$0xff]
    %v108 = vld [vmem:[#allocation2 + $0x20] sm:$0xff]
    %v109 = vld [vmem:[#allocation2 + $0x28] sm:$0xff]
    %v110 = vld [vmem:[#allocation2 + $0x30] sm:$0xff]
    %v111 = vld [vmem:[#allocation2 + $0x38] sm:$0xff]
    %v112 = vld [vmem:[#allocation2 + $0x40] sm:$0xff]
    %v113 = vld [vmem:[#allocation2 + $0x48] sm:$0xff]
    %v114 = vld [vmem:[#allocation2 + $0x50] sm:$0xff]
    %v115 = vld [vmem:[#allocation2 + $0x58] sm:$0xff]
    %v116 = vld [vmem:[#allocation2 + $0x60] sm:$0xff]
    %v117 = vld [vmem:[#allocation2 + $0x68] sm:$0xff]
    %v118 = vld [vmem:[#allocation2 + $0x70] sm:$0xff]
    %v119 = vld [vmem:[#allocation2 + $0x78] sm:$0xff]
    %v120 = vld [vmem:[#allocation2 + $0x80] sm:$0xff]
    %v121 = vld [vmem:[#allocation2 + $0x88] sm:$0xff]
    %v122 = vld [vmem:[#allocation2 + $0x90] sm:$0xff]
    %v123 = vld [vmem:[#allocation2 + $0x98] sm:$0xff]
    %v124 = vld [vmem:[#allocation2 + $0xa0] sm:$0xff]
    %v125 = vld [vmem:[#allocation2 + $0xa8] sm:$0xff]
    %v126 = vld [vmem:[#allocation2 + $0xb0] sm:$0xff]
    %v127 = vld [vmem:[#allocation2 + $0xb8] sm:$0xff]
    %v128 = vld [vmem:[#allocation2 + $0xc0] sm:$0xff]
    %v129 = vld [vmem:[#allocation2 + $0xc8] sm:$0xff]
    %v130 = vld [vmem:[#allocation2 + $0xd0] sm:$0xff]
    %v131 = vld [vmem:[#allocation2 + $0xd8] sm:$0xff]
    %v132 = vld [vmem:[#allocation2 + $0xe0] sm:$0xff]
    %v133 = vld [vmem:[#allocation2 + $0xe8] sm:$0xff]
    %v134 = vld [vmem:[#allocation2 + $0xf0] sm:$0xff]
    %v135 = vld [vmem:[#allocation2 + $0xf8] sm:$0xff]
    %v136 = vld [vmem:[#allocation2 + $0x100] sm:$0xff]
    %v137 = vld [vmem:[#allocation2 + $0x108] sm:$0xff]
    %v138 = vld [vmem:[#allocation2 + $0x110] sm:$0xff]
    %v139 = vld [vmem:[#allocation2 + $0x118] sm:$0xff]
    %v140 = vld [vmem:[#allocation2 + $0x120] sm:$0xff]
    %v141 = vld [vmem:[#allocation2 + $0x128] sm:$0xff]
    %v142 = vld [vmem:[#allocation2 + $0x130] sm:$0xff]
    %v143 = vld [vmem:[#allocation2 + $0x138] sm:$0xff]
    %v144 = vld [vmem:[#allocation2 + $0x140] sm:$0xff]
    %v145 = vld [vmem:[#allocation2 + $0x148] sm:$0xff]
    %v146 = vld [vmem:[#allocation2 + $0x150] sm:$0xff]
    %v147 = vld [vmem:[#allocation2 + $0x158] sm:$0xff]
    %v148 = vld [vmem:[#allocation2 + $0x160] sm:$0xff]
    %v149 = vld [vmem:[#allocation2 + $0x168] sm:$0xff]
    %v150 = vld [vmem:[#allocation2 + $0x170] sm:$0xff]
    %v151 = vld [vmem:[#allocation2 + $0x178] sm:$0xff]
    %v152 = vld [vmem:[#allocation2 + $0x180] sm:$0xff]
    %v153 = vld [vmem:[#allocation2 + $0x188] sm:$0xff]
    %v154 = vld [vmem:[#allocation2 + $0x190] sm:$0xff]
    %v155 = vld [vmem:[#allocation2 + $0x198] sm:$0xff]
    %v156 = vld [vmem:[#allocation2 + $0x1a0] sm:$0xff]
    %v157 = vld [vmem:[#allocation2 + $0x1a8] sm:$0xff]
    %v158 = vld [vmem:[#allocation2 + $0x1b0] sm:$0xff]
    %v159 = vld [vmem:[#allocation2 + $0x1b8] sm:$0xff]
    %v160 = vld [vmem:[#allocation2 + $0x1c0] sm:$0xff]
    %v161 = vld [vmem:[#allocation2 + $0x1c8] sm:$0xff]
    %v162 = vld [vmem:[#allocation2 + $0x1d0] sm:$0xff]
    %v163 = vld [vmem:[#allocation2 + $0x1d8] sm:$0xff]
    %v164 = vld [vmem:[#allocation2 + $0x1e0] sm:$0xff]
    %v165 = vld [vmem:[#allocation2 + $0x1e8] sm:$0xff]
    %v166 = vld [vmem:[#allocation2 + $0x1f0] sm:$0xff]
    %v167 = vld [vmem:[#allocation2 + $0x1f8] sm:$0xff]
    %v168 = vld [vmem:[%s2] sm:$0xff]
    %v170 = vlaneseq
    %v171 = vshrl.u32 %v170, 7
    %v172 = vsub.s32 0, %v171
    %v173 = vrot.slane %v168, %v172
    %v174 = vlaneseq
    %v175 = vshrl.u32 %v174, 7
    %v176 = vsub.s32 1, %v175
    %v177 = vrot.slane %v168, %v176
    %v178 = vlaneseq
    %v179 = vshrl.u32 %v178, 7
    %v180 = vsub.s32 2, %v179
    %v181 = vrot.slane %v168, %v180
    %v182 = vlaneseq
    %v183 = vshrl.u32 %v182, 7
    %v184 = vsub.s32 3, %v183
    %v185 = vrot.slane %v168, %v184
    %v186 = vlaneseq
    %v187 = vshrl.u32 %v186, 7
    %v188 = vsub.s32 4, %v187
    %v189 = vrot.slane %v168, %v188
    %v190 = vlaneseq
    %v191 = vshrl.u32 %v190, 7
    %v192 = vsub.s32 5, %v191
    %v193 = vrot.slane %v168, %v192
    %v194 = vlaneseq
    %v195 = vshrl.u32 %v194, 7
    %v196 = vsub.s32 6, %v195
    %v197 = vrot.slane %v168, %v196
    %v198 = vlaneseq
    %v199 = vshrl.u32 %v198, 7
    %v200 = vsub.s32 7, %v199
    %v201 = vrot.slane %v168, %v200
    %v218 = vunpack.c.l.b16 %v88
    %v219 = vunpack.c.l.b16 %v89
    %v220 = vunpack.c.l.b16 %v90
    %v221 = vunpack.c.l.b16 %v91
    %v222 = vunpack.c.l.b16 %v92
    %v223 = vunpack.c.l.b16 %v93
    %v224 = vunpack.c.l.b16 %v94
    %v225 = vunpack.c.l.b16 %v95
    %v226 = vpack.c.b16 %v219, %v218
    %v227 = vpack.c.b16 %v221, %v220
    %v228 = vpack.c.b16 %v223, %v222
    %v229 = vpack.c.b16 %v225, %v224
    %v298 = vunpack.c.l.b16 %v104
    %v299 = vunpack.c.h.b16 %v104
    %v300 = vunpack.c.l.b16 %v105
    %v301 = vunpack.c.h.b16 %v105
    %v302 = vunpack.c.l.b16 %v106
    %v303 = vunpack.c.h.b16 %v106
    %v304 = vunpack.c.l.b16 %v107
    %v305 = vunpack.c.h.b16 %v107
    %v306 = vunpack.c.l.b16 %v108
    %v307 = vunpack.c.h.b16 %v108
    %v308 = vunpack.c.l.b16 %v109
    %v309 = vunpack.c.h.b16 %v109
    %v310 = vunpack.c.l.b16 %v110
    %v311 = vunpack.c.h.b16 %v110
    %v312 = vunpack.c.l.b16 %v111
    %v313 = vunpack.c.h.b16 %v111
    %v314 = vunpack.c.l.b16 %v112
    %v315 = vunpack.c.h.b16 %v112
    %v316 = vunpack.c.l.b16 %v113
    %v317 = vunpack.c.h.b16 %v113
    %v318 = vunpack.c.l.b16 %v114
    %v319 = vunpack.c.h.b16 %v114
    %v320 = vunpack.c.l.b16 %v115
    %v321 = vunpack.c.h.b16 %v115
    %v322 = vunpack.c.l.b16 %v116
    %v323 = vunpack.c.h.b16 %v116
    %v324 = vunpack.c.l.b16 %v117
    %v325 = vunpack.c.h.b16 %v117
    %v326 = vunpack.c.l.b16 %v118
    %v327 = vunpack.c.h.b16 %v118
    %v328 = vunpack.c.l.b16 %v119
    %v329 = vunpack.c.h.b16 %v119
    %v330 = vunpack.c.l.b16 %v120
    %v331 = vunpack.c.h.b16 %v120
    %v332 = vunpack.c.l.b16 %v121
    %v333 = vunpack.c.h.b16 %v121
    %v334 = vunpack.c.l.b16 %v122
    %v335 = vunpack.c.h.b16 %v122
    %v336 = vunpack.c.l.b16 %v123
    %v337 = vunpack.c.h.b16 %v123
    %v338 = vunpack.c.l.b16 %v124
    %v339 = vunpack.c.h.b16 %v124
    %v340 = vunpack.c.l.b16 %v125
    %v341 = vunpack.c.h.b16 %v125
    %v342 = vunpack.c.l.b16 %v126
    %v343 = vunpack.c.h.b16 %v126
    %v344 = vunpack.c.l.b16 %v127
    %v345 = vunpack.c.h.b16 %v127
    %v346 = vunpack.c.l.b16 %v128
    %v347 = vunpack.c.h.b16 %v128
    %v348 = vunpack.c.l.b16 %v129
    %v349 = vunpack.c.h.b16 %v129
    %v350 = vunpack.c.l.b16 %v130
    %v351 = vunpack.c.h.b16 %v130
    %v352 = vunpack.c.l.b16 %v131
    %v353 = vunpack.c.h.b16 %v131
    %v354 = vunpack.c.l.b16 %v132
    %v355 = vunpack.c.h.b16 %v132
    %v356 = vunpack.c.l.b16 %v133
    %v357 = vunpack.c.h.b16 %v133
    %v358 = vunpack.c.l.b16 %v134
    %v359 = vunpack.c.h.b16 %v134
    %v360 = vunpack.c.l.b16 %v135
    %v361 = vunpack.c.h.b16 %v135
    %v362 = vunpack.c.l.b16 %v136
    %v363 = vunpack.c.h.b16 %v136
    %v364 = vunpack.c.l.b16 %v137
    %v365 = vunpack.c.h.b16 %v137
    %v366 = vunpack.c.l.b16 %v138
    %v367 = vunpack.c.h.b16 %v138
    %v368 = vunpack.c.l.b16 %v139
    %v369 = vunpack.c.h.b16 %v139
    %v370 = vunpack.c.l.b16 %v140
    %v371 = vunpack.c.h.b16 %v140
    %v372 = vunpack.c.l.b16 %v141
    %v373 = vunpack.c.h.b16 %v141
    %v374 = vunpack.c.l.b16 %v142
    %v375 = vunpack.c.h.b16 %v142
    %v376 = vunpack.c.l.b16 %v143
    %v377 = vunpack.c.h.b16 %v143
    %v378 = vunpack.c.l.b16 %v144
    %v379 = vunpack.c.h.b16 %v144
    %v380 = vunpack.c.l.b16 %v145
    %v381 = vunpack.c.h.b16 %v145
    %v382 = vunpack.c.l.b16 %v146
    %v383 = vunpack.c.h.b16 %v146
    %v384 = vunpack.c.l.b16 %v147
    %v385 = vunpack.c.h.b16 %v147
    %v386 = vunpack.c.l.b16 %v148
    %v387 = vunpack.c.h.b16 %v148
    %v388 = vunpack.c.l.b16 %v149
    %v389 = vunpack.c.h.b16 %v149
    %v390 = vunpack.c.l.b16 %v150
    %v391 = vunpack.c.h.b16 %v150
    %v392 = vunpack.c.l.b16 %v151
    %v393 = vunpack.c.h.b16 %v151
    %v394 = vunpack.c.l.b16 %v152
    %v395 = vunpack.c.h.b16 %v152
    %v396 = vunpack.c.l.b16 %v153
    %v397 = vunpack.c.h.b16 %v153
    %v398 = vunpack.c.l.b16 %v154
    %v399 = vunpack.c.h.b16 %v154
    %v400 = vunpack.c.l.b16 %v155
    %v401 = vunpack.c.h.b16 %v155
    %v402 = vunpack.c.l.b16 %v156
    %v403 = vunpack.c.h.b16 %v156
    %v404 = vunpack.c.l.b16 %v157
    %v405 = vunpack.c.h.b16 %v157
    %v406 = vunpack.c.l.b16 %v158
    %v407 = vunpack.c.h.b16 %v158
    %v408 = vunpack.c.l.b16 %v159
    %v409 = vunpack.c.h.b16 %v159
    %v410 = vunpack.c.l.b16 %v160
    %v411 = vunpack.c.h.b16 %v160
    %v412 = vunpack.c.l.b16 %v161
    %v413 = vunpack.c.h.b16 %v161
    %v414 = vunpack.c.l.b16 %v162
    %v415 = vunpack.c.h.b16 %v162
    %v416 = vunpack.c.l.b16 %v163
    %v417 = vunpack.c.h.b16 %v163
    %v418 = vunpack.c.l.b16 %v164
    %v419 = vunpack.c.h.b16 %v164
    %v420 = vunpack.c.l.b16 %v165
    %v421 = vunpack.c.h.b16 %v165
    %v422 = vunpack.c.l.b16 %v166
    %v423 = vunpack.c.h.b16 %v166
    %v424 = vunpack.c.l.b16 %v167
    %v425 = vunpack.c.h.b16 %v167
    %v426 = vpack.c.b16 %v306, %v298
    %v427 = vpack.c.b16 %v307, %v299
    %v428 = vpack.c.b16 %v308, %v300
    %v429 = vpack.c.b16 %v309, %v301
    %v430 = vpack.c.b16 %v310, %v302
    %v431 = vpack.c.b16 %v311, %v303
    %v432 = vpack.c.b16 %v312, %v304
    %v433 = vpack.c.b16 %v313, %v305
    %v434 = vpack.c.b16 %v322, %v314
    %v435 = vpack.c.b16 %v323, %v315
    %v436 = vpack.c.b16 %v324, %v316
    %v437 = vpack.c.b16 %v325, %v317
    %v438 = vpack.c.b16 %v326, %v318
    %v439 = vpack.c.b16 %v327, %v319
    %v440 = vpack.c.b16 %v328, %v320
    %v441 = vpack.c.b16 %v329, %v321
    %v442 = vpack.c.b16 %v338, %v330
    %v443 = vpack.c.b16 %v339, %v331
    %v444 = vpack.c.b16 %v340, %v332
    %v445 = vpack.c.b16 %v341, %v333
    %v446 = vpack.c.b16 %v342, %v334
    %v447 = vpack.c.b16 %v343, %v335
    %v448 = vpack.c.b16 %v344, %v336
    %v449 = vpack.c.b16 %v345, %v337
    %v450 = vpack.c.b16 %v354, %v346
    %v451 = vpack.c.b16 %v355, %v347
    %v452 = vpack.c.b16 %v356, %v348
    %v453 = vpack.c.b16 %v357, %v349
    %v454 = vpack.c.b16 %v358, %v350
    %v455 = vpack.c.b16 %v359, %v351
    %v456 = vpack.c.b16 %v360, %v352
    %v457 = vpack.c.b16 %v361, %v353
    %v458 = vpack.c.b16 %v370, %v362
    %v459 = vpack.c.b16 %v371, %v363
    %v460 = vpack.c.b16 %v372, %v364
    %v461 = vpack.c.b16 %v373, %v365
    %v462 = vpack.c.b16 %v374, %v366
    %v463 = vpack.c.b16 %v375, %v367
    %v464 = vpack.c.b16 %v376, %v368
    %v465 = vpack.c.b16 %v377, %v369
    %v466 = vpack.c.b16 %v386, %v378
    %v467 = vpack.c.b16 %v387, %v379
    %v468 = vpack.c.b16 %v388, %v380
    %v469 = vpack.c.b16 %v389, %v381
    %v470 = vpack.c.b16 %v390, %v382
    %v471 = vpack.c.b16 %v391, %v383
    %v472 = vpack.c.b16 %v392, %v384
    %v473 = vpack.c.b16 %v393, %v385
    %v474 = vpack.c.b16 %v402, %v394
    %v475 = vpack.c.b16 %v403, %v395
    %v476 = vpack.c.b16 %v404, %v396
    %v477 = vpack.c.b16 %v405, %v397
    %v478 = vpack.c.b16 %v406, %v398
    %v479 = vpack.c.b16 %v407, %v399
    %v480 = vpack.c.b16 %v408, %v400
    %v481 = vpack.c.b16 %v409, %v401
    %v482 = vpack.c.b16 %v418, %v410
    %v483 = vpack.c.b16 %v419, %v411
    %v484 = vpack.c.b16 %v420, %v412
    %v485 = vpack.c.b16 %v421, %v413
    %v486 = vpack.c.b16 %v422, %v414
    %v487 = vpack.c.b16 %v423, %v415
    %v488 = vpack.c.b16 %v424, %v416
    %v489 = vpack.c.b16 %v425, %v417
    %554 = vmatprep.subr.bf16.mxu0 %v427
    %555 = vmatpush1.bf16.msra.mxu0 %v426
    %556 = vmatprep.subr.bf16.mxu0 %v435
    %557 = vmatpush1.bf16.msra.mxu0 %v434
    %558 = vmatprep.subr.bf16.mxu0 %v443
    %559 = vmatpush1.bf16.msra.mxu0 %v442
    %560 = vmatprep.subr.bf16.mxu0 %v451
    %561 = vmatpush1.bf16.msra.mxu0 %v450
    %562 = vmatprep.subr.bf16.mxu0 %v459
    %563 = vmatpush1.bf16.msra.mxu0 %v458
    %564 = vmatprep.subr.bf16.mxu0 %v467
    %565 = vmatpush1.bf16.msra.mxu0 %v466
    %566 = vmatprep.subr.bf16.mxu0 %v475
    %567 = vmatpush1.bf16.msra.mxu0 %v474
    %568 = vmatprep.subr.bf16.mxu0 %v483
    %569 = vmatpush1.bf16.msra.mxu0 %v482
    %570 = vmatprep.subr.bf16.mxu0 0
    %571 = vmatpush1.bf16.msra.mxu0 0
    %572 = vmatprep.subr.bf16.mxu0 0
    %573 = vmatpush1.bf16.msra.mxu0 0
    %574 = vmatprep.subr.bf16.mxu0 0
    %575 = vmatpush1.bf16.msra.mxu0 0
    %576 = vmatprep.subr.bf16.mxu0 0
    %577 = vmatpush1.bf16.msra.mxu0 0
    %578 = vmatprep.subr.bf16.mxu0 0
    %579 = vmatpush1.bf16.msra.mxu0 0
    %580 = vmatprep.subr.bf16.mxu0 0
    %581 = vmatpush1.bf16.msra.mxu0 0
    %582 = vmatprep.subr.bf16.mxu0 0
    %583 = vmatpush1.bf16.msra.mxu0 0
    %584 = vmatprep.subr.bf16.mxu0 0
    %585 = vmatpush1.bf16.msra.mxu0 0
    %586 = vmatprep.mubr.bf16.mxu0 0
    %587 = vmatmul.mubr.bf16.gmra.mrb[0].mxu0 %v226
    %v588 = vpop.f32.mrb[0].mxu0
    %v589 = vadd.f32 %v173, %v588
    %v590 = vpop.f32.mrb[0].mxu0
    %v591 = vadd.f32 %v177, %v590
    %v592 = vpop.f32.mrb[0].mxu0
    %v593 = vadd.f32 %v173, %v592
    %v594 = vpop.f32.mrb[0].mxu0
    %v595 = vadd.f32 %v177, %v594
    %596 = vmatprep.mubr.bf16.mxu0 0
    %597 = vmatmul.mubr.bf16.gmra.mrb[0].mxu0 %v227
    %v598 = vpop.f32.mrb[0].mxu0
    %v599 = vadd.f32 %v173, %v598
    %v600 = vpop.f32.mrb[0].mxu0
    %v601 = vadd.f32 %v177, %v600
    %v602 = vpop.f32.mrb[0].mxu0
    %v603 = vadd.f32 %v173, %v602
    %v604 = vpop.f32.mrb[0].mxu0
    %v605 = vadd.f32 %v177, %v604
    %606 = vmatprep.mubr.bf16.mxu0 0
    %607 = vmatmul.mubr.bf16.gmra.mrb[0].mxu0 %v228
    %v608 = vpop.f32.mrb[0].mxu0
    %v609 = vadd.f32 %v173, %v608
    %v610 = vpop.f32.mrb[0].mxu0
    %v611 = vadd.f32 %v177, %v610
    %v612 = vpop.f32.mrb[0].mxu0
    %v613 = vadd.f32 %v173, %v612
    %v614 = vpop.f32.mrb[0].mxu0
    %v615 = vadd.f32 %v177, %v614
    %616 = vmatprep.mubr.bf16.mxu0 0
    %617 = vmatmul.mubr.bf16.gmra.mrb[0].mxu0 %v229
    %v618 = vpop.f32.mrb[0].mxu0
    %v619 = vadd.f32 %v173, %v618
    %v620 = vpop.f32.mrb[0].mxu0
    %v621 = vadd.f32 %v177, %v620
    %v622 = vpop.f32.mrb[0].mxu0
    %v623 = vadd.f32 %v173, %v622
    %v624 = vpop.f32.mrb[0].mxu0
    %v625 = vadd.f32 %v177, %v624
    %626 = vdwg.mxu0
    %627 = vmatprep.subr.bf16.mxu0 %v429
    %628 = vmatpush1.bf16.msra.mxu0 %v428
    %629 = vmatprep.subr.bf16.mxu0 %v437
    %630 = vmatpush1.bf16.msra.mxu0 %v436
    %631 = vmatprep.subr.bf16.mxu0 %v445
    %632 = vmatpush1.bf16.msra.mxu0 %v444
    %633 = vmatprep.subr.bf16.mxu0 %v453
    %634 = vmatpush1.bf16.msra.mxu0 %v452
    %635 = vmatprep.subr.bf16.mxu0 %v461
    %636 = vmatpush1.bf16.msra.mxu0 %v460
    %637 = vmatprep.subr.bf16.mxu0 %v469
    %638 = vmatpush1.bf16.msra.mxu0 %v468
    %639 = vmatprep.subr.bf16.mxu0 %v477
    %640 = vmatpush1.bf16.msra.mxu0 %v476
    %641 = vmatprep.subr.bf16.mxu0 %v485
    %642 = vmatpush1.bf16.msra.mxu0 %v484
    %643 = vmatprep.subr.bf16.mxu0 0
    %644 = vmatpush1.bf16.msra.mxu0 0
    %645 = vmatprep.subr.bf16.mxu0 0
    %646 = vmatpush1.bf16.msra.mxu0 0
    %647 = vmatprep.subr.bf16.mxu0 0
    %648 = vmatpush1.bf16.msra.mxu0 0
    %649 = vmatprep.subr.bf16.mxu0 0
    %650 = vmatpush1.bf16.msra.mxu0 0
    %651 = vmatprep.subr.bf16.mxu0 0
    %652 = vmatpush1.bf16.msra.mxu0 0
    %653 = vmatprep.subr.bf16.mxu0 0
    %654 = vmatpush1.bf16.msra.mxu0 0
    %655 = vmatprep.subr.bf16.mxu0 0
    %656 = vmatpush1.bf16.msra.mxu0 0
    %657 = vmatprep.subr.bf16.mxu0 0
    %658 = vmatpush1.bf16.msra.mxu0 0
    %659 = vmatprep.mubr.bf16.mxu0 0
    %660 = vmatmul.mubr.bf16.gmra.mrb[0].mxu0 %v226
    %v661 = vpop.f32.mrb[0].mxu0
    %v662 = vadd.f32 %v181, %v661
    %v663 = vpop.f32.mrb[0].mxu0
    %v664 = vadd.f32 %v185, %v663
    %v665 = vpop.f32.mrb[0].mxu0
    %v666 = vadd.f32 %v181, %v665
    %v667 = vpop.f32.mrb[0].mxu0
    %v668 = vadd.f32 %v185, %v667
    %669 = vmatprep.mubr.bf16.mxu0 0
    %670 = vmatmul.mubr.bf16.gmra.mrb[0].mxu0 %v227
    %v671 = vpop.f32.mrb[0].mxu0
    %v672 = vadd.f32 %v181, %v671
    %v673 = vpop.f32.mrb[0].mxu0
    %v674 = vadd.f32 %v185, %v673
    %v675 = vpop.f32.mrb[0].mxu0
    %v676 = vadd.f32 %v181, %v675
    %v677 = vpop.f32.mrb[0].mxu0
    %v678 = vadd.f32 %v185, %v677
    %679 = vmatprep.mubr.bf16.mxu0 0
    %680 = vmatmul.mubr.bf16.gmra.mrb[0].mxu0 %v228
    %v681 = vpop.f32.mrb[0].mxu0
    %v682 = vadd.f32 %v181, %v681
    %v683 = vpop.f32.mrb[0].mxu0
    %v684 = vadd.f32 %v185, %v683
    %v685 = vpop.f32.mrb[0].mxu0
    %v686 = vadd.f32 %v181, %v685
    %v687 = vpop.f32.mrb[0].mxu0
    %v688 = vadd.f32 %v185, %v687
    %689 = vmatprep.mubr.bf16.mxu0 0
    %690 = vmatmul.mubr.bf16.gmra.mrb[0].mxu0 %v229
    %v691 = vpop.f32.mrb[0].mxu0
    %v692 = vadd.f32 %v181, %v691
    %v693 = vpop.f32.mrb[0].mxu0
    %v694 = vadd.f32 %v185, %v693
    %v695 = vpop.f32.mrb[0].mxu0
    %v696 = vadd.f32 %v181, %v695
    %v697 = vpop.f32.mrb[0].mxu0
    %v698 = vadd.f32 %v185, %v697
    %699 = vdwg.mxu0
    %700 = vmatprep.subr.bf16.mxu0 %v431
    %701 = vmatpush1.bf16.msra.mxu0 %v430
    %702 = vmatprep.subr.bf16.mxu0 %v439
    %703 = vmatpush1.bf16.msra.mxu0 %v438
    %704 = vmatprep.subr.bf16.mxu0 %v447
    %705 = vmatpush1.bf16.msra.mxu0 %v446
    %706 = vmatprep.subr.bf16.mxu0 %v455
    %707 = vmatpush1.bf16.msra.mxu0 %v454
    %708 = vmatprep.subr.bf16.mxu0 %v463
    %709 = vmatpush1.bf16.msra.mxu0 %v462
    %710 = vmatprep.subr.bf16.mxu0 %v471
    %711 = vmatpush1.bf16.msra.mxu0 %v470
    %712 = vmatprep.subr.bf16.mxu0 %v479
    %713 = vmatpush1.bf16.msra.mxu0 %v478
    %714 = vmatprep.subr.bf16.mxu0 %v487
    %715 = vmatpush1.bf16.msra.mxu0 %v486
    %716 = vmatprep.subr.bf16.mxu0 0
    %717 = vmatpush1.bf16.msra.mxu0 0
    %718 = vmatprep.subr.bf16.mxu0 0
    %719 = vmatpush1.bf16.msra.mxu0 0
    %720 = vmatprep.subr.bf16.mxu0 0
    %721 = vmatpush1.bf16.msra.mxu0 0
    %722 = vmatprep.subr.bf16.mxu0 0
    %723 = vmatpush1.bf16.msra.mxu0 0
    %724 = vmatprep.subr.bf16.mxu0 0
    %725 = vmatpush1.bf16.msra.mxu0 0
    %726 = vmatprep.subr.bf16.mxu0 0
    %727 = vmatpush1.bf16.msra.mxu0 0
    %728 = vmatprep.subr.bf16.mxu0 0
    %729 = vmatpush1.bf16.msra.mxu0 0
    %730 = vmatprep.subr.bf16.mxu0 0
    %731 = vmatpush1.bf16.msra.mxu0 0
    %732 = vmatprep.mubr.bf16.mxu0 0
    %733 = vmatmul.mubr.bf16.gmra.mrb[0].mxu0 %v226
    %v734 = vpop.f32.mrb[0].mxu0
    %v735 = vadd.f32 %v189, %v734
    %v736 = vpop.f32.mrb[0].mxu0
    %v737 = vadd.f32 %v193, %v736
    %v738 = vpop.f32.mrb[0].mxu0
    %v739 = vadd.f32 %v189, %v738
    %v740 = vpop.f32.mrb[0].mxu0
    %v741 = vadd.f32 %v193, %v740
    %742 = vmatprep.mubr.bf16.mxu0 0
    %743 = vmatmul.mubr.bf16.gmra.mrb[0].mxu0 %v227
    %v744 = vpop.f32.mrb[0].mxu0
    %v745 = vadd.f32 %v189, %v744
    %v746 = vpop.f32.mrb[0].mxu0
    %v747 = vadd.f32 %v193, %v746
    %v748 = vpop.f32.mrb[0].mxu0
    %v749 = vadd.f32 %v189, %v748
    %v750 = vpop.f32.mrb[0].mxu0
    %v751 = vadd.f32 %v193, %v750
    %752 = vmatprep.mubr.bf16.mxu0 0
    %753 = vmatmul.mubr.bf16.gmra.mrb[0].mxu0 %v228
    %v754 = vpop.f32.mrb[0].mxu0
    %v755 = vadd.f32 %v189, %v754
    %v756 = vpop.f32.mrb[0].mxu0
    %v757 = vadd.f32 %v193, %v756
    %v758 = vpop.f32.mrb[0].mxu0
    %v759 = vadd.f32 %v189, %v758
    %v760 = vpop.f32.mrb[0].mxu0
    %v761 = vadd.f32 %v193, %v760
    %762 = vmatprep.mubr.bf16.mxu0 0
    %763 = vmatmul.mubr.bf16.gmra.mrb[0].mxu0 %v229
    %v764 = vpop.f32.mrb[0].mxu0
    %v765 = vadd.f32 %v189, %v764
    %v766 = vpop.f32.mrb[0].mxu0
    %v767 = vadd.f32 %v193, %v766
    %v768 = vpop.f32.mrb[0].mxu0
    %v769 = vadd.f32 %v189, %v768
    %v770 = vpop.f32.mrb[0].mxu0
    %v771 = vadd.f32 %v193, %v770
    %772 = vdwg.mxu0
    %773 = vmatprep.subr.bf16.mxu0 %v433
    %774 = vmatpush1.bf16.msra.mxu0 %v432
    %775 = vmatprep.subr.bf16.mxu0 %v441
    %776 = vmatpush1.bf16.msra.mxu0 %v440
    %777 = vmatprep.subr.bf16.mxu0 %v449
    %778 = vmatpush1.bf16.msra.mxu0 %v448
    %779 = vmatprep.subr.bf16.mxu0 %v457
    %780 = vmatpush1.bf16.msra.mxu0 %v456
    %781 = vmatprep.subr.bf16.mxu0 %v465
    %782 = vmatpush1.bf16.msra.mxu0 %v464
    %783 = vmatprep.subr.bf16.mxu0 %v473
    %784 = vmatpush1.bf16.msra.mxu0 %v472
    %785 = vmatprep.subr.bf16.mxu0 %v481
    %786 = vmatpush1.bf16.msra.mxu0 %v480
    %787 = vmatprep.subr.bf16.mxu0 %v489
    %788 = vmatpush1.bf16.msra.mxu0 %v488
    %789 = vmatprep.subr.bf16.mxu0 0
    %790 = vmatpush1.bf16.msra.mxu0 0
    %791 = vmatprep.subr.bf16.mxu0 0
    %792 = vmatpush1.bf16.msra.mxu0 0
    %793 = vmatprep.subr.bf16.mxu0 0
    %794 = vmatpush1.bf16.msra.mxu0 0
    %795 = vmatprep.subr.bf16.mxu0 0
    %796 = vmatpush1.bf16.msra.mxu0 0
    %797 = vmatprep.subr.bf16.mxu0 0
    %798 = vmatpush1.bf16.msra.mxu0 0
    %799 = vmatprep.subr.bf16.mxu0 0
    %800 = vmatpush1.bf16.msra.mxu0 0
    %801 = vmatprep.subr.bf16.mxu0 0
    %802 = vmatpush1.bf16.msra.mxu0 0
    %803 = vmatprep.subr.bf16.mxu0 0
    %804 = vmatpush1.bf16.msra.mxu0 0
    %805 = vmatprep.mubr.bf16.mxu0 0
    %806 = vmatmul.mubr.bf16.gmra.mrb[0].mxu0 %v226
    %v807 = vpop.f32.mrb[0].mxu0
    %v808 = vadd.f32 %v197, %v807
    %v809 = vpop.f32.mrb[0].mxu0
    %v810 = vadd.f32 %v201, %v809
    %v811 = vpop.f32.mrb[0].mxu0
    %v812 = vadd.f32 %v197, %v811
    %v813 = vpop.f32.mrb[0].mxu0
    %v814 = vadd.f32 %v201, %v813
    %815 = vmatprep.mubr.bf16.mxu0 0
    %816 = vmatmul.mubr.bf16.gmra.mrb[0].mxu0 %v227
    %v817 = vpop.f32.mrb[0].mxu0
    %v818 = vadd.f32 %v197, %v817
    %v819 = vpop.f32.mrb[0].mxu0
    %v820 = vadd.f32 %v201, %v819
    %v821 = vpop.f32.mrb[0].mxu0
    %v822 = vadd.f32 %v197, %v821
    %v823 = vpop.f32.mrb[0].mxu0
    %v824 = vadd.f32 %v201, %v823
    %825 = vmatprep.mubr.bf16.mxu0 0
    %826 = vmatmul.mubr.bf16.gmra.mrb[0].mxu0 %v228
    %v827 = vpop.f32.mrb[0].mxu0
    %v828 = vadd.f32 %v197, %v827
    %v829 = vpop.f32.mrb[0].mxu0
    %v830 = vadd.f32 %v201, %v829
    %v831 = vpop.f32.mrb[0].mxu0
    %v832 = vadd.f32 %v197, %v831
    %v833 = vpop.f32.mrb[0].mxu0
    %v834 = vadd.f32 %v201, %v833
    %835 = vmatprep.mubr.bf16.mxu0 0
    %836 = vmatmul.mubr.bf16.gmra.mrb[0].mxu0 %v229
    %v837 = vpop.f32.mrb[0].mxu0
    %v838 = vadd.f32 %v197, %v837
    %v839 = vpop.f32.mrb[0].mxu0
    %v840 = vadd.f32 %v201, %v839
    %v841 = vpop.f32.mrb[0].mxu0
    %v842 = vadd.f32 %v197, %v841
    %v843 = vpop.f32.mrb[0].mxu0
    %v844 = vadd.f32 %v201, %v843
    %845 = vdwg.mxu0
    %v846 = vmax.f32 %v589, 0.0
    %v847 = vmax.f32 %v591, 0.0
    %v848 = vmax.f32 %v662, 0.0
    %v849 = vmax.f32 %v664, 0.0
    %v850 = vmax.f32 %v735, 0.0
    %v851 = vmax.f32 %v737, 0.0
    %v852 = vmax.f32 %v808, 0.0
    %v853 = vmax.f32 %v810, 0.0
    %v854 = vmax.f32 %v593, 0.0
    %v855 = vmax.f32 %v595, 0.0
    %v856 = vmax.f32 %v666, 0.0
    %v857 = vmax.f32 %v668, 0.0
    %v858 = vmax.f32 %v739, 0.0
    %v859 = vmax.f32 %v741, 0.0
    %v860 = vmax.f32 %v812, 0.0
    %v861 = vmax.f32 %v814, 0.0
    %v862 = vmax.f32 %v599, 0.0
    %v863 = vmax.f32 %v601, 0.0
    %v864 = vmax.f32 %v672, 0.0
    %v865 = vmax.f32 %v674, 0.0
    %v866 = vmax.f32 %v745, 0.0
    %v867 = vmax.f32 %v747, 0.0
    %v868 = vmax.f32 %v818, 0.0
    %v869 = vmax.f32 %v820, 0.0
    %v870 = vmax.f32 %v603, 0.0
    %v871 = vmax.f32 %v605, 0.0
    %v872 = vmax.f32 %v676, 0.0
    %v873 = vmax.f32 %v678, 0.0
    %v874 = vmax.f32 %v749, 0.0
    %v875 = vmax.f32 %v751, 0.0
    %v876 = vmax.f32 %v822, 0.0
    %v877 = vmax.f32 %v824, 0.0
    %v878 = vmax.f32 %v609, 0.0
    %v879 = vmax.f32 %v611, 0.0
    %v880 = vmax.f32 %v682, 0.0
    %v881 = vmax.f32 %v684, 0.0
    %v882 = vmax.f32 %v755, 0.0
    %v883 = vmax.f32 %v757, 0.0
    %v884 = vmax.f32 %v828, 0.0
    %v885 = vmax.f32 %v830, 0.0
    %v886 = vmax.f32 %v613, 0.0
    %v887 = vmax.f32 %v615, 0.0
    %v888 = vmax.f32 %v686, 0.0
    %v889 = vmax.f32 %v688, 0.0
    %v890 = vmax.f32 %v759, 0.0
    %v891 = vmax.f32 %v761, 0.0
    %v892 = vmax.f32 %v832, 0.0
    %v893 = vmax.f32 %v834, 0.0
    %v894 = vmax.f32 %v619, 0.0
    %v895 = vmax.f32 %v621, 0.0
    %v896 = vmax.f32 %v692, 0.0
    %v897 = vmax.f32 %v694, 0.0
    %v898 = vmax.f32 %v765, 0.0
    %v899 = vmax.f32 %v767, 0.0
    %v900 = vmax.f32 %v838, 0.0
    %v901 = vmax.f32 %v840, 0.0
    %v902 = vmax.f32 %v623, 0.0
    %v903 = vmax.f32 %v625, 0.0
    %v904 = vmax.f32 %v696, 0.0
    %v905 = vmax.f32 %v698, 0.0
    %v906 = vmax.f32 %v769, 0.0
    %v907 = vmax.f32 %v771, 0.0
    %v908 = vmax.f32 %v842, 0.0
    %v909 = vmax.f32 %v844, 0.0
    %v910 = vpack.c.bf16 %v854, %v846
    %v911 = vpack.c.bf16 %v855, %v847
    %v912 = vpack.c.bf16 %v856, %v848
    %v913 = vpack.c.bf16 %v857, %v849
    %v914 = vpack.c.bf16 %v858, %v850
    %v915 = vpack.c.bf16 %v859, %v851
    %v916 = vpack.c.bf16 %v860, %v852
    %v917 = vpack.c.bf16 %v861, %v853
    %v918 = vpack.c.bf16 %v870, %v862
    %v919 = vpack.c.bf16 %v871, %v863
    %v920 = vpack.c.bf16 %v872, %v864
    %v921 = vpack.c.bf16 %v873, %v865
    %v922 = vpack.c.bf16 %v874, %v866
    %v923 = vpack.c.bf16 %v875, %v867
    %v924 = vpack.c.bf16 %v876, %v868
    %v925 = vpack.c.bf16 %v877, %v869
    %v926 = vpack.c.bf16 %v886, %v878
    %v927 = vpack.c.bf16 %v887, %v879
    %v928 = vpack.c.bf16 %v888, %v880
    %v929 = vpack.c.bf16 %v889, %v881
    %v930 = vpack.c.bf16 %v890, %v882
    %v931 = vpack.c.bf16 %v891, %v883
    %v932 = vpack.c.bf16 %v892, %v884
    %v933 = vpack.c.bf16 %v893, %v885
    %v934 = vpack.c.bf16 %v902, %v894
    %v935 = vpack.c.bf16 %v903, %v895
    %v936 = vpack.c.bf16 %v904, %v896
    %v937 = vpack.c.bf16 %v905, %v897
    %v938 = vpack.c.bf16 %v906, %v898
    %v939 = vpack.c.bf16 %v907, %v899
    %v940 = vpack.c.bf16 %v908, %v900
    %v941 = vpack.c.bf16 %v909, %v901
    %v950 = vunpack.c.l.b16 %v96
    %v951 = vunpack.c.l.b16 %v97
    %v952 = vunpack.c.l.b16 %v98
    %v953 = vunpack.c.l.b16 %v99
    %v954 = vunpack.c.l.b16 %v100
    %v955 = vunpack.c.l.b16 %v101
    %v956 = vunpack.c.l.b16 %v102
    %v957 = vunpack.c.l.b16 %v103
    %v958 = vpack.c.b16 %v951, %v950
    %v959 = vpack.c.b16 %v953, %v952
    %v960 = vpack.c.b16 %v955, %v954
    %v961 = vpack.c.b16 %v957, %v956
    %966 = vmatprep.subr.bf16.mxu0 %v427
    %967 = vmatpush1.bf16.msra.mxu0 %v426
    %968 = vmatprep.subr.bf16.mxu0 %v435
    %969 = vmatpush1.bf16.msra.mxu0 %v434
    %970 = vmatprep.subr.bf16.mxu0 %v443
    %971 = vmatpush1.bf16.msra.mxu0 %v442
    %972 = vmatprep.subr.bf16.mxu0 %v451
    %973 = vmatpush1.bf16.msra.mxu0 %v450
    %974 = vmatprep.subr.bf16.mxu0 %v459
    %975 = vmatpush1.bf16.msra.mxu0 %v458
    %976 = vmatprep.subr.bf16.mxu0 %v467
    %977 = vmatpush1.bf16.msra.mxu0 %v466
    %978 = vmatprep.subr.bf16.mxu0 %v475
    %979 = vmatpush1.bf16.msra.mxu0 %v474
    %980 = vmatprep.subr.bf16.mxu0 %v483
    %981 = vmatpush1.bf16.msra.mxu0 %v482
    %982 = vmatprep.subr.bf16.mxu0 0
    %983 = vmatpush1.bf16.msra.mxu0 0
    %984 = vmatprep.subr.bf16.mxu0 0
    %985 = vmatpush1.bf16.msra.mxu0 0
    %986 = vmatprep.subr.bf16.mxu0 0
    %987 = vmatpush1.bf16.msra.mxu0 0
    %988 = vmatprep.subr.bf16.mxu0 0
    %989 = vmatpush1.bf16.msra.mxu0 0
    %990 = vmatprep.subr.bf16.mxu0 0
    %991 = vmatpush1.bf16.msra.mxu0 0
    %992 = vmatprep.subr.bf16.mxu0 0
    %993 = vmatpush1.bf16.msra.mxu0 0
    %994 = vmatprep.subr.bf16.mxu0 0
    %995 = vmatpush1.bf16.msra.mxu0 0
    %996 = vmatprep.subr.bf16.mxu0 0
    %997 = vmatpush1.bf16.msra.mxu0 0
    %998 = vmatprep.mubr.bf16.mxu0 0
    %999 = vmatmul.mubr.bf16.gmra.mrb[0].mxu0 %v958
    %v1000 = vpop.f32.mrb[0].mxu0
    %v1001 = vadd.f32 %v173, %v1000
    %v1002 = vpop.f32.mrb[0].mxu0
    %v1003 = vadd.f32 %v177, %v1002
    %v1004 = vpop.f32.mrb[0].mxu0
    %v1005 = vadd.f32 %v173, %v1004
    %v1006 = vpop.f32.mrb[0].mxu0
    %v1007 = vadd.f32 %v177, %v1006
    %1008 = vmatprep.mubr.bf16.mxu0 0
    %1009 = vmatmul.mubr.bf16.gmra.mrb[0].mxu0 %v959
    %v1010 = vpop.f32.mrb[0].mxu0
    %v1011 = vadd.f32 %v173, %v1010
    %v1012 = vpop.f32.mrb[0].mxu0
    %v1013 = vadd.f32 %v177, %v1012
    %v1014 = vpop.f32.mrb[0].mxu0
    %v1015 = vadd.f32 %v173, %v1014
    %v1016 = vpop.f32.mrb[0].mxu0
    %v1017 = vadd.f32 %v177, %v1016
    %1018 = vmatprep.mubr.bf16.mxu0 0
    %1019 = vmatmul.mubr.bf16.gmra.mrb[0].mxu0 %v960
    %v1020 = vpop.f32.mrb[0].mxu0
    %v1021 = vadd.f32 %v173, %v1020
    %v1022 = vpop.f32.mrb[0].mxu0
    %v1023 = vadd.f32 %v177, %v1022
    %v1024 = vpop.f32.mrb[0].mxu0
    %v1025 = vadd.f32 %v173, %v1024
    %v1026 = vpop.f32.mrb[0].mxu0
    %v1027 = vadd.f32 %v177, %v1026
    %1028 = vmatprep.mubr.bf16.mxu0 0
    %1029 = vmatmul.mubr.bf16.gmra.mrb[0].mxu0 %v961
    %v1030 = vpop.f32.mrb[0].mxu0
    %v1031 = vadd.f32 %v173, %v1030
    %v1032 = vpop.f32.mrb[0].mxu0
    %v1033 = vadd.f32 %v177, %v1032
    %v1034 = vpop.f32.mrb[0].mxu0
    %v1035 = vadd.f32 %v173, %v1034
    %v1036 = vpop.f32.mrb[0].mxu0
    %v1037 = vadd.f32 %v177, %v1036
    %1038 = vdwg.mxu0
    %1039 = vmatprep.subr.bf16.mxu0 %v429
    %1040 = vmatpush1.bf16.msra.mxu0 %v428
    %1041 = vmatprep.subr.bf16.mxu0 %v437
    %1042 = vmatpush1.bf16.msra.mxu0 %v436
    %1043 = vmatprep.subr.bf16.mxu0 %v445
    %1044 = vmatpush1.bf16.msra.mxu0 %v444
    %1045 = vmatprep.subr.bf16.mxu0 %v453
    %1046 = vmatpush1.bf16.msra.mxu0 %v452
    %1047 = vmatprep.subr.bf16.mxu0 %v461
    %1048 = vmatpush1.bf16.msra.mxu0 %v460
    %1049 = vmatprep.subr.bf16.mxu0 %v469
    %1050 = vmatpush1.bf16.msra.mxu0 %v468
    %1051 = vmatprep.subr.bf16.mxu0 %v477
    %1052 = vmatpush1.bf16.msra.mxu0 %v476
    %1053 = vmatprep.subr.bf16.mxu0 %v485
    %1054 = vmatpush1.bf16.msra.mxu0 %v484
    %1055 = vmatprep.subr.bf16.mxu0 0
    %1056 = vmatpush1.bf16.msra.mxu0 0
    %1057 = vmatprep.subr.bf16.mxu0 0
    %1058 = vmatpush1.bf16.msra.mxu0 0
    %1059 = vmatprep.subr.bf16.mxu0 0
    %1060 = vmatpush1.bf16.msra.mxu0 0
    %1061 = vmatprep.subr.bf16.mxu0 0
    %1062 = vmatpush1.bf16.msra.mxu0 0
    %1063 = vmatprep.subr.bf16.mxu0 0
    %1064 = vmatpush1.bf16.msra.mxu0 0
    %1065 = vmatprep.subr.bf16.mxu0 0
    %1066 = vmatpush1.bf16.msra.mxu0 0
    %1067 = vmatprep.subr.bf16.mxu0 0
    %1068 = vmatpush1.bf16.msra.mxu0 0
    %1069 = vmatprep.subr.bf16.mxu0 0
    %1070 = vmatpush1.bf16.msra.mxu0 0
    %1071 = vmatprep.mubr.bf16.mxu0 0
    %1072 = vmatmul.mubr.bf16.gmra.mrb[0].mxu0 %v958
    %v1073 = vpop.f32.mrb[0].mxu0
    %v1074 = vadd.f32 %v181, %v1073
    %v1075 = vpop.f32.mrb[0].mxu0
    %v1076 = vadd.f32 %v185, %v1075
    %v1077 = vpop.f32.mrb[0].mxu0
    %v1078 = vadd.f32 %v181, %v1077
    %v1079 = vpop.f32.mrb[0].mxu0
    %v1080 = vadd.f32 %v185, %v1079
    %1081 = vmatprep.mubr.bf16.mxu0 0
    %1082 = vmatmul.mubr.bf16.gmra.mrb[0].mxu0 %v959
    %v1083 = vpop.f32.mrb[0].mxu0
    %v1084 = vadd.f32 %v181, %v1083
    %v1085 = vpop.f32.mrb[0].mxu0
    %v1086 = vadd.f32 %v185, %v1085
    %v1087 = vpop.f32.mrb[0].mxu0
    %v1088 = vadd.f32 %v181, %v1087
    %v1089 = vpop.f32.mrb[0].mxu0
    %v1090 = vadd.f32 %v185, %v1089
    %1091 = vmatprep.mubr.bf16.mxu0 0
    %1092 = vmatmul.mubr.bf16.gmra.mrb[0].mxu0 %v960
    %v1093 = vpop.f32.mrb[0].mxu0
    %v1094 = vadd.f32 %v181, %v1093
    %v1095 = vpop.f32.mrb[0].mxu0
    %v1096 = vadd.f32 %v185, %v1095
    %v1097 = vpop.f32.mrb[0].mxu0
    %v1098 = vadd.f32 %v181, %v1097
    %v1099 = vpop.f32.mrb[0].mxu0
    %v1100 = vadd.f32 %v185, %v1099
    %1101 = vmatprep.mubr.bf16.mxu0 0
    %1102 = vmatmul.mubr.bf16.gmra.mrb[0].mxu0 %v961
    %v1103 = vpop.f32.mrb[0].mxu0
    %v1104 = vadd.f32 %v181, %v1103
    %v1105 = vpop.f32.mrb[0].mxu0
    %v1106 = vadd.f32 %v185, %v1105
    %v1107 = vpop.f32.mrb[0].mxu0
    %v1108 = vadd.f32 %v181, %v1107
    %v1109 = vpop.f32.mrb[0].mxu0
    %v1110 = vadd.f32 %v185, %v1109
    %1111 = vdwg.mxu0
    %1112 = vmatprep.subr.bf16.mxu0 %v431
    %1113 = vmatpush1.bf16.msra.mxu0 %v430
    %1114 = vmatprep.subr.bf16.mxu0 %v439
    %1115 = vmatpush1.bf16.msra.mxu0 %v438
    %1116 = vmatprep.subr.bf16.mxu0 %v447
    %1117 = vmatpush1.bf16.msra.mxu0 %v446
    %1118 = vmatprep.subr.bf16.mxu0 %v455
    %1119 = vmatpush1.bf16.msra.mxu0 %v454
    %1120 = vmatprep.subr.bf16.mxu0 %v463
    %1121 = vmatpush1.bf16.msra.mxu0 %v462
    %1122 = vmatprep.subr.bf16.mxu0 %v471
    %1123 = vmatpush1.bf16.msra.mxu0 %v470
    %1124 = vmatprep.subr.bf16.mxu0 %v479
    %1125 = vmatpush1.bf16.msra.mxu0 %v478
    %1126 = vmatprep.subr.bf16.mxu0 %v487
    %1127 = vmatpush1.bf16.msra.mxu0 %v486
    %1128 = vmatprep.subr.bf16.mxu0 0
    %1129 = vmatpush1.bf16.msra.mxu0 0
    %1130 = vmatprep.subr.bf16.mxu0 0
    %1131 = vmatpush1.bf16.msra.mxu0 0
    %1132 = vmatprep.subr.bf16.mxu0 0
    %1133 = vmatpush1.bf16.msra.mxu0 0
    %1134 = vmatprep.subr.bf16.mxu0 0
    %1135 = vmatpush1.bf16.msra.mxu0 0
    %1136 = vmatprep.subr.bf16.mxu0 0
    %1137 = vmatpush1.bf16.msra.mxu0 0
    %1138 = vmatprep.subr.bf16.mxu0 0
    %1139 = vmatpush1.bf16.msra.mxu0 0
    %1140 = vmatprep.subr.bf16.mxu0 0
    %1141 = vmatpush1.bf16.msra.mxu0 0
    %1142 = vmatprep.subr.bf16.mxu0 0
    %1143 = vmatpush1.bf16.msra.mxu0 0
    %1144 = vmatprep.mubr.bf16.mxu0 0
    %1145 = vmatmul.mubr.bf16.gmra.mrb[0].mxu0 %v958
    %v1146 = vpop.f32.mrb[0].mxu0
    %v1147 = vadd.f32 %v189, %v1146
    %v1148 = vpop.f32.mrb[0].mxu0
    %v1149 = vadd.f32 %v193, %v1148
    %v1150 = vpop.f32.mrb[0].mxu0
    %v1151 = vadd.f32 %v189, %v1150
    %v1152 = vpop.f32.mrb[0].mxu0
    %v1153 = vadd.f32 %v193, %v1152
    %1154 = vmatprep.mubr.bf16.mxu0 0
    %1155 = vmatmul.mubr.bf16.gmra.mrb[0].mxu0 %v959
    %v1156 = vpop.f32.mrb[0].mxu0
    %v1157 = vadd.f32 %v189, %v1156
    %v1158 = vpop.f32.mrb[0].mxu0
    %v1159 = vadd.f32 %v193, %v1158
    %v1160 = vpop.f32.mrb[0].mxu0
    %v1161 = vadd.f32 %v189, %v1160
    %v1162 = vpop.f32.mrb[0].mxu0
    %v1163 = vadd.f32 %v193, %v1162
    %1164 = vmatprep.mubr.bf16.mxu0 0
    %1165 = vmatmul.mubr.bf16.gmra.mrb[0].mxu0 %v960
    %v1166 = vpop.f32.mrb[0].mxu0
    %v1167 = vadd.f32 %v189, %v1166
    %v1168 = vpop.f32.mrb[0].mxu0
    %v1169 = vadd.f32 %v193, %v1168
    %v1170 = vpop.f32.mrb[0].mxu0
    %v1171 = vadd.f32 %v189, %v1170
    %v1172 = vpop.f32.mrb[0].mxu0
    %v1173 = vadd.f32 %v193, %v1172
    %1174 = vmatprep.mubr.bf16.mxu0 0
    %1175 = vmatmul.mubr.bf16.gmra.mrb[0].mxu0 %v961
    %v1176 = vpop.f32.mrb[0].mxu0
    %v1177 = vadd.f32 %v189, %v1176
    %v1178 = vpop.f32.mrb[0].mxu0
    %v1179 = vadd.f32 %v193, %v1178
    %v1180 = vpop.f32.mrb[0].mxu0
    %v1181 = vadd.f32 %v189, %v1180
    %v1182 = vpop.f32.mrb[0].mxu0
    %v1183 = vadd.f32 %v193, %v1182
    %1184 = vdwg.mxu0
    %1185 = vmatprep.subr.bf16.mxu0 %v433
    %1186 = vmatpush1.bf16.msra.mxu0 %v432
    %1187 = vmatprep.subr.bf16.mxu0 %v441
    %1188 = vmatpush1.bf16.msra.mxu0 %v440
    %1189 = vmatprep.subr.bf16.mxu0 %v449
    %1190 = vmatpush1.bf16.msra.mxu0 %v448
    %1191 = vmatprep.subr.bf16.mxu0 %v457
    %1192 = vmatpush1.bf16.msra.mxu0 %v456
    %1193 = vmatprep.subr.bf16.mxu0 %v465
    %1194 = vmatpush1.bf16.msra.mxu0 %v464
    %1195 = vmatprep.subr.bf16.mxu0 %v473
    %1196 = vmatpush1.bf16.msra.mxu0 %v472
    %1197 = vmatprep.subr.bf16.mxu0 %v481
    %1198 = vmatpush1.bf16.msra.mxu0 %v480
    %1199 = vmatprep.subr.bf16.mxu0 %v489
    %1200 = vmatpush1.bf16.msra.mxu0 %v488
    %1201 = vmatprep.subr.bf16.mxu0 0
    %1202 = vmatpush1.bf16.msra.mxu0 0
    %1203 = vmatprep.subr.bf16.mxu0 0
    %1204 = vmatpush1.bf16.msra.mxu0 0
    %1205 = vmatprep.subr.bf16.mxu0 0
    %1206 = vmatpush1.bf16.msra.mxu0 0
    %1207 = vmatprep.subr.bf16.mxu0 0
    %1208 = vmatpush1.bf16.msra.mxu0 0
    %1209 = vmatprep.subr.bf16.mxu0 0
    %1210 = vmatpush1.bf16.msra.mxu0 0
    %1211 = vmatprep.subr.bf16.mxu0 0
    %1212 = vmatpush1.bf16.msra.mxu0 0
    %1213 = vmatprep.subr.bf16.mxu0 0
    %1214 = vmatpush1.bf16.msra.mxu0 0
    %1215 = vmatprep.subr.bf16.mxu0 0
    %1216 = vmatpush1.bf16.msra.mxu0 0
    %1217 = vmatprep.mubr.bf16.mxu0 0
    %1218 = vmatmul.mubr.bf16.gmra.mrb[0].mxu0 %v958
    %v1219 = vpop.f32.mrb[0].mxu0
    %v1220 = vadd.f32 %v197, %v1219
    %v1221 = vpop.f32.mrb[0].mxu0
    %v1222 = vadd.f32 %v201, %v1221
    %v1223 = vpop.f32.mrb[0].mxu0
    %v1224 = vadd.f32 %v197, %v1223
    %v1225 = vpop.f32.mrb[0].mxu0
    %v1226 = vadd.f32 %v201, %v1225
    %1227 = vmatprep.mubr.bf16.mxu0 0
    %1228 = vmatmul.mubr.bf16.gmra.mrb[0].mxu0 %v959
    %v1229 = vpop.f32.mrb[0].mxu0
    %v1230 = vadd.f32 %v197, %v1229
    %v1231 = vpop.f32.mrb[0].mxu0
    %v1232 = vadd.f32 %v201, %v1231
    %v1233 = vpop.f32.mrb[0].mxu0
    %v1234 = vadd.f32 %v197, %v1233
    %v1235 = vpop.f32.mrb[0].mxu0
    %v1236 = vadd.f32 %v201, %v1235
    %1237 = vmatprep.mubr.bf16.mxu0 0
    %1238 = vmatmul.mubr.bf16.gmra.mrb[0].mxu0 %v960
    %v1239 = vpop.f32.mrb[0].mxu0
    %v1240 = vadd.f32 %v197, %v1239
    %v1241 = vpop.f32.mrb[0].mxu0
    %v1242 = vadd.f32 %v201, %v1241
    %v1243 = vpop.f32.mrb[0].mxu0
    %v1244 = vadd.f32 %v197, %v1243
    %v1245 = vpop.f32.mrb[0].mxu0
    %v1246 = vadd.f32 %v201, %v1245
    %1247 = vmatprep.mubr.bf16.mxu0 0
    %1248 = vmatmul.mubr.bf16.gmra.mrb[0].mxu0 %v961
    %v1249 = vpop.f32.mrb[0].mxu0
    %v1250 = vadd.f32 %v197, %v1249
    %v1251 = vpop.f32.mrb[0].mxu0
    %v1252 = vadd.f32 %v201, %v1251
    %v1253 = vpop.f32.mrb[0].mxu0
    %v1254 = vadd.f32 %v197, %v1253
    %v1255 = vpop.f32.mrb[0].mxu0
    %v1256 = vadd.f32 %v201, %v1255
    %1257 = vdwg.mxu0
    %v1258 = vmax.f32 %v1001, 0.0
    %v1259 = vmax.f32 %v1003, 0.0
    %v1260 = vmax.f32 %v1074, 0.0
    %v1261 = vmax.f32 %v1076, 0.0
    %v1262 = vmax.f32 %v1147, 0.0
    %v1263 = vmax.f32 %v1149, 0.0
    %v1264 = vmax.f32 %v1220, 0.0
    %v1265 = vmax.f32 %v1222, 0.0
    %v1266 = vmax.f32 %v1005, 0.0
    %v1267 = vmax.f32 %v1007, 0.0
    %v1268 = vmax.f32 %v1078, 0.0
    %v1269 = vmax.f32 %v1080, 0.0
    %v1270 = vmax.f32 %v1151, 0.0
    %v1271 = vmax.f32 %v1153, 0.0
    %v1272 = vmax.f32 %v1224, 0.0
    %v1273 = vmax.f32 %v1226, 0.0
    %v1274 = vmax.f32 %v1011, 0.0
    %v1275 = vmax.f32 %v1013, 0.0
    %v1276 = vmax.f32 %v1084, 0.0
    %v1277 = vmax.f32 %v1086, 0.0
    %v1278 = vmax.f32 %v1157, 0.0
    %v1279 = vmax.f32 %v1159, 0.0
    %v1280 = vmax.f32 %v1230, 0.0
    %v1281 = vmax.f32 %v1232, 0.0
    %v1282 = vmax.f32 %v1015, 0.0
    %v1283 = vmax.f32 %v1017, 0.0
    %v1284 = vmax.f32 %v1088, 0.0
    %v1285 = vmax.f32 %v1090, 0.0
    %v1286 = vmax.f32 %v1161, 0.0
    %v1287 = vmax.f32 %v1163, 0.0
    %v1288 = vmax.f32 %v1234, 0.0
    %v1289 = vmax.f32 %v1236, 0.0
    %v1290 = vmax.f32 %v1021, 0.0
    %v1291 = vmax.f32 %v1023, 0.0
    %v1292 = vmax.f32 %v1094, 0.0
    %v1293 = vmax.f32 %v1096, 0.0
    %v1294 = vmax.f32 %v1167, 0.0
    %v1295 = vmax.f32 %v1169, 0.0
    %v1296 = vmax.f32 %v1240, 0.0
    %v1297 = vmax.f32 %v1242, 0.0
    %v1298 = vmax.f32 %v1025, 0.0
    %v1299 = vmax.f32 %v1027, 0.0
    %v1300 = vmax.f32 %v1098, 0.0
    %v1301 = vmax.f32 %v1100, 0.0
    %v1302 = vmax.f32 %v1171, 0.0
    %v1303 = vmax.f32 %v1173, 0.0
    %v1304 = vmax.f32 %v1244, 0.0
    %v1305 = vmax.f32 %v1246, 0.0
    %v1306 = vmax.f32 %v1031, 0.0
    %v1307 = vmax.f32 %v1033, 0.0
    %v1308 = vmax.f32 %v1104, 0.0
    %v1309 = vmax.f32 %v1106, 0.0
    %v1310 = vmax.f32 %v1177, 0.0
    %v1311 = vmax.f32 %v1179, 0.0
    %v1312 = vmax.f32 %v1250, 0.0
    %v1313 = vmax.f32 %v1252, 0.0
    %v1314 = vmax.f32 %v1035, 0.0
    %v1315 = vmax.f32 %v1037, 0.0
    %v1316 = vmax.f32 %v1108, 0.0
    %v1317 = vmax.f32 %v1110, 0.0
    %v1318 = vmax.f32 %v1181, 0.0
    %v1319 = vmax.f32 %v1183, 0.0
    %v1320 = vmax.f32 %v1254, 0.0
    %v1321 = vmax.f32 %v1256, 0.0
    %v1322 = vpack.c.bf16 %v1266, %v1258
    %v1323 = vpack.c.bf16 %v1267, %v1259
    %v1324 = vpack.c.bf16 %v1268, %v1260
    %v1325 = vpack.c.bf16 %v1269, %v1261
    %v1326 = vpack.c.bf16 %v1270, %v1262
    %v1327 = vpack.c.bf16 %v1271, %v1263
    %v1328 = vpack.c.bf16 %v1272, %v1264
    %v1329 = vpack.c.bf16 %v1273, %v1265
    %v1330 = vpack.c.bf16 %v1282, %v1274
    %v1331 = vpack.c.bf16 %v1283, %v1275
    %v1332 = vpack.c.bf16 %v1284, %v1276
    %v1333 = vpack.c.bf16 %v1285, %v1277
    %v1334 = vpack.c.bf16 %v1286, %v1278
    %v1335 = vpack.c.bf16 %v1287, %v1279
    %v1336 = vpack.c.bf16 %v1288, %v1280
    %v1337 = vpack.c.bf16 %v1289, %v1281
    %v1338 = vpack.c.bf16 %v1298, %v1290
    %v1339 = vpack.c.bf16 %v1299, %v1291
    %v1340 = vpack.c.bf16 %v1300, %v1292
    %v1341 = vpack.c.bf16 %v1301, %v1293
    %v1342 = vpack.c.bf16 %v1302, %v1294
    %v1343 = vpack.c.bf16 %v1303, %v1295
    %v1344 = vpack.c.bf16 %v1304, %v1296
    %v1345 = vpack.c.bf16 %v1305, %v1297
    %v1346 = vpack.c.bf16 %v1314, %v1306
    %v1347 = vpack.c.bf16 %v1315, %v1307
    %v1348 = vpack.c.bf16 %v1316, %v1308
    %v1349 = vpack.c.bf16 %v1317, %v1309
    %v1350 = vpack.c.bf16 %v1318, %v1310
    %v1351 = vpack.c.bf16 %v1319, %v1311
    %v1352 = vpack.c.bf16 %v1320, %v1312
    %v1353 = vpack.c.bf16 %v1321, %v1313
    %v1354 = vld [vmem:[#allocation4] sm:$0xff]
    %v1355 = vld [vmem:[#allocation4 + $0x8] sm:$0xff]
    %v1356 = vld [vmem:[#allocation4 + $0x10] sm:$0xff]
    %v1357 = vld [vmem:[#allocation4 + $0x18] sm:$0xff]
    %v1358 = vld [vmem:[#allocation4 + $0x20] sm:$0xff]
    %v1359 = vld [vmem:[#allocation4 + $0x28] sm:$0xff]
    %v1360 = vld [vmem:[#allocation4 + $0x30] sm:$0xff]
    %v1361 = vld [vmem:[#allocation4 + $0x38] sm:$0xff]
    %v1362 = vld [vmem:[#allocation4 + $0x40] sm:$0xff]
    %v1363 = vld [vmem:[#allocation4 + $0x48] sm:$0xff]
    %v1364 = vld [vmem:[#allocation4 + $0x50] sm:$0xff]
    %v1365 = vld [vmem:[#allocation4 + $0x58] sm:$0xff]
    %v1366 = vld [vmem:[#allocation4 + $0x60] sm:$0xff]
    %v1367 = vld [vmem:[#allocation4 + $0x68] sm:$0xff]
    %v1368 = vld [vmem:[#allocation4 + $0x70] sm:$0xff]
    %v1369 = vld [vmem:[#allocation4 + $0x78] sm:$0xff]
    %v1370 = vld [vmem:[#allocation4 + $0x80] sm:$0xff]
    %v1371 = vld [vmem:[#allocation4 + $0x88] sm:$0xff]
    %v1372 = vld [vmem:[#allocation4 + $0x90] sm:$0xff]
    %v1373 = vld [vmem:[#allocation4 + $0x98] sm:$0xff]
    %v1374 = vld [vmem:[#allocation4 + $0xa0] sm:$0xff]
    %v1375 = vld [vmem:[#allocation4 + $0xa8] sm:$0xff]
    %v1376 = vld [vmem:[#allocation4 + $0xb0] sm:$0xff]
    %v1377 = vld [vmem:[#allocation4 + $0xb8] sm:$0xff]
    %v1378 = vld [vmem:[#allocation4 + $0xc0] sm:$0xff]
    %v1379 = vld [vmem:[#allocation4 + $0xc8] sm:$0xff]
    %v1380 = vld [vmem:[#allocation4 + $0xd0] sm:$0xff]
    %v1381 = vld [vmem:[#allocation4 + $0xd8] sm:$0xff]
    %v1382 = vld [vmem:[#allocation4 + $0xe0] sm:$0xff]
    %v1383 = vld [vmem:[#allocation4 + $0xe8] sm:$0xff]
    %v1384 = vld [vmem:[#allocation4 + $0xf0] sm:$0xff]
    %v1385 = vld [vmem:[#allocation4 + $0xf8] sm:$0xff]
    %v1386 = vld [vmem:[#allocation4 + $0x100] sm:$0xff]
    %v1387 = vld [vmem:[#allocation4 + $0x108] sm:$0xff]
    %v1388 = vld [vmem:[#allocation4 + $0x110] sm:$0xff]
    %v1389 = vld [vmem:[#allocation4 + $0x118] sm:$0xff]
    %v1390 = vld [vmem:[#allocation4 + $0x120] sm:$0xff]
    %v1391 = vld [vmem:[#allocation4 + $0x128] sm:$0xff]
    %v1392 = vld [vmem:[#allocation4 + $0x130] sm:$0xff]
    %v1393 = vld [vmem:[#allocation4 + $0x138] sm:$0xff]
    %v1394 = vld [vmem:[#allocation4 + $0x140] sm:$0xff]
    %v1395 = vld [vmem:[#allocation4 + $0x148] sm:$0xff]
    %v1396 = vld [vmem:[#allocation4 + $0x150] sm:$0xff]
    %v1397 = vld [vmem:[#allocation4 + $0x158] sm:$0xff]
    %v1398 = vld [vmem:[#allocation4 + $0x160] sm:$0xff]
    %v1399 = vld [vmem:[#allocation4 + $0x168] sm:$0xff]
    %v1400 = vld [vmem:[#allocation4 + $0x170] sm:$0xff]
    %v1401 = vld [vmem:[#allocation4 + $0x178] sm:$0xff]
    %v1402 = vld [vmem:[#allocation4 + $0x180] sm:$0xff]
    %v1403 = vld [vmem:[#allocation4 + $0x188] sm:$0xff]
    %v1404 = vld [vmem:[#allocation4 + $0x190] sm:$0xff]
    %v1405 = vld [vmem:[#allocation4 + $0x198] sm:$0xff]
    %v1406 = vld [vmem:[#allocation4 + $0x1a0] sm:$0xff]
    %v1407 = vld [vmem:[#allocation4 + $0x1a8] sm:$0xff]
    %v1408 = vld [vmem:[#allocation4 + $0x1b0] sm:$0xff]
    %v1409 = vld [vmem:[#allocation4 + $0x1b8] sm:$0xff]
    %v1410 = vld [vmem:[#allocation4 + $0x1c0] sm:$0xff]
    %v1411 = vld [vmem:[#allocation4 + $0x1c8] sm:$0xff]
    %v1412 = vld [vmem:[#allocation4 + $0x1d0] sm:$0xff]
    %v1413 = vld [vmem:[#allocation4 + $0x1d8] sm:$0xff]
    %v1414 = vld [vmem:[#allocation4 + $0x1e0] sm:$0xff]
    %v1415 = vld [vmem:[#allocation4 + $0x1e8] sm:$0xff]
    %v1416 = vld [vmem:[#allocation4 + $0x1f0] sm:$0xff]
    %v1417 = vld [vmem:[#allocation4 + $0x1f8] sm:$0xff]
    %v1418 = vld [vmem:[#allocation4 + $0x200] sm:$0xff]
    %v1419 = vld [vmem:[#allocation4 + $0x208] sm:$0xff]
    %v1420 = vld [vmem:[#allocation4 + $0x210] sm:$0xff]
    %v1421 = vld [vmem:[#allocation4 + $0x218] sm:$0xff]
    %v1422 = vld [vmem:[#allocation4 + $0x220] sm:$0xff]
    %v1423 = vld [vmem:[#allocation4 + $0x228] sm:$0xff]
    %v1424 = vld [vmem:[#allocation4 + $0x230] sm:$0xff]
    %v1425 = vld [vmem:[#allocation4 + $0x238] sm:$0xff]
    %v1426 = vld [vmem:[#allocation4 + $0x240] sm:$0xff]
    %v1427 = vld [vmem:[#allocation4 + $0x248] sm:$0xff]
    %v1428 = vld [vmem:[#allocation4 + $0x250] sm:$0xff]
    %v1429 = vld [vmem:[#allocation4 + $0x258] sm:$0xff]
    %v1430 = vld [vmem:[#allocation4 + $0x260] sm:$0xff]
    %v1431 = vld [vmem:[#allocation4 + $0x268] sm:$0xff]
    %v1432 = vld [vmem:[#allocation4 + $0x270] sm:$0xff]
    %v1433 = vld [vmem:[#allocation4 + $0x278] sm:$0xff]
    %v1434 = vld [vmem:[#allocation4 + $0x280] sm:$0xff]
    %v1435 = vld [vmem:[#allocation4 + $0x288] sm:$0xff]
    %v1436 = vld [vmem:[#allocation4 + $0x290] sm:$0xff]
    %v1437 = vld [vmem:[#allocation4 + $0x298] sm:$0xff]
    %v1438 = vld [vmem:[#allocation4 + $0x2a0] sm:$0xff]
    %v1439 = vld [vmem:[#allocation4 + $0x2a8] sm:$0xff]
    %v1440 = vld [vmem:[#allocation4 + $0x2b0] sm:$0xff]
    %v1441 = vld [vmem:[#allocation4 + $0x2b8] sm:$0xff]
    %v1442 = vld [vmem:[#allocation4 + $0x2c0] sm:$0xff]
    %v1443 = vld [vmem:[#allocation4 + $0x2c8] sm:$0xff]
    %v1444 = vld [vmem:[#allocation4 + $0x2d0] sm:$0xff]
    %v1445 = vld [vmem:[#allocation4 + $0x2d8] sm:$0xff]
    %v1446 = vld [vmem:[#allocation4 + $0x2e0] sm:$0xff]
    %v1447 = vld [vmem:[#allocation4 + $0x2e8] sm:$0xff]
    %v1448 = vld [vmem:[#allocation4 + $0x2f0] sm:$0xff]
    %v1449 = vld [vmem:[#allocation4 + $0x2f8] sm:$0xff]
    %v1450 = vld [vmem:[#allocation4 + $0x300] sm:$0xff]
    %v1451 = vld [vmem:[#allocation4 + $0x308] sm:$0xff]
    %v1452 = vld [vmem:[#allocation4 + $0x310] sm:$0xff]
    %v1453 = vld [vmem:[#allocation4 + $0x318] sm:$0xff]
    %v1454 = vld [vmem:[#allocation4 + $0x320] sm:$0xff]
    %v1455 = vld [vmem:[#allocation4 + $0x328] sm:$0xff]
    %v1456 = vld [vmem:[#allocation4 + $0x330] sm:$0xff]
    %v1457 = vld [vmem:[#allocation4 + $0x338] sm:$0xff]
    %v1458 = vld [vmem:[#allocation4 + $0x340] sm:$0xff]
    %v1459 = vld [vmem:[#allocation4 + $0x348] sm:$0xff]
    %v1460 = vld [vmem:[#allocation4 + $0x350] sm:$0xff]
    %v1461 = vld [vmem:[#allocation4 + $0x358] sm:$0xff]
    %v1462 = vld [vmem:[#allocation4 + $0x360] sm:$0xff]
    %v1463 = vld [vmem:[#allocation4 + $0x368] sm:$0xff]
    %v1464 = vld [vmem:[#allocation4 + $0x370] sm:$0xff]
    %v1465 = vld [vmem:[#allocation4 + $0x378] sm:$0xff]
    %v1466 = vld [vmem:[#allocation4 + $0x380] sm:$0xff]
    %v1467 = vld [vmem:[#allocation4 + $0x388] sm:$0xff]
    %v1468 = vld [vmem:[#allocation4 + $0x390] sm:$0xff]
    %v1469 = vld [vmem:[#allocation4 + $0x398] sm:$0xff]
    %v1470 = vld [vmem:[#allocation4 + $0x3a0] sm:$0xff]
    %v1471 = vld [vmem:[#allocation4 + $0x3a8] sm:$0xff]
    %v1472 = vld [vmem:[#allocation4 + $0x3b0] sm:$0xff]
    %v1473 = vld [vmem:[#allocation4 + $0x3b8] sm:$0xff]
    %v1474 = vld [vmem:[#allocation4 + $0x3c0] sm:$0xff]
    %v1475 = vld [vmem:[#allocation4 + $0x3c8] sm:$0xff]
    %v1476 = vld [vmem:[#allocation4 + $0x3d0] sm:$0xff]
    %v1477 = vld [vmem:[#allocation4 + $0x3d8] sm:$0xff]
    %v1478 = vld [vmem:[#allocation4 + $0x3e0] sm:$0xff]
    %v1479 = vld [vmem:[#allocation4 + $0x3e8] sm:$0xff]
    %v1480 = vld [vmem:[#allocation4 + $0x3f0] sm:$0xff]
    %v1481 = vld [vmem:[#allocation4 + $0x3f8] sm:$0xff]
    %v1482 = vld [vmem:[#allocation4 + $0x400] sm:$0xff]
    %v1483 = vld [vmem:[#allocation4 + $0x408] sm:$0xff]
    %v1484 = vld [vmem:[#allocation4 + $0x410] sm:$0xff]
    %v1485 = vld [vmem:[#allocation4 + $0x418] sm:$0xff]
    %v1486 = vld [vmem:[#allocation4 + $0x420] sm:$0xff]
    %v1487 = vld [vmem:[#allocation4 + $0x428] sm:$0xff]
    %v1488 = vld [vmem:[#allocation4 + $0x430] sm:$0xff]
    %v1489 = vld [vmem:[#allocation4 + $0x438] sm:$0xff]
    %v1490 = vld [vmem:[#allocation4 + $0x440] sm:$0xff]
    %v1491 = vld [vmem:[#allocation4 + $0x448] sm:$0xff]
    %v1492 = vld [vmem:[#allocation4 + $0x450] sm:$0xff]
    %v1493 = vld [vmem:[#allocation4 + $0x458] sm:$0xff]
    %v1494 = vld [vmem:[#allocation4 + $0x460] sm:$0xff]
    %v1495 = vld [vmem:[#allocation4 + $0x468] sm:$0xff]
    %v1496 = vld [vmem:[#allocation4 + $0x470] sm:$0xff]
    %v1497 = vld [vmem:[#allocation4 + $0x478] sm:$0xff]
    %v1498 = vld [vmem:[#allocation4 + $0x480] sm:$0xff]
    %v1499 = vld [vmem:[#allocation4 + $0x488] sm:$0xff]
    %v1500 = vld [vmem:[#allocation4 + $0x490] sm:$0xff]
    %v1501 = vld [vmem:[#allocation4 + $0x498] sm:$0xff]
    %v1502 = vld [vmem:[#allocation4 + $0x4a0] sm:$0xff]
    %v1503 = vld [vmem:[#allocation4 + $0x4a8] sm:$0xff]
    %v1504 = vld [vmem:[#allocation4 + $0x4b0] sm:$0xff]
    %v1505 = vld [vmem:[#allocation4 + $0x4b8] sm:$0xff]
    %v1506 = vld [vmem:[#allocation4 + $0x4c0] sm:$0xff]
    %v1507 = vld [vmem:[#allocation4 + $0x4c8] sm:$0xff]
    %v1508 = vld [vmem:[#allocation4 + $0x4d0] sm:$0xff]
    %v1509 = vld [vmem:[#allocation4 + $0x4d8] sm:$0xff]
    %v1510 = vld [vmem:[#allocation4 + $0x4e0] sm:$0xff]
    %v1511 = vld [vmem:[#allocation4 + $0x4e8] sm:$0xff]
    %v1512 = vld [vmem:[#allocation4 + $0x4f0] sm:$0xff]
    %v1513 = vld [vmem:[#allocation4 + $0x4f8] sm:$0xff]
    %v1514 = vld [vmem:[#allocation4 + $0x500] sm:$0xff]
    %v1515 = vld [vmem:[#allocation4 + $0x508] sm:$0xff]
    %v1516 = vld [vmem:[#allocation4 + $0x510] sm:$0xff]
    %v1517 = vld [vmem:[#allocation4 + $0x518] sm:$0xff]
    %v1518 = vld [vmem:[#allocation4 + $0x520] sm:$0xff]
    %v1519 = vld [vmem:[#allocation4 + $0x528] sm:$0xff]
    %v1520 = vld [vmem:[#allocation4 + $0x530] sm:$0xff]
    %v1521 = vld [vmem:[#allocation4 + $0x538] sm:$0xff]
    %v1522 = vld [vmem:[#allocation4 + $0x540] sm:$0xff]
    %v1523 = vld [vmem:[#allocation4 + $0x548] sm:$0xff]
    %v1524 = vld [vmem:[#allocation4 + $0x550] sm:$0xff]
    %v1525 = vld [vmem:[#allocation4 + $0x558] sm:$0xff]
    %v1526 = vld [vmem:[#allocation4 + $0x560] sm:$0xff]
    %v1527 = vld [vmem:[#allocation4 + $0x568] sm:$0xff]
    %v1528 = vld [vmem:[#allocation4 + $0x570] sm:$0xff]
    %v1529 = vld [vmem:[#allocation4 + $0x578] sm:$0xff]
    %v1530 = vld [vmem:[#allocation4 + $0x580] sm:$0xff]
    %v1531 = vld [vmem:[#allocation4 + $0x588] sm:$0xff]
    %v1532 = vld [vmem:[#allocation4 + $0x590] sm:$0xff]
    %v1533 = vld [vmem:[#allocation4 + $0x598] sm:$0xff]
    %v1534 = vld [vmem:[#allocation4 + $0x5a0] sm:$0xff]
    %v1535 = vld [vmem:[#allocation4 + $0x5a8] sm:$0xff]
    %v1536 = vld [vmem:[#allocation4 + $0x5b0] sm:$0xff]
    %v1537 = vld [vmem:[#allocation4 + $0x5b8] sm:$0xff]
    %v1538 = vld [vmem:[#allocation4 + $0x5c0] sm:$0xff]
    %v1539 = vld [vmem:[#allocation4 + $0x5c8] sm:$0xff]
    %v1540 = vld [vmem:[#allocation4 + $0x5d0] sm:$0xff]
    %v1541 = vld [vmem:[#allocation4 + $0x5d8] sm:$0xff]
    %v1542 = vld [vmem:[#allocation4 + $0x5e0] sm:$0xff]
    %v1543 = vld [vmem:[#allocation4 + $0x5e8] sm:$0xff]
    %v1544 = vld [vmem:[#allocation4 + $0x5f0] sm:$0xff]
    %v1545 = vld [vmem:[#allocation4 + $0x5f8] sm:$0xff]
    %v1546 = vld [vmem:[#allocation4 + $0x600] sm:$0xff]
    %v1547 = vld [vmem:[#allocation4 + $0x608] sm:$0xff]
    %v1548 = vld [vmem:[#allocation4 + $0x610] sm:$0xff]
    %v1549 = vld [vmem:[#allocation4 + $0x618] sm:$0xff]
    %v1550 = vld [vmem:[#allocation4 + $0x620] sm:$0xff]
    %v1551 = vld [vmem:[#allocation4 + $0x628] sm:$0xff]
    %v1552 = vld [vmem:[#allocation4 + $0x630] sm:$0xff]
    %v1553 = vld [vmem:[#allocation4 + $0x638] sm:$0xff]
    %v1554 = vld [vmem:[#allocation4 + $0x640] sm:$0xff]
    %v1555 = vld [vmem:[#allocation4 + $0x648] sm:$0xff]
    %v1556 = vld [vmem:[#allocation4 + $0x650] sm:$0xff]
    %v1557 = vld [vmem:[#allocation4 + $0x658] sm:$0xff]
    %v1558 = vld [vmem:[#allocation4 + $0x660] sm:$0xff]
    %v1559 = vld [vmem:[#allocation4 + $0x668] sm:$0xff]
    %v1560 = vld [vmem:[#allocation4 + $0x670] sm:$0xff]
    %v1561 = vld [vmem:[#allocation4 + $0x678] sm:$0xff]
    %v1562 = vld [vmem:[#allocation4 + $0x680] sm:$0xff]
    %v1563 = vld [vmem:[#allocation4 + $0x688] sm:$0xff]
    %v1564 = vld [vmem:[#allocation4 + $0x690] sm:$0xff]
    %v1565 = vld [vmem:[#allocation4 + $0x698] sm:$0xff]
    %v1566 = vld [vmem:[#allocation4 + $0x6a0] sm:$0xff]
    %v1567 = vld [vmem:[#allocation4 + $0x6a8] sm:$0xff]
    %v1568 = vld [vmem:[#allocation4 + $0x6b0] sm:$0xff]
    %v1569 = vld [vmem:[#allocation4 + $0x6b8] sm:$0xff]
    %v1570 = vld [vmem:[#allocation4 + $0x6c0] sm:$0xff]
    %v1571 = vld [vmem:[#allocation4 + $0x6c8] sm:$0xff]
    %v1572 = vld [vmem:[#allocation4 + $0x6d0] sm:$0xff]
    %v1573 = vld [vmem:[#allocation4 + $0x6d8] sm:$0xff]
    %v1574 = vld [vmem:[#allocation4 + $0x6e0] sm:$0xff]
    %v1575 = vld [vmem:[#allocation4 + $0x6e8] sm:$0xff]
    %v1576 = vld [vmem:[#allocation4 + $0x6f0] sm:$0xff]
    %v1577 = vld [vmem:[#allocation4 + $0x6f8] sm:$0xff]
    %v1578 = vld [vmem:[#allocation4 + $0x700] sm:$0xff]
    %v1579 = vld [vmem:[#allocation4 + $0x708] sm:$0xff]
    %v1580 = vld [vmem:[#allocation4 + $0x710] sm:$0xff]
    %v1581 = vld [vmem:[#allocation4 + $0x718] sm:$0xff]
    %v1582 = vld [vmem:[#allocation4 + $0x720] sm:$0xff]
    %v1583 = vld [vmem:[#allocation4 + $0x728] sm:$0xff]
    %v1584 = vld [vmem:[#allocation4 + $0x730] sm:$0xff]
    %v1585 = vld [vmem:[#allocation4 + $0x738] sm:$0xff]
    %v1586 = vld [vmem:[#allocation4 + $0x740] sm:$0xff]
    %v1587 = vld [vmem:[#allocation4 + $0x748] sm:$0xff]
    %v1588 = vld [vmem:[#allocation4 + $0x750] sm:$0xff]
    %v1589 = vld [vmem:[#allocation4 + $0x758] sm:$0xff]
    %v1590 = vld [vmem:[#allocation4 + $0x760] sm:$0xff]
    %v1591 = vld [vmem:[#allocation4 + $0x768] sm:$0xff]
    %v1592 = vld [vmem:[#allocation4 + $0x770] sm:$0xff]
    %v1593 = vld [vmem:[#allocation4 + $0x778] sm:$0xff]
    %v1594 = vld [vmem:[#allocation4 + $0x780] sm:$0xff]
    %v1595 = vld [vmem:[#allocation4 + $0x788] sm:$0xff]
    %v1596 = vld [vmem:[#allocation4 + $0x790] sm:$0xff]
    %v1597 = vld [vmem:[#allocation4 + $0x798] sm:$0xff]
    %v1598 = vld [vmem:[#allocation4 + $0x7a0] sm:$0xff]
    %v1599 = vld [vmem:[#allocation4 + $0x7a8] sm:$0xff]
    %v1600 = vld [vmem:[#allocation4 + $0x7b0] sm:$0xff]
    %v1601 = vld [vmem:[#allocation4 + $0x7b8] sm:$0xff]
    %v1602 = vld [vmem:[#allocation4 + $0x7c0] sm:$0xff]
    %v1603 = vld [vmem:[#allocation4 + $0x7c8] sm:$0xff]
    %v1604 = vld [vmem:[#allocation4 + $0x7d0] sm:$0xff]
    %v1605 = vld [vmem:[#allocation4 + $0x7d8] sm:$0xff]
    %v1606 = vld [vmem:[#allocation4 + $0x7e0] sm:$0xff]
    %v1607 = vld [vmem:[#allocation4 + $0x7e8] sm:$0xff]
    %v1608 = vld [vmem:[#allocation4 + $0x7f0] sm:$0xff]
    %v1609 = vld [vmem:[#allocation4 + $0x7f8] sm:$0xff]
    %v1610 = vld [vmem:[%s4] sm:$0xf]
    %v1612 = vlaneseq
    %v1613 = vshrl.u32 %v1612, 7
    %v1614 = vsub.s32 0, %v1613
    %v1615 = vrot.slane %v1610, %v1614
    %v1616 = vlaneseq
    %v1617 = vshrl.u32 %v1616, 7
    %v1618 = vsub.s32 1, %v1617
    %v1619 = vrot.slane %v1610, %v1618
    %v1620 = vlaneseq
    %v1621 = vshrl.u32 %v1620, 7
    %v1622 = vsub.s32 2, %v1621
    %v1623 = vrot.slane %v1610, %v1622
    %v1624 = vlaneseq
    %v1625 = vshrl.u32 %v1624, 7
    %v1626 = vsub.s32 3, %v1625
    %v1627 = vrot.slane %v1610, %v1626
    %v1888 = vunpack.c.l.b16 %v1354
    %v1889 = vunpack.c.h.b16 %v1354
    %v1890 = vunpack.c.l.b16 %v1355
    %v1891 = vunpack.c.h.b16 %v1355
    %v1892 = vunpack.c.l.b16 %v1356
    %v1893 = vunpack.c.h.b16 %v1356
    %v1894 = vunpack.c.l.b16 %v1357
    %v1895 = vunpack.c.h.b16 %v1357
    %v1896 = vunpack.c.l.b16 %v1358
    %v1897 = vunpack.c.h.b16 %v1358
    %v1898 = vunpack.c.l.b16 %v1359
    %v1899 = vunpack.c.h.b16 %v1359
    %v1900 = vunpack.c.l.b16 %v1360
    %v1901 = vunpack.c.h.b16 %v1360
    %v1902 = vunpack.c.l.b16 %v1361
    %v1903 = vunpack.c.h.b16 %v1361
    %v1904 = vunpack.c.l.b16 %v1362
    %v1905 = vunpack.c.h.b16 %v1362
    %v1906 = vunpack.c.l.b16 %v1363
    %v1907 = vunpack.c.h.b16 %v1363
    %v1908 = vunpack.c.l.b16 %v1364
    %v1909 = vunpack.c.h.b16 %v1364
    %v1910 = vunpack.c.l.b16 %v1365
    %v1911 = vunpack.c.h.b16 %v1365
    %v1912 = vunpack.c.l.b16 %v1366
    %v1913 = vunpack.c.h.b16 %v1366
    %v1914 = vunpack.c.l.b16 %v1367
    %v1915 = vunpack.c.h.b16 %v1367
    %v1916 = vunpack.c.l.b16 %v1368
    %v1917 = vunpack.c.h.b16 %v1368
    %v1918 = vunpack.c.l.b16 %v1369
    %v1919 = vunpack.c.h.b16 %v1369
    %v1920 = vunpack.c.l.b16 %v1370
    %v1921 = vunpack.c.h.b16 %v1370
    %v1922 = vunpack.c.l.b16 %v1371
    %v1923 = vunpack.c.h.b16 %v1371
    %v1924 = vunpack.c.l.b16 %v1372
    %v1925 = vunpack.c.h.b16 %v1372
    %v1926 = vunpack.c.l.b16 %v1373
    %v1927 = vunpack.c.h.b16 %v1373
    %v1928 = vunpack.c.l.b16 %v1374
    %v1929 = vunpack.c.h.b16 %v1374
    %v1930 = vunpack.c.l.b16 %v1375
    %v1931 = vunpack.c.h.b16 %v1375
    %v1932 = vunpack.c.l.b16 %v1376
    %v1933 = vunpack.c.h.b16 %v1376
    %v1934 = vunpack.c.l.b16 %v1377
    %v1935 = vunpack.c.h.b16 %v1377
    %v1936 = vunpack.c.l.b16 %v1378
    %v1937 = vunpack.c.h.b16 %v1378
    %v1938 = vunpack.c.l.b16 %v1379
    %v1939 = vunpack.c.h.b16 %v1379
    %v1940 = vunpack.c.l.b16 %v1380
    %v1941 = vunpack.c.h.b16 %v1380
    %v1942 = vunpack.c.l.b16 %v1381
    %v1943 = vunpack.c.h.b16 %v1381
    %v1944 = vunpack.c.l.b16 %v1382
    %v1945 = vunpack.c.h.b16 %v1382
    %v1946 = vunpack.c.l.b16 %v1383
    %v1947 = vunpack.c.h.b16 %v1383
    %v1948 = vunpack.c.l.b16 %v1384
    %v1949 = vunpack.c.h.b16 %v1384
    %v1950 = vunpack.c.l.b16 %v1385
    %v1951 = vunpack.c.h.b16 %v1385
    %v1952 = vunpack.c.l.b16 %v1386
    %v1953 = vunpack.c.h.b16 %v1386
    %v1954 = vunpack.c.l.b16 %v1387
    %v1955 = vunpack.c.h.b16 %v1387
    %v1956 = vunpack.c.l.b16 %v1388
    %v1957 = vunpack.c.h.b16 %v1388
    %v1958 = vunpack.c.l.b16 %v1389
    %v1959 = vunpack.c.h.b16 %v1389
    %v1960 = vunpack.c.l.b16 %v1390
    %v1961 = vunpack.c.h.b16 %v1390
    %v1962 = vunpack.c.l.b16 %v1391
    %v1963 = vunpack.c.h.b16 %v1391
    %v1964 = vunpack.c.l.b16 %v1392
    %v1965 = vunpack.c.h.b16 %v1392
    %v1966 = vunpack.c.l.b16 %v1393
    %v1967 = vunpack.c.h.b16 %v1393
    %v1968 = vunpack.c.l.b16 %v1394
    %v1969 = vunpack.c.h.b16 %v1394
    %v1970 = vunpack.c.l.b16 %v1395
    %v1971 = vunpack.c.h.b16 %v1395
    %v1972 = vunpack.c.l.b16 %v1396
    %v1973 = vunpack.c.h.b16 %v1396
    %v1974 = vunpack.c.l.b16 %v1397
    %v1975 = vunpack.c.h.b16 %v1397
    %v1976 = vunpack.c.l.b16 %v1398
    %v1977 = vunpack.c.h.b16 %v1398
    %v1978 = vunpack.c.l.b16 %v1399
    %v1979 = vunpack.c.h.b16 %v1399
    %v1980 = vunpack.c.l.b16 %v1400
    %v1981 = vunpack.c.h.b16 %v1400
    %v1982 = vunpack.c.l.b16 %v1401
    %v1983 = vunpack.c.h.b16 %v1401
    %v1984 = vunpack.c.l.b16 %v1402
    %v1985 = vunpack.c.h.b16 %v1402
    %v1986 = vunpack.c.l.b16 %v1403
    %v1987 = vunpack.c.h.b16 %v1403
    %v1988 = vunpack.c.l.b16 %v1404
    %v1989 = vunpack.c.h.b16 %v1404
    %v1990 = vunpack.c.l.b16 %v1405
    %v1991 = vunpack.c.h.b16 %v1405
    %v1992 = vunpack.c.l.b16 %v1406
    %v1993 = vunpack.c.h.b16 %v1406
    %v1994 = vunpack.c.l.b16 %v1407
    %v1995 = vunpack.c.h.b16 %v1407
    %v1996 = vunpack.c.l.b16 %v1408
    %v1997 = vunpack.c.h.b16 %v1408
    %v1998 = vunpack.c.l.b16 %v1409
    %v1999 = vunpack.c.h.b16 %v1409
    %v2000 = vunpack.c.l.b16 %v1410
    %v2001 = vunpack.c.h.b16 %v1410
    %v2002 = vunpack.c.l.b16 %v1411
    %v2003 = vunpack.c.h.b16 %v1411
    %v2004 = vunpack.c.l.b16 %v1412
    %v2005 = vunpack.c.h.b16 %v1412
    %v2006 = vunpack.c.l.b16 %v1413
    %v2007 = vunpack.c.h.b16 %v1413
    %v2008 = vunpack.c.l.b16 %v1414
    %v2009 = vunpack.c.h.b16 %v1414
    %v2010 = vunpack.c.l.b16 %v1415
    %v2011 = vunpack.c.h.b16 %v1415
    %v2012 = vunpack.c.l.b16 %v1416
    %v2013 = vunpack.c.h.b16 %v1416
    %v2014 = vunpack.c.l.b16 %v1417
    %v2015 = vunpack.c.h.b16 %v1417
    %v2016 = vunpack.c.l.b16 %v1418
    %v2017 = vunpack.c.h.b16 %v1418
    %v2018 = vunpack.c.l.b16 %v1419
    %v2019 = vunpack.c.h.b16 %v1419
    %v2020 = vunpack.c.l.b16 %v1420
    %v2021 = vunpack.c.h.b16 %v1420
    %v2022 = vunpack.c.l.b16 %v1421
    %v2023 = vunpack.c.h.b16 %v1421
    %v2024 = vunpack.c.l.b16 %v1422
    %v2025 = vunpack.c.h.b16 %v1422
    %v2026 = vunpack.c.l.b16 %v1423
    %v2027 = vunpack.c.h.b16 %v1423
    %v2028 = vunpack.c.l.b16 %v1424
    %v2029 = vunpack.c.h.b16 %v1424
    %v2030 = vunpack.c.l.b16 %v1425
    %v2031 = vunpack.c.h.b16 %v1425
    %v2032 = vunpack.c.l.b16 %v1426
    %v2033 = vunpack.c.h.b16 %v1426
    %v2034 = vunpack.c.l.b16 %v1427
    %v2035 = vunpack.c.h.b16 %v1427
    %v2036 = vunpack.c.l.b16 %v1428
    %v2037 = vunpack.c.h.b16 %v1428
    %v2038 = vunpack.c.l.b16 %v1429
    %v2039 = vunpack.c.h.b16 %v1429
    %v2040 = vunpack.c.l.b16 %v1430
    %v2041 = vunpack.c.h.b16 %v1430
    %v2042 = vunpack.c.l.b16 %v1431
    %v2043 = vunpack.c.h.b16 %v1431
    %v2044 = vunpack.c.l.b16 %v1432
    %v2045 = vunpack.c.h.b16 %v1432
    %v2046 = vunpack.c.l.b16 %v1433
    %v2047 = vunpack.c.h.b16 %v1433
    %v2048 = vunpack.c.l.b16 %v1434
    %v2049 = vunpack.c.h.b16 %v1434
    %v2050 = vunpack.c.l.b16 %v1435
    %v2051 = vunpack.c.h.b16 %v1435
    %v2052 = vunpack.c.l.b16 %v1436
    %v2053 = vunpack.c.h.b16 %v1436
    %v2054 = vunpack.c.l.b16 %v1437
    %v2055 = vunpack.c.h.b16 %v1437
    %v2056 = vunpack.c.l.b16 %v1438
    %v2057 = vunpack.c.h.b16 %v1438
    %v2058 = vunpack.c.l.b16 %v1439
    %v2059 = vunpack.c.h.b16 %v1439
    %v2060 = vunpack.c.l.b16 %v1440
    %v2061 = vunpack.c.h.b16 %v1440
    %v2062 = vunpack.c.l.b16 %v1441
    %v2063 = vunpack.c.h.b16 %v1441
    %v2064 = vunpack.c.l.b16 %v1442
    %v2065 = vunpack.c.h.b16 %v1442
    %v2066 = vunpack.c.l.b16 %v1443
    %v2067 = vunpack.c.h.b16 %v1443
    %v2068 = vunpack.c.l.b16 %v1444
    %v2069 = vunpack.c.h.b16 %v1444
    %v2070 = vunpack.c.l.b16 %v1445
    %v2071 = vunpack.c.h.b16 %v1445
    %v2072 = vunpack.c.l.b16 %v1446
    %v2073 = vunpack.c.h.b16 %v1446
    %v2074 = vunpack.c.l.b16 %v1447
    %v2075 = vunpack.c.h.b16 %v1447
    %v2076 = vunpack.c.l.b16 %v1448
    %v2077 = vunpack.c.h.b16 %v1448
    %v2078 = vunpack.c.l.b16 %v1449
    %v2079 = vunpack.c.h.b16 %v1449
    %v2080 = vunpack.c.l.b16 %v1450
    %v2081 = vunpack.c.h.b16 %v1450
    %v2082 = vunpack.c.l.b16 %v1451
    %v2083 = vunpack.c.h.b16 %v1451
    %v2084 = vunpack.c.l.b16 %v1452
    %v2085 = vunpack.c.h.b16 %v1452
    %v2086 = vunpack.c.l.b16 %v1453
    %v2087 = vunpack.c.h.b16 %v1453
    %v2088 = vunpack.c.l.b16 %v1454
    %v2089 = vunpack.c.h.b16 %v1454
    %v2090 = vunpack.c.l.b16 %v1455
    %v2091 = vunpack.c.h.b16 %v1455
    %v2092 = vunpack.c.l.b16 %v1456
    %v2093 = vunpack.c.h.b16 %v1456
    %v2094 = vunpack.c.l.b16 %v1457
    %v2095 = vunpack.c.h.b16 %v1457
    %v2096 = vunpack.c.l.b16 %v1458
    %v2097 = vunpack.c.h.b16 %v1458
    %v2098 = vunpack.c.l.b16 %v1459
    %v2099 = vunpack.c.h.b16 %v1459
    %v2100 = vunpack.c.l.b16 %v1460
    %v2101 = vunpack.c.h.b16 %v1460
    %v2102 = vunpack.c.l.b16 %v1461
    %v2103 = vunpack.c.h.b16 %v1461
    %v2104 = vunpack.c.l.b16 %v1462
    %v2105 = vunpack.c.h.b16 %v1462
    %v2106 = vunpack.c.l.b16 %v1463
    %v2107 = vunpack.c.h.b16 %v1463
    %v2108 = vunpack.c.l.b16 %v1464
    %v2109 = vunpack.c.h.b16 %v1464
    %v2110 = vunpack.c.l.b16 %v1465
    %v2111 = vunpack.c.h.b16 %v1465
    %v2112 = vunpack.c.l.b16 %v1466
    %v2113 = vunpack.c.h.b16 %v1466
    %v2114 = vunpack.c.l.b16 %v1467
    %v2115 = vunpack.c.h.b16 %v1467
    %v2116 = vunpack.c.l.b16 %v1468
    %v2117 = vunpack.c.h.b16 %v1468
    %v2118 = vunpack.c.l.b16 %v1469
    %v2119 = vunpack.c.h.b16 %v1469
    %v2120 = vunpack.c.l.b16 %v1470
    %v2121 = vunpack.c.h.b16 %v1470
    %v2122 = vunpack.c.l.b16 %v1471
    %v2123 = vunpack.c.h.b16 %v1471
    %v2124 = vunpack.c.l.b16 %v1472
    %v2125 = vunpack.c.h.b16 %v1472
    %v2126 = vunpack.c.l.b16 %v1473
    %v2127 = vunpack.c.h.b16 %v1473
    %v2128 = vunpack.c.l.b16 %v1474
    %v2129 = vunpack.c.h.b16 %v1474
    %v2130 = vunpack.c.l.b16 %v1475
    %v2131 = vunpack.c.h.b16 %v1475
    %v2132 = vunpack.c.l.b16 %v1476
    %v2133 = vunpack.c.h.b16 %v1476
    %v2134 = vunpack.c.l.b16 %v1477
    %v2135 = vunpack.c.h.b16 %v1477
    %v2136 = vunpack.c.l.b16 %v1478
    %v2137 = vunpack.c.h.b16 %v1478
    %v2138 = vunpack.c.l.b16 %v1479
    %v2139 = vunpack.c.h.b16 %v1479
    %v2140 = vunpack.c.l.b16 %v1480
    %v2141 = vunpack.c.h.b16 %v1480
    %v2142 = vunpack.c.l.b16 %v1481
    %v2143 = vunpack.c.h.b16 %v1481
    %v2144 = vunpack.c.l.b16 %v1482
    %v2145 = vunpack.c.h.b16 %v1482
    %v2146 = vunpack.c.l.b16 %v1483
    %v2147 = vunpack.c.h.b16 %v1483
    %v2148 = vunpack.c.l.b16 %v1484
    %v2149 = vunpack.c.h.b16 %v1484
    %v2150 = vunpack.c.l.b16 %v1485
    %v2151 = vunpack.c.h.b16 %v1485
    %v2152 = vunpack.c.l.b16 %v1486
    %v2153 = vunpack.c.h.b16 %v1486
    %v2154 = vunpack.c.l.b16 %v1487
    %v2155 = vunpack.c.h.b16 %v1487
    %v2156 = vunpack.c.l.b16 %v1488
    %v2157 = vunpack.c.h.b16 %v1488
    %v2158 = vunpack.c.l.b16 %v1489
    %v2159 = vunpack.c.h.b16 %v1489
    %v2160 = vunpack.c.l.b16 %v1490
    %v2161 = vunpack.c.h.b16 %v1490
    %v2162 = vunpack.c.l.b16 %v1491
    %v2163 = vunpack.c.h.b16 %v1491
    %v2164 = vunpack.c.l.b16 %v1492
    %v2165 = vunpack.c.h.b16 %v1492
    %v2166 = vunpack.c.l.b16 %v1493
    %v2167 = vunpack.c.h.b16 %v1493
    %v2168 = vunpack.c.l.b16 %v1494
    %v2169 = vunpack.c.h.b16 %v1494
    %v2170 = vunpack.c.l.b16 %v1495
    %v2171 = vunpack.c.h.b16 %v1495
    %v2172 = vunpack.c.l.b16 %v1496
    %v2173 = vunpack.c.h.b16 %v1496
    %v2174 = vunpack.c.l.b16 %v1497
    %v2175 = vunpack.c.h.b16 %v1497
    %v2176 = vunpack.c.l.b16 %v1498
    %v2177 = vunpack.c.h.b16 %v1498
    %v2178 = vunpack.c.l.b16 %v1499
    %v2179 = vunpack.c.h.b16 %v1499
    %v2180 = vunpack.c.l.b16 %v1500
    %v2181 = vunpack.c.h.b16 %v1500
    %v2182 = vunpack.c.l.b16 %v1501
    %v2183 = vunpack.c.h.b16 %v1501
    %v2184 = vunpack.c.l.b16 %v1502
    %v2185 = vunpack.c.h.b16 %v1502
    %v2186 = vunpack.c.l.b16 %v1503
    %v2187 = vunpack.c.h.b16 %v1503
    %v2188 = vunpack.c.l.b16 %v1504
    %v2189 = vunpack.c.h.b16 %v1504
    %v2190 = vunpack.c.l.b16 %v1505
    %v2191 = vunpack.c.h.b16 %v1505
    %v2192 = vunpack.c.l.b16 %v1506
    %v2193 = vunpack.c.h.b16 %v1506
    %v2194 = vunpack.c.l.b16 %v1507
    %v2195 = vunpack.c.h.b16 %v1507
    %v2196 = vunpack.c.l.b16 %v1508
    %v2197 = vunpack.c.h.b16 %v1508
    %v2198 = vunpack.c.l.b16 %v1509
    %v2199 = vunpack.c.h.b16 %v1509
    %v2200 = vunpack.c.l.b16 %v1510
    %v2201 = vunpack.c.h.b16 %v1510
    %v2202 = vunpack.c.l.b16 %v1511
    %v2203 = vunpack.c.h.b16 %v1511
    %v2204 = vunpack.c.l.b16 %v1512
    %v2205 = vunpack.c.h.b16 %v1512
    %v2206 = vunpack.c.l.b16 %v1513
    %v2207 = vunpack.c.h.b16 %v1513
    %v2208 = vunpack.c.l.b16 %v1514
    %v2209 = vunpack.c.h.b16 %v1514
    %v2210 = vunpack.c.l.b16 %v1515
    %v2211 = vunpack.c.h.b16 %v1515
    %v2212 = vunpack.c.l.b16 %v1516
    %v2213 = vunpack.c.h.b16 %v1516
    %v2214 = vunpack.c.l.b16 %v1517
    %v2215 = vunpack.c.h.b16 %v1517
    %v2216 = vunpack.c.l.b16 %v1518
    %v2217 = vunpack.c.h.b16 %v1518
    %v2218 = vunpack.c.l.b16 %v1519
    %v2219 = vunpack.c.h.b16 %v1519
    %v2220 = vunpack.c.l.b16 %v1520
    %v2221 = vunpack.c.h.b16 %v1520
    %v2222 = vunpack.c.l.b16 %v1521
    %v2223 = vunpack.c.h.b16 %v1521
    %v2224 = vunpack.c.l.b16 %v1522
    %v2225 = vunpack.c.h.b16 %v1522
    %v2226 = vunpack.c.l.b16 %v1523
    %v2227 = vunpack.c.h.b16 %v1523
    %v2228 = vunpack.c.l.b16 %v1524
    %v2229 = vunpack.c.h.b16 %v1524
    %v2230 = vunpack.c.l.b16 %v1525
    %v2231 = vunpack.c.h.b16 %v1525
    %v2232 = vunpack.c.l.b16 %v1526
    %v2233 = vunpack.c.h.b16 %v1526
    %v2234 = vunpack.c.l.b16 %v1527
    %v2235 = vunpack.c.h.b16 %v1527
    %v2236 = vunpack.c.l.b16 %v1528
    %v2237 = vunpack.c.h.b16 %v1528
    %v2238 = vunpack.c.l.b16 %v1529
    %v2239 = vunpack.c.h.b16 %v1529
    %v2240 = vunpack.c.l.b16 %v1530
    %v2241 = vunpack.c.h.b16 %v1530
    %v2242 = vunpack.c.l.b16 %v1531
    %v2243 = vunpack.c.h.b16 %v1531
    %v2244 = vunpack.c.l.b16 %v1532
    %v2245 = vunpack.c.h.b16 %v1532
    %v2246 = vunpack.c.l.b16 %v1533
    %v2247 = vunpack.c.h.b16 %v1533
    %v2248 = vunpack.c.l.b16 %v1534
    %v2249 = vunpack.c.h.b16 %v1534
    %v2250 = vunpack.c.l.b16 %v1535
    %v2251 = vunpack.c.h.b16 %v1535
    %v2252 = vunpack.c.l.b16 %v1536
    %v2253 = vunpack.c.h.b16 %v1536
    %v2254 = vunpack.c.l.b16 %v1537
    %v2255 = vunpack.c.h.b16 %v1537
    %v2256 = vunpack.c.l.b16 %v1538
    %v2257 = vunpack.c.h.b16 %v1538
    %v2258 = vunpack.c.l.b16 %v1539
    %v2259 = vunpack.c.h.b16 %v1539
    %v2260 = vunpack.c.l.b16 %v1540
    %v2261 = vunpack.c.h.b16 %v1540
    %v2262 = vunpack.c.l.b16 %v1541
    %v2263 = vunpack.c.h.b16 %v1541
    %v2264 = vunpack.c.l.b16 %v1542
    %v2265 = vunpack.c.h.b16 %v1542
    %v2266 = vunpack.c.l.b16 %v1543
    %v2267 = vunpack.c.h.b16 %v1543
    %v2268 = vunpack.c.l.b16 %v1544
    %v2269 = vunpack.c.h.b16 %v1544
    %v2270 = vunpack.c.l.b16 %v1545
    %v2271 = vunpack.c.h.b16 %v1545
    %v2272 = vunpack.c.l.b16 %v1546
    %v2273 = vunpack.c.h.b16 %v1546
    %v2274 = vunpack.c.l.b16 %v1547
    %v2275 = vunpack.c.h.b16 %v1547
    %v2276 = vunpack.c.l.b16 %v1548
    %v2277 = vunpack.c.h.b16 %v1548
    %v2278 = vunpack.c.l.b16 %v1549
    %v2279 = vunpack.c.h.b16 %v1549
    %v2280 = vunpack.c.l.b16 %v1550
    %v2281 = vunpack.c.h.b16 %v1550
    %v2282 = vunpack.c.l.b16 %v1551
    %v2283 = vunpack.c.h.b16 %v1551
    %v2284 = vunpack.c.l.b16 %v1552
    %v2285 = vunpack.c.h.b16 %v1552
    %v2286 = vunpack.c.l.b16 %v1553
    %v2287 = vunpack.c.h.b16 %v1553
    %v2288 = vunpack.c.l.b16 %v1554
    %v2289 = vunpack.c.h.b16 %v1554
    %v2290 = vunpack.c.l.b16 %v1555
    %v2291 = vunpack.c.h.b16 %v1555
    %v2292 = vunpack.c.l.b16 %v1556
    %v2293 = vunpack.c.h.b16 %v1556
    %v2294 = vunpack.c.l.b16 %v1557
    %v2295 = vunpack.c.h.b16 %v1557
    %v2296 = vunpack.c.l.b16 %v1558
    %v2297 = vunpack.c.h.b16 %v1558
    %v2298 = vunpack.c.l.b16 %v1559
    %v2299 = vunpack.c.h.b16 %v1559
    %v2300 = vunpack.c.l.b16 %v1560
    %v2301 = vunpack.c.h.b16 %v1560
    %v2302 = vunpack.c.l.b16 %v1561
    %v2303 = vunpack.c.h.b16 %v1561
    %v2304 = vunpack.c.l.b16 %v1562
    %v2305 = vunpack.c.h.b16 %v1562
    %v2306 = vunpack.c.l.b16 %v1563
    %v2307 = vunpack.c.h.b16 %v1563
    %v2308 = vunpack.c.l.b16 %v1564
    %v2309 = vunpack.c.h.b16 %v1564
    %v2310 = vunpack.c.l.b16 %v1565
    %v2311 = vunpack.c.h.b16 %v1565
    %v2312 = vunpack.c.l.b16 %v1566
    %v2313 = vunpack.c.h.b16 %v1566
    %v2314 = vunpack.c.l.b16 %v1567
    %v2315 = vunpack.c.h.b16 %v1567
    %v2316 = vunpack.c.l.b16 %v1568
    %v2317 = vunpack.c.h.b16 %v1568
    %v2318 = vunpack.c.l.b16 %v1569
    %v2319 = vunpack.c.h.b16 %v1569
    %v2320 = vunpack.c.l.b16 %v1570
    %v2321 = vunpack.c.h.b16 %v1570
    %v2322 = vunpack.c.l.b16 %v1571
    %v2323 = vunpack.c.h.b16 %v1571
    %v2324 = vunpack.c.l.b16 %v1572
    %v2325 = vunpack.c.h.b16 %v1572
    %v2326 = vunpack.c.l.b16 %v1573
    %v2327 = vunpack.c.h.b16 %v1573
    %v2328 = vunpack.c.l.b16 %v1574
    %v2329 = vunpack.c.h.b16 %v1574
    %v2330 = vunpack.c.l.b16 %v1575
    %v2331 = vunpack.c.h.b16 %v1575
    %v2332 = vunpack.c.l.b16 %v1576
    %v2333 = vunpack.c.h.b16 %v1576
    %v2334 = vunpack.c.l.b16 %v1577
    %v2335 = vunpack.c.h.b16 %v1577
    %v2336 = vunpack.c.l.b16 %v1578
    %v2337 = vunpack.c.h.b16 %v1578
    %v2338 = vunpack.c.l.b16 %v1579
    %v2339 = vunpack.c.h.b16 %v1579
    %v2340 = vunpack.c.l.b16 %v1580
    %v2341 = vunpack.c.h.b16 %v1580
    %v2342 = vunpack.c.l.b16 %v1581
    %v2343 = vunpack.c.h.b16 %v1581
    %v2344 = vunpack.c.l.b16 %v1582
    %v2345 = vunpack.c.h.b16 %v1582
    %v2346 = vunpack.c.l.b16 %v1583
    %v2347 = vunpack.c.h.b16 %v1583
    %v2348 = vunpack.c.l.b16 %v1584
    %v2349 = vunpack.c.h.b16 %v1584
    %v2350 = vunpack.c.l.b16 %v1585
    %v2351 = vunpack.c.h.b16 %v1585
    %v2352 = vunpack.c.l.b16 %v1586
    %v2353 = vunpack.c.h.b16 %v1586
    %v2354 = vunpack.c.l.b16 %v1587
    %v2355 = vunpack.c.h.b16 %v1587
    %v2356 = vunpack.c.l.b16 %v1588
    %v2357 = vunpack.c.h.b16 %v1588
    %v2358 = vunpack.c.l.b16 %v1589
    %v2359 = vunpack.c.h.b16 %v1589
    %v2360 = vunpack.c.l.b16 %v1590
    %v2361 = vunpack.c.h.b16 %v1590
    %v2362 = vunpack.c.l.b16 %v1591
    %v2363 = vunpack.c.h.b16 %v1591
    %v2364 = vunpack.c.l.b16 %v1592
    %v2365 = vunpack.c.h.b16 %v1592
    %v2366 = vunpack.c.l.b16 %v1593
    %v2367 = vunpack.c.h.b16 %v1593
    %v2368 = vunpack.c.l.b16 %v1594
    %v2369 = vunpack.c.h.b16 %v1594
    %v2370 = vunpack.c.l.b16 %v1595
    %v2371 = vunpack.c.h.b16 %v1595
    %v2372 = vunpack.c.l.b16 %v1596
    %v2373 = vunpack.c.h.b16 %v1596
    %v2374 = vunpack.c.l.b16 %v1597
    %v2375 = vunpack.c.h.b16 %v1597
    %v2376 = vunpack.c.l.b16 %v1598
    %v2377 = vunpack.c.h.b16 %v1598
    %v2378 = vunpack.c.l.b16 %v1599
    %v2379 = vunpack.c.h.b16 %v1599
    %v2380 = vunpack.c.l.b16 %v1600
    %v2381 = vunpack.c.h.b16 %v1600
    %v2382 = vunpack.c.l.b16 %v1601
    %v2383 = vunpack.c.h.b16 %v1601
    %v2384 = vunpack.c.l.b16 %v1602
    %v2385 = vunpack.c.h.b16 %v1602
    %v2386 = vunpack.c.l.b16 %v1603
    %v2387 = vunpack.c.h.b16 %v1603
    %v2388 = vunpack.c.l.b16 %v1604
    %v2389 = vunpack.c.h.b16 %v1604
    %v2390 = vunpack.c.l.b16 %v1605
    %v2391 = vunpack.c.h.b16 %v1605
    %v2392 = vunpack.c.l.b16 %v1606
    %v2393 = vunpack.c.h.b16 %v1606
    %v2394 = vunpack.c.l.b16 %v1607
    %v2395 = vunpack.c.h.b16 %v1607
    %v2396 = vunpack.c.l.b16 %v1608
    %v2397 = vunpack.c.h.b16 %v1608
    %v2398 = vunpack.c.l.b16 %v1609
    %v2399 = vunpack.c.h.b16 %v1609
    %v2400 = vpack.c.b16 %v1892, %v1888
    %v2401 = vpack.c.b16 %v1893, %v1889
    %v2402 = vpack.c.b16 %v1894, %v1890
    %v2403 = vpack.c.b16 %v1895, %v1891
    %v2404 = vpack.c.b16 %v1900, %v1896
    %v2405 = vpack.c.b16 %v1901, %v1897
    %v2406 = vpack.c.b16 %v1902, %v1898
    %v2407 = vpack.c.b16 %v1903, %v1899
    %v2408 = vpack.c.b16 %v1908, %v1904
    %v2409 = vpack.c.b16 %v1909, %v1905
    %v2410 = vpack.c.b16 %v1910, %v1906
    %v2411 = vpack.c.b16 %v1911, %v1907
    %v2412 = vpack.c.b16 %v1916, %v1912
    %v2413 = vpack.c.b16 %v1917, %v1913
    %v2414 = vpack.c.b16 %v1918, %v1914
    %v2415 = vpack.c.b16 %v1919, %v1915
    %v2416 = vpack.c.b16 %v1924, %v1920
    %v2417 = vpack.c.b16 %v1925, %v1921
    %v2418 = vpack.c.b16 %v1926, %v1922
    %v2419 = vpack.c.b16 %v1927, %v1923
    %v2420 = vpack.c.b16 %v1932, %v1928
    %v2421 = vpack.c.b16 %v1933, %v1929
    %v2422 = vpack.c.b16 %v1934, %v1930
    %v2423 = vpack.c.b16 %v1935, %v1931
    %v2424 = vpack.c.b16 %v1940, %v1936
    %v2425 = vpack.c.b16 %v1941, %v1937
    %v2426 = vpack.c.b16 %v1942, %v1938
    %v2427 = vpack.c.b16 %v1943, %v1939
    %v2428 = vpack.c.b16 %v1948, %v1944
    %v2429 = vpack.c.b16 %v1949, %v1945
    %v2430 = vpack.c.b16 %v1950, %v1946
    %v2431 = vpack.c.b16 %v1951, %v1947
    %v2432 = vpack.c.b16 %v1956, %v1952
    %v2433 = vpack.c.b16 %v1957, %v1953
    %v2434 = vpack.c.b16 %v1958, %v1954
    %v2435 = vpack.c.b16 %v1959, %v1955
    %v2436 = vpack.c.b16 %v1964, %v1960
    %v2437 = vpack.c.b16 %v1965, %v1961
    %v2438 = vpack.c.b16 %v1966, %v1962
    %v2439 = vpack.c.b16 %v1967, %v1963
    %v2440 = vpack.c.b16 %v1972, %v1968
    %v2441 = vpack.c.b16 %v1973, %v1969
    %v2442 = vpack.c.b16 %v1974, %v1970
    %v2443 = vpack.c.b16 %v1975, %v1971
    %v2444 = vpack.c.b16 %v1980, %v1976
    %v2445 = vpack.c.b16 %v1981, %v1977
    %v2446 = vpack.c.b16 %v1982, %v1978
    %v2447 = vpack.c.b16 %v1983, %v1979
    %v2448 = vpack.c.b16 %v1988, %v1984
    %v2449 = vpack.c.b16 %v1989, %v1985
    %v2450 = vpack.c.b16 %v1990, %v1986
    %v2451 = vpack.c.b16 %v1991, %v1987
    %v2452 = vpack.c.b16 %v1996, %v1992
    %v2453 = vpack.c.b16 %v1997, %v1993
    %v2454 = vpack.c.b16 %v1998, %v1994
    %v2455 = vpack.c.b16 %v1999, %v1995
    %v2456 = vpack.c.b16 %v2004, %v2000
    %v2457 = vpack.c.b16 %v2005, %v2001
    %v2458 = vpack.c.b16 %v2006, %v2002
    %v2459 = vpack.c.b16 %v2007, %v2003
    %v2460 = vpack.c.b16 %v2012, %v2008
    %v2461 = vpack.c.b16 %v2013, %v2009
    %v2462 = vpack.c.b16 %v2014, %v2010
    %v2463 = vpack.c.b16 %v2015, %v2011
    %v2464 = vpack.c.b16 %v2020, %v2016
    %v2465 = vpack.c.b16 %v2021, %v2017
    %v2466 = vpack.c.b16 %v2022, %v2018
    %v2467 = vpack.c.b16 %v2023, %v2019
    %v2468 = vpack.c.b16 %v2028, %v2024
    %v2469 = vpack.c.b16 %v2029, %v2025
    %v2470 = vpack.c.b16 %v2030, %v2026
    %v2471 = vpack.c.b16 %v2031, %v2027
    %v2472 = vpack.c.b16 %v2036, %v2032
    %v2473 = vpack.c.b16 %v2037, %v2033
    %v2474 = vpack.c.b16 %v2038, %v2034
    %v2475 = vpack.c.b16 %v2039, %v2035
    %v2476 = vpack.c.b16 %v2044, %v2040
    %v2477 = vpack.c.b16 %v2045, %v2041
    %v2478 = vpack.c.b16 %v2046, %v2042
    %v2479 = vpack.c.b16 %v2047, %v2043
    %v2480 = vpack.c.b16 %v2052, %v2048
    %v2481 = vpack.c.b16 %v2053, %v2049
    %v2482 = vpack.c.b16 %v2054, %v2050
    %v2483 = vpack.c.b16 %v2055, %v2051
    %v2484 = vpack.c.b16 %v2060, %v2056
    %v2485 = vpack.c.b16 %v2061, %v2057
    %v2486 = vpack.c.b16 %v2062, %v2058
    %v2487 = vpack.c.b16 %v2063, %v2059
    %v2488 = vpack.c.b16 %v2068, %v2064
    %v2489 = vpack.c.b16 %v2069, %v2065
    %v2490 = vpack.c.b16 %v2070, %v2066
    %v2491 = vpack.c.b16 %v2071, %v2067
    %v2492 = vpack.c.b16 %v2076, %v2072
    %v2493 = vpack.c.b16 %v2077, %v2073
    %v2494 = vpack.c.b16 %v2078, %v2074
    %v2495 = vpack.c.b16 %v2079, %v2075
    %v2496 = vpack.c.b16 %v2084, %v2080
    %v2497 = vpack.c.b16 %v2085, %v2081
    %v2498 = vpack.c.b16 %v2086, %v2082
    %v2499 = vpack.c.b16 %v2087, %v2083
    %v2500 = vpack.c.b16 %v2092, %v2088
    %v2501 = vpack.c.b16 %v2093, %v2089
    %v2502 = vpack.c.b16 %v2094, %v2090
    %v2503 = vpack.c.b16 %v2095, %v2091
    %v2504 = vpack.c.b16 %v2100, %v2096
    %v2505 = vpack.c.b16 %v2101, %v2097
    %v2506 = vpack.c.b16 %v2102, %v2098
    %v2507 = vpack.c.b16 %v2103, %v2099
    %v2508 = vpack.c.b16 %v2108, %v2104
    %v2509 = vpack.c.b16 %v2109, %v2105
    %v2510 = vpack.c.b16 %v2110, %v2106
    %v2511 = vpack.c.b16 %v2111, %v2107
    %v2512 = vpack.c.b16 %v2116, %v2112
    %v2513 = vpack.c.b16 %v2117, %v2113
    %v2514 = vpack.c.b16 %v2118, %v2114
    %v2515 = vpack.c.b16 %v2119, %v2115
    %v2516 = vpack.c.b16 %v2124, %v2120
    %v2517 = vpack.c.b16 %v2125, %v2121
    %v2518 = vpack.c.b16 %v2126, %v2122
    %v2519 = vpack.c.b16 %v2127, %v2123
    %v2520 = vpack.c.b16 %v2132, %v2128
    %v2521 = vpack.c.b16 %v2133, %v2129
    %v2522 = vpack.c.b16 %v2134, %v2130
    %v2523 = vpack.c.b16 %v2135, %v2131
    %v2524 = vpack.c.b16 %v2140, %v2136
    %v2525 = vpack.c.b16 %v2141, %v2137
    %v2526 = vpack.c.b16 %v2142, %v2138
    %v2527 = vpack.c.b16 %v2143, %v2139
    %v2528 = vpack.c.b16 %v2148, %v2144
    %v2529 = vpack.c.b16 %v2149, %v2145
    %v2530 = vpack.c.b16 %v2150, %v2146
    %v2531 = vpack.c.b16 %v2151, %v2147
    %v2532 = vpack.c.b16 %v2156, %v2152
    %v2533 = vpack.c.b16 %v2157, %v2153
    %v2534 = vpack.c.b16 %v2158, %v2154
    %v2535 = vpack.c.b16 %v2159, %v2155
    %v2536 = vpack.c.b16 %v2164, %v2160
    %v2537 = vpack.c.b16 %v2165, %v2161
    %v2538 = vpack.c.b16 %v2166, %v2162
    %v2539 = vpack.c.b16 %v2167, %v2163
    %v2540 = vpack.c.b16 %v2172, %v2168
    %v2541 = vpack.c.b16 %v2173, %v2169
    %v2542 = vpack.c.b16 %v2174, %v2170
    %v2543 = vpack.c.b16 %v2175, %v2171
    %v2544 = vpack.c.b16 %v2180, %v2176
    %v2545 = vpack.c.b16 %v2181, %v2177
    %v2546 = vpack.c.b16 %v2182, %v2178
    %v2547 = vpack.c.b16 %v2183, %v2179
    %v2548 = vpack.c.b16 %v2188, %v2184
    %v2549 = vpack.c.b16 %v2189, %v2185
    %v2550 = vpack.c.b16 %v2190, %v2186
    %v2551 = vpack.c.b16 %v2191, %v2187
    %v2552 = vpack.c.b16 %v2196, %v2192
    %v2553 = vpack.c.b16 %v2197, %v2193
    %v2554 = vpack.c.b16 %v2198, %v2194
    %v2555 = vpack.c.b16 %v2199, %v2195
    %v2556 = vpack.c.b16 %v2204, %v2200
    %v2557 = vpack.c.b16 %v2205, %v2201
    %v2558 = vpack.c.b16 %v2206, %v2202
    %v2559 = vpack.c.b16 %v2207, %v2203
    %v2560 = vpack.c.b16 %v2212, %v2208
    %v2561 = vpack.c.b16 %v2213, %v2209
    %v2562 = vpack.c.b16 %v2214, %v2210
    %v2563 = vpack.c.b16 %v2215, %v2211
    %v2564 = vpack.c.b16 %v2220, %v2216
    %v2565 = vpack.c.b16 %v2221, %v2217
    %v2566 = vpack.c.b16 %v2222, %v2218
    %v2567 = vpack.c.b16 %v2223, %v2219
    %v2568 = vpack.c.b16 %v2228, %v2224
    %v2569 = vpack.c.b16 %v2229, %v2225
    %v2570 = vpack.c.b16 %v2230, %v2226
    %v2571 = vpack.c.b16 %v2231, %v2227
    %v2572 = vpack.c.b16 %v2236, %v2232
    %v2573 = vpack.c.b16 %v2237, %v2233
    %v2574 = vpack.c.b16 %v2238, %v2234
    %v2575 = vpack.c.b16 %v2239, %v2235
    %v2576 = vpack.c.b16 %v2244, %v2240
    %v2577 = vpack.c.b16 %v2245, %v2241
    %v2578 = vpack.c.b16 %v2246, %v2242
    %v2579 = vpack.c.b16 %v2247, %v2243
    %v2580 = vpack.c.b16 %v2252, %v2248
    %v2581 = vpack.c.b16 %v2253, %v2249
    %v2582 = vpack.c.b16 %v2254, %v2250
    %v2583 = vpack.c.b16 %v2255, %v2251
    %v2584 = vpack.c.b16 %v2260, %v2256
    %v2585 = vpack.c.b16 %v2261, %v2257
    %v2586 = vpack.c.b16 %v2262, %v2258
    %v2587 = vpack.c.b16 %v2263, %v2259
    %v2588 = vpack.c.b16 %v2268, %v2264
    %v2589 = vpack.c.b16 %v2269, %v2265
    %v2590 = vpack.c.b16 %v2270, %v2266
    %v2591 = vpack.c.b16 %v2271, %v2267
    %v2592 = vpack.c.b16 %v2276, %v2272
    %v2593 = vpack.c.b16 %v2277, %v2273
    %v2594 = vpack.c.b16 %v2278, %v2274
    %v2595 = vpack.c.b16 %v2279, %v2275
    %v2596 = vpack.c.b16 %v2284, %v2280
    %v2597 = vpack.c.b16 %v2285, %v2281
    %v2598 = vpack.c.b16 %v2286, %v2282
    %v2599 = vpack.c.b16 %v2287, %v2283
    %v2600 = vpack.c.b16 %v2292, %v2288
    %v2601 = vpack.c.b16 %v2293, %v2289
    %v2602 = vpack.c.b16 %v2294, %v2290
    %v2603 = vpack.c.b16 %v2295, %v2291
    %v2604 = vpack.c.b16 %v2300, %v2296
    %v2605 = vpack.c.b16 %v2301, %v2297
    %v2606 = vpack.c.b16 %v2302, %v2298
    %v2607 = vpack.c.b16 %v2303, %v2299
    %v2608 = vpack.c.b16 %v2308, %v2304
    %v2609 = vpack.c.b16 %v2309, %v2305
    %v2610 = vpack.c.b16 %v2310, %v2306
    %v2611 = vpack.c.b16 %v2311, %v2307
    %v2612 = vpack.c.b16 %v2316, %v2312
    %v2613 = vpack.c.b16 %v2317, %v2313
    %v2614 = vpack.c.b16 %v2318, %v2314
    %v2615 = vpack.c.b16 %v2319, %v2315
    %v2616 = vpack.c.b16 %v2324, %v2320
    %v2617 = vpack.c.b16 %v2325, %v2321
    %v2618 = vpack.c.b16 %v2326, %v2322
    %v2619 = vpack.c.b16 %v2327, %v2323
    %v2620 = vpack.c.b16 %v2332, %v2328
    %v2621 = vpack.c.b16 %v2333, %v2329
    %v2622 = vpack.c.b16 %v2334, %v2330
    %v2623 = vpack.c.b16 %v2335, %v2331
    %v2624 = vpack.c.b16 %v2340, %v2336
    %v2625 = vpack.c.b16 %v2341, %v2337
    %v2626 = vpack.c.b16 %v2342, %v2338
    %v2627 = vpack.c.b16 %v2343, %v2339
    %v2628 = vpack.c.b16 %v2348, %v2344
    %v2629 = vpack.c.b16 %v2349, %v2345
    %v2630 = vpack.c.b16 %v2350, %v2346
    %v2631 = vpack.c.b16 %v2351, %v2347
    %v2632 = vpack.c.b16 %v2356, %v2352
    %v2633 = vpack.c.b16 %v2357, %v2353
    %v2634 = vpack.c.b16 %v2358, %v2354
    %v2635 = vpack.c.b16 %v2359, %v2355
    %v2636 = vpack.c.b16 %v2364, %v2360
    %v2637 = vpack.c.b16 %v2365, %v2361
    %v2638 = vpack.c.b16 %v2366, %v2362
    %v2639 = vpack.c.b16 %v2367, %v2363
    %v2640 = vpack.c.b16 %v2372, %v2368
    %v2641 = vpack.c.b16 %v2373, %v2369
    %v2642 = vpack.c.b16 %v2374, %v2370
    %v2643 = vpack.c.b16 %v2375, %v2371
    %v2644 = vpack.c.b16 %v2380, %v2376
    %v2645 = vpack.c.b16 %v2381, %v2377
    %v2646 = vpack.c.b16 %v2382, %v2378
    %v2647 = vpack.c.b16 %v2383, %v2379
    %v2648 = vpack.c.b16 %v2388, %v2384
    %v2649 = vpack.c.b16 %v2389, %v2385
    %v2650 = vpack.c.b16 %v2390, %v2386
    %v2651 = vpack.c.b16 %v2391, %v2387
    %v2652 = vpack.c.b16 %v2396, %v2392
    %v2653 = vpack.c.b16 %v2397, %v2393
    %v2654 = vpack.c.b16 %v2398, %v2394
    %v2655 = vpack.c.b16 %v2399, %v2395
    %2912 = vmatprep.subr.bf16.mxu0 %v2401
    %2913 = vmatpush1.bf16.msra.mxu0 %v2400
    %2914 = vmatprep.subr.bf16.mxu0 %v2405
    %2915 = vmatpush1.bf16.msra.mxu0 %v2404
    %2916 = vmatprep.subr.bf16.mxu0 %v2409
    %2917 = vmatpush1.bf16.msra.mxu0 %v2408
    %2918 = vmatprep.subr.bf16.mxu0 %v2413
    %2919 = vmatpush1.bf16.msra.mxu0 %v2412
    %2920 = vmatprep.subr.bf16.mxu0 %v2417
    %2921 = vmatpush1.bf16.msra.mxu0 %v2416
    %2922 = vmatprep.subr.bf16.mxu0 %v2421
    %2923 = vmatpush1.bf16.msra.mxu0 %v2420
    %2924 = vmatprep.subr.bf16.mxu0 %v2425
    %2925 = vmatpush1.bf16.msra.mxu0 %v2424
    %2926 = vmatprep.subr.bf16.mxu0 %v2429
    %2927 = vmatpush1.bf16.msra.mxu0 %v2428
    %2928 = vmatprep.subr.bf16.mxu0 %v2433
    %2929 = vmatpush1.bf16.msra.mxu0 %v2432
    %2930 = vmatprep.subr.bf16.mxu0 %v2437
    %2931 = vmatpush1.bf16.msra.mxu0 %v2436
    %2932 = vmatprep.subr.bf16.mxu0 %v2441
    %2933 = vmatpush1.bf16.msra.mxu0 %v2440
    %2934 = vmatprep.subr.bf16.mxu0 %v2445
    %2935 = vmatpush1.bf16.msra.mxu0 %v2444
    %2936 = vmatprep.subr.bf16.mxu0 %v2449
    %2937 = vmatpush1.bf16.msra.mxu0 %v2448
    %2938 = vmatprep.subr.bf16.mxu0 %v2453
    %2939 = vmatpush1.bf16.msra.mxu0 %v2452
    %2940 = vmatprep.subr.bf16.mxu0 %v2457
    %2941 = vmatpush1.bf16.msra.mxu0 %v2456
    %2942 = vmatprep.subr.bf16.mxu0 %v2461
    %2943 = vmatpush1.bf16.msra.mxu0 %v2460
    %2944 = vmatprep.mubr.bf16.mxu0 %v911
    %2945 = vmatmul.mubr.bf16.gmra.mrb[0].mxu0 %v910
    %v2946 = vpop.f32.mrb[0].mxu0
    %v2947 = vadd.f32 %v1615, %v2946
    %v2948 = vpop.f32.mrb[0].mxu0
    %v2949 = vadd.f32 %v1619, %v2948
    %v2950 = vpop.f32.mrb[0].mxu0
    %v2951 = vadd.f32 %v1615, %v2950
    %v2952 = vpop.f32.mrb[0].mxu0
    %v2953 = vadd.f32 %v1619, %v2952
    %2954 = vmatprep.mubr.bf16.mxu0 %v919
    %2955 = vmatmul.mubr.bf16.gmra.mrb[0].mxu0 %v918
    %v2956 = vpop.f32.mrb[0].mxu0
    %v2957 = vadd.f32 %v1615, %v2956
    %v2958 = vpop.f32.mrb[0].mxu0
    %v2959 = vadd.f32 %v1619, %v2958
    %v2960 = vpop.f32.mrb[0].mxu0
    %v2961 = vadd.f32 %v1615, %v2960
    %v2962 = vpop.f32.mrb[0].mxu0
    %v2963 = vadd.f32 %v1619, %v2962
    %2964 = vmatprep.mubr.bf16.mxu0 %v927
    %2965 = vmatmul.mubr.bf16.gmra.mrb[0].mxu0 %v926
    %v2966 = vpop.f32.mrb[0].mxu0
    %v2967 = vadd.f32 %v1615, %v2966
    %v2968 = vpop.f32.mrb[0].mxu0
    %v2969 = vadd.f32 %v1619, %v2968
    %v2970 = vpop.f32.mrb[0].mxu0
    %v2971 = vadd.f32 %v1615, %v2970
    %v2972 = vpop.f32.mrb[0].mxu0
    %v2973 = vadd.f32 %v1619, %v2972
    %2974 = vmatprep.mubr.bf16.mxu0 %v935
    %2975 = vmatmul.mubr.bf16.gmra.mrb[0].mxu0 %v934
    %v2976 = vpop.f32.mrb[0].mxu0
    %v2977 = vadd.f32 %v1615, %v2976
    %v2978 = vpop.f32.mrb[0].mxu0
    %v2979 = vadd.f32 %v1619, %v2978
    %v2980 = vpop.f32.mrb[0].mxu0
    %v2981 = vadd.f32 %v1615, %v2980
    %v2982 = vpop.f32.mrb[0].mxu0
    %v2983 = vadd.f32 %v1619, %v2982
    %2984 = vdwg.mxu0
    %2985 = vmatprep.subr.bf16.mxu0 %v2465
    %2986 = vmatpush1.bf16.msra.mxu0 %v2464
    %2987 = vmatprep.subr.bf16.mxu0 %v2469
    %2988 = vmatpush1.bf16.msra.mxu0 %v2468
    %2989 = vmatprep.subr.bf16.mxu0 %v2473
    %2990 = vmatpush1.bf16.msra.mxu0 %v2472
    %2991 = vmatprep.subr.bf16.mxu0 %v2477
    %2992 = vmatpush1.bf16.msra.mxu0 %v2476
    %2993 = vmatprep.subr.bf16.mxu0 %v2481
    %2994 = vmatpush1.bf16.msra.mxu0 %v2480
    %2995 = vmatprep.subr.bf16.mxu0 %v2485
    %2996 = vmatpush1.bf16.msra.mxu0 %v2484
    %2997 = vmatprep.subr.bf16.mxu0 %v2489
    %2998 = vmatpush1.bf16.msra.mxu0 %v2488
    %2999 = vmatprep.subr.bf16.mxu0 %v2493
    %3000 = vmatpush1.bf16.msra.mxu0 %v2492
    %3001 = vmatprep.subr.bf16.mxu0 %v2497
    %3002 = vmatpush1.bf16.msra.mxu0 %v2496
    %3003 = vmatprep.subr.bf16.mxu0 %v2501
    %3004 = vmatpush1.bf16.msra.mxu0 %v2500
    %3005 = vmatprep.subr.bf16.mxu0 %v2505
    %3006 = vmatpush1.bf16.msra.mxu0 %v2504
    %3007 = vmatprep.subr.bf16.mxu0 %v2509
    %3008 = vmatpush1.bf16.msra.mxu0 %v2508
    %3009 = vmatprep.subr.bf16.mxu0 %v2513
    %3010 = vmatpush1.bf16.msra.mxu0 %v2512
    %3011 = vmatprep.subr.bf16.mxu0 %v2517
    %3012 = vmatpush1.bf16.msra.mxu0 %v2516
    %3013 = vmatprep.subr.bf16.mxu0 %v2521
    %3014 = vmatpush1.bf16.msra.mxu0 %v2520
    %3015 = vmatprep.subr.bf16.mxu0 %v2525
    %3016 = vmatpush1.bf16.msra.mxu0 %v2524
    %3017 = vmatprep.mubr.bf16.mxu0 %v913
    %3018 = vmatmul.mubr.bf16.gmra.mrb[0].mxu0 %v912
    %v3019 = vpop.f32.mrb[0].mxu0
    %v3020 = vadd.f32 %v2947, %v3019
    %v3021 = vpop.f32.mrb[0].mxu0
    %v3022 = vadd.f32 %v2949, %v3021
    %v3023 = vpop.f32.mrb[0].mxu0
    %v3024 = vadd.f32 %v2951, %v3023
    %v3025 = vpop.f32.mrb[0].mxu0
    %v3026 = vadd.f32 %v2953, %v3025
    %3027 = vmatprep.mubr.bf16.mxu0 %v921
    %3028 = vmatmul.mubr.bf16.gmra.mrb[0].mxu0 %v920
    %v3029 = vpop.f32.mrb[0].mxu0
    %v3030 = vadd.f32 %v2957, %v3029
    %v3031 = vpop.f32.mrb[0].mxu0
    %v3032 = vadd.f32 %v2959, %v3031
    %v3033 = vpop.f32.mrb[0].mxu0
    %v3034 = vadd.f32 %v2961, %v3033
    %v3035 = vpop.f32.mrb[0].mxu0
    %v3036 = vadd.f32 %v2963, %v3035
    %3037 = vmatprep.mubr.bf16.mxu0 %v929
    %3038 = vmatmul.mubr.bf16.gmra.mrb[0].mxu0 %v928
    %v3039 = vpop.f32.mrb[0].mxu0
    %v3040 = vadd.f32 %v2967, %v3039
    %v3041 = vpop.f32.mrb[0].mxu0
    %v3042 = vadd.f32 %v2969, %v3041
    %v3043 = vpop.f32.mrb[0].mxu0
    %v3044 = vadd.f32 %v2971, %v3043
    %v3045 = vpop.f32.mrb[0].mxu0
    %v3046 = vadd.f32 %v2973, %v3045
    %3047 = vmatprep.mubr.bf16.mxu0 %v937
    %3048 = vmatmul.mubr.bf16.gmra.mrb[0].mxu0 %v936
    %v3049 = vpop.f32.mrb[0].mxu0
    %v3050 = vadd.f32 %v2977, %v3049
    %v3051 = vpop.f32.mrb[0].mxu0
    %v3052 = vadd.f32 %v2979, %v3051
    %v3053 = vpop.f32.mrb[0].mxu0
    %v3054 = vadd.f32 %v2981, %v3053
    %v3055 = vpop.f32.mrb[0].mxu0
    %v3056 = vadd.f32 %v2983, %v3055
    %3057 = vdwg.mxu0
    %3058 = vmatprep.subr.bf16.mxu0 %v2529
    %3059 = vmatpush1.bf16.msra.mxu0 %v2528
    %3060 = vmatprep.subr.bf16.mxu0 %v2533
    %3061 = vmatpush1.bf16.msra.mxu0 %v2532
    %3062 = vmatprep.subr.bf16.mxu0 %v2537
    %3063 = vmatpush1.bf16.msra.mxu0 %v2536
    %3064 = vmatprep.subr.bf16.mxu0 %v2541
    %3065 = vmatpush1.bf16.msra.mxu0 %v2540
    %3066 = vmatprep.subr.bf16.mxu0 %v2545
    %3067 = vmatpush1.bf16.msra.mxu0 %v2544
    %3068 = vmatprep.subr.bf16.mxu0 %v2549
    %3069 = vmatpush1.bf16.msra.mxu0 %v2548
    %3070 = vmatprep.subr.bf16.mxu0 %v2553
    %3071 = vmatpush1.bf16.msra.mxu0 %v2552
    %3072 = vmatprep.subr.bf16.mxu0 %v2557
    %3073 = vmatpush1.bf16.msra.mxu0 %v2556
    %3074 = vmatprep.subr.bf16.mxu0 %v2561
    %3075 = vmatpush1.bf16.msra.mxu0 %v2560
    %3076 = vmatprep.subr.bf16.mxu0 %v2565
    %3077 = vmatpush1.bf16.msra.mxu0 %v2564
    %3078 = vmatprep.subr.bf16.mxu0 %v2569
    %3079 = vmatpush1.bf16.msra.mxu0 %v2568
    %3080 = vmatprep.subr.bf16.mxu0 %v2573
    %3081 = vmatpush1.bf16.msra.mxu0 %v2572
    %3082 = vmatprep.subr.bf16.mxu0 %v2577
    %3083 = vmatpush1.bf16.msra.mxu0 %v2576
    %3084 = vmatprep.subr.bf16.mxu0 %v2581
    %3085 = vmatpush1.bf16.msra.mxu0 %v2580
    %3086 = vmatprep.subr.bf16.mxu0 %v2585
    %3087 = vmatpush1.bf16.msra.mxu0 %v2584
    %3088 = vmatprep.subr.bf16.mxu0 %v2589
    %3089 = vmatpush1.bf16.msra.mxu0 %v2588
    %3090 = vmatprep.mubr.bf16.mxu0 %v915
    %3091 = vmatmul.mubr.bf16.gmra.mrb[0].mxu0 %v914
    %v3092 = vpop.f32.mrb[0].mxu0
    %v3093 = vadd.f32 %v3020, %v3092
    %v3094 = vpop.f32.mrb[0].mxu0
    %v3095 = vadd.f32 %v3022, %v3094
    %v3096 = vpop.f32.mrb[0].mxu0
    %v3097 = vadd.f32 %v3024, %v3096
    %v3098 = vpop.f32.mrb[0].mxu0
    %v3099 = vadd.f32 %v3026, %v3098
    %3100 = vmatprep.mubr.bf16.mxu0 %v923
    %3101 = vmatmul.mubr.bf16.gmra.mrb[0].mxu0 %v922
    %v3102 = vpop.f32.mrb[0].mxu0
    %v3103 = vadd.f32 %v3030, %v3102
    %v3104 = vpop.f32.mrb[0].mxu0
    %v3105 = vadd.f32 %v3032, %v3104
    %v3106 = vpop.f32.mrb[0].mxu0
    %v3107 = vadd.f32 %v3034, %v3106
    %v3108 = vpop.f32.mrb[0].mxu0
    %v3109 = vadd.f32 %v3036, %v3108
    %3110 = vmatprep.mubr.bf16.mxu0 %v931
    %3111 = vmatmul.mubr.bf16.gmra.mrb[0].mxu0 %v930
    %v3112 = vpop.f32.mrb[0].mxu0
    %v3113 = vadd.f32 %v3040, %v3112
    %v3114 = vpop.f32.mrb[0].mxu0
    %v3115 = vadd.f32 %v3042, %v3114
    %v3116 = vpop.f32.mrb[0].mxu0
    %v3117 = vadd.f32 %v3044, %v3116
    %v3118 = vpop.f32.mrb[0].mxu0
    %v3119 = vadd.f32 %v3046, %v3118
    %3120 = vmatprep.mubr.bf16.mxu0 %v939
    %3121 = vmatmul.mubr.bf16.gmra.mrb[0].mxu0 %v938
    %v3122 = vpop.f32.mrb[0].mxu0
    %v3123 = vadd.f32 %v3050, %v3122
    %v3124 = vpop.f32.mrb[0].mxu0
    %v3125 = vadd.f32 %v3052, %v3124
    %v3126 = vpop.f32.mrb[0].mxu0
    %v3127 = vadd.f32 %v3054, %v3126
    %v3128 = vpop.f32.mrb[0].mxu0
    %v3129 = vadd.f32 %v3056, %v3128
    %3130 = vdwg.mxu0
    %3131 = vmatprep.subr.bf16.mxu0 %v2593
    %3132 = vmatpush1.bf16.msra.mxu0 %v2592
    %3133 = vmatprep.subr.bf16.mxu0 %v2597
    %3134 = vmatpush1.bf16.msra.mxu0 %v2596
    %3135 = vmatprep.subr.bf16.mxu0 %v2601
    %3136 = vmatpush1.bf16.msra.mxu0 %v2600
    %3137 = vmatprep.subr.bf16.mxu0 %v2605
    %3138 = vmatpush1.bf16.msra.mxu0 %v2604
    %3139 = vmatprep.subr.bf16.mxu0 %v2609
    %3140 = vmatpush1.bf16.msra.mxu0 %v2608
    %3141 = vmatprep.subr.bf16.mxu0 %v2613
    %3142 = vmatpush1.bf16.msra.mxu0 %v2612
    %3143 = vmatprep.subr.bf16.mxu0 %v2617
    %3144 = vmatpush1.bf16.msra.mxu0 %v2616
    %3145 = vmatprep.subr.bf16.mxu0 %v2621
    %3146 = vmatpush1.bf16.msra.mxu0 %v2620
    %3147 = vmatprep.subr.bf16.mxu0 %v2625
    %3148 = vmatpush1.bf16.msra.mxu0 %v2624
    %3149 = vmatprep.subr.bf16.mxu0 %v2629
    %3150 = vmatpush1.bf16.msra.mxu0 %v2628
    %3151 = vmatprep.subr.bf16.mxu0 %v2633
    %3152 = vmatpush1.bf16.msra.mxu0 %v2632
    %3153 = vmatprep.subr.bf16.mxu0 %v2637
    %3154 = vmatpush1.bf16.msra.mxu0 %v2636
    %3155 = vmatprep.subr.bf16.mxu0 %v2641
    %3156 = vmatpush1.bf16.msra.mxu0 %v2640
    %3157 = vmatprep.subr.bf16.mxu0 %v2645
    %3158 = vmatpush1.bf16.msra.mxu0 %v2644
    %3159 = vmatprep.subr.bf16.mxu0 %v2649
    %3160 = vmatpush1.bf16.msra.mxu0 %v2648
    %3161 = vmatprep.subr.bf16.mxu0 %v2653
    %3162 = vmatpush1.bf16.msra.mxu0 %v2652
    %3163 = vmatprep.mubr.bf16.mxu0 %v917
    %3164 = vmatmul.mubr.bf16.gmra.mrb[0].mxu0 %v916
    %v3165 = vpop.f32.mrb[0].mxu0
    %v3166 = vadd.f32 %v3093, %v3165
    %v3167 = vpop.f32.mrb[0].mxu0
    %v3168 = vadd.f32 %v3095, %v3167
    %v3169 = vpop.f32.mrb[0].mxu0
    %v3170 = vadd.f32 %v3097, %v3169
    %v3171 = vpop.f32.mrb[0].mxu0
    %v3172 = vadd.f32 %v3099, %v3171
    %3173 = vmatprep.mubr.bf16.mxu0 %v925
    %3174 = vmatmul.mubr.bf16.gmra.mrb[0].mxu0 %v924
    %v3175 = vpop.f32.mrb[0].mxu0
    %v3176 = vadd.f32 %v3103, %v3175
    %v3177 = vpop.f32.mrb[0].mxu0
    %v3178 = vadd.f32 %v3105, %v3177
    %v3179 = vpop.f32.mrb[0].mxu0
    %v3180 = vadd.f32 %v3107, %v3179
    %v3181 = vpop.f32.mrb[0].mxu0
    %v3182 = vadd.f32 %v3109, %v3181
    %3183 = vmatprep.mubr.bf16.mxu0 %v933
    %3184 = vmatmul.mubr.bf16.gmra.mrb[0].mxu0 %v932
    %v3185 = vpop.f32.mrb[0].mxu0
    %v3186 = vadd.f32 %v3113, %v3185
    %v3187 = vpop.f32.mrb[0].mxu0
    %v3188 = vadd.f32 %v3115, %v3187
    %v3189 = vpop.f32.mrb[0].mxu0
    %v3190 = vadd.f32 %v3117, %v3189
    %v3191 = vpop.f32.mrb[0].mxu0
    %v3192 = vadd.f32 %v3119, %v3191
    %3193 = vmatprep.mubr.bf16.mxu0 %v941
    %3194 = vmatmul.mubr.bf16.gmra.mrb[0].mxu0 %v940
    %v3195 = vpop.f32.mrb[0].mxu0
    %v3196 = vadd.f32 %v3123, %v3195
    %v3197 = vpop.f32.mrb[0].mxu0
    %v3198 = vadd.f32 %v3125, %v3197
    %v3199 = vpop.f32.mrb[0].mxu0
    %v3200 = vadd.f32 %v3127, %v3199
    %v3201 = vpop.f32.mrb[0].mxu0
    %v3202 = vadd.f32 %v3129, %v3201
    %3203 = vdwg.mxu0
    %3204 = vmatprep.subr.bf16.mxu0 %v2403
    %3205 = vmatpush1.bf16.msra.mxu0 %v2402
    %3206 = vmatprep.subr.bf16.mxu0 %v2407
    %3207 = vmatpush1.bf16.msra.mxu0 %v2406
    %3208 = vmatprep.subr.bf16.mxu0 %v2411
    %3209 = vmatpush1.bf16.msra.mxu0 %v2410
    %3210 = vmatprep.subr.bf16.mxu0 %v2415
    %3211 = vmatpush1.bf16.msra.mxu0 %v2414
    %3212 = vmatprep.subr.bf16.mxu0 %v2419
    %3213 = vmatpush1.bf16.msra.mxu0 %v2418
    %3214 = vmatprep.subr.bf16.mxu0 %v2423
    %3215 = vmatpush1.bf16.msra.mxu0 %v2422
    %3216 = vmatprep.subr.bf16.mxu0 %v2427
    %3217 = vmatpush1.bf16.msra.mxu0 %v2426
    %3218 = vmatprep.subr.bf16.mxu0 %v2431
    %3219 = vmatpush1.bf16.msra.mxu0 %v2430
    %3220 = vmatprep.subr.bf16.mxu0 %v2435
    %3221 = vmatpush1.bf16.msra.mxu0 %v2434
    %3222 = vmatprep.subr.bf16.mxu0 %v2439
    %3223 = vmatpush1.bf16.msra.mxu0 %v2438
    %3224 = vmatprep.subr.bf16.mxu0 %v2443
    %3225 = vmatpush1.bf16.msra.mxu0 %v2442
    %3226 = vmatprep.subr.bf16.mxu0 %v2447
    %3227 = vmatpush1.bf16.msra.mxu0 %v2446
    %3228 = vmatprep.subr.bf16.mxu0 %v2451
    %3229 = vmatpush1.bf16.msra.mxu0 %v2450
    %3230 = vmatprep.subr.bf16.mxu0 %v2455
    %3231 = vmatpush1.bf16.msra.mxu0 %v2454
    %3232 = vmatprep.subr.bf16.mxu0 %v2459
    %3233 = vmatpush1.bf16.msra.mxu0 %v2458
    %3234 = vmatprep.subr.bf16.mxu0 %v2463
    %3235 = vmatpush1.bf16.msra.mxu0 %v2462
    %3236 = vmatprep.mubr.bf16.mxu0 %v911
    %3237 = vmatmul.mubr.bf16.gmra.mrb[0].mxu0 %v910
    %v3238 = vpop.f32.mrb[0].mxu0
    %v3239 = vadd.f32 %v1623, %v3238
    %v3240 = vpop.f32.mrb[0].mxu0
    %v3241 = vadd.f32 %v1627, %v3240
    %v3242 = vpop.f32.mrb[0].mxu0
    %v3243 = vadd.f32 %v1623, %v3242
    %v3244 = vpop.f32.mrb[0].mxu0
    %v3245 = vadd.f32 %v1627, %v3244
    %3246 = vmatprep.mubr.bf16.mxu0 %v919
    %3247 = vmatmul.mubr.bf16.gmra.mrb[0].mxu0 %v918
    %v3248 = vpop.f32.mrb[0].mxu0
    %v3249 = vadd.f32 %v1623, %v3248
    %v3250 = vpop.f32.mrb[0].mxu0
    %v3251 = vadd.f32 %v1627, %v3250
    %v3252 = vpop.f32.mrb[0].mxu0
    %v3253 = vadd.f32 %v1623, %v3252
    %v3254 = vpop.f32.mrb[0].mxu0
    %v3255 = vadd.f32 %v1627, %v3254
    %3256 = vmatprep.mubr.bf16.mxu0 %v927
    %3257 = vmatmul.mubr.bf16.gmra.mrb[0].mxu0 %v926
    %v3258 = vpop.f32.mrb[0].mxu0
    %v3259 = vadd.f32 %v1623, %v3258
    %v3260 = vpop.f32.mrb[0].mxu0
    %v3261 = vadd.f32 %v1627, %v3260
    %v3262 = vpop.f32.mrb[0].mxu0
    %v3263 = vadd.f32 %v1623, %v3262
    %v3264 = vpop.f32.mrb[0].mxu0
    %v3265 = vadd.f32 %v1627, %v3264
    %3266 = vmatprep.mubr.bf16.mxu0 %v935
    %3267 = vmatmul.mubr.bf16.gmra.mrb[0].mxu0 %v934
    %v3268 = vpop.f32.mrb[0].mxu0
    %v3269 = vadd.f32 %v1623, %v3268
    %v3270 = vpop.f32.mrb[0].mxu0
    %v3271 = vadd.f32 %v1627, %v3270
    %v3272 = vpop.f32.mrb[0].mxu0
    %v3273 = vadd.f32 %v1623, %v3272
    %v3274 = vpop.f32.mrb[0].mxu0
    %v3275 = vadd.f32 %v1627, %v3274
    %3276 = vdwg.mxu0
    %3277 = vmatprep.subr.bf16.mxu0 %v2467
    %3278 = vmatpush1.bf16.msra.mxu0 %v2466
    %3279 = vmatprep.subr.bf16.mxu0 %v2471
    %3280 = vmatpush1.bf16.msra.mxu0 %v2470
    %3281 = vmatprep.subr.bf16.mxu0 %v2475
    %3282 = vmatpush1.bf16.msra.mxu0 %v2474
    %3283 = vmatprep.subr.bf16.mxu0 %v2479
    %3284 = vmatpush1.bf16.msra.mxu0 %v2478
    %3285 = vmatprep.subr.bf16.mxu0 %v2483
    %3286 = vmatpush1.bf16.msra.mxu0 %v2482
    %3287 = vmatprep.subr.bf16.mxu0 %v2487
    %3288 = vmatpush1.bf16.msra.mxu0 %v2486
    %3289 = vmatprep.subr.bf16.mxu0 %v2491
    %3290 = vmatpush1.bf16.msra.mxu0 %v2490
    %3291 = vmatprep.subr.bf16.mxu0 %v2495
    %3292 = vmatpush1.bf16.msra.mxu0 %v2494
    %3293 = vmatprep.subr.bf16.mxu0 %v2499
    %3294 = vmatpush1.bf16.msra.mxu0 %v2498
    %3295 = vmatprep.subr.bf16.mxu0 %v2503
    %3296 = vmatpush1.bf16.msra.mxu0 %v2502
    %3297 = vmatprep.subr.bf16.mxu0 %v2507
    %3298 = vmatpush1.bf16.msra.mxu0 %v2506
    %3299 = vmatprep.subr.bf16.mxu0 %v2511
    %3300 = vmatpush1.bf16.msra.mxu0 %v2510
    %3301 = vmatprep.subr.bf16.mxu0 %v2515
    %3302 = vmatpush1.bf16.msra.mxu0 %v2514
    %3303 = vmatprep.subr.bf16.mxu0 %v2519
    %3304 = vmatpush1.bf16.msra.mxu0 %v2518
    %3305 = vmatprep.subr.bf16.mxu0 %v2523
    %3306 = vmatpush1.bf16.msra.mxu0 %v2522
    %3307 = vmatprep.subr.bf16.mxu0 %v2527
    %3308 = vmatpush1.bf16.msra.mxu0 %v2526
    %3309 = vmatprep.mubr.bf16.mxu0 %v913
    %3310 = vmatmul.mubr.bf16.gmra.mrb[0].mxu0 %v912
    %v3311 = vpop.f32.mrb[0].mxu0
    %v3312 = vadd.f32 %v3239, %v3311
    %v3313 = vpop.f32.mrb[0].mxu0
    %v3314 = vadd.f32 %v3241, %v3313
    %v3315 = vpop.f32.mrb[0].mxu0
    %v3316 = vadd.f32 %v3243, %v3315
    %v3317 = vpop.f32.mrb[0].mxu0
    %v3318 = vadd.f32 %v3245, %v3317
    %3319 = vmatprep.mubr.bf16.mxu0 %v921
    %3320 = vmatmul.mubr.bf16.gmra.mrb[0].mxu0 %v920
    %v3321 = vpop.f32.mrb[0].mxu0
    %v3322 = vadd.f32 %v3249, %v3321
    %v3323 = vpop.f32.mrb[0].mxu0
    %v3324 = vadd.f32 %v3251, %v3323
    %v3325 = vpop.f32.mrb[0].mxu0
    %v3326 = vadd.f32 %v3253, %v3325
    %v3327 = vpop.f32.mrb[0].mxu0
    %v3328 = vadd.f32 %v3255, %v3327
    %3329 = vmatprep.mubr.bf16.mxu0 %v929
    %3330 = vmatmul.mubr.bf16.gmra.mrb[0].mxu0 %v928
    %v3331 = vpop.f32.mrb[0].mxu0
    %v3332 = vadd.f32 %v3259, %v3331
    %v3333 = vpop.f32.mrb[0].mxu0
    %v3334 = vadd.f32 %v3261, %v3333
    %v3335 = vpop.f32.mrb[0].mxu0
    %v3336 = vadd.f32 %v3263, %v3335
    %v3337 = vpop.f32.mrb[0].mxu0
    %v3338 = vadd.f32 %v3265, %v3337
    %3339 = vmatprep.mubr.bf16.mxu0 %v937
    %3340 = vmatmul.mubr.bf16.gmra.mrb[0].mxu0 %v936
    %v3341 = vpop.f32.mrb[0].mxu0
    %v3342 = vadd.f32 %v3269, %v3341
    %v3343 = vpop.f32.mrb[0].mxu0
    %v3344 = vadd.f32 %v3271, %v3343
    %v3345 = vpop.f32.mrb[0].mxu0
    %v3346 = vadd.f32 %v3273, %v3345
    %v3347 = vpop.f32.mrb[0].mxu0
    %v3348 = vadd.f32 %v3275, %v3347
    %3349 = vdwg.mxu0
    %3350 = vmatprep.subr.bf16.mxu0 %v2531
    %3351 = vmatpush1.bf16.msra.mxu0 %v2530
    %3352 = vmatprep.subr.bf16.mxu0 %v2535
    %3353 = vmatpush1.bf16.msra.mxu0 %v2534
    %3354 = vmatprep.subr.bf16.mxu0 %v2539
    %3355 = vmatpush1.bf16.msra.mxu0 %v2538
    %3356 = vmatprep.subr.bf16.mxu0 %v2543
    %3357 = vmatpush1.bf16.msra.mxu0 %v2542
    %3358 = vmatprep.subr.bf16.mxu0 %v2547
    %3359 = vmatpush1.bf16.msra.mxu0 %v2546
    %3360 = vmatprep.subr.bf16.mxu0 %v2551
    %3361 = vmatpush1.bf16.msra.mxu0 %v2550
    %3362 = vmatprep.subr.bf16.mxu0 %v2555
    %3363 = vmatpush1.bf16.msra.mxu0 %v2554
    %3364 = vmatprep.subr.bf16.mxu0 %v2559
    %3365 = vmatpush1.bf16.msra.mxu0 %v2558
    %3366 = vmatprep.subr.bf16.mxu0 %v2563
    %3367 = vmatpush1.bf16.msra.mxu0 %v2562
    %3368 = vmatprep.subr.bf16.mxu0 %v2567
    %3369 = vmatpush1.bf16.msra.mxu0 %v2566
    %3370 = vmatprep.subr.bf16.mxu0 %v2571
    %3371 = vmatpush1.bf16.msra.mxu0 %v2570
    %3372 = vmatprep.subr.bf16.mxu0 %v2575
    %3373 = vmatpush1.bf16.msra.mxu0 %v2574
    %3374 = vmatprep.subr.bf16.mxu0 %v2579
    %3375 = vmatpush1.bf16.msra.mxu0 %v2578
    %3376 = vmatprep.subr.bf16.mxu0 %v2583
    %3377 = vmatpush1.bf16.msra.mxu0 %v2582
    %3378 = vmatprep.subr.bf16.mxu0 %v2587
    %3379 = vmatpush1.bf16.msra.mxu0 %v2586
    %3380 = vmatprep.subr.bf16.mxu0 %v2591
    %3381 = vmatpush1.bf16.msra.mxu0 %v2590
    %3382 = vmatprep.mubr.bf16.mxu0 %v915
    %3383 = vmatmul.mubr.bf16.gmra.mrb[0].mxu0 %v914
    %v3384 = vpop.f32.mrb[0].mxu0
    %v3385 = vadd.f32 %v3312, %v3384
    %v3386 = vpop.f32.mrb[0].mxu0
    %v3387 = vadd.f32 %v3314, %v3386
    %v3388 = vpop.f32.mrb[0].mxu0
    %v3389 = vadd.f32 %v3316, %v3388
    %v3390 = vpop.f32.mrb[0].mxu0
    %v3391 = vadd.f32 %v3318, %v3390
    %3392 = vmatprep.mubr.bf16.mxu0 %v923
    %3393 = vmatmul.mubr.bf16.gmra.mrb[0].mxu0 %v922
    %v3394 = vpop.f32.mrb[0].mxu0
    %v3395 = vadd.f32 %v3322, %v3394
    %v3396 = vpop.f32.mrb[0].mxu0
    %v3397 = vadd.f32 %v3324, %v3396
    %v3398 = vpop.f32.mrb[0].mxu0
    %v3399 = vadd.f32 %v3326, %v3398
    %v3400 = vpop.f32.mrb[0].mxu0
    %v3401 = vadd.f32 %v3328, %v3400
    %3402 = vmatprep.mubr.bf16.mxu0 %v931
    %3403 = vmatmul.mubr.bf16.gmra.mrb[0].mxu0 %v930
    %v3404 = vpop.f32.mrb[0].mxu0
    %v3405 = vadd.f32 %v3332, %v3404
    %v3406 = vpop.f32.mrb[0].mxu0
    %v3407 = vadd.f32 %v3334, %v3406
    %v3408 = vpop.f32.mrb[0].mxu0
    %v3409 = vadd.f32 %v3336, %v3408
    %v3410 = vpop.f32.mrb[0].mxu0
    %v3411 = vadd.f32 %v3338, %v3410
    %3412 = vmatprep.mubr.bf16.mxu0 %v939
    %3413 = vmatmul.mubr.bf16.gmra.mrb[0].mxu0 %v938
    %v3414 = vpop.f32.mrb[0].mxu0
    %v3415 = vadd.f32 %v3342, %v3414
    %v3416 = vpop.f32.mrb[0].mxu0
    %v3417 = vadd.f32 %v3344, %v3416
    %v3418 = vpop.f32.mrb[0].mxu0
    %v3419 = vadd.f32 %v3346, %v3418
    %v3420 = vpop.f32.mrb[0].mxu0
    %v3421 = vadd.f32 %v3348, %v3420
    %3422 = vdwg.mxu0
    %3423 = vmatprep.subr.bf16.mxu0 %v2595
    %3424 = vmatpush1.bf16.msra.mxu0 %v2594
    %3425 = vmatprep.subr.bf16.mxu0 %v2599
    %3426 = vmatpush1.bf16.msra.mxu0 %v2598
    %3427 = vmatprep.subr.bf16.mxu0 %v2603
    %3428 = vmatpush1.bf16.msra.mxu0 %v2602
    %3429 = vmatprep.subr.bf16.mxu0 %v2607
    %3430 = vmatpush1.bf16.msra.mxu0 %v2606
    %3431 = vmatprep.subr.bf16.mxu0 %v2611
    %3432 = vmatpush1.bf16.msra.mxu0 %v2610
    %3433 = vmatprep.subr.bf16.mxu0 %v2615
    %3434 = vmatpush1.bf16.msra.mxu0 %v2614
    %3435 = vmatprep.subr.bf16.mxu0 %v2619
    %3436 = vmatpush1.bf16.msra.mxu0 %v2618
    %3437 = vmatprep.subr.bf16.mxu0 %v2623
    %3438 = vmatpush1.bf16.msra.mxu0 %v2622
    %3439 = vmatprep.subr.bf16.mxu0 %v2627
    %3440 = vmatpush1.bf16.msra.mxu0 %v2626
    %3441 = vmatprep.subr.bf16.mxu0 %v2631
    %3442 = vmatpush1.bf16.msra.mxu0 %v2630
    %3443 = vmatprep.subr.bf16.mxu0 %v2635
    %3444 = vmatpush1.bf16.msra.mxu0 %v2634
    %3445 = vmatprep.subr.bf16.mxu0 %v2639
    %3446 = vmatpush1.bf16.msra.mxu0 %v2638
    %3447 = vmatprep.subr.bf16.mxu0 %v2643
    %3448 = vmatpush1.bf16.msra.mxu0 %v2642
    %3449 = vmatprep.subr.bf16.mxu0 %v2647
    %3450 = vmatpush1.bf16.msra.mxu0 %v2646
    %3451 = vmatprep.subr.bf16.mxu0 %v2651
    %3452 = vmatpush1.bf16.msra.mxu0 %v2650
    %3453 = vmatprep.subr.bf16.mxu0 %v2655
    %3454 = vmatpush1.bf16.msra.mxu0 %v2654
    %3455 = vmatprep.mubr.bf16.mxu0 %v917
    %3456 = vmatmul.mubr.bf16.gmra.mrb[0].mxu0 %v916
    %v3457 = vpop.f32.mrb[0].mxu0
    %v3458 = vadd.f32 %v3385, %v3457
    %v3459 = vpop.f32.mrb[0].mxu0
    %v3460 = vadd.f32 %v3387, %v3459
    %v3461 = vpop.f32.mrb[0].mxu0
    %v3462 = vadd.f32 %v3389, %v3461
    %v3463 = vpop.f32.mrb[0].mxu0
    %v3464 = vadd.f32 %v3391, %v3463
    %3465 = vmatprep.mubr.bf16.mxu0 %v925
    %3466 = vmatmul.mubr.bf16.gmra.mrb[0].mxu0 %v924
    %v3467 = vpop.f32.mrb[0].mxu0
    %v3468 = vadd.f32 %v3395, %v3467
    %v3469 = vpop.f32.mrb[0].mxu0
    %v3470 = vadd.f32 %v3397, %v3469
    %v3471 = vpop.f32.mrb[0].mxu0
    %v3472 = vadd.f32 %v3399, %v3471
    %v3473 = vpop.f32.mrb[0].mxu0
    %v3474 = vadd.f32 %v3401, %v3473
    %3475 = vmatprep.mubr.bf16.mxu0 %v933
    %3476 = vmatmul.mubr.bf16.gmra.mrb[0].mxu0 %v932
    %v3477 = vpop.f32.mrb[0].mxu0
    %v3478 = vadd.f32 %v3405, %v3477
    %v3479 = vpop.f32.mrb[0].mxu0
    %v3480 = vadd.f32 %v3407, %v3479
    %v3481 = vpop.f32.mrb[0].mxu0
    %v3482 = vadd.f32 %v3409, %v3481
    %v3483 = vpop.f32.mrb[0].mxu0
    %v3484 = vadd.f32 %v3411, %v3483
    %3485 = vmatprep.mubr.bf16.mxu0 %v941
    %3486 = vmatmul.mubr.bf16.gmra.mrb[0].mxu0 %v940
    %v3487 = vpop.f32.mrb[0].mxu0
    %v3488 = vadd.f32 %v3415, %v3487
    %v3489 = vpop.f32.mrb[0].mxu0
    %v3490 = vadd.f32 %v3417, %v3489
    %v3491 = vpop.f32.mrb[0].mxu0
    %v3492 = vadd.f32 %v3419, %v3491
    %v3493 = vpop.f32.mrb[0].mxu0
    %v3494 = vadd.f32 %v3421, %v3493
    %3495 = vdwg.mxu0
    %v3496 = vmax.f32 %v3166, 0.0
    %v3497 = vmax.f32 %v3168, 0.0
    %v3498 = vmax.f32 %v3458, 0.0
    %v3499 = vmax.f32 %v3460, 0.0
    %v3500 = vmax.f32 %v3170, 0.0
    %v3501 = vmax.f32 %v3172, 0.0
    %v3502 = vmax.f32 %v3462, 0.0
    %v3503 = vmax.f32 %v3464, 0.0
    %v3504 = vmax.f32 %v3176, 0.0
    %v3505 = vmax.f32 %v3178, 0.0
    %v3506 = vmax.f32 %v3468, 0.0
    %v3507 = vmax.f32 %v3470, 0.0
    %v3508 = vmax.f32 %v3180, 0.0
    %v3509 = vmax.f32 %v3182, 0.0
    %v3510 = vmax.f32 %v3472, 0.0
    %v3511 = vmax.f32 %v3474, 0.0
    %v3512 = vmax.f32 %v3186, 0.0
    %v3513 = vmax.f32 %v3188, 0.0
    %v3514 = vmax.f32 %v3478, 0.0
    %v3515 = vmax.f32 %v3480, 0.0
    %v3516 = vmax.f32 %v3190, 0.0
    %v3517 = vmax.f32 %v3192, 0.0
    %v3518 = vmax.f32 %v3482, 0.0
    %v3519 = vmax.f32 %v3484, 0.0
    %v3520 = vmax.f32 %v3196, 0.0
    %v3521 = vmax.f32 %v3198, 0.0
    %v3522 = vmax.f32 %v3488, 0.0
    %v3523 = vmax.f32 %v3490, 0.0
    %v3524 = vmax.f32 %v3200, 0.0
    %v3525 = vmax.f32 %v3202, 0.0
    %v3526 = vmax.f32 %v3492, 0.0
    %v3527 = vmax.f32 %v3494, 0.0
    %v3528 = vpack.c.bf16 %v3500, %v3496
    %v3529 = vpack.c.bf16 %v3501, %v3497
    %v3530 = vpack.c.bf16 %v3502, %v3498
    %v3531 = vpack.c.bf16 %v3503, %v3499
    %v3532 = vpack.c.bf16 %v3508, %v3504
    %v3533 = vpack.c.bf16 %v3509, %v3505
    %v3534 = vpack.c.bf16 %v3510, %v3506
    %v3535 = vpack.c.bf16 %v3511, %v3507
    %v3536 = vpack.c.bf16 %v3516, %v3512
    %v3537 = vpack.c.bf16 %v3517, %v3513
    %v3538 = vpack.c.bf16 %v3518, %v3514
    %v3539 = vpack.c.bf16 %v3519, %v3515
    %v3540 = vpack.c.bf16 %v3524, %v3520
    %v3541 = vpack.c.bf16 %v3525, %v3521
    %v3542 = vpack.c.bf16 %v3526, %v3522
    %v3543 = vpack.c.bf16 %v3527, %v3523
    %3544 = vmatprep.subr.bf16.mxu0 %v2401
    %3545 = vmatpush1.bf16.msra.mxu0 %v2400
    %3546 = vmatprep.subr.bf16.mxu0 %v2405
    %3547 = vmatpush1.bf16.msra.mxu0 %v2404
    %3548 = vmatprep.subr.bf16.mxu0 %v2409
    %3549 = vmatpush1.bf16.msra.mxu0 %v2408
    %3550 = vmatprep.subr.bf16.mxu0 %v2413
    %3551 = vmatpush1.bf16.msra.mxu0 %v2412
    %3552 = vmatprep.subr.bf16.mxu0 %v2417
    %3553 = vmatpush1.bf16.msra.mxu0 %v2416
    %3554 = vmatprep.subr.bf16.mxu0 %v2421
    %3555 = vmatpush1.bf16.msra.mxu0 %v2420
    %3556 = vmatprep.subr.bf16.mxu0 %v2425
    %3557 = vmatpush1.bf16.msra.mxu0 %v2424
    %3558 = vmatprep.subr.bf16.mxu0 %v2429
    %3559 = vmatpush1.bf16.msra.mxu0 %v2428
    %3560 = vmatprep.subr.bf16.mxu0 %v2433
    %3561 = vmatpush1.bf16.msra.mxu0 %v2432
    %3562 = vmatprep.subr.bf16.mxu0 %v2437
    %3563 = vmatpush1.bf16.msra.mxu0 %v2436
    %3564 = vmatprep.subr.bf16.mxu0 %v2441
    %3565 = vmatpush1.bf16.msra.mxu0 %v2440
    %3566 = vmatprep.subr.bf16.mxu0 %v2445
    %3567 = vmatpush1.bf16.msra.mxu0 %v2444
    %3568 = vmatprep.subr.bf16.mxu0 %v2449
    %3569 = vmatpush1.bf16.msra.mxu0 %v2448
    %3570 = vmatprep.subr.bf16.mxu0 %v2453
    %3571 = vmatpush1.bf16.msra.mxu0 %v2452
    %3572 = vmatprep.subr.bf16.mxu0 %v2457
    %3573 = vmatpush1.bf16.msra.mxu0 %v2456
    %3574 = vmatprep.subr.bf16.mxu0 %v2461
    %3575 = vmatpush1.bf16.msra.mxu0 %v2460
    %3576 = vmatprep.mubr.bf16.mxu0 %v1323
    %3577 = vmatmul.mubr.bf16.gmra.mrb[0].mxu0 %v1322
    %v3578 = vpop.f32.mrb[0].mxu0
    %v3579 = vadd.f32 %v1615, %v3578
    %v3580 = vpop.f32.mrb[0].mxu0
    %v3581 = vadd.f32 %v1619, %v3580
    %v3582 = vpop.f32.mrb[0].mxu0
    %v3583 = vadd.f32 %v1615, %v3582
    %v3584 = vpop.f32.mrb[0].mxu0
    %v3585 = vadd.f32 %v1619, %v3584
    %3586 = vmatprep.mubr.bf16.mxu0 %v1331
    %3587 = vmatmul.mubr.bf16.gmra.mrb[0].mxu0 %v1330
    %v3588 = vpop.f32.mrb[0].mxu0
    %v3589 = vadd.f32 %v1615, %v3588
    %v3590 = vpop.f32.mrb[0].mxu0
    %v3591 = vadd.f32 %v1619, %v3590
    %v3592 = vpop.f32.mrb[0].mxu0
    %v3593 = vadd.f32 %v1615, %v3592
    %v3594 = vpop.f32.mrb[0].mxu0
    %v3595 = vadd.f32 %v1619, %v3594
    %3596 = vmatprep.mubr.bf16.mxu0 %v1339
    %3597 = vmatmul.mubr.bf16.gmra.mrb[0].mxu0 %v1338
    %v3598 = vpop.f32.mrb[0].mxu0
    %v3599 = vadd.f32 %v1615, %v3598
    %v3600 = vpop.f32.mrb[0].mxu0
    %v3601 = vadd.f32 %v1619, %v3600
    %v3602 = vpop.f32.mrb[0].mxu0
    %v3603 = vadd.f32 %v1615, %v3602
    %v3604 = vpop.f32.mrb[0].mxu0
    %v3605 = vadd.f32 %v1619, %v3604
    %3606 = vmatprep.mubr.bf16.mxu0 %v1347
    %3607 = vmatmul.mubr.bf16.gmra.mrb[0].mxu0 %v1346
    %v3608 = vpop.f32.mrb[0].mxu0
    %v3609 = vadd.f32 %v1615, %v3608
    %v3610 = vpop.f32.mrb[0].mxu0
    %v3611 = vadd.f32 %v1619, %v3610
    %v3612 = vpop.f32.mrb[0].mxu0
    %v3613 = vadd.f32 %v1615, %v3612
    %v3614 = vpop.f32.mrb[0].mxu0
    %v3615 = vadd.f32 %v1619, %v3614
    %3616 = vdwg.mxu0
    %3617 = vmatprep.subr.bf16.mxu0 %v2465
    %3618 = vmatpush1.bf16.msra.mxu0 %v2464
    %3619 = vmatprep.subr.bf16.mxu0 %v2469
    %3620 = vmatpush1.bf16.msra.mxu0 %v2468
    %3621 = vmatprep.subr.bf16.mxu0 %v2473
    %3622 = vmatpush1.bf16.msra.mxu0 %v2472
    %3623 = vmatprep.subr.bf16.mxu0 %v2477
    %3624 = vmatpush1.bf16.msra.mxu0 %v2476
    %3625 = vmatprep.subr.bf16.mxu0 %v2481
    %3626 = vmatpush1.bf16.msra.mxu0 %v2480
    %3627 = vmatprep.subr.bf16.mxu0 %v2485
    %3628 = vmatpush1.bf16.msra.mxu0 %v2484
    %3629 = vmatprep.subr.bf16.mxu0 %v2489
    %3630 = vmatpush1.bf16.msra.mxu0 %v2488
    %3631 = vmatprep.subr.bf16.mxu0 %v2493
    %3632 = vmatpush1.bf16.msra.mxu0 %v2492
    %3633 = vmatprep.subr.bf16.mxu0 %v2497
    %3634 = vmatpush1.bf16.msra.mxu0 %v2496
    %3635 = vmatprep.subr.bf16.mxu0 %v2501
    %3636 = vmatpush1.bf16.msra.mxu0 %v2500
    %3637 = vmatprep.subr.bf16.mxu0 %v2505
    %3638 = vmatpush1.bf16.msra.mxu0 %v2504
    %3639 = vmatprep.subr.bf16.mxu0 %v2509
    %3640 = vmatpush1.bf16.msra.mxu0 %v2508
    %3641 = vmatprep.subr.bf16.mxu0 %v2513
    %3642 = vmatpush1.bf16.msra.mxu0 %v2512
    %3643 = vmatprep.subr.bf16.mxu0 %v2517
    %3644 = vmatpush1.bf16.msra.mxu0 %v2516
    %3645 = vmatprep.subr.bf16.mxu0 %v2521
    %3646 = vmatpush1.bf16.msra.mxu0 %v2520
    %3647 = vmatprep.subr.bf16.mxu0 %v2525
    %3648 = vmatpush1.bf16.msra.mxu0 %v2524
    %3649 = vmatprep.mubr.bf16.mxu0 %v1325
    %3650 = vmatmul.mubr.bf16.gmra.mrb[0].mxu0 %v1324
    %v3651 = vpop.f32.mrb[0].mxu0
    %v3652 = vadd.f32 %v3579, %v3651
    %v3653 = vpop.f32.mrb[0].mxu0
    %v3654 = vadd.f32 %v3581, %v3653
    %v3655 = vpop.f32.mrb[0].mxu0
    %v3656 = vadd.f32 %v3583, %v3655
    %v3657 = vpop.f32.mrb[0].mxu0
    %v3658 = vadd.f32 %v3585, %v3657
    %3659 = vmatprep.mubr.bf16.mxu0 %v1333
    %3660 = vmatmul.mubr.bf16.gmra.mrb[0].mxu0 %v1332
    %v3661 = vpop.f32.mrb[0].mxu0
    %v3662 = vadd.f32 %v3589, %v3661
    %v3663 = vpop.f32.mrb[0].mxu0
    %v3664 = vadd.f32 %v3591, %v3663
    %v3665 = vpop.f32.mrb[0].mxu0
    %v3666 = vadd.f32 %v3593, %v3665
    %v3667 = vpop.f32.mrb[0].mxu0
    %v3668 = vadd.f32 %v3595, %v3667
    %3669 = vmatprep.mubr.bf16.mxu0 %v1341
    %3670 = vmatmul.mubr.bf16.gmra.mrb[0].mxu0 %v1340
    %v3671 = vpop.f32.mrb[0].mxu0
    %v3672 = vadd.f32 %v3599, %v3671
    %v3673 = vpop.f32.mrb[0].mxu0
    %v3674 = vadd.f32 %v3601, %v3673
    %v3675 = vpop.f32.mrb[0].mxu0
    %v3676 = vadd.f32 %v3603, %v3675
    %v3677 = vpop.f32.mrb[0].mxu0
    %v3678 = vadd.f32 %v3605, %v3677
    %3679 = vmatprep.mubr.bf16.mxu0 %v1349
    %3680 = vmatmul.mubr.bf16.gmra.mrb[0].mxu0 %v1348
    %v3681 = vpop.f32.mrb[0].mxu0
    %v3682 = vadd.f32 %v3609, %v3681
    %v3683 = vpop.f32.mrb[0].mxu0
    %v3684 = vadd.f32 %v3611, %v3683
    %v3685 = vpop.f32.mrb[0].mxu0
    %v3686 = vadd.f32 %v3613, %v3685
    %v3687 = vpop.f32.mrb[0].mxu0
    %v3688 = vadd.f32 %v3615, %v3687
    %3689 = vdwg.mxu0
    %3690 = vmatprep.subr.bf16.mxu0 %v2529
    %3691 = vmatpush1.bf16.msra.mxu0 %v2528
    %3692 = vmatprep.subr.bf16.mxu0 %v2533
    %3693 = vmatpush1.bf16.msra.mxu0 %v2532
    %3694 = vmatprep.subr.bf16.mxu0 %v2537
    %3695 = vmatpush1.bf16.msra.mxu0 %v2536
    %3696 = vmatprep.subr.bf16.mxu0 %v2541
    %3697 = vmatpush1.bf16.msra.mxu0 %v2540
    %3698 = vmatprep.subr.bf16.mxu0 %v2545
    %3699 = vmatpush1.bf16.msra.mxu0 %v2544
    %3700 = vmatprep.subr.bf16.mxu0 %v2549
    %3701 = vmatpush1.bf16.msra.mxu0 %v2548
    %3702 = vmatprep.subr.bf16.mxu0 %v2553
    %3703 = vmatpush1.bf16.msra.mxu0 %v2552
    %3704 = vmatprep.subr.bf16.mxu0 %v2557
    %3705 = vmatpush1.bf16.msra.mxu0 %v2556
    %3706 = vmatprep.subr.bf16.mxu0 %v2561
    %3707 = vmatpush1.bf16.msra.mxu0 %v2560
    %3708 = vmatprep.subr.bf16.mxu0 %v2565
    %3709 = vmatpush1.bf16.msra.mxu0 %v2564
    %3710 = vmatprep.subr.bf16.mxu0 %v2569
    %3711 = vmatpush1.bf16.msra.mxu0 %v2568
    %3712 = vmatprep.subr.bf16.mxu0 %v2573
    %3713 = vmatpush1.bf16.msra.mxu0 %v2572
    %3714 = vmatprep.subr.bf16.mxu0 %v2577
    %3715 = vmatpush1.bf16.msra.mxu0 %v2576
    %3716 = vmatprep.subr.bf16.mxu0 %v2581
    %3717 = vmatpush1.bf16.msra.mxu0 %v2580
    %3718 = vmatprep.subr.bf16.mxu0 %v2585
    %3719 = vmatpush1.bf16.msra.mxu0 %v2584
    %3720 = vmatprep.subr.bf16.mxu0 %v2589
    %3721 = vmatpush1.bf16.msra.mxu0 %v2588
    %3722 = vmatprep.mubr.bf16.mxu0 %v1327
    %3723 = vmatmul.mubr.bf16.gmra.mrb[0].mxu0 %v1326
    %v3724 = vpop.f32.mrb[0].mxu0
    %v3725 = vadd.f32 %v3652, %v3724
    %v3726 = vpop.f32.mrb[0].mxu0
    %v3727 = vadd.f32 %v3654, %v3726
    %v3728 = vpop.f32.mrb[0].mxu0
    %v3729 = vadd.f32 %v3656, %v3728
    %v3730 = vpop.f32.mrb[0].mxu0
    %v3731 = vadd.f32 %v3658, %v3730
    %3732 = vmatprep.mubr.bf16.mxu0 %v1335
    %3733 = vmatmul.mubr.bf16.gmra.mrb[0].mxu0 %v1334
    %v3734 = vpop.f32.mrb[0].mxu0
    %v3735 = vadd.f32 %v3662, %v3734
    %v3736 = vpop.f32.mrb[0].mxu0
    %v3737 = vadd.f32 %v3664, %v3736
    %v3738 = vpop.f32.mrb[0].mxu0
    %v3739 = vadd.f32 %v3666, %v3738
    %v3740 = vpop.f32.mrb[0].mxu0
    %v3741 = vadd.f32 %v3668, %v3740
    %3742 = vmatprep.mubr.bf16.mxu0 %v1343
    %3743 = vmatmul.mubr.bf16.gmra.mrb[0].mxu0 %v1342
    %v3744 = vpop.f32.mrb[0].mxu0
    %v3745 = vadd.f32 %v3672, %v3744
    %v3746 = vpop.f32.mrb[0].mxu0
    %v3747 = vadd.f32 %v3674, %v3746
    %v3748 = vpop.f32.mrb[0].mxu0
    %v3749 = vadd.f32 %v3676, %v3748
    %v3750 = vpop.f32.mrb[0].mxu0
    %v3751 = vadd.f32 %v3678, %v3750
    %3752 = vmatprep.mubr.bf16.mxu0 %v1351
    %3753 = vmatmul.mubr.bf16.gmra.mrb[0].mxu0 %v1350
    %v3754 = vpop.f32.mrb[0].mxu0
    %v3755 = vadd.f32 %v3682, %v3754
    %v3756 = vpop.f32.mrb[0].mxu0
    %v3757 = vadd.f32 %v3684, %v3756
    %v3758 = vpop.f32.mrb[0].mxu0
    %v3759 = vadd.f32 %v3686, %v3758
    %v3760 = vpop.f32.mrb[0].mxu0
    %v3761 = vadd.f32 %v3688, %v3760
    %3762 = vdwg.mxu0
    %3763 = vmatprep.subr.bf16.mxu0 %v2593
    %3764 = vmatpush1.bf16.msra.mxu0 %v2592
    %3765 = vmatprep.subr.bf16.mxu0 %v2597
    %3766 = vmatpush1.bf16.msra.mxu0 %v2596
    %3767 = vmatprep.subr.bf16.mxu0 %v2601
    %3768 = vmatpush1.bf16.msra.mxu0 %v2600
    %3769 = vmatprep.subr.bf16.mxu0 %v2605
    %3770 = vmatpush1.bf16.msra.mxu0 %v2604
    %3771 = vmatprep.subr.bf16.mxu0 %v2609
    %3772 = vmatpush1.bf16.msra.mxu0 %v2608
    %3773 = vmatprep.subr.bf16.mxu0 %v2613
    %3774 = vmatpush1.bf16.msra.mxu0 %v2612
    %3775 = vmatprep.subr.bf16.mxu0 %v2617
    %3776 = vmatpush1.bf16.msra.mxu0 %v2616
    %3777 = vmatprep.subr.bf16.mxu0 %v2621
    %3778 = vmatpush1.bf16.msra.mxu0 %v2620
    %3779 = vmatprep.subr.bf16.mxu0 %v2625
    %3780 = vmatpush1.bf16.msra.mxu0 %v2624
    %3781 = vmatprep.subr.bf16.mxu0 %v2629
    %3782 = vmatpush1.bf16.msra.mxu0 %v2628
    %3783 = vmatprep.subr.bf16.mxu0 %v2633
    %3784 = vmatpush1.bf16.msra.mxu0 %v2632
    %3785 = vmatprep.subr.bf16.mxu0 %v2637
    %3786 = vmatpush1.bf16.msra.mxu0 %v2636
    %3787 = vmatprep.subr.bf16.mxu0 %v2641
    %3788 = vmatpush1.bf16.msra.mxu0 %v2640
    %3789 = vmatprep.subr.bf16.mxu0 %v2645
    %3790 = vmatpush1.bf16.msra.mxu0 %v2644
    %3791 = vmatprep.subr.bf16.mxu0 %v2649
    %3792 = vmatpush1.bf16.msra.mxu0 %v2648
    %3793 = vmatprep.subr.bf16.mxu0 %v2653
    %3794 = vmatpush1.bf16.msra.mxu0 %v2652
    %3795 = vmatprep.mubr.bf16.mxu0 %v1329
    %3796 = vmatmul.mubr.bf16.gmra.mrb[0].mxu0 %v1328
    %v3797 = vpop.f32.mrb[0].mxu0
    %v3798 = vadd.f32 %v3725, %v3797
    %v3799 = vpop.f32.mrb[0].mxu0
    %v3800 = vadd.f32 %v3727, %v3799
    %v3801 = vpop.f32.mrb[0].mxu0
    %v3802 = vadd.f32 %v3729, %v3801
    %v3803 = vpop.f32.mrb[0].mxu0
    %v3804 = vadd.f32 %v3731, %v3803
    %3805 = vmatprep.mubr.bf16.mxu0 %v1337
    %3806 = vmatmul.mubr.bf16.gmra.mrb[0].mxu0 %v1336
    %v3807 = vpop.f32.mrb[0].mxu0
    %v3808 = vadd.f32 %v3735, %v3807
    %v3809 = vpop.f32.mrb[0].mxu0
    %v3810 = vadd.f32 %v3737, %v3809
    %v3811 = vpop.f32.mrb[0].mxu0
    %v3812 = vadd.f32 %v3739, %v3811
    %v3813 = vpop.f32.mrb[0].mxu0
    %v3814 = vadd.f32 %v3741, %v3813
    %3815 = vmatprep.mubr.bf16.mxu0 %v1345
    %3816 = vmatmul.mubr.bf16.gmra.mrb[0].mxu0 %v1344
    %v3817 = vpop.f32.mrb[0].mxu0
    %v3818 = vadd.f32 %v3745, %v3817
    %v3819 = vpop.f32.mrb[0].mxu0
    %v3820 = vadd.f32 %v3747, %v3819
    %v3821 = vpop.f32.mrb[0].mxu0
    %v3822 = vadd.f32 %v3749, %v3821
    %v3823 = vpop.f32.mrb[0].mxu0
    %v3824 = vadd.f32 %v3751, %v3823
    %3825 = vmatprep.mubr.bf16.mxu0 %v1353
    %3826 = vmatmul.mubr.bf16.gmra.mrb[0].mxu0 %v1352
    %v3827 = vpop.f32.mrb[0].mxu0
    %v3828 = vadd.f32 %v3755, %v3827
    %v3829 = vpop.f32.mrb[0].mxu0
    %v3830 = vadd.f32 %v3757, %v3829
    %v3831 = vpop.f32.mrb[0].mxu0
    %v3832 = vadd.f32 %v3759, %v3831
    %v3833 = vpop.f32.mrb[0].mxu0
    %v3834 = vadd.f32 %v3761, %v3833
    %3835 = vdwg.mxu0
    %3836 = vmatprep.subr.bf16.mxu0 %v2403
    %3837 = vmatpush1.bf16.msra.mxu0 %v2402
    %3838 = vmatprep.subr.bf16.mxu0 %v2407
    %3839 = vmatpush1.bf16.msra.mxu0 %v2406
    %3840 = vmatprep.subr.bf16.mxu0 %v2411
    %3841 = vmatpush1.bf16.msra.mxu0 %v2410
    %3842 = vmatprep.subr.bf16.mxu0 %v2415
    %3843 = vmatpush1.bf16.msra.mxu0 %v2414
    %3844 = vmatprep.subr.bf16.mxu0 %v2419
    %3845 = vmatpush1.bf16.msra.mxu0 %v2418
    %3846 = vmatprep.subr.bf16.mxu0 %v2423
    %3847 = vmatpush1.bf16.msra.mxu0 %v2422
    %3848 = vmatprep.subr.bf16.mxu0 %v2427
    %3849 = vmatpush1.bf16.msra.mxu0 %v2426
    %3850 = vmatprep.subr.bf16.mxu0 %v2431
    %3851 = vmatpush1.bf16.msra.mxu0 %v2430
    %3852 = vmatprep.subr.bf16.mxu0 %v2435
    %3853 = vmatpush1.bf16.msra.mxu0 %v2434
    %3854 = vmatprep.subr.bf16.mxu0 %v2439
    %3855 = vmatpush1.bf16.msra.mxu0 %v2438
    %3856 = vmatprep.subr.bf16.mxu0 %v2443
    %3857 = vmatpush1.bf16.msra.mxu0 %v2442
    %3858 = vmatprep.subr.bf16.mxu0 %v2447
    %3859 = vmatpush1.bf16.msra.mxu0 %v2446
    %3860 = vmatprep.subr.bf16.mxu0 %v2451
    %3861 = vmatpush1.bf16.msra.mxu0 %v2450
    %3862 = vmatprep.subr.bf16.mxu0 %v2455
    %3863 = vmatpush1.bf16.msra.mxu0 %v2454
    %3864 = vmatprep.subr.bf16.mxu0 %v2459
    %3865 = vmatpush1.bf16.msra.mxu0 %v2458
    %3866 = vmatprep.subr.bf16.mxu0 %v2463
    %3867 = vmatpush1.bf16.msra.mxu0 %v2462
    %3868 = vmatprep.mubr.bf16.mxu0 %v1323
    %3869 = vmatmul.mubr.bf16.gmra.mrb[0].mxu0 %v1322
    %v3870 = vpop.f32.mrb[0].mxu0
    %v3871 = vadd.f32 %v1623, %v3870
    %v3872 = vpop.f32.mrb[0].mxu0
    %v3873 = vadd.f32 %v1627, %v3872
    %v3874 = vpop.f32.mrb[0].mxu0
    %v3875 = vadd.f32 %v1623, %v3874
    %v3876 = vpop.f32.mrb[0].mxu0
    %v3877 = vadd.f32 %v1627, %v3876
    %3878 = vmatprep.mubr.bf16.mxu0 %v1331
    %3879 = vmatmul.mubr.bf16.gmra.mrb[0].mxu0 %v1330
    %v3880 = vpop.f32.mrb[0].mxu0
    %v3881 = vadd.f32 %v1623, %v3880
    %v3882 = vpop.f32.mrb[0].mxu0
    %v3883 = vadd.f32 %v1627, %v3882
    %v3884 = vpop.f32.mrb[0].mxu0
    %v3885 = vadd.f32 %v1623, %v3884
    %v3886 = vpop.f32.mrb[0].mxu0
    %v3887 = vadd.f32 %v1627, %v3886
    %3888 = vmatprep.mubr.bf16.mxu0 %v1339
    %3889 = vmatmul.mubr.bf16.gmra.mrb[0].mxu0 %v1338
    %v3890 = vpop.f32.mrb[0].mxu0
    %v3891 = vadd.f32 %v1623, %v3890
    %v3892 = vpop.f32.mrb[0].mxu0
    %v3893 = vadd.f32 %v1627, %v3892
    %v3894 = vpop.f32.mrb[0].mxu0
    %v3895 = vadd.f32 %v1623, %v3894
    %v3896 = vpop.f32.mrb[0].mxu0
    %v3897 = vadd.f32 %v1627, %v3896
    %3898 = vmatprep.mubr.bf16.mxu0 %v1347
    %3899 = vmatmul.mubr.bf16.gmra.mrb[0].mxu0 %v1346
    %v3900 = vpop.f32.mrb[0].mxu0
    %v3901 = vadd.f32 %v1623, %v3900
    %v3902 = vpop.f32.mrb[0].mxu0
    %v3903 = vadd.f32 %v1627, %v3902
    %v3904 = vpop.f32.mrb[0].mxu0
    %v3905 = vadd.f32 %v1623, %v3904
    %v3906 = vpop.f32.mrb[0].mxu0
    %v3907 = vadd.f32 %v1627, %v3906
    %3908 = vdwg.mxu0
    %3909 = vmatprep.subr.bf16.mxu0 %v2467
    %3910 = vmatpush1.bf16.msra.mxu0 %v2466
    %3911 = vmatprep.subr.bf16.mxu0 %v2471
    %3912 = vmatpush1.bf16.msra.mxu0 %v2470
    %3913 = vmatprep.subr.bf16.mxu0 %v2475
    %3914 = vmatpush1.bf16.msra.mxu0 %v2474
    %3915 = vmatprep.subr.bf16.mxu0 %v2479
    %3916 = vmatpush1.bf16.msra.mxu0 %v2478
    %3917 = vmatprep.subr.bf16.mxu0 %v2483
    %3918 = vmatpush1.bf16.msra.mxu0 %v2482
    %3919 = vmatprep.subr.bf16.mxu0 %v2487
    %3920 = vmatpush1.bf16.msra.mxu0 %v2486
    %3921 = vmatprep.subr.bf16.mxu0 %v2491
    %3922 = vmatpush1.bf16.msra.mxu0 %v2490
    %3923 = vmatprep.subr.bf16.mxu0 %v2495
    %3924 = vmatpush1.bf16.msra.mxu0 %v2494
    %3925 = vmatprep.subr.bf16.mxu0 %v2499
    %3926 = vmatpush1.bf16.msra.mxu0 %v2498
    %3927 = vmatprep.subr.bf16.mxu0 %v2503
    %3928 = vmatpush1.bf16.msra.mxu0 %v2502
    %3929 = vmatprep.subr.bf16.mxu0 %v2507
    %3930 = vmatpush1.bf16.msra.mxu0 %v2506
    %3931 = vmatprep.subr.bf16.mxu0 %v2511
    %3932 = vmatpush1.bf16.msra.mxu0 %v2510
    %3933 = vmatprep.subr.bf16.mxu0 %v2515
    %3934 = vmatpush1.bf16.msra.mxu0 %v2514
    %3935 = vmatprep.subr.bf16.mxu0 %v2519
    %3936 = vmatpush1.bf16.msra.mxu0 %v2518
    %3937 = vmatprep.subr.bf16.mxu0 %v2523
    %3938 = vmatpush1.bf16.msra.mxu0 %v2522
    %3939 = vmatprep.subr.bf16.mxu0 %v2527
    %3940 = vmatpush1.bf16.msra.mxu0 %v2526
    %3941 = vmatprep.mubr.bf16.mxu0 %v1325
    %3942 = vmatmul.mubr.bf16.gmra.mrb[0].mxu0 %v1324
    %v3943 = vpop.f32.mrb[0].mxu0
    %v3944 = vadd.f32 %v3871, %v3943
    %v3945 = vpop.f32.mrb[0].mxu0
    %v3946 = vadd.f32 %v3873, %v3945
    %v3947 = vpop.f32.mrb[0].mxu0
    %v3948 = vadd.f32 %v3875, %v3947
    %v3949 = vpop.f32.mrb[0].mxu0
    %v3950 = vadd.f32 %v3877, %v3949
    %3951 = vmatprep.mubr.bf16.mxu0 %v1333
    %3952 = vmatmul.mubr.bf16.gmra.mrb[0].mxu0 %v1332
    %v3953 = vpop.f32.mrb[0].mxu0
    %v3954 = vadd.f32 %v3881, %v3953
    %v3955 = vpop.f32.mrb[0].mxu0
    %v3956 = vadd.f32 %v3883, %v3955
    %v3957 = vpop.f32.mrb[0].mxu0
    %v3958 = vadd.f32 %v3885, %v3957
    %v3959 = vpop.f32.mrb[0].mxu0
    %v3960 = vadd.f32 %v3887, %v3959
    %3961 = vmatprep.mubr.bf16.mxu0 %v1341
    %3962 = vmatmul.mubr.bf16.gmra.mrb[0].mxu0 %v1340
    %v3963 = vpop.f32.mrb[0].mxu0
    %v3964 = vadd.f32 %v3891, %v3963
    %v3965 = vpop.f32.mrb[0].mxu0
    %v3966 = vadd.f32 %v3893, %v3965
    %v3967 = vpop.f32.mrb[0].mxu0
    %v3968 = vadd.f32 %v3895, %v3967
    %v3969 = vpop.f32.mrb[0].mxu0
    %v3970 = vadd.f32 %v3897, %v3969
    %3971 = vmatprep.mubr.bf16.mxu0 %v1349
    %3972 = vmatmul.mubr.bf16.gmra.mrb[0].mxu0 %v1348
    %v3973 = vpop.f32.mrb[0].mxu0
    %v3974 = vadd.f32 %v3901, %v3973
    %v3975 = vpop.f32.mrb[0].mxu0
    %v3976 = vadd.f32 %v3903, %v3975
    %v3977 = vpop.f32.mrb[0].mxu0
    %v3978 = vadd.f32 %v3905, %v3977
    %v3979 = vpop.f32.mrb[0].mxu0
    %v3980 = vadd.f32 %v3907, %v3979
    %3981 = vdwg.mxu0
    %3982 = vmatprep.subr.bf16.mxu0 %v2531
    %3983 = vmatpush1.bf16.msra.mxu0 %v2530
    %3984 = vmatprep.subr.bf16.mxu0 %v2535
    %3985 = vmatpush1.bf16.msra.mxu0 %v2534
    %3986 = vmatprep.subr.bf16.mxu0 %v2539
    %3987 = vmatpush1.bf16.msra.mxu0 %v2538
    %3988 = vmatprep.subr.bf16.mxu0 %v2543
    %3989 = vmatpush1.bf16.msra.mxu0 %v2542
    %3990 = vmatprep.subr.bf16.mxu0 %v2547
    %3991 = vmatpush1.bf16.msra.mxu0 %v2546
    %3992 = vmatprep.subr.bf16.mxu0 %v2551
    %3993 = vmatpush1.bf16.msra.mxu0 %v2550
    %3994 = vmatprep.subr.bf16.mxu0 %v2555
    %3995 = vmatpush1.bf16.msra.mxu0 %v2554
    %3996 = vmatprep.subr.bf16.mxu0 %v2559
    %3997 = vmatpush1.bf16.msra.mxu0 %v2558
    %3998 = vmatprep.subr.bf16.mxu0 %v2563
    %3999 = vmatpush1.bf16.msra.mxu0 %v2562
    %4000 = vmatprep.subr.bf16.mxu0 %v2567
    %4001 = vmatpush1.bf16.msra.mxu0 %v2566
    %4002 = vmatprep.subr.bf16.mxu0 %v2571
    %4003 = vmatpush1.bf16.msra.mxu0 %v2570
    %4004 = vmatprep.subr.bf16.mxu0 %v2575
    %4005 = vmatpush1.bf16.msra.mxu0 %v2574
    %4006 = vmatprep.subr.bf16.mxu0 %v2579
    %4007 = vmatpush1.bf16.msra.mxu0 %v2578
    %4008 = vmatprep.subr.bf16.mxu0 %v2583
    %4009 = vmatpush1.bf16.msra.mxu0 %v2582
    %4010 = vmatprep.subr.bf16.mxu0 %v2587
    %4011 = vmatpush1.bf16.msra.mxu0 %v2586
    %4012 = vmatprep.subr.bf16.mxu0 %v2591
    %4013 = vmatpush1.bf16.msra.mxu0 %v2590
    %4014 = vmatprep.mubr.bf16.mxu0 %v1327
    %4015 = vmatmul.mubr.bf16.gmra.mrb[0].mxu0 %v1326
    %v4016 = vpop.f32.mrb[0].mxu0
    %v4017 = vadd.f32 %v3944, %v4016
    %v4018 = vpop.f32.mrb[0].mxu0
    %v4019 = vadd.f32 %v3946, %v4018
    %v4020 = vpop.f32.mrb[0].mxu0
    %v4021 = vadd.f32 %v3948, %v4020
    %v4022 = vpop.f32.mrb[0].mxu0
    %v4023 = vadd.f32 %v3950, %v4022
    %4024 = vmatprep.mubr.bf16.mxu0 %v1335
    %4025 = vmatmul.mubr.bf16.gmra.mrb[0].mxu0 %v1334
    %v4026 = vpop.f32.mrb[0].mxu0
    %v4027 = vadd.f32 %v3954, %v4026
    %v4028 = vpop.f32.mrb[0].mxu0
    %v4029 = vadd.f32 %v3956, %v4028
    %v4030 = vpop.f32.mrb[0].mxu0
    %v4031 = vadd.f32 %v3958, %v4030
    %v4032 = vpop.f32.mrb[0].mxu0
    %v4033 = vadd.f32 %v3960, %v4032
    %4034 = vmatprep.mubr.bf16.mxu0 %v1343
    %4035 = vmatmul.mubr.bf16.gmra.mrb[0].mxu0 %v1342
    %v4036 = vpop.f32.mrb[0].mxu0
    %v4037 = vadd.f32 %v3964, %v4036
    %v4038 = vpop.f32.mrb[0].mxu0
    %v4039 = vadd.f32 %v3966, %v4038
    %v4040 = vpop.f32.mrb[0].mxu0
    %v4041 = vadd.f32 %v3968, %v4040
    %v4042 = vpop.f32.mrb[0].mxu0
    %v4043 = vadd.f32 %v3970, %v4042
    %4044 = vmatprep.mubr.bf16.mxu0 %v1351
    %4045 = vmatmul.mubr.bf16.gmra.mrb[0].mxu0 %v1350
    %v4046 = vpop.f32.mrb[0].mxu0
    %v4047 = vadd.f32 %v3974, %v4046
    %v4048 = vpop.f32.mrb[0].mxu0
    %v4049 = vadd.f32 %v3976, %v4048
    %v4050 = vpop.f32.mrb[0].mxu0
    %v4051 = vadd.f32 %v3978, %v4050
    %v4052 = vpop.f32.mrb[0].mxu0
    %v4053 = vadd.f32 %v3980, %v4052
    %4054 = vdwg.mxu0
    %4055 = vmatprep.subr.bf16.mxu0 %v2595
    %4056 = vmatpush1.bf16.msra.mxu0 %v2594
    %4057 = vmatprep.subr.bf16.mxu0 %v2599
    %4058 = vmatpush1.bf16.msra.mxu0 %v2598
    %4059 = vmatprep.subr.bf16.mxu0 %v2603
    %4060 = vmatpush1.bf16.msra.mxu0 %v2602
    %4061 = vmatprep.subr.bf16.mxu0 %v2607
    %4062 = vmatpush1.bf16.msra.mxu0 %v2606
    %4063 = vmatprep.subr.bf16.mxu0 %v2611
    %4064 = vmatpush1.bf16.msra.mxu0 %v2610
    %4065 = vmatprep.subr.bf16.mxu0 %v2615
    %4066 = vmatpush1.bf16.msra.mxu0 %v2614
    %4067 = vmatprep.subr.bf16.mxu0 %v2619
    %4068 = vmatpush1.bf16.msra.mxu0 %v2618
    %4069 = vmatprep.subr.bf16.mxu0 %v2623
    %4070 = vmatpush1.bf16.msra.mxu0 %v2622
    %4071 = vmatprep.subr.bf16.mxu0 %v2627
    %4072 = vmatpush1.bf16.msra.mxu0 %v2626
    %4073 = vmatprep.subr.bf16.mxu0 %v2631
    %4074 = vmatpush1.bf16.msra.mxu0 %v2630
    %4075 = vmatprep.subr.bf16.mxu0 %v2635
    %4076 = vmatpush1.bf16.msra.mxu0 %v2634
    %4077 = vmatprep.subr.bf16.mxu0 %v2639
    %4078 = vmatpush1.bf16.msra.mxu0 %v2638
    %4079 = vmatprep.subr.bf16.mxu0 %v2643
    %4080 = vmatpush1.bf16.msra.mxu0 %v2642
    %4081 = vmatprep.subr.bf16.mxu0 %v2647
    %4082 = vmatpush1.bf16.msra.mxu0 %v2646
    %4083 = vmatprep.subr.bf16.mxu0 %v2651
    %4084 = vmatpush1.bf16.msra.mxu0 %v2650
    %4085 = vmatprep.subr.bf16.mxu0 %v2655
    %4086 = vmatpush1.bf16.msra.mxu0 %v2654
    %4087 = vmatprep.mubr.bf16.mxu0 %v1329
    %4088 = vmatmul.mubr.bf16.gmra.mrb[0].mxu0 %v1328
    %v4089 = vpop.f32.mrb[0].mxu0
    %v4090 = vadd.f32 %v4017, %v4089
    %v4091 = vpop.f32.mrb[0].mxu0
    %v4092 = vadd.f32 %v4019, %v4091
    %v4093 = vpop.f32.mrb[0].mxu0
    %v4094 = vadd.f32 %v4021, %v4093
    %v4095 = vpop.f32.mrb[0].mxu0
    %v4096 = vadd.f32 %v4023, %v4095
    %4097 = vmatprep.mubr.bf16.mxu0 %v1337
    %4098 = vmatmul.mubr.bf16.gmra.mrb[0].mxu0 %v1336
    %v4099 = vpop.f32.mrb[0].mxu0
    %v4100 = vadd.f32 %v4027, %v4099
    %v4101 = vpop.f32.mrb[0].mxu0
    %v4102 = vadd.f32 %v4029, %v4101
    %v4103 = vpop.f32.mrb[0].mxu0
    %v4104 = vadd.f32 %v4031, %v4103
    %v4105 = vpop.f32.mrb[0].mxu0
    %v4106 = vadd.f32 %v4033, %v4105
    %4107 = vmatprep.mubr.bf16.mxu0 %v1345
    %4108 = vmatmul.mubr.bf16.gmra.mrb[0].mxu0 %v1344
    %v4109 = vpop.f32.mrb[0].mxu0
    %v4110 = vadd.f32 %v4037, %v4109
    %v4111 = vpop.f32.mrb[0].mxu0
    %v4112 = vadd.f32 %v4039, %v4111
    %v4113 = vpop.f32.mrb[0].mxu0
    %v4114 = vadd.f32 %v4041, %v4113
    %v4115 = vpop.f32.mrb[0].mxu0
    %v4116 = vadd.f32 %v4043, %v4115
    %4117 = vmatprep.mubr.bf16.mxu0 %v1353
    %4118 = vmatmul.mubr.bf16.gmra.mrb[0].mxu0 %v1352
    %v4119 = vpop.f32.mrb[0].mxu0
    %v4120 = vadd.f32 %v4047, %v4119
    %v4121 = vpop.f32.mrb[0].mxu0
    %v4122 = vadd.f32 %v4049, %v4121
    %v4123 = vpop.f32.mrb[0].mxu0
    %v4124 = vadd.f32 %v4051, %v4123
    %v4125 = vpop.f32.mrb[0].mxu0
    %v4126 = vadd.f32 %v4053, %v4125
    %4127 = vdwg.mxu0
    %v4128 = vmax.f32 %v3798, 0.0
    %v4129 = vmax.f32 %v3800, 0.0
    %v4130 = vmax.f32 %v4090, 0.0
    %v4131 = vmax.f32 %v4092, 0.0
    %v4132 = vmax.f32 %v3802, 0.0
    %v4133 = vmax.f32 %v3804, 0.0
    %v4134 = vmax.f32 %v4094, 0.0
    %v4135 = vmax.f32 %v4096, 0.0
    %v4136 = vmax.f32 %v3808, 0.0
    %v4137 = vmax.f32 %v3810, 0.0
    %v4138 = vmax.f32 %v4100, 0.0
    %v4139 = vmax.f32 %v4102, 0.0
    %v4140 = vmax.f32 %v3812, 0.0
    %v4141 = vmax.f32 %v3814, 0.0
    %v4142 = vmax.f32 %v4104, 0.0
    %v4143 = vmax.f32 %v4106, 0.0
    %v4144 = vmax.f32 %v3818, 0.0
    %v4145 = vmax.f32 %v3820, 0.0
    %v4146 = vmax.f32 %v4110, 0.0
    %v4147 = vmax.f32 %v4112, 0.0
    %v4148 = vmax.f32 %v3822, 0.0
    %v4149 = vmax.f32 %v3824, 0.0
    %v4150 = vmax.f32 %v4114, 0.0
    %v4151 = vmax.f32 %v4116, 0.0
    %v4152 = vmax.f32 %v3828, 0.0
    %v4153 = vmax.f32 %v3830, 0.0
    %v4154 = vmax.f32 %v4120, 0.0
    %v4155 = vmax.f32 %v4122, 0.0
    %v4156 = vmax.f32 %v3832, 0.0
    %v4157 = vmax.f32 %v3834, 0.0
    %v4158 = vmax.f32 %v4124, 0.0
    %v4159 = vmax.f32 %v4126, 0.0
    %v4160 = vpack.c.bf16 %v4132, %v4128
    %v4161 = vpack.c.bf16 %v4133, %v4129
    %v4162 = vpack.c.bf16 %v4134, %v4130
    %v4163 = vpack.c.bf16 %v4135, %v4131
    %v4164 = vpack.c.bf16 %v4140, %v4136
    %v4165 = vpack.c.bf16 %v4141, %v4137
    %v4166 = vpack.c.bf16 %v4142, %v4138
    %v4167 = vpack.c.bf16 %v4143, %v4139
    %v4168 = vpack.c.bf16 %v4148, %v4144
    %v4169 = vpack.c.bf16 %v4149, %v4145
    %v4170 = vpack.c.bf16 %v4150, %v4146
    %v4171 = vpack.c.bf16 %v4151, %v4147
    %v4172 = vpack.c.bf16 %v4156, %v4152
    %v4173 = vpack.c.bf16 %v4157, %v4153
    %v4174 = vpack.c.bf16 %v4158, %v4154
    %v4175 = vpack.c.bf16 %v4159, %v4155
    %v4176 = vld [vmem:[#allocation6] sm:$0xff]
    %v4177 = vld [vmem:[#allocation6 + $0x8] sm:$0xff]
    %v4178 = vld [vmem:[#allocation6 + $0x10] sm:$0xff]
    %v4179 = vld [vmem:[#allocation6 + $0x18] sm:$0xff]
    %v4180 = vld [vmem:[#allocation6 + $0x20] sm:$0xff]
    %v4181 = vld [vmem:[#allocation6 + $0x28] sm:$0xff]
    %v4182 = vld [vmem:[#allocation6 + $0x30] sm:$0xff]
    %v4183 = vld [vmem:[#allocation6 + $0x38] sm:$0xff]
    %v4184 = vld [vmem:[#allocation6 + $0x40] sm:$0xff]
    %v4185 = vld [vmem:[#allocation6 + $0x48] sm:$0xff]
    %v4186 = vld [vmem:[#allocation6 + $0x50] sm:$0xff]
    %v4187 = vld [vmem:[#allocation6 + $0x58] sm:$0xff]
    %v4188 = vld [vmem:[#allocation6 + $0x60] sm:$0xff]
    %v4189 = vld [vmem:[#allocation6 + $0x68] sm:$0xff]
    %v4190 = vld [vmem:[#allocation6 + $0x70] sm:$0xff]
    %v4191 = vld [vmem:[#allocation6 + $0x78] sm:$0xff]
    %v4192 = vld [vmem:[#allocation6 + $0x80] sm:$0xff]
    %v4193 = vld [vmem:[#allocation6 + $0x88] sm:$0xff]
    %v4194 = vld [vmem:[#allocation6 + $0x90] sm:$0xff]
    %v4195 = vld [vmem:[#allocation6 + $0x98] sm:$0xff]
    %v4196 = vld [vmem:[#allocation6 + $0xa0] sm:$0xff]
    %v4197 = vld [vmem:[#allocation6 + $0xa8] sm:$0xff]
    %v4198 = vld [vmem:[#allocation6 + $0xb0] sm:$0xff]
    %v4199 = vld [vmem:[#allocation6 + $0xb8] sm:$0xff]
    %v4200 = vld [vmem:[#allocation6 + $0xc0] sm:$0xff]
    %v4201 = vld [vmem:[#allocation6 + $0xc8] sm:$0xff]
    %v4202 = vld [vmem:[#allocation6 + $0xd0] sm:$0xff]
    %v4203 = vld [vmem:[#allocation6 + $0xd8] sm:$0xff]
    %v4204 = vld [vmem:[#allocation6 + $0xe0] sm:$0xff]
    %v4205 = vld [vmem:[#allocation6 + $0xe8] sm:$0xff]
    %v4206 = vld [vmem:[#allocation6 + $0xf0] sm:$0xff]
    %v4207 = vld [vmem:[#allocation6 + $0xf8] sm:$0xff]
    %v4208 = vld [vmem:[#allocation6 + $0x100] sm:$0xff]
    %v4209 = vld [vmem:[#allocation6 + $0x108] sm:$0xff]
    %v4210 = vld [vmem:[#allocation6 + $0x110] sm:$0xff]
    %v4211 = vld [vmem:[#allocation6 + $0x118] sm:$0xff]
    %v4212 = vld [vmem:[#allocation6 + $0x120] sm:$0xff]
    %v4213 = vld [vmem:[#allocation6 + $0x128] sm:$0xff]
    %v4214 = vld [vmem:[#allocation6 + $0x130] sm:$0xff]
    %v4215 = vld [vmem:[#allocation6 + $0x138] sm:$0xff]
    %v4216 = vld [vmem:[#allocation6 + $0x140] sm:$0xff]
    %v4217 = vld [vmem:[#allocation6 + $0x148] sm:$0xff]
    %v4218 = vld [vmem:[#allocation6 + $0x150] sm:$0xff]
    %v4219 = vld [vmem:[#allocation6 + $0x158] sm:$0xff]
    %v4220 = vld [vmem:[#allocation6 + $0x160] sm:$0xff]
    %v4221 = vld [vmem:[#allocation6 + $0x168] sm:$0xff]
    %v4222 = vld [vmem:[#allocation6 + $0x170] sm:$0xff]
    %v4223 = vld [vmem:[#allocation6 + $0x178] sm:$0xff]
    %v4224 = vld [vmem:[#allocation6 + $0x180] sm:$0xff]
    %v4225 = vld [vmem:[#allocation6 + $0x188] sm:$0xff]
    %v4226 = vld [vmem:[#allocation6 + $0x190] sm:$0xff]
    %v4227 = vld [vmem:[#allocation6 + $0x198] sm:$0xff]
    %v4228 = vld [vmem:[#allocation6 + $0x1a0] sm:$0xff]
    %v4229 = vld [vmem:[#allocation6 + $0x1a8] sm:$0xff]
    %v4230 = vld [vmem:[#allocation6 + $0x1b0] sm:$0xff]
    %v4231 = vld [vmem:[#allocation6 + $0x1b8] sm:$0xff]
    %v4232 = vld [vmem:[#allocation6 + $0x1c0] sm:$0xff]
    %v4233 = vld [vmem:[#allocation6 + $0x1c8] sm:$0xff]
    %v4234 = vld [vmem:[#allocation6 + $0x1d0] sm:$0xff]
    %v4235 = vld [vmem:[#allocation6 + $0x1d8] sm:$0xff]
    %v4236 = vld [vmem:[#allocation6 + $0x1e0] sm:$0xff]
    %v4237 = vld [vmem:[#allocation6 + $0x1e8] sm:$0xff]
    %v4238 = vld [vmem:[#allocation6 + $0x1f0] sm:$0xff]
    %v4239 = vld [vmem:[#allocation6 + $0x1f8] sm:$0xff]
    %v4240 = vld [vmem:[#allocation6 + $0x200] sm:$0xff]
    %v4241 = vld [vmem:[#allocation6 + $0x208] sm:$0xff]
    %v4242 = vld [vmem:[#allocation6 + $0x210] sm:$0xff]
    %v4243 = vld [vmem:[#allocation6 + $0x218] sm:$0xff]
    %v4244 = vld [vmem:[#allocation6 + $0x220] sm:$0xff]
    %v4245 = vld [vmem:[#allocation6 + $0x228] sm:$0xff]
    %v4246 = vld [vmem:[#allocation6 + $0x230] sm:$0xff]
    %v4247 = vld [vmem:[#allocation6 + $0x238] sm:$0xff]
    %v4248 = vld [vmem:[#allocation6 + $0x240] sm:$0xff]
    %v4249 = vld [vmem:[#allocation6 + $0x248] sm:$0xff]
    %v4250 = vld [vmem:[#allocation6 + $0x250] sm:$0xff]
    %v4251 = vld [vmem:[#allocation6 + $0x258] sm:$0xff]
    %v4252 = vld [vmem:[#allocation6 + $0x260] sm:$0xff]
    %v4253 = vld [vmem:[#allocation6 + $0x268] sm:$0xff]
    %v4254 = vld [vmem:[#allocation6 + $0x270] sm:$0xff]
    %v4255 = vld [vmem:[#allocation6 + $0x278] sm:$0xff]
    %v4256 = vld [vmem:[#allocation6 + $0x280] sm:$0xff]
    %v4257 = vld [vmem:[#allocation6 + $0x288] sm:$0xff]
    %v4258 = vld [vmem:[#allocation6 + $0x290] sm:$0xff]
    %v4259 = vld [vmem:[#allocation6 + $0x298] sm:$0xff]
    %v4260 = vld [vmem:[#allocation6 + $0x2a0] sm:$0xff]
    %v4261 = vld [vmem:[#allocation6 + $0x2a8] sm:$0xff]
    %v4262 = vld [vmem:[#allocation6 + $0x2b0] sm:$0xff]
    %v4263 = vld [vmem:[#allocation6 + $0x2b8] sm:$0xff]
    %v4264 = vld [vmem:[#allocation6 + $0x2c0] sm:$0xff]
    %v4265 = vld [vmem:[#allocation6 + $0x2c8] sm:$0xff]
    %v4266 = vld [vmem:[#allocation6 + $0x2d0] sm:$0xff]
    %v4267 = vld [vmem:[#allocation6 + $0x2d8] sm:$0xff]
    %v4268 = vld [vmem:[#allocation6 + $0x2e0] sm:$0xff]
    %v4269 = vld [vmem:[#allocation6 + $0x2e8] sm:$0xff]
    %v4270 = vld [vmem:[#allocation6 + $0x2f0] sm:$0xff]
    %v4271 = vld [vmem:[#allocation6 + $0x2f8] sm:$0xff]
    %v4272 = vld [vmem:[#allocation6 + $0x300] sm:$0xff]
    %v4273 = vld [vmem:[#allocation6 + $0x308] sm:$0xff]
    %v4274 = vld [vmem:[#allocation6 + $0x310] sm:$0xff]
    %v4275 = vld [vmem:[#allocation6 + $0x318] sm:$0xff]
    %v4276 = vld [vmem:[#allocation6 + $0x320] sm:$0xff]
    %v4277 = vld [vmem:[#allocation6 + $0x328] sm:$0xff]
    %v4278 = vld [vmem:[#allocation6 + $0x330] sm:$0xff]
    %v4279 = vld [vmem:[#allocation6 + $0x338] sm:$0xff]
    %v4280 = vld [vmem:[#allocation6 + $0x340] sm:$0xff]
    %v4281 = vld [vmem:[#allocation6 + $0x348] sm:$0xff]
    %v4282 = vld [vmem:[#allocation6 + $0x350] sm:$0xff]
    %v4283 = vld [vmem:[#allocation6 + $0x358] sm:$0xff]
    %v4284 = vld [vmem:[#allocation6 + $0x360] sm:$0xff]
    %v4285 = vld [vmem:[#allocation6 + $0x368] sm:$0xff]
    %v4286 = vld [vmem:[#allocation6 + $0x370] sm:$0xff]
    %v4287 = vld [vmem:[#allocation6 + $0x378] sm:$0xff]
    %v4288 = vld [vmem:[#allocation6 + $0x380] sm:$0xff]
    %v4289 = vld [vmem:[#allocation6 + $0x388] sm:$0xff]
    %v4290 = vld [vmem:[#allocation6 + $0x390] sm:$0xff]
    %v4291 = vld [vmem:[#allocation6 + $0x398] sm:$0xff]
    %v4292 = vld [vmem:[#allocation6 + $0x3a0] sm:$0xff]
    %v4293 = vld [vmem:[#allocation6 + $0x3a8] sm:$0xff]
    %v4294 = vld [vmem:[#allocation6 + $0x3b0] sm:$0xff]
    %v4295 = vld [vmem:[#allocation6 + $0x3b8] sm:$0xff]
    %v4296 = vld [vmem:[#allocation6 + $0x3c0] sm:$0xff]
    %v4297 = vld [vmem:[#allocation6 + $0x3c8] sm:$0xff]
    %v4298 = vld [vmem:[#allocation6 + $0x3d0] sm:$0xff]
    %v4299 = vld [vmem:[#allocation6 + $0x3d8] sm:$0xff]
    %v4300 = vld [vmem:[#allocation6 + $0x3e0] sm:$0xff]
    %v4301 = vld [vmem:[#allocation6 + $0x3e8] sm:$0xff]
    %v4302 = vld [vmem:[#allocation6 + $0x3f0] sm:$0xff]
    %v4303 = vld [vmem:[#allocation6 + $0x3f8] sm:$0xff]
    %v4304 = vld [vmem:[#allocation6 + $0x400] sm:$0xff]
    %v4305 = vld [vmem:[#allocation6 + $0x408] sm:$0xff]
    %v4306 = vld [vmem:[#allocation6 + $0x410] sm:$0xff]
    %v4307 = vld [vmem:[#allocation6 + $0x418] sm:$0xff]
    %v4308 = vld [vmem:[#allocation6 + $0x420] sm:$0xff]
    %v4309 = vld [vmem:[#allocation6 + $0x428] sm:$0xff]
    %v4310 = vld [vmem:[#allocation6 + $0x430] sm:$0xff]
    %v4311 = vld [vmem:[#allocation6 + $0x438] sm:$0xff]
    %v4312 = vld [vmem:[#allocation6 + $0x440] sm:$0xff]
    %v4313 = vld [vmem:[#allocation6 + $0x448] sm:$0xff]
    %v4314 = vld [vmem:[#allocation6 + $0x450] sm:$0xff]
    %v4315 = vld [vmem:[#allocation6 + $0x458] sm:$0xff]
    %v4316 = vld [vmem:[#allocation6 + $0x460] sm:$0xff]
    %v4317 = vld [vmem:[#allocation6 + $0x468] sm:$0xff]
    %v4318 = vld [vmem:[#allocation6 + $0x470] sm:$0xff]
    %v4319 = vld [vmem:[#allocation6 + $0x478] sm:$0xff]
    %v4320 = vld [vmem:[#allocation6 + $0x480] sm:$0xff]
    %v4321 = vld [vmem:[#allocation6 + $0x488] sm:$0xff]
    %v4322 = vld [vmem:[#allocation6 + $0x490] sm:$0xff]
    %v4323 = vld [vmem:[#allocation6 + $0x498] sm:$0xff]
    %v4324 = vld [vmem:[#allocation6 + $0x4a0] sm:$0xff]
    %v4325 = vld [vmem:[#allocation6 + $0x4a8] sm:$0xff]
    %v4326 = vld [vmem:[#allocation6 + $0x4b0] sm:$0xff]
    %v4327 = vld [vmem:[#allocation6 + $0x4b8] sm:$0xff]
    %v4328 = vld [vmem:[#allocation6 + $0x4c0] sm:$0xff]
    %v4329 = vld [vmem:[#allocation6 + $0x4c8] sm:$0xff]
    %v4330 = vld [vmem:[#allocation6 + $0x4d0] sm:$0xff]
    %v4331 = vld [vmem:[#allocation6 + $0x4d8] sm:$0xff]
    %v4332 = vld [vmem:[#allocation6 + $0x4e0] sm:$0xff]
    %v4333 = vld [vmem:[#allocation6 + $0x4e8] sm:$0xff]
    %v4334 = vld [vmem:[#allocation6 + $0x4f0] sm:$0xff]
    %v4335 = vld [vmem:[#allocation6 + $0x4f8] sm:$0xff]
    %v4336 = vld [vmem:[#allocation6 + $0x500] sm:$0xff]
    %v4337 = vld [vmem:[#allocation6 + $0x508] sm:$0xff]
    %v4338 = vld [vmem:[#allocation6 + $0x510] sm:$0xff]
    %v4339 = vld [vmem:[#allocation6 + $0x518] sm:$0xff]
    %v4340 = vld [vmem:[#allocation6 + $0x520] sm:$0xff]
    %v4341 = vld [vmem:[#allocation6 + $0x528] sm:$0xff]
    %v4342 = vld [vmem:[#allocation6 + $0x530] sm:$0xff]
    %v4343 = vld [vmem:[#allocation6 + $0x538] sm:$0xff]
    %v4344 = vld [vmem:[#allocation6 + $0x540] sm:$0xff]
    %v4345 = vld [vmem:[#allocation6 + $0x548] sm:$0xff]
    %v4346 = vld [vmem:[#allocation6 + $0x550] sm:$0xff]
    %v4347 = vld [vmem:[#allocation6 + $0x558] sm:$0xff]
    %v4348 = vld [vmem:[#allocation6 + $0x560] sm:$0xff]
    %v4349 = vld [vmem:[#allocation6 + $0x568] sm:$0xff]
    %v4350 = vld [vmem:[#allocation6 + $0x570] sm:$0xff]
    %v4351 = vld [vmem:[#allocation6 + $0x578] sm:$0xff]
    %v4352 = vld [vmem:[#allocation6 + $0x580] sm:$0xff]
    %v4353 = vld [vmem:[#allocation6 + $0x588] sm:$0xff]
    %v4354 = vld [vmem:[#allocation6 + $0x590] sm:$0xff]
    %v4355 = vld [vmem:[#allocation6 + $0x598] sm:$0xff]
    %v4356 = vld [vmem:[#allocation6 + $0x5a0] sm:$0xff]
    %v4357 = vld [vmem:[#allocation6 + $0x5a8] sm:$0xff]
    %v4358 = vld [vmem:[#allocation6 + $0x5b0] sm:$0xff]
    %v4359 = vld [vmem:[#allocation6 + $0x5b8] sm:$0xff]
    %v4360 = vld [vmem:[#allocation6 + $0x5c0] sm:$0xff]
    %v4361 = vld [vmem:[#allocation6 + $0x5c8] sm:$0xff]
    %v4362 = vld [vmem:[#allocation6 + $0x5d0] sm:$0xff]
    %v4363 = vld [vmem:[#allocation6 + $0x5d8] sm:$0xff]
    %v4364 = vld [vmem:[#allocation6 + $0x5e0] sm:$0xff]
    %v4365 = vld [vmem:[#allocation6 + $0x5e8] sm:$0xff]
    %v4366 = vld [vmem:[#allocation6 + $0x5f0] sm:$0xff]
    %v4367 = vld [vmem:[#allocation6 + $0x5f8] sm:$0xff]
    %v4368 = vld [vmem:[#allocation6 + $0x600] sm:$0xff]
    %v4369 = vld [vmem:[#allocation6 + $0x608] sm:$0xff]
    %v4370 = vld [vmem:[#allocation6 + $0x610] sm:$0xff]
    %v4371 = vld [vmem:[#allocation6 + $0x618] sm:$0xff]
    %v4372 = vld [vmem:[#allocation6 + $0x620] sm:$0xff]
    %v4373 = vld [vmem:[#allocation6 + $0x628] sm:$0xff]
    %v4374 = vld [vmem:[#allocation6 + $0x630] sm:$0xff]
    %v4375 = vld [vmem:[#allocation6 + $0x638] sm:$0xff]
    %v4376 = vld [vmem:[#allocation6 + $0x640] sm:$0xff]
    %v4377 = vld [vmem:[#allocation6 + $0x648] sm:$0xff]
    %v4378 = vld [vmem:[#allocation6 + $0x650] sm:$0xff]
    %v4379 = vld [vmem:[#allocation6 + $0x658] sm:$0xff]
    %v4380 = vld [vmem:[#allocation6 + $0x660] sm:$0xff]
    %v4381 = vld [vmem:[#allocation6 + $0x668] sm:$0xff]
    %v4382 = vld [vmem:[#allocation6 + $0x670] sm:$0xff]
    %v4383 = vld [vmem:[#allocation6 + $0x678] sm:$0xff]
    %v4384 = vld [vmem:[#allocation6 + $0x680] sm:$0xff]
    %v4385 = vld [vmem:[#allocation6 + $0x688] sm:$0xff]
    %v4386 = vld [vmem:[#allocation6 + $0x690] sm:$0xff]
    %v4387 = vld [vmem:[#allocation6 + $0x698] sm:$0xff]
    %v4388 = vld [vmem:[#allocation6 + $0x6a0] sm:$0xff]
    %v4389 = vld [vmem:[#allocation6 + $0x6a8] sm:$0xff]
    %v4390 = vld [vmem:[#allocation6 + $0x6b0] sm:$0xff]
    %v4391 = vld [vmem:[#allocation6 + $0x6b8] sm:$0xff]
    %v4392 = vld [vmem:[#allocation6 + $0x6c0] sm:$0xff]
    %v4393 = vld [vmem:[#allocation6 + $0x6c8] sm:$0xff]
    %v4394 = vld [vmem:[#allocation6 + $0x6d0] sm:$0xff]
    %v4395 = vld [vmem:[#allocation6 + $0x6d8] sm:$0xff]
    %v4396 = vld [vmem:[#allocation6 + $0x6e0] sm:$0xff]
    %v4397 = vld [vmem:[#allocation6 + $0x6e8] sm:$0xff]
    %v4398 = vld [vmem:[#allocation6 + $0x6f0] sm:$0xff]
    %v4399 = vld [vmem:[#allocation6 + $0x6f8] sm:$0xff]
    %v4400 = vld [vmem:[#allocation6 + $0x700] sm:$0xff]
    %v4401 = vld [vmem:[#allocation6 + $0x708] sm:$0xff]
    %v4402 = vld [vmem:[#allocation6 + $0x710] sm:$0xff]
    %v4403 = vld [vmem:[#allocation6 + $0x718] sm:$0xff]
    %v4404 = vld [vmem:[#allocation6 + $0x720] sm:$0xff]
    %v4405 = vld [vmem:[#allocation6 + $0x728] sm:$0xff]
    %v4406 = vld [vmem:[#allocation6 + $0x730] sm:$0xff]
    %v4407 = vld [vmem:[#allocation6 + $0x738] sm:$0xff]
    %v4408 = vld [vmem:[#allocation6 + $0x740] sm:$0xff]
    %v4409 = vld [vmem:[#allocation6 + $0x748] sm:$0xff]
    %v4410 = vld [vmem:[#allocation6 + $0x750] sm:$0xff]
    %v4411 = vld [vmem:[#allocation6 + $0x758] sm:$0xff]
    %v4412 = vld [vmem:[#allocation6 + $0x760] sm:$0xff]
    %v4413 = vld [vmem:[#allocation6 + $0x768] sm:$0xff]
    %v4414 = vld [vmem:[#allocation6 + $0x770] sm:$0xff]
    %v4415 = vld [vmem:[#allocation6 + $0x778] sm:$0xff]
    %v4416 = vld [vmem:[#allocation6 + $0x780] sm:$0xff]
    %v4417 = vld [vmem:[#allocation6 + $0x788] sm:$0xff]
    %v4418 = vld [vmem:[#allocation6 + $0x790] sm:$0xff]
    %v4419 = vld [vmem:[#allocation6 + $0x798] sm:$0xff]
    %v4420 = vld [vmem:[#allocation6 + $0x7a0] sm:$0xff]
    %v4421 = vld [vmem:[#allocation6 + $0x7a8] sm:$0xff]
    %v4422 = vld [vmem:[#allocation6 + $0x7b0] sm:$0xff]
    %v4423 = vld [vmem:[#allocation6 + $0x7b8] sm:$0xff]
    %v4424 = vld [vmem:[#allocation6 + $0x7c0] sm:$0xff]
    %v4425 = vld [vmem:[#allocation6 + $0x7c8] sm:$0xff]
    %v4426 = vld [vmem:[#allocation6 + $0x7d0] sm:$0xff]
    %v4427 = vld [vmem:[#allocation6 + $0x7d8] sm:$0xff]
    %v4428 = vld [vmem:[#allocation6 + $0x7e0] sm:$0xff]
    %v4429 = vld [vmem:[#allocation6 + $0x7e8] sm:$0xff]
    %v4430 = vld [vmem:[#allocation6 + $0x7f0] sm:$0xff]
    %v4431 = vld [vmem:[#allocation6 + $0x7f8] sm:$0xff]
    %v4432 = vld [vmem:[%s6] sm:$0xff]
    %v4434 = vlaneseq
    %v4435 = vshrl.u32 %v4434, 7
    %v4436 = vsub.s32 0, %v4435
    %v4437 = vrot.slane %v4432, %v4436
    %v4438 = vlaneseq
    %v4439 = vshrl.u32 %v4438, 7
    %v4440 = vsub.s32 1, %v4439
    %v4441 = vrot.slane %v4432, %v4440
    %v4442 = vlaneseq
    %v4443 = vshrl.u32 %v4442, 7
    %v4444 = vsub.s32 2, %v4443
    %v4445 = vrot.slane %v4432, %v4444
    %v4446 = vlaneseq
    %v4447 = vshrl.u32 %v4446, 7
    %v4448 = vsub.s32 3, %v4447
    %v4449 = vrot.slane %v4432, %v4448
    %v4450 = vlaneseq
    %v4451 = vshrl.u32 %v4450, 7
    %v4452 = vsub.s32 4, %v4451
    %v4453 = vrot.slane %v4432, %v4452
    %v4454 = vlaneseq
    %v4455 = vshrl.u32 %v4454, 7
    %v4456 = vsub.s32 5, %v4455
    %v4457 = vrot.slane %v4432, %v4456
    %v4458 = vlaneseq
    %v4459 = vshrl.u32 %v4458, 7
    %v4460 = vsub.s32 6, %v4459
    %v4461 = vrot.slane %v4432, %v4460
    %v4462 = vlaneseq
    %v4463 = vshrl.u32 %v4462, 7
    %v4464 = vsub.s32 7, %v4463
    %v4465 = vrot.slane %v4432, %v4464
    %v4730 = vunpack.c.l.b16 %v4176
    %v4731 = vunpack.c.h.b16 %v4176
    %v4732 = vunpack.c.l.b16 %v4177
    %v4733 = vunpack.c.h.b16 %v4177
    %v4734 = vunpack.c.l.b16 %v4178
    %v4735 = vunpack.c.h.b16 %v4178
    %v4736 = vunpack.c.l.b16 %v4179
    %v4737 = vunpack.c.h.b16 %v4179
    %v4738 = vunpack.c.l.b16 %v4180
    %v4739 = vunpack.c.h.b16 %v4180
    %v4740 = vunpack.c.l.b16 %v4181
    %v4741 = vunpack.c.h.b16 %v4181
    %v4742 = vunpack.c.l.b16 %v4182
    %v4743 = vunpack.c.h.b16 %v4182
    %v4744 = vunpack.c.l.b16 %v4183
    %v4745 = vunpack.c.h.b16 %v4183
    %v4746 = vunpack.c.l.b16 %v4184
    %v4747 = vunpack.c.h.b16 %v4184
    %v4748 = vunpack.c.l.b16 %v4185
    %v4749 = vunpack.c.h.b16 %v4185
    %v4750 = vunpack.c.l.b16 %v4186
    %v4751 = vunpack.c.h.b16 %v4186
    %v4752 = vunpack.c.l.b16 %v4187
    %v4753 = vunpack.c.h.b16 %v4187
    %v4754 = vunpack.c.l.b16 %v4188
    %v4755 = vunpack.c.h.b16 %v4188
    %v4756 = vunpack.c.l.b16 %v4189
    %v4757 = vunpack.c.h.b16 %v4189
    %v4758 = vunpack.c.l.b16 %v4190
    %v4759 = vunpack.c.h.b16 %v4190
    %v4760 = vunpack.c.l.b16 %v4191
    %v4761 = vunpack.c.h.b16 %v4191
    %v4762 = vunpack.c.l.b16 %v4192
    %v4763 = vunpack.c.h.b16 %v4192
    %v4764 = vunpack.c.l.b16 %v4193
    %v4765 = vunpack.c.h.b16 %v4193
    %v4766 = vunpack.c.l.b16 %v4194
    %v4767 = vunpack.c.h.b16 %v4194
    %v4768 = vunpack.c.l.b16 %v4195
    %v4769 = vunpack.c.h.b16 %v4195
    %v4770 = vunpack.c.l.b16 %v4196
    %v4771 = vunpack.c.h.b16 %v4196
    %v4772 = vunpack.c.l.b16 %v4197
    %v4773 = vunpack.c.h.b16 %v4197
    %v4774 = vunpack.c.l.b16 %v4198
    %v4775 = vunpack.c.h.b16 %v4198
    %v4776 = vunpack.c.l.b16 %v4199
    %v4777 = vunpack.c.h.b16 %v4199
    %v4778 = vunpack.c.l.b16 %v4200
    %v4779 = vunpack.c.h.b16 %v4200
    %v4780 = vunpack.c.l.b16 %v4201
    %v4781 = vunpack.c.h.b16 %v4201
    %v4782 = vunpack.c.l.b16 %v4202
    %v4783 = vunpack.c.h.b16 %v4202
    %v4784 = vunpack.c.l.b16 %v4203
    %v4785 = vunpack.c.h.b16 %v4203
    %v4786 = vunpack.c.l.b16 %v4204
    %v4787 = vunpack.c.h.b16 %v4204
    %v4788 = vunpack.c.l.b16 %v4205
    %v4789 = vunpack.c.h.b16 %v4205
    %v4790 = vunpack.c.l.b16 %v4206
    %v4791 = vunpack.c.h.b16 %v4206
    %v4792 = vunpack.c.l.b16 %v4207
    %v4793 = vunpack.c.h.b16 %v4207
    %v4794 = vunpack.c.l.b16 %v4208
    %v4795 = vunpack.c.h.b16 %v4208
    %v4796 = vunpack.c.l.b16 %v4209
    %v4797 = vunpack.c.h.b16 %v4209
    %v4798 = vunpack.c.l.b16 %v4210
    %v4799 = vunpack.c.h.b16 %v4210
    %v4800 = vunpack.c.l.b16 %v4211
    %v4801 = vunpack.c.h.b16 %v4211
    %v4802 = vunpack.c.l.b16 %v4212
    %v4803 = vunpack.c.h.b16 %v4212
    %v4804 = vunpack.c.l.b16 %v4213
    %v4805 = vunpack.c.h.b16 %v4213
    %v4806 = vunpack.c.l.b16 %v4214
    %v4807 = vunpack.c.h.b16 %v4214
    %v4808 = vunpack.c.l.b16 %v4215
    %v4809 = vunpack.c.h.b16 %v4215
    %v4810 = vunpack.c.l.b16 %v4216
    %v4811 = vunpack.c.h.b16 %v4216
    %v4812 = vunpack.c.l.b16 %v4217
    %v4813 = vunpack.c.h.b16 %v4217
    %v4814 = vunpack.c.l.b16 %v4218
    %v4815 = vunpack.c.h.b16 %v4218
    %v4816 = vunpack.c.l.b16 %v4219
    %v4817 = vunpack.c.h.b16 %v4219
    %v4818 = vunpack.c.l.b16 %v4220
    %v4819 = vunpack.c.h.b16 %v4220
    %v4820 = vunpack.c.l.b16 %v4221
    %v4821 = vunpack.c.h.b16 %v4221
    %v4822 = vunpack.c.l.b16 %v4222
    %v4823 = vunpack.c.h.b16 %v4222
    %v4824 = vunpack.c.l.b16 %v4223
    %v4825 = vunpack.c.h.b16 %v4223
    %v4826 = vunpack.c.l.b16 %v4224
    %v4827 = vunpack.c.h.b16 %v4224
    %v4828 = vunpack.c.l.b16 %v4225
    %v4829 = vunpack.c.h.b16 %v4225
    %v4830 = vunpack.c.l.b16 %v4226
    %v4831 = vunpack.c.h.b16 %v4226
    %v4832 = vunpack.c.l.b16 %v4227
    %v4833 = vunpack.c.h.b16 %v4227
    %v4834 = vunpack.c.l.b16 %v4228
    %v4835 = vunpack.c.h.b16 %v4228
    %v4836 = vunpack.c.l.b16 %v4229
    %v4837 = vunpack.c.h.b16 %v4229
    %v4838 = vunpack.c.l.b16 %v4230
    %v4839 = vunpack.c.h.b16 %v4230
    %v4840 = vunpack.c.l.b16 %v4231
    %v4841 = vunpack.c.h.b16 %v4231
    %v4842 = vunpack.c.l.b16 %v4232
    %v4843 = vunpack.c.h.b16 %v4232
    %v4844 = vunpack.c.l.b16 %v4233
    %v4845 = vunpack.c.h.b16 %v4233
    %v4846 = vunpack.c.l.b16 %v4234
    %v4847 = vunpack.c.h.b16 %v4234
    %v4848 = vunpack.c.l.b16 %v4235
    %v4849 = vunpack.c.h.b16 %v4235
    %v4850 = vunpack.c.l.b16 %v4236
    %v4851 = vunpack.c.h.b16 %v4236
    %v4852 = vunpack.c.l.b16 %v4237
    %v4853 = vunpack.c.h.b16 %v4237
    %v4854 = vunpack.c.l.b16 %v4238
    %v4855 = vunpack.c.h.b16 %v4238
    %v4856 = vunpack.c.l.b16 %v4239
    %v4857 = vunpack.c.h.b16 %v4239
    %v4858 = vunpack.c.l.b16 %v4240
    %v4859 = vunpack.c.h.b16 %v4240
    %v4860 = vunpack.c.l.b16 %v4241
    %v4861 = vunpack.c.h.b16 %v4241
    %v4862 = vunpack.c.l.b16 %v4242
    %v4863 = vunpack.c.h.b16 %v4242
    %v4864 = vunpack.c.l.b16 %v4243
    %v4865 = vunpack.c.h.b16 %v4243
    %v4866 = vunpack.c.l.b16 %v4244
    %v4867 = vunpack.c.h.b16 %v4244
    %v4868 = vunpack.c.l.b16 %v4245
    %v4869 = vunpack.c.h.b16 %v4245
    %v4870 = vunpack.c.l.b16 %v4246
    %v4871 = vunpack.c.h.b16 %v4246
    %v4872 = vunpack.c.l.b16 %v4247
    %v4873 = vunpack.c.h.b16 %v4247
    %v4874 = vunpack.c.l.b16 %v4248
    %v4875 = vunpack.c.h.b16 %v4248
    %v4876 = vunpack.c.l.b16 %v4249
    %v4877 = vunpack.c.h.b16 %v4249
    %v4878 = vunpack.c.l.b16 %v4250
    %v4879 = vunpack.c.h.b16 %v4250
    %v4880 = vunpack.c.l.b16 %v4251
    %v4881 = vunpack.c.h.b16 %v4251
    %v4882 = vunpack.c.l.b16 %v4252
    %v4883 = vunpack.c.h.b16 %v4252
    %v4884 = vunpack.c.l.b16 %v4253
    %v4885 = vunpack.c.h.b16 %v4253
    %v4886 = vunpack.c.l.b16 %v4254
    %v4887 = vunpack.c.h.b16 %v4254
    %v4888 = vunpack.c.l.b16 %v4255
    %v4889 = vunpack.c.h.b16 %v4255
    %v4890 = vunpack.c.l.b16 %v4256
    %v4891 = vunpack.c.h.b16 %v4256
    %v4892 = vunpack.c.l.b16 %v4257
    %v4893 = vunpack.c.h.b16 %v4257
    %v4894 = vunpack.c.l.b16 %v4258
    %v4895 = vunpack.c.h.b16 %v4258
    %v4896 = vunpack.c.l.b16 %v4259
    %v4897 = vunpack.c.h.b16 %v4259
    %v4898 = vunpack.c.l.b16 %v4260
    %v4899 = vunpack.c.h.b16 %v4260
    %v4900 = vunpack.c.l.b16 %v4261
    %v4901 = vunpack.c.h.b16 %v4261
    %v4902 = vunpack.c.l.b16 %v4262
    %v4903 = vunpack.c.h.b16 %v4262
    %v4904 = vunpack.c.l.b16 %v4263
    %v4905 = vunpack.c.h.b16 %v4263
    %v4906 = vunpack.c.l.b16 %v4264
    %v4907 = vunpack.c.h.b16 %v4264
    %v4908 = vunpack.c.l.b16 %v4265
    %v4909 = vunpack.c.h.b16 %v4265
    %v4910 = vunpack.c.l.b16 %v4266
    %v4911 = vunpack.c.h.b16 %v4266
    %v4912 = vunpack.c.l.b16 %v4267
    %v4913 = vunpack.c.h.b16 %v4267
    %v4914 = vunpack.c.l.b16 %v4268
    %v4915 = vunpack.c.h.b16 %v4268
    %v4916 = vunpack.c.l.b16 %v4269
    %v4917 = vunpack.c.h.b16 %v4269
    %v4918 = vunpack.c.l.b16 %v4270
    %v4919 = vunpack.c.h.b16 %v4270
    %v4920 = vunpack.c.l.b16 %v4271
    %v4921 = vunpack.c.h.b16 %v4271
    %v4922 = vunpack.c.l.b16 %v4272
    %v4923 = vunpack.c.h.b16 %v4272
    %v4924 = vunpack.c.l.b16 %v4273
    %v4925 = vunpack.c.h.b16 %v4273
    %v4926 = vunpack.c.l.b16 %v4274
    %v4927 = vunpack.c.h.b16 %v4274
    %v4928 = vunpack.c.l.b16 %v4275
    %v4929 = vunpack.c.h.b16 %v4275
    %v4930 = vunpack.c.l.b16 %v4276
    %v4931 = vunpack.c.h.b16 %v4276
    %v4932 = vunpack.c.l.b16 %v4277
    %v4933 = vunpack.c.h.b16 %v4277
    %v4934 = vunpack.c.l.b16 %v4278
    %v4935 = vunpack.c.h.b16 %v4278
    %v4936 = vunpack.c.l.b16 %v4279
    %v4937 = vunpack.c.h.b16 %v4279
    %v4938 = vunpack.c.l.b16 %v4280
    %v4939 = vunpack.c.h.b16 %v4280
    %v4940 = vunpack.c.l.b16 %v4281
    %v4941 = vunpack.c.h.b16 %v4281
    %v4942 = vunpack.c.l.b16 %v4282
    %v4943 = vunpack.c.h.b16 %v4282
    %v4944 = vunpack.c.l.b16 %v4283
    %v4945 = vunpack.c.h.b16 %v4283
    %v4946 = vunpack.c.l.b16 %v4284
    %v4947 = vunpack.c.h.b16 %v4284
    %v4948 = vunpack.c.l.b16 %v4285
    %v4949 = vunpack.c.h.b16 %v4285
    %v4950 = vunpack.c.l.b16 %v4286
    %v4951 = vunpack.c.h.b16 %v4286
    %v4952 = vunpack.c.l.b16 %v4287
    %v4953 = vunpack.c.h.b16 %v4287
    %v4954 = vunpack.c.l.b16 %v4288
    %v4955 = vunpack.c.h.b16 %v4288
    %v4956 = vunpack.c.l.b16 %v4289
    %v4957 = vunpack.c.h.b16 %v4289
    %v4958 = vunpack.c.l.b16 %v4290
    %v4959 = vunpack.c.h.b16 %v4290
    %v4960 = vunpack.c.l.b16 %v4291
    %v4961 = vunpack.c.h.b16 %v4291
    %v4962 = vunpack.c.l.b16 %v4292
    %v4963 = vunpack.c.h.b16 %v4292
    %v4964 = vunpack.c.l.b16 %v4293
    %v4965 = vunpack.c.h.b16 %v4293
    %v4966 = vunpack.c.l.b16 %v4294
    %v4967 = vunpack.c.h.b16 %v4294
    %v4968 = vunpack.c.l.b16 %v4295
    %v4969 = vunpack.c.h.b16 %v4295
    %v4970 = vunpack.c.l.b16 %v4296
    %v4971 = vunpack.c.h.b16 %v4296
    %v4972 = vunpack.c.l.b16 %v4297
    %v4973 = vunpack.c.h.b16 %v4297
    %v4974 = vunpack.c.l.b16 %v4298
    %v4975 = vunpack.c.h.b16 %v4298
    %v4976 = vunpack.c.l.b16 %v4299
    %v4977 = vunpack.c.h.b16 %v4299
    %v4978 = vunpack.c.l.b16 %v4300
    %v4979 = vunpack.c.h.b16 %v4300
    %v4980 = vunpack.c.l.b16 %v4301
    %v4981 = vunpack.c.h.b16 %v4301
    %v4982 = vunpack.c.l.b16 %v4302
    %v4983 = vunpack.c.h.b16 %v4302
    %v4984 = vunpack.c.l.b16 %v4303
    %v4985 = vunpack.c.h.b16 %v4303
    %v4986 = vunpack.c.l.b16 %v4304
    %v4987 = vunpack.c.h.b16 %v4304
    %v4988 = vunpack.c.l.b16 %v4305
    %v4989 = vunpack.c.h.b16 %v4305
    %v4990 = vunpack.c.l.b16 %v4306
    %v4991 = vunpack.c.h.b16 %v4306
    %v4992 = vunpack.c.l.b16 %v4307
    %v4993 = vunpack.c.h.b16 %v4307
    %v4994 = vunpack.c.l.b16 %v4308
    %v4995 = vunpack.c.h.b16 %v4308
    %v4996 = vunpack.c.l.b16 %v4309
    %v4997 = vunpack.c.h.b16 %v4309
    %v4998 = vunpack.c.l.b16 %v4310
    %v4999 = vunpack.c.h.b16 %v4310
    %v5000 = vunpack.c.l.b16 %v4311
    %v5001 = vunpack.c.h.b16 %v4311
    %v5002 = vunpack.c.l.b16 %v4312
    %v5003 = vunpack.c.h.b16 %v4312
    %v5004 = vunpack.c.l.b16 %v4313
    %v5005 = vunpack.c.h.b16 %v4313
    %v5006 = vunpack.c.l.b16 %v4314
    %v5007 = vunpack.c.h.b16 %v4314
    %v5008 = vunpack.c.l.b16 %v4315
    %v5009 = vunpack.c.h.b16 %v4315
    %v5010 = vunpack.c.l.b16 %v4316
    %v5011 = vunpack.c.h.b16 %v4316
    %v5012 = vunpack.c.l.b16 %v4317
    %v5013 = vunpack.c.h.b16 %v4317
    %v5014 = vunpack.c.l.b16 %v4318
    %v5015 = vunpack.c.h.b16 %v4318
    %v5016 = vunpack.c.l.b16 %v4319
    %v5017 = vunpack.c.h.b16 %v4319
    %v5018 = vunpack.c.l.b16 %v4320
    %v5019 = vunpack.c.h.b16 %v4320
    %v5020 = vunpack.c.l.b16 %v4321
    %v5021 = vunpack.c.h.b16 %v4321
    %v5022 = vunpack.c.l.b16 %v4322
    %v5023 = vunpack.c.h.b16 %v4322
    %v5024 = vunpack.c.l.b16 %v4323
    %v5025 = vunpack.c.h.b16 %v4323
    %v5026 = vunpack.c.l.b16 %v4324
    %v5027 = vunpack.c.h.b16 %v4324
    %v5028 = vunpack.c.l.b16 %v4325
    %v5029 = vunpack.c.h.b16 %v4325
    %v5030 = vunpack.c.l.b16 %v4326
    %v5031 = vunpack.c.h.b16 %v4326
    %v5032 = vunpack.c.l.b16 %v4327
    %v5033 = vunpack.c.h.b16 %v4327
    %v5034 = vunpack.c.l.b16 %v4328
    %v5035 = vunpack.c.h.b16 %v4328
    %v5036 = vunpack.c.l.b16 %v4329
    %v5037 = vunpack.c.h.b16 %v4329
    %v5038 = vunpack.c.l.b16 %v4330
    %v5039 = vunpack.c.h.b16 %v4330
    %v5040 = vunpack.c.l.b16 %v4331
    %v5041 = vunpack.c.h.b16 %v4331
    %v5042 = vunpack.c.l.b16 %v4332
    %v5043 = vunpack.c.h.b16 %v4332
    %v5044 = vunpack.c.l.b16 %v4333
    %v5045 = vunpack.c.h.b16 %v4333
    %v5046 = vunpack.c.l.b16 %v4334
    %v5047 = vunpack.c.h.b16 %v4334
    %v5048 = vunpack.c.l.b16 %v4335
    %v5049 = vunpack.c.h.b16 %v4335
    %v5050 = vunpack.c.l.b16 %v4336
    %v5051 = vunpack.c.h.b16 %v4336
    %v5052 = vunpack.c.l.b16 %v4337
    %v5053 = vunpack.c.h.b16 %v4337
    %v5054 = vunpack.c.l.b16 %v4338
    %v5055 = vunpack.c.h.b16 %v4338
    %v5056 = vunpack.c.l.b16 %v4339
    %v5057 = vunpack.c.h.b16 %v4339
    %v5058 = vunpack.c.l.b16 %v4340
    %v5059 = vunpack.c.h.b16 %v4340
    %v5060 = vunpack.c.l.b16 %v4341
    %v5061 = vunpack.c.h.b16 %v4341
    %v5062 = vunpack.c.l.b16 %v4342
    %v5063 = vunpack.c.h.b16 %v4342
    %v5064 = vunpack.c.l.b16 %v4343
    %v5065 = vunpack.c.h.b16 %v4343
    %v5066 = vunpack.c.l.b16 %v4344
    %v5067 = vunpack.c.h.b16 %v4344
    %v5068 = vunpack.c.l.b16 %v4345
    %v5069 = vunpack.c.h.b16 %v4345
    %v5070 = vunpack.c.l.b16 %v4346
    %v5071 = vunpack.c.h.b16 %v4346
    %v5072 = vunpack.c.l.b16 %v4347
    %v5073 = vunpack.c.h.b16 %v4347
    %v5074 = vunpack.c.l.b16 %v4348
    %v5075 = vunpack.c.h.b16 %v4348
    %v5076 = vunpack.c.l.b16 %v4349
    %v5077 = vunpack.c.h.b16 %v4349
    %v5078 = vunpack.c.l.b16 %v4350
    %v5079 = vunpack.c.h.b16 %v4350
    %v5080 = vunpack.c.l.b16 %v4351
    %v5081 = vunpack.c.h.b16 %v4351
    %v5082 = vunpack.c.l.b16 %v4352
    %v5083 = vunpack.c.h.b16 %v4352
    %v5084 = vunpack.c.l.b16 %v4353
    %v5085 = vunpack.c.h.b16 %v4353
    %v5086 = vunpack.c.l.b16 %v4354
    %v5087 = vunpack.c.h.b16 %v4354
    %v5088 = vunpack.c.l.b16 %v4355
    %v5089 = vunpack.c.h.b16 %v4355
    %v5090 = vunpack.c.l.b16 %v4356
    %v5091 = vunpack.c.h.b16 %v4356
    %v5092 = vunpack.c.l.b16 %v4357
    %v5093 = vunpack.c.h.b16 %v4357
    %v5094 = vunpack.c.l.b16 %v4358
    %v5095 = vunpack.c.h.b16 %v4358
    %v5096 = vunpack.c.l.b16 %v4359
    %v5097 = vunpack.c.h.b16 %v4359
    %v5098 = vunpack.c.l.b16 %v4360
    %v5099 = vunpack.c.h.b16 %v4360
    %v5100 = vunpack.c.l.b16 %v4361
    %v5101 = vunpack.c.h.b16 %v4361
    %v5102 = vunpack.c.l.b16 %v4362
    %v5103 = vunpack.c.h.b16 %v4362
    %v5104 = vunpack.c.l.b16 %v4363
    %v5105 = vunpack.c.h.b16 %v4363
    %v5106 = vunpack.c.l.b16 %v4364
    %v5107 = vunpack.c.h.b16 %v4364
    %v5108 = vunpack.c.l.b16 %v4365
    %v5109 = vunpack.c.h.b16 %v4365
    %v5110 = vunpack.c.l.b16 %v4366
    %v5111 = vunpack.c.h.b16 %v4366
    %v5112 = vunpack.c.l.b16 %v4367
    %v5113 = vunpack.c.h.b16 %v4367
    %v5114 = vunpack.c.l.b16 %v4368
    %v5115 = vunpack.c.h.b16 %v4368
    %v5116 = vunpack.c.l.b16 %v4369
    %v5117 = vunpack.c.h.b16 %v4369
    %v5118 = vunpack.c.l.b16 %v4370
    %v5119 = vunpack.c.h.b16 %v4370
    %v5120 = vunpack.c.l.b16 %v4371
    %v5121 = vunpack.c.h.b16 %v4371
    %v5122 = vunpack.c.l.b16 %v4372
    %v5123 = vunpack.c.h.b16 %v4372
    %v5124 = vunpack.c.l.b16 %v4373
    %v5125 = vunpack.c.h.b16 %v4373
    %v5126 = vunpack.c.l.b16 %v4374
    %v5127 = vunpack.c.h.b16 %v4374
    %v5128 = vunpack.c.l.b16 %v4375
    %v5129 = vunpack.c.h.b16 %v4375
    %v5130 = vunpack.c.l.b16 %v4376
    %v5131 = vunpack.c.h.b16 %v4376
    %v5132 = vunpack.c.l.b16 %v4377
    %v5133 = vunpack.c.h.b16 %v4377
    %v5134 = vunpack.c.l.b16 %v4378
    %v5135 = vunpack.c.h.b16 %v4378
    %v5136 = vunpack.c.l.b16 %v4379
    %v5137 = vunpack.c.h.b16 %v4379
    %v5138 = vunpack.c.l.b16 %v4380
    %v5139 = vunpack.c.h.b16 %v4380
    %v5140 = vunpack.c.l.b16 %v4381
    %v5141 = vunpack.c.h.b16 %v4381
    %v5142 = vunpack.c.l.b16 %v4382
    %v5143 = vunpack.c.h.b16 %v4382
    %v5144 = vunpack.c.l.b16 %v4383
    %v5145 = vunpack.c.h.b16 %v4383
    %v5146 = vunpack.c.l.b16 %v4384
    %v5147 = vunpack.c.h.b16 %v4384
    %v5148 = vunpack.c.l.b16 %v4385
    %v5149 = vunpack.c.h.b16 %v4385
    %v5150 = vunpack.c.l.b16 %v4386
    %v5151 = vunpack.c.h.b16 %v4386
    %v5152 = vunpack.c.l.b16 %v4387
    %v5153 = vunpack.c.h.b16 %v4387
    %v5154 = vunpack.c.l.b16 %v4388
    %v5155 = vunpack.c.h.b16 %v4388
    %v5156 = vunpack.c.l.b16 %v4389
    %v5157 = vunpack.c.h.b16 %v4389
    %v5158 = vunpack.c.l.b16 %v4390
    %v5159 = vunpack.c.h.b16 %v4390
    %v5160 = vunpack.c.l.b16 %v4391
    %v5161 = vunpack.c.h.b16 %v4391
    %v5162 = vunpack.c.l.b16 %v4392
    %v5163 = vunpack.c.h.b16 %v4392
    %v5164 = vunpack.c.l.b16 %v4393
    %v5165 = vunpack.c.h.b16 %v4393
    %v5166 = vunpack.c.l.b16 %v4394
    %v5167 = vunpack.c.h.b16 %v4394
    %v5168 = vunpack.c.l.b16 %v4395
    %v5169 = vunpack.c.h.b16 %v4395
    %v5170 = vunpack.c.l.b16 %v4396
    %v5171 = vunpack.c.h.b16 %v4396
    %v5172 = vunpack.c.l.b16 %v4397
    %v5173 = vunpack.c.h.b16 %v4397
    %v5174 = vunpack.c.l.b16 %v4398
    %v5175 = vunpack.c.h.b16 %v4398
    %v5176 = vunpack.c.l.b16 %v4399
    %v5177 = vunpack.c.h.b16 %v4399
    %v5178 = vunpack.c.l.b16 %v4400
    %v5179 = vunpack.c.h.b16 %v4400
    %v5180 = vunpack.c.l.b16 %v4401
    %v5181 = vunpack.c.h.b16 %v4401
    %v5182 = vunpack.c.l.b16 %v4402
    %v5183 = vunpack.c.h.b16 %v4402
    %v5184 = vunpack.c.l.b16 %v4403
    %v5185 = vunpack.c.h.b16 %v4403
    %v5186 = vunpack.c.l.b16 %v4404
    %v5187 = vunpack.c.h.b16 %v4404
    %v5188 = vunpack.c.l.b16 %v4405
    %v5189 = vunpack.c.h.b16 %v4405
    %v5190 = vunpack.c.l.b16 %v4406
    %v5191 = vunpack.c.h.b16 %v4406
    %v5192 = vunpack.c.l.b16 %v4407
    %v5193 = vunpack.c.h.b16 %v4407
    %v5194 = vunpack.c.l.b16 %v4408
    %v5195 = vunpack.c.h.b16 %v4408
    %v5196 = vunpack.c.l.b16 %v4409
    %v5197 = vunpack.c.h.b16 %v4409
    %v5198 = vunpack.c.l.b16 %v4410
    %v5199 = vunpack.c.h.b16 %v4410
    %v5200 = vunpack.c.l.b16 %v4411
    %v5201 = vunpack.c.h.b16 %v4411
    %v5202 = vunpack.c.l.b16 %v4412
    %v5203 = vunpack.c.h.b16 %v4412
    %v5204 = vunpack.c.l.b16 %v4413
    %v5205 = vunpack.c.h.b16 %v4413
    %v5206 = vunpack.c.l.b16 %v4414
    %v5207 = vunpack.c.h.b16 %v4414
    %v5208 = vunpack.c.l.b16 %v4415
    %v5209 = vunpack.c.h.b16 %v4415
    %v5210 = vunpack.c.l.b16 %v4416
    %v5211 = vunpack.c.h.b16 %v4416
    %v5212 = vunpack.c.l.b16 %v4417
    %v5213 = vunpack.c.h.b16 %v4417
    %v5214 = vunpack.c.l.b16 %v4418
    %v5215 = vunpack.c.h.b16 %v4418
    %v5216 = vunpack.c.l.b16 %v4419
    %v5217 = vunpack.c.h.b16 %v4419
    %v5218 = vunpack.c.l.b16 %v4420
    %v5219 = vunpack.c.h.b16 %v4420
    %v5220 = vunpack.c.l.b16 %v4421
    %v5221 = vunpack.c.h.b16 %v4421
    %v5222 = vunpack.c.l.b16 %v4422
    %v5223 = vunpack.c.h.b16 %v4422
    %v5224 = vunpack.c.l.b16 %v4423
    %v5225 = vunpack.c.h.b16 %v4423
    %v5226 = vunpack.c.l.b16 %v4424
    %v5227 = vunpack.c.h.b16 %v4424
    %v5228 = vunpack.c.l.b16 %v4425
    %v5229 = vunpack.c.h.b16 %v4425
    %v5230 = vunpack.c.l.b16 %v4426
    %v5231 = vunpack.c.h.b16 %v4426
    %v5232 = vunpack.c.l.b16 %v4427
    %v5233 = vunpack.c.h.b16 %v4427
    %v5234 = vunpack.c.l.b16 %v4428
    %v5235 = vunpack.c.h.b16 %v4428
    %v5236 = vunpack.c.l.b16 %v4429
    %v5237 = vunpack.c.h.b16 %v4429
    %v5238 = vunpack.c.l.b16 %v4430
    %v5239 = vunpack.c.h.b16 %v4430
    %v5240 = vunpack.c.l.b16 %v4431
    %v5241 = vunpack.c.h.b16 %v4431
    %v5242 = vpack.c.b16 %v4738, %v4730
    %v5243 = vpack.c.b16 %v4739, %v4731
    %v5244 = vpack.c.b16 %v4740, %v4732
    %v5245 = vpack.c.b16 %v4741, %v4733
    %v5246 = vpack.c.b16 %v4742, %v4734
    %v5247 = vpack.c.b16 %v4743, %v4735
    %v5248 = vpack.c.b16 %v4744, %v4736
    %v5249 = vpack.c.b16 %v4745, %v4737
    %v5250 = vpack.c.b16 %v4754, %v4746
    %v5251 = vpack.c.b16 %v4755, %v4747
    %v5252 = vpack.c.b16 %v4756, %v4748
    %v5253 = vpack.c.b16 %v4757, %v4749
    %v5254 = vpack.c.b16 %v4758, %v4750
    %v5255 = vpack.c.b16 %v4759, %v4751
    %v5256 = vpack.c.b16 %v4760, %v4752
    %v5257 = vpack.c.b16 %v4761, %v4753
    %v5258 = vpack.c.b16 %v4770, %v4762
    %v5259 = vpack.c.b16 %v4771, %v4763
    %v5260 = vpack.c.b16 %v4772, %v4764
    %v5261 = vpack.c.b16 %v4773, %v4765
    %v5262 = vpack.c.b16 %v4774, %v4766
    %v5263 = vpack.c.b16 %v4775, %v4767
    %v5264 = vpack.c.b16 %v4776, %v4768
    %v5265 = vpack.c.b16 %v4777, %v4769
    %v5266 = vpack.c.b16 %v4786, %v4778
    %v5267 = vpack.c.b16 %v4787, %v4779
    %v5268 = vpack.c.b16 %v4788, %v4780
    %v5269 = vpack.c.b16 %v4789, %v4781
    %v5270 = vpack.c.b16 %v4790, %v4782
    %v5271 = vpack.c.b16 %v4791, %v4783
    %v5272 = vpack.c.b16 %v4792, %v4784
    %v5273 = vpack.c.b16 %v4793, %v4785
    %v5274 = vpack.c.b16 %v4802, %v4794
    %v5275 = vpack.c.b16 %v4803, %v4795
    %v5276 = vpack.c.b16 %v4804, %v4796
    %v5277 = vpack.c.b16 %v4805, %v4797
    %v5278 = vpack.c.b16 %v4806, %v4798
    %v5279 = vpack.c.b16 %v4807, %v4799
    %v5280 = vpack.c.b16 %v4808, %v4800
    %v5281 = vpack.c.b16 %v4809, %v4801
    %v5282 = vpack.c.b16 %v4818, %v4810
    %v5283 = vpack.c.b16 %v4819, %v4811
    %v5284 = vpack.c.b16 %v4820, %v4812
    %v5285 = vpack.c.b16 %v4821, %v4813
    %v5286 = vpack.c.b16 %v4822, %v4814
    %v5287 = vpack.c.b16 %v4823, %v4815
    %v5288 = vpack.c.b16 %v4824, %v4816
    %v5289 = vpack.c.b16 %v4825, %v4817
    %v5290 = vpack.c.b16 %v4834, %v4826
    %v5291 = vpack.c.b16 %v4835, %v4827
    %v5292 = vpack.c.b16 %v4836, %v4828
    %v5293 = vpack.c.b16 %v4837, %v4829
    %v5294 = vpack.c.b16 %v4838, %v4830
    %v5295 = vpack.c.b16 %v4839, %v4831
    %v5296 = vpack.c.b16 %v4840, %v4832
    %v5297 = vpack.c.b16 %v4841, %v4833
    %v5298 = vpack.c.b16 %v4850, %v4842
    %v5299 = vpack.c.b16 %v4851, %v4843
    %v5300 = vpack.c.b16 %v4852, %v4844
    %v5301 = vpack.c.b16 %v4853, %v4845
    %v5302 = vpack.c.b16 %v4854, %v4846
    %v5303 = vpack.c.b16 %v4855, %v4847
    %v5304 = vpack.c.b16 %v4856, %v4848
    %v5305 = vpack.c.b16 %v4857, %v4849
    %v5306 = vpack.c.b16 %v4866, %v4858
    %v5307 = vpack.c.b16 %v4867, %v4859
    %v5308 = vpack.c.b16 %v4868, %v4860
    %v5309 = vpack.c.b16 %v4869, %v4861
    %v5310 = vpack.c.b16 %v4870, %v4862
    %v5311 = vpack.c.b16 %v4871, %v4863
    %v5312 = vpack.c.b16 %v4872, %v4864
    %v5313 = vpack.c.b16 %v4873, %v4865
    %v5314 = vpack.c.b16 %v4882, %v4874
    %v5315 = vpack.c.b16 %v4883, %v4875
    %v5316 = vpack.c.b16 %v4884, %v4876
    %v5317 = vpack.c.b16 %v4885, %v4877
    %v5318 = vpack.c.b16 %v4886, %v4878
    %v5319 = vpack.c.b16 %v4887, %v4879
    %v5320 = vpack.c.b16 %v4888, %v4880
    %v5321 = vpack.c.b16 %v4889, %v4881
    %v5322 = vpack.c.b16 %v4898, %v4890
    %v5323 = vpack.c.b16 %v4899, %v4891
    %v5324 = vpack.c.b16 %v4900, %v4892
    %v5325 = vpack.c.b16 %v4901, %v4893
    %v5326 = vpack.c.b16 %v4902, %v4894
    %v5327 = vpack.c.b16 %v4903, %v4895
    %v5328 = vpack.c.b16 %v4904, %v4896
    %v5329 = vpack.c.b16 %v4905, %v4897
    %v5330 = vpack.c.b16 %v4914, %v4906
    %v5331 = vpack.c.b16 %v4915, %v4907
    %v5332 = vpack.c.b16 %v4916, %v4908
    %v5333 = vpack.c.b16 %v4917, %v4909
    %v5334 = vpack.c.b16 %v4918, %v4910
    %v5335 = vpack.c.b16 %v4919, %v4911
    %v5336 = vpack.c.b16 %v4920, %v4912
    %v5337 = vpack.c.b16 %v4921, %v4913
    %v5338 = vpack.c.b16 %v4930, %v4922
    %v5339 = vpack.c.b16 %v4931, %v4923
    %v5340 = vpack.c.b16 %v4932, %v4924
    %v5341 = vpack.c.b16 %v4933, %v4925
    %v5342 = vpack.c.b16 %v4934, %v4926
    %v5343 = vpack.c.b16 %v4935, %v4927
    %v5344 = vpack.c.b16 %v4936, %v4928
    %v5345 = vpack.c.b16 %v4937, %v4929
    %v5346 = vpack.c.b16 %v4946, %v4938
    %v5347 = vpack.c.b16 %v4947, %v4939
    %v5348 = vpack.c.b16 %v4948, %v4940
    %v5349 = vpack.c.b16 %v4949, %v4941
    %v5350 = vpack.c.b16 %v4950, %v4942
    %v5351 = vpack.c.b16 %v4951, %v4943
    %v5352 = vpack.c.b16 %v4952, %v4944
    %v5353 = vpack.c.b16 %v4953, %v4945
    %v5354 = vpack.c.b16 %v4962, %v4954
    %v5355 = vpack.c.b16 %v4963, %v4955
    %v5356 = vpack.c.b16 %v4964, %v4956
    %v5357 = vpack.c.b16 %v4965, %v4957
    %v5358 = vpack.c.b16 %v4966, %v4958
    %v5359 = vpack.c.b16 %v4967, %v4959
    %v5360 = vpack.c.b16 %v4968, %v4960
    %v5361 = vpack.c.b16 %v4969, %v4961
    %v5362 = vpack.c.b16 %v4978, %v4970
    %v5363 = vpack.c.b16 %v4979, %v4971
    %v5364 = vpack.c.b16 %v4980, %v4972
    %v5365 = vpack.c.b16 %v4981, %v4973
    %v5366 = vpack.c.b16 %v4982, %v4974
    %v5367 = vpack.c.b16 %v4983, %v4975
    %v5368 = vpack.c.b16 %v4984, %v4976
    %v5369 = vpack.c.b16 %v4985, %v4977
    %v5370 = vpack.c.b16 %v4994, %v4986
    %v5371 = vpack.c.b16 %v4995, %v4987
    %v5372 = vpack.c.b16 %v4996, %v4988
    %v5373 = vpack.c.b16 %v4997, %v4989
    %v5374 = vpack.c.b16 %v4998, %v4990
    %v5375 = vpack.c.b16 %v4999, %v4991
    %v5376 = vpack.c.b16 %v5000, %v4992
    %v5377 = vpack.c.b16 %v5001, %v4993
    %v5378 = vpack.c.b16 %v5010, %v5002
    %v5379 = vpack.c.b16 %v5011, %v5003
    %v5380 = vpack.c.b16 %v5012, %v5004
    %v5381 = vpack.c.b16 %v5013, %v5005
    %v5382 = vpack.c.b16 %v5014, %v5006
    %v5383 = vpack.c.b16 %v5015, %v5007
    %v5384 = vpack.c.b16 %v5016, %v5008
    %v5385 = vpack.c.b16 %v5017, %v5009
    %v5386 = vpack.c.b16 %v5026, %v5018
    %v5387 = vpack.c.b16 %v5027, %v5019
    %v5388 = vpack.c.b16 %v5028, %v5020
    %v5389 = vpack.c.b16 %v5029, %v5021
    %v5390 = vpack.c.b16 %v5030, %v5022
    %v5391 = vpack.c.b16 %v5031, %v5023
    %v5392 = vpack.c.b16 %v5032, %v5024
    %v5393 = vpack.c.b16 %v5033, %v5025
    %v5394 = vpack.c.b16 %v5042, %v5034
    %v5395 = vpack.c.b16 %v5043, %v5035
    %v5396 = vpack.c.b16 %v5044, %v5036
    %v5397 = vpack.c.b16 %v5045, %v5037
    %v5398 = vpack.c.b16 %v5046, %v5038
    %v5399 = vpack.c.b16 %v5047, %v5039
    %v5400 = vpack.c.b16 %v5048, %v5040
    %v5401 = vpack.c.b16 %v5049, %v5041
    %v5402 = vpack.c.b16 %v5058, %v5050
    %v5403 = vpack.c.b16 %v5059, %v5051
    %v5404 = vpack.c.b16 %v5060, %v5052
    %v5405 = vpack.c.b16 %v5061, %v5053
    %v5406 = vpack.c.b16 %v5062, %v5054
    %v5407 = vpack.c.b16 %v5063, %v5055
    %v5408 = vpack.c.b16 %v5064, %v5056
    %v5409 = vpack.c.b16 %v5065, %v5057
    %v5410 = vpack.c.b16 %v5074, %v5066
    %v5411 = vpack.c.b16 %v5075, %v5067
    %v5412 = vpack.c.b16 %v5076, %v5068
    %v5413 = vpack.c.b16 %v5077, %v5069
    %v5414 = vpack.c.b16 %v5078, %v5070
    %v5415 = vpack.c.b16 %v5079, %v5071
    %v5416 = vpack.c.b16 %v5080, %v5072
    %v5417 = vpack.c.b16 %v5081, %v5073
    %v5418 = vpack.c.b16 %v5090, %v5082
    %v5419 = vpack.c.b16 %v5091, %v5083
    %v5420 = vpack.c.b16 %v5092, %v5084
    %v5421 = vpack.c.b16 %v5093, %v5085
    %v5422 = vpack.c.b16 %v5094, %v5086
    %v5423 = vpack.c.b16 %v5095, %v5087
    %v5424 = vpack.c.b16 %v5096, %v5088
    %v5425 = vpack.c.b16 %v5097, %v5089
    %v5426 = vpack.c.b16 %v5106, %v5098
    %v5427 = vpack.c.b16 %v5107, %v5099
    %v5428 = vpack.c.b16 %v5108, %v5100
    %v5429 = vpack.c.b16 %v5109, %v5101
    %v5430 = vpack.c.b16 %v5110, %v5102
    %v5431 = vpack.c.b16 %v5111, %v5103
    %v5432 = vpack.c.b16 %v5112, %v5104
    %v5433 = vpack.c.b16 %v5113, %v5105
    %v5434 = vpack.c.b16 %v5122, %v5114
    %v5435 = vpack.c.b16 %v5123, %v5115
    %v5436 = vpack.c.b16 %v5124, %v5116
    %v5437 = vpack.c.b16 %v5125, %v5117
    %v5438 = vpack.c.b16 %v5126, %v5118
    %v5439 = vpack.c.b16 %v5127, %v5119
    %v5440 = vpack.c.b16 %v5128, %v5120
    %v5441 = vpack.c.b16 %v5129, %v5121
    %v5442 = vpack.c.b16 %v5138, %v5130
    %v5443 = vpack.c.b16 %v5139, %v5131
    %v5444 = vpack.c.b16 %v5140, %v5132
    %v5445 = vpack.c.b16 %v5141, %v5133
    %v5446 = vpack.c.b16 %v5142, %v5134
    %v5447 = vpack.c.b16 %v5143, %v5135
    %v5448 = vpack.c.b16 %v5144, %v5136
    %v5449 = vpack.c.b16 %v5145, %v5137
    %v5450 = vpack.c.b16 %v5154, %v5146
    %v5451 = vpack.c.b16 %v5155, %v5147
    %v5452 = vpack.c.b16 %v5156, %v5148
    %v5453 = vpack.c.b16 %v5157, %v5149
    %v5454 = vpack.c.b16 %v5158, %v5150
    %v5455 = vpack.c.b16 %v5159, %v5151
    %v5456 = vpack.c.b16 %v5160, %v5152
    %v5457 = vpack.c.b16 %v5161, %v5153
    %v5458 = vpack.c.b16 %v5170, %v5162
    %v5459 = vpack.c.b16 %v5171, %v5163
    %v5460 = vpack.c.b16 %v5172, %v5164
    %v5461 = vpack.c.b16 %v5173, %v5165
    %v5462 = vpack.c.b16 %v5174, %v5166
    %v5463 = vpack.c.b16 %v5175, %v5167
    %v5464 = vpack.c.b16 %v5176, %v5168
    %v5465 = vpack.c.b16 %v5177, %v5169
    %v5466 = vpack.c.b16 %v5186, %v5178
    %v5467 = vpack.c.b16 %v5187, %v5179
    %v5468 = vpack.c.b16 %v5188, %v5180
    %v5469 = vpack.c.b16 %v5189, %v5181
    %v5470 = vpack.c.b16 %v5190, %v5182
    %v5471 = vpack.c.b16 %v5191, %v5183
    %v5472 = vpack.c.b16 %v5192, %v5184
    %v5473 = vpack.c.b16 %v5193, %v5185
    %v5474 = vpack.c.b16 %v5202, %v5194
    %v5475 = vpack.c.b16 %v5203, %v5195
    %v5476 = vpack.c.b16 %v5204, %v5196
    %v5477 = vpack.c.b16 %v5205, %v5197
    %v5478 = vpack.c.b16 %v5206, %v5198
    %v5479 = vpack.c.b16 %v5207, %v5199
    %v5480 = vpack.c.b16 %v5208, %v5200
    %v5481 = vpack.c.b16 %v5209, %v5201
    %v5482 = vpack.c.b16 %v5218, %v5210
    %v5483 = vpack.c.b16 %v5219, %v5211
    %v5484 = vpack.c.b16 %v5220, %v5212
    %v5485 = vpack.c.b16 %v5221, %v5213
    %v5486 = vpack.c.b16 %v5222, %v5214
    %v5487 = vpack.c.b16 %v5223, %v5215
    %v5488 = vpack.c.b16 %v5224, %v5216
    %v5489 = vpack.c.b16 %v5225, %v5217
    %v5490 = vpack.c.b16 %v5234, %v5226
    %v5491 = vpack.c.b16 %v5235, %v5227
    %v5492 = vpack.c.b16 %v5236, %v5228
    %v5493 = vpack.c.b16 %v5237, %v5229
    %v5494 = vpack.c.b16 %v5238, %v5230
    %v5495 = vpack.c.b16 %v5239, %v5231
    %v5496 = vpack.c.b16 %v5240, %v5232
    %v5497 = vpack.c.b16 %v5241, %v5233
    %5754 = vmatprep.subr.bf16.mxu0 %v5243
    %5755 = vmatpush1.bf16.msra.mxu0 %v5242
    %5756 = vmatprep.subr.bf16.mxu0 %v5251
    %5757 = vmatpush1.bf16.msra.mxu0 %v5250
    %5758 = vmatprep.subr.bf16.mxu0 %v5259
    %5759 = vmatpush1.bf16.msra.mxu0 %v5258
    %5760 = vmatprep.subr.bf16.mxu0 %v5267
    %5761 = vmatpush1.bf16.msra.mxu0 %v5266
    %5762 = vmatprep.subr.bf16.mxu0 %v5275
    %5763 = vmatpush1.bf16.msra.mxu0 %v5274
    %5764 = vmatprep.subr.bf16.mxu0 %v5283
    %5765 = vmatpush1.bf16.msra.mxu0 %v5282
    %5766 = vmatprep.subr.bf16.mxu0 %v5291
    %5767 = vmatpush1.bf16.msra.mxu0 %v5290
    %5768 = vmatprep.subr.bf16.mxu0 %v5299
    %5769 = vmatpush1.bf16.msra.mxu0 %v5298
    %5770 = vmatprep.subr.bf16.mxu0 %v5307
    %5771 = vmatpush1.bf16.msra.mxu0 %v5306
    %5772 = vmatprep.subr.bf16.mxu0 %v5315
    %5773 = vmatpush1.bf16.msra.mxu0 %v5314
    %5774 = vmatprep.subr.bf16.mxu0 %v5323
    %5775 = vmatpush1.bf16.msra.mxu0 %v5322
    %5776 = vmatprep.subr.bf16.mxu0 %v5331
    %5777 = vmatpush1.bf16.msra.mxu0 %v5330
    %5778 = vmatprep.subr.bf16.mxu0 %v5339
    %5779 = vmatpush1.bf16.msra.mxu0 %v5338
    %5780 = vmatprep.subr.bf16.mxu0 %v5347
    %5781 = vmatpush1.bf16.msra.mxu0 %v5346
    %5782 = vmatprep.subr.bf16.mxu0 %v5355
    %5783 = vmatpush1.bf16.msra.mxu0 %v5354
    %5784 = vmatprep.subr.bf16.mxu0 %v5363
    %5785 = vmatpush1.bf16.msra.mxu0 %v5362
    %5786 = vmatprep.mubr.bf16.mxu0 %v3529
    %5787 = vmatmul.mubr.bf16.gmra.mrb[0].mxu0 %v3528
    %v5788 = vpop.f32.mrb[0].mxu0
    %v5789 = vadd.f32 %v4437, %v5788
    %v5790 = vpop.f32.mrb[0].mxu0
    %v5791 = vadd.f32 %v4441, %v5790
    %v5792 = vpop.f32.mrb[0].mxu0
    %v5793 = vadd.f32 %v4437, %v5792
    %v5794 = vpop.f32.mrb[0].mxu0
    %v5795 = vadd.f32 %v4441, %v5794
    %5796 = vmatprep.mubr.bf16.mxu0 %v3533
    %5797 = vmatmul.mubr.bf16.gmra.mrb[0].mxu0 %v3532
    %v5798 = vpop.f32.mrb[0].mxu0
    %v5799 = vadd.f32 %v4437, %v5798
    %v5800 = vpop.f32.mrb[0].mxu0
    %v5801 = vadd.f32 %v4441, %v5800
    %v5802 = vpop.f32.mrb[0].mxu0
    %v5803 = vadd.f32 %v4437, %v5802
    %v5804 = vpop.f32.mrb[0].mxu0
    %v5805 = vadd.f32 %v4441, %v5804
    %5806 = vmatprep.mubr.bf16.mxu0 %v3537
    %5807 = vmatmul.mubr.bf16.gmra.mrb[0].mxu0 %v3536
    %v5808 = vpop.f32.mrb[0].mxu0
    %v5809 = vadd.f32 %v4437, %v5808
    %v5810 = vpop.f32.mrb[0].mxu0
    %v5811 = vadd.f32 %v4441, %v5810
    %v5812 = vpop.f32.mrb[0].mxu0
    %v5813 = vadd.f32 %v4437, %v5812
    %v5814 = vpop.f32.mrb[0].mxu0
    %v5815 = vadd.f32 %v4441, %v5814
    %5816 = vmatprep.mubr.bf16.mxu0 %v3541
    %5817 = vmatmul.mubr.bf16.gmra.mrb[0].mxu0 %v3540
    %v5818 = vpop.f32.mrb[0].mxu0
    %v5819 = vadd.f32 %v4437, %v5818
    %v5820 = vpop.f32.mrb[0].mxu0
    %v5821 = vadd.f32 %v4441, %v5820
    %v5822 = vpop.f32.mrb[0].mxu0
    %v5823 = vadd.f32 %v4437, %v5822
    %v5824 = vpop.f32.mrb[0].mxu0
    %v5825 = vadd.f32 %v4441, %v5824
    %5826 = vdwg.mxu0
    %5827 = vmatprep.subr.bf16.mxu0 %v5371
    %5828 = vmatpush1.bf16.msra.mxu0 %v5370
    %5829 = vmatprep.subr.bf16.mxu0 %v5379
    %5830 = vmatpush1.bf16.msra.mxu0 %v5378
    %5831 = vmatprep.subr.bf16.mxu0 %v5387
    %5832 = vmatpush1.bf16.msra.mxu0 %v5386
    %5833 = vmatprep.subr.bf16.mxu0 %v5395
    %5834 = vmatpush1.bf16.msra.mxu0 %v5394
    %5835 = vmatprep.subr.bf16.mxu0 %v5403
    %5836 = vmatpush1.bf16.msra.mxu0 %v5402
    %5837 = vmatprep.subr.bf16.mxu0 %v5411
    %5838 = vmatpush1.bf16.msra.mxu0 %v5410
    %5839 = vmatprep.subr.bf16.mxu0 %v5419
    %5840 = vmatpush1.bf16.msra.mxu0 %v5418
    %5841 = vmatprep.subr.bf16.mxu0 %v5427
    %5842 = vmatpush1.bf16.msra.mxu0 %v5426
    %5843 = vmatprep.subr.bf16.mxu0 %v5435
    %5844 = vmatpush1.bf16.msra.mxu0 %v5434
    %5845 = vmatprep.subr.bf16.mxu0 %v5443
    %5846 = vmatpush1.bf16.msra.mxu0 %v5442
    %5847 = vmatprep.subr.bf16.mxu0 %v5451
    %5848 = vmatpush1.bf16.msra.mxu0 %v5450
    %5849 = vmatprep.subr.bf16.mxu0 %v5459
    %5850 = vmatpush1.bf16.msra.mxu0 %v5458
    %5851 = vmatprep.subr.bf16.mxu0 %v5467
    %5852 = vmatpush1.bf16.msra.mxu0 %v5466
    %5853 = vmatprep.subr.bf16.mxu0 %v5475
    %5854 = vmatpush1.bf16.msra.mxu0 %v5474
    %5855 = vmatprep.subr.bf16.mxu0 %v5483
    %5856 = vmatpush1.bf16.msra.mxu0 %v5482
    %5857 = vmatprep.subr.bf16.mxu0 %v5491
    %5858 = vmatpush1.bf16.msra.mxu0 %v5490
    %5859 = vmatprep.mubr.bf16.mxu0 %v3531
    %5860 = vmatmul.mubr.bf16.gmra.mrb[0].mxu0 %v3530
    %v5861 = vpop.f32.mrb[0].mxu0
    %v5862 = vadd.f32 %v5789, %v5861
    %v5863 = vpop.f32.mrb[0].mxu0
    %v5864 = vadd.f32 %v5791, %v5863
    %v5865 = vpop.f32.mrb[0].mxu0
    %v5866 = vadd.f32 %v5793, %v5865
    %v5867 = vpop.f32.mrb[0].mxu0
    %v5868 = vadd.f32 %v5795, %v5867
    %5869 = vmatprep.mubr.bf16.mxu0 %v3535
    %5870 = vmatmul.mubr.bf16.gmra.mrb[0].mxu0 %v3534
    %v5871 = vpop.f32.mrb[0].mxu0
    %v5872 = vadd.f32 %v5799, %v5871
    %v5873 = vpop.f32.mrb[0].mxu0
    %v5874 = vadd.f32 %v5801, %v5873
    %v5875 = vpop.f32.mrb[0].mxu0
    %v5876 = vadd.f32 %v5803, %v5875
    %v5877 = vpop.f32.mrb[0].mxu0
    %v5878 = vadd.f32 %v5805, %v5877
    %5879 = vmatprep.mubr.bf16.mxu0 %v3539
    %5880 = vmatmul.mubr.bf16.gmra.mrb[0].mxu0 %v3538
    %v5881 = vpop.f32.mrb[0].mxu0
    %v5882 = vadd.f32 %v5809, %v5881
    %v5883 = vpop.f32.mrb[0].mxu0
    %v5884 = vadd.f32 %v5811, %v5883
    %v5885 = vpop.f32.mrb[0].mxu0
    %v5886 = vadd.f32 %v5813, %v5885
    %v5887 = vpop.f32.mrb[0].mxu0
    %v5888 = vadd.f32 %v5815, %v5887
    %5889 = vmatprep.mubr.bf16.mxu0 %v3543
    %5890 = vmatmul.mubr.bf16.gmra.mrb[0].mxu0 %v3542
    %v5891 = vpop.f32.mrb[0].mxu0
    %v5892 = vadd.f32 %v5819, %v5891
    %v5893 = vpop.f32.mrb[0].mxu0
    %v5894 = vadd.f32 %v5821, %v5893
    %v5895 = vpop.f32.mrb[0].mxu0
    %v5896 = vadd.f32 %v5823, %v5895
    %v5897 = vpop.f32.mrb[0].mxu0
    %v5898 = vadd.f32 %v5825, %v5897
    %5899 = vdwg.mxu0
    %5900 = vmatprep.subr.bf16.mxu0 %v5245
    %5901 = vmatpush1.bf16.msra.mxu0 %v5244
    %5902 = vmatprep.subr.bf16.mxu0 %v5253
    %5903 = vmatpush1.bf16.msra.mxu0 %v5252
    %5904 = vmatprep.subr.bf16.mxu0 %v5261
    %5905 = vmatpush1.bf16.msra.mxu0 %v5260
    %5906 = vmatprep.subr.bf16.mxu0 %v5269
    %5907 = vmatpush1.bf16.msra.mxu0 %v5268
    %5908 = vmatprep.subr.bf16.mxu0 %v5277
    %5909 = vmatpush1.bf16.msra.mxu0 %v5276
    %5910 = vmatprep.subr.bf16.mxu0 %v5285
    %5911 = vmatpush1.bf16.msra.mxu0 %v5284
    %5912 = vmatprep.subr.bf16.mxu0 %v5293
    %5913 = vmatpush1.bf16.msra.mxu0 %v5292
    %5914 = vmatprep.subr.bf16.mxu0 %v5301
    %5915 = vmatpush1.bf16.msra.mxu0 %v5300
    %5916 = vmatprep.subr.bf16.mxu0 %v5309
    %5917 = vmatpush1.bf16.msra.mxu0 %v5308
    %5918 = vmatprep.subr.bf16.mxu0 %v5317
    %5919 = vmatpush1.bf16.msra.mxu0 %v5316
    %5920 = vmatprep.subr.bf16.mxu0 %v5325
    %5921 = vmatpush1.bf16.msra.mxu0 %v5324
    %5922 = vmatprep.subr.bf16.mxu0 %v5333
    %5923 = vmatpush1.bf16.msra.mxu0 %v5332
    %5924 = vmatprep.subr.bf16.mxu0 %v5341
    %5925 = vmatpush1.bf16.msra.mxu0 %v5340
    %5926 = vmatprep.subr.bf16.mxu0 %v5349
    %5927 = vmatpush1.bf16.msra.mxu0 %v5348
    %5928 = vmatprep.subr.bf16.mxu0 %v5357
    %5929 = vmatpush1.bf16.msra.mxu0 %v5356
    %5930 = vmatprep.subr.bf16.mxu0 %v5365
    %5931 = vmatpush1.bf16.msra.mxu0 %v5364
    %5932 = vmatprep.mubr.bf16.mxu0 %v3529
    %5933 = vmatmul.mubr.bf16.gmra.mrb[0].mxu0 %v3528
    %v5934 = vpop.f32.mrb[0].mxu0
    %v5935 = vadd.f32 %v4445, %v5934
    %v5936 = vpop.f32.mrb[0].mxu0
    %v5937 = vadd.f32 %v4449, %v5936
    %v5938 = vpop.f32.mrb[0].mxu0
    %v5939 = vadd.f32 %v4445, %v5938
    %v5940 = vpop.f32.mrb[0].mxu0
    %v5941 = vadd.f32 %v4449, %v5940
    %5942 = vmatprep.mubr.bf16.mxu0 %v3533
    %5943 = vmatmul.mubr.bf16.gmra.mrb[0].mxu0 %v3532
    %v5944 = vpop.f32.mrb[0].mxu0
    %v5945 = vadd.f32 %v4445, %v5944
    %v5946 = vpop.f32.mrb[0].mxu0
    %v5947 = vadd.f32 %v4449, %v5946
    %v5948 = vpop.f32.mrb[0].mxu0
    %v5949 = vadd.f32 %v4445, %v5948
    %v5950 = vpop.f32.mrb[0].mxu0
    %v5951 = vadd.f32 %v4449, %v5950
    %5952 = vmatprep.mubr.bf16.mxu0 %v3537
    %5953 = vmatmul.mubr.bf16.gmra.mrb[0].mxu0 %v3536
    %v5954 = vpop.f32.mrb[0].mxu0
    %v5955 = vadd.f32 %v4445, %v5954
    %v5956 = vpop.f32.mrb[0].mxu0
    %v5957 = vadd.f32 %v4449, %v5956
    %v5958 = vpop.f32.mrb[0].mxu0
    %v5959 = vadd.f32 %v4445, %v5958
    %v5960 = vpop.f32.mrb[0].mxu0
    %v5961 = vadd.f32 %v4449, %v5960
    %5962 = vmatprep.mubr.bf16.mxu0 %v3541
    %5963 = vmatmul.mubr.bf16.gmra.mrb[0].mxu0 %v3540
    %v5964 = vpop.f32.mrb[0].mxu0
    %v5965 = vadd.f32 %v4445, %v5964
    %v5966 = vpop.f32.mrb[0].mxu0
    %v5967 = vadd.f32 %v4449, %v5966
    %v5968 = vpop.f32.mrb[0].mxu0
    %v5969 = vadd.f32 %v4445, %v5968
    %v5970 = vpop.f32.mrb[0].mxu0
    %v5971 = vadd.f32 %v4449, %v5970
    %5972 = vdwg.mxu0
    %5973 = vmatprep.subr.bf16.mxu0 %v5373
    %5974 = vmatpush1.bf16.msra.mxu0 %v5372
    %5975 = vmatprep.subr.bf16.mxu0 %v5381
    %5976 = vmatpush1.bf16.msra.mxu0 %v5380
    %5977 = vmatprep.subr.bf16.mxu0 %v5389
    %5978 = vmatpush1.bf16.msra.mxu0 %v5388
    %5979 = vmatprep.subr.bf16.mxu0 %v5397
    %5980 = vmatpush1.bf16.msra.mxu0 %v5396
    %5981 = vmatprep.subr.bf16.mxu0 %v5405
    %5982 = vmatpush1.bf16.msra.mxu0 %v5404
    %5983 = vmatprep.subr.bf16.mxu0 %v5413
    %5984 = vmatpush1.bf16.msra.mxu0 %v5412
    %5985 = vmatprep.subr.bf16.mxu0 %v5421
    %5986 = vmatpush1.bf16.msra.mxu0 %v5420
    %5987 = vmatprep.subr.bf16.mxu0 %v5429
    %5988 = vmatpush1.bf16.msra.mxu0 %v5428
    %5989 = vmatprep.subr.bf16.mxu0 %v5437
    %5990 = vmatpush1.bf16.msra.mxu0 %v5436
    %5991 = vmatprep.subr.bf16.mxu0 %v5445
    %5992 = vmatpush1.bf16.msra.mxu0 %v5444
    %5993 = vmatprep.subr.bf16.mxu0 %v5453
    %5994 = vmatpush1.bf16.msra.mxu0 %v5452
    %5995 = vmatprep.subr.bf16.mxu0 %v5461
    %5996 = vmatpush1.bf16.msra.mxu0 %v5460
    %5997 = vmatprep.subr.bf16.mxu0 %v5469
    %5998 = vmatpush1.bf16.msra.mxu0 %v5468
    %5999 = vmatprep.subr.bf16.mxu0 %v5477
    %6000 = vmatpush1.bf16.msra.mxu0 %v5476
    %6001 = vmatprep.subr.bf16.mxu0 %v5485
    %6002 = vmatpush1.bf16.msra.mxu0 %v5484
    %6003 = vmatprep.subr.bf16.mxu0 %v5493
    %6004 = vmatpush1.bf16.msra.mxu0 %v5492
    %6005 = vmatprep.mubr.bf16.mxu0 %v3531
    %6006 = vmatmul.mubr.bf16.gmra.mrb[0].mxu0 %v3530
    %v6007 = vpop.f32.mrb[0].mxu0
    %v6008 = vadd.f32 %v5935, %v6007
    %v6009 = vpop.f32.mrb[0].mxu0
    %v6010 = vadd.f32 %v5937, %v6009
    %v6011 = vpop.f32.mrb[0].mxu0
    %v6012 = vadd.f32 %v5939, %v6011
    %v6013 = vpop.f32.mrb[0].mxu0
    %v6014 = vadd.f32 %v5941, %v6013
    %6015 = vmatprep.mubr.bf16.mxu0 %v3535
    %6016 = vmatmul.mubr.bf16.gmra.mrb[0].mxu0 %v3534
    %v6017 = vpop.f32.mrb[0].mxu0
    %v6018 = vadd.f32 %v5945, %v6017
    %v6019 = vpop.f32.mrb[0].mxu0
    %v6020 = vadd.f32 %v5947, %v6019
    %v6021 = vpop.f32.mrb[0].mxu0
    %v6022 = vadd.f32 %v5949, %v6021
    %v6023 = vpop.f32.mrb[0].mxu0
    %v6024 = vadd.f32 %v5951, %v6023
    %6025 = vmatprep.mubr.bf16.mxu0 %v3539
    %6026 = vmatmul.mubr.bf16.gmra.mrb[0].mxu0 %v3538
    %v6027 = vpop.f32.mrb[0].mxu0
    %v6028 = vadd.f32 %v5955, %v6027
    %v6029 = vpop.f32.mrb[0].mxu0
    %v6030 = vadd.f32 %v5957, %v6029
    %v6031 = vpop.f32.mrb[0].mxu0
    %v6032 = vadd.f32 %v5959, %v6031
    %v6033 = vpop.f32.mrb[0].mxu0
    %v6034 = vadd.f32 %v5961, %v6033
    %6035 = vmatprep.mubr.bf16.mxu0 %v3543
    %6036 = vmatmul.mubr.bf16.gmra.mrb[0].mxu0 %v3542
    %v6037 = vpop.f32.mrb[0].mxu0
    %v6038 = vadd.f32 %v5965, %v6037
    %v6039 = vpop.f32.mrb[0].mxu0
    %v6040 = vadd.f32 %v5967, %v6039
    %v6041 = vpop.f32.mrb[0].mxu0
    %v6042 = vadd.f32 %v5969, %v6041
    %v6043 = vpop.f32.mrb[0].mxu0
    %v6044 = vadd.f32 %v5971, %v6043
    %6045 = vdwg.mxu0
    %6046 = vmatprep.subr.bf16.mxu0 %v5247
    %6047 = vmatpush1.bf16.msra.mxu0 %v5246
    %6048 = vmatprep.subr.bf16.mxu0 %v5255
    %6049 = vmatpush1.bf16.msra.mxu0 %v5254
    %6050 = vmatprep.subr.bf16.mxu0 %v5263
    %6051 = vmatpush1.bf16.msra.mxu0 %v5262
    %6052 = vmatprep.subr.bf16.mxu0 %v5271
    %6053 = vmatpush1.bf16.msra.mxu0 %v5270
    %6054 = vmatprep.subr.bf16.mxu0 %v5279
    %6055 = vmatpush1.bf16.msra.mxu0 %v5278
    %6056 = vmatprep.subr.bf16.mxu0 %v5287
    %6057 = vmatpush1.bf16.msra.mxu0 %v5286
    %6058 = vmatprep.subr.bf16.mxu0 %v5295
    %6059 = vmatpush1.bf16.msra.mxu0 %v5294
    %6060 = vmatprep.subr.bf16.mxu0 %v5303
    %6061 = vmatpush1.bf16.msra.mxu0 %v5302
    %6062 = vmatprep.subr.bf16.mxu0 %v5311
    %6063 = vmatpush1.bf16.msra.mxu0 %v5310
    %6064 = vmatprep.subr.bf16.mxu0 %v5319
    %6065 = vmatpush1.bf16.msra.mxu0 %v5318
    %6066 = vmatprep.subr.bf16.mxu0 %v5327
    %6067 = vmatpush1.bf16.msra.mxu0 %v5326
    %6068 = vmatprep.subr.bf16.mxu0 %v5335
    %6069 = vmatpush1.bf16.msra.mxu0 %v5334
    %6070 = vmatprep.subr.bf16.mxu0 %v5343
    %6071 = vmatpush1.bf16.msra.mxu0 %v5342
    %6072 = vmatprep.subr.bf16.mxu0 %v5351
    %6073 = vmatpush1.bf16.msra.mxu0 %v5350
    %6074 = vmatprep.subr.bf16.mxu0 %v5359
    %6075 = vmatpush1.bf16.msra.mxu0 %v5358
    %6076 = vmatprep.subr.bf16.mxu0 %v5367
    %6077 = vmatpush1.bf16.msra.mxu0 %v5366
    %6078 = vmatprep.mubr.bf16.mxu0 %v3529
    %6079 = vmatmul.mubr.bf16.gmra.mrb[0].mxu0 %v3528
    %v6080 = vpop.f32.mrb[0].mxu0
    %v6081 = vadd.f32 %v4453, %v6080
    %v6082 = vpop.f32.mrb[0].mxu0
    %v6083 = vadd.f32 %v4457, %v6082
    %v6084 = vpop.f32.mrb[0].mxu0
    %v6085 = vadd.f32 %v4453, %v6084
    %v6086 = vpop.f32.mrb[0].mxu0
    %v6087 = vadd.f32 %v4457, %v6086
    %6088 = vmatprep.mubr.bf16.mxu0 %v3533
    %6089 = vmatmul.mubr.bf16.gmra.mrb[0].mxu0 %v3532
    %v6090 = vpop.f32.mrb[0].mxu0
    %v6091 = vadd.f32 %v4453, %v6090
    %v6092 = vpop.f32.mrb[0].mxu0
    %v6093 = vadd.f32 %v4457, %v6092
    %v6094 = vpop.f32.mrb[0].mxu0
    %v6095 = vadd.f32 %v4453, %v6094
    %v6096 = vpop.f32.mrb[0].mxu0
    %v6097 = vadd.f32 %v4457, %v6096
    %6098 = vmatprep.mubr.bf16.mxu0 %v3537
    %6099 = vmatmul.mubr.bf16.gmra.mrb[0].mxu0 %v3536
    %v6100 = vpop.f32.mrb[0].mxu0
    %v6101 = vadd.f32 %v4453, %v6100
    %v6102 = vpop.f32.mrb[0].mxu0
    %v6103 = vadd.f32 %v4457, %v6102
    %v6104 = vpop.f32.mrb[0].mxu0
    %v6105 = vadd.f32 %v4453, %v6104
    %v6106 = vpop.f32.mrb[0].mxu0
    %v6107 = vadd.f32 %v4457, %v6106
    %6108 = vmatprep.mubr.bf16.mxu0 %v3541
    %6109 = vmatmul.mubr.bf16.gmra.mrb[0].mxu0 %v3540
    %v6110 = vpop.f32.mrb[0].mxu0
    %v6111 = vadd.f32 %v4453, %v6110
    %v6112 = vpop.f32.mrb[0].mxu0
    %v6113 = vadd.f32 %v4457, %v6112
    %v6114 = vpop.f32.mrb[0].mxu0
    %v6115 = vadd.f32 %v4453, %v6114
    %v6116 = vpop.f32.mrb[0].mxu0
    %v6117 = vadd.f32 %v4457, %v6116
    %6118 = vdwg.mxu0
    %6119 = vmatprep.subr.bf16.mxu0 %v5375
    %6120 = vmatpush1.bf16.msra.mxu0 %v5374
    %6121 = vmatprep.subr.bf16.mxu0 %v5383
    %6122 = vmatpush1.bf16.msra.mxu0 %v5382
    %6123 = vmatprep.subr.bf16.mxu0 %v5391
    %6124 = vmatpush1.bf16.msra.mxu0 %v5390
    %6125 = vmatprep.subr.bf16.mxu0 %v5399
    %6126 = vmatpush1.bf16.msra.mxu0 %v5398
    %6127 = vmatprep.subr.bf16.mxu0 %v5407
    %6128 = vmatpush1.bf16.msra.mxu0 %v5406
    %6129 = vmatprep.subr.bf16.mxu0 %v5415
    %6130 = vmatpush1.bf16.msra.mxu0 %v5414
    %6131 = vmatprep.subr.bf16.mxu0 %v5423
    %6132 = vmatpush1.bf16.msra.mxu0 %v5422
    %6133 = vmatprep.subr.bf16.mxu0 %v5431
    %6134 = vmatpush1.bf16.msra.mxu0 %v5430
    %6135 = vmatprep.subr.bf16.mxu0 %v5439
    %6136 = vmatpush1.bf16.msra.mxu0 %v5438
    %6137 = vmatprep.subr.bf16.mxu0 %v5447
    %6138 = vmatpush1.bf16.msra.mxu0 %v5446
    %6139 = vmatprep.subr.bf16.mxu0 %v5455
    %6140 = vmatpush1.bf16.msra.mxu0 %v5454
    %6141 = vmatprep.subr.bf16.mxu0 %v5463
    %6142 = vmatpush1.bf16.msra.mxu0 %v5462
    %6143 = vmatprep.subr.bf16.mxu0 %v5471
    %6144 = vmatpush1.bf16.msra.mxu0 %v5470
    %6145 = vmatprep.subr.bf16.mxu0 %v5479
    %6146 = vmatpush1.bf16.msra.mxu0 %v5478
    %6147 = vmatprep.subr.bf16.mxu0 %v5487
    %6148 = vmatpush1.bf16.msra.mxu0 %v5486
    %6149 = vmatprep.subr.bf16.mxu0 %v5495
    %6150 = vmatpush1.bf16.msra.mxu0 %v5494
    %6151 = vmatprep.mubr.bf16.mxu0 %v3531
    %6152 = vmatmul.mubr.bf16.gmra.mrb[0].mxu0 %v3530
    %v6153 = vpop.f32.mrb[0].mxu0
    %v6154 = vadd.f32 %v6081, %v6153
    %v6155 = vpop.f32.mrb[0].mxu0
    %v6156 = vadd.f32 %v6083, %v6155
    %v6157 = vpop.f32.mrb[0].mxu0
    %v6158 = vadd.f32 %v6085, %v6157
    %v6159 = vpop.f32.mrb[0].mxu0
    %v6160 = vadd.f32 %v6087, %v6159
    %6161 = vmatprep.mubr.bf16.mxu0 %v3535
    %6162 = vmatmul.mubr.bf16.gmra.mrb[0].mxu0 %v3534
    %v6163 = vpop.f32.mrb[0].mxu0
    %v6164 = vadd.f32 %v6091, %v6163
    %v6165 = vpop.f32.mrb[0].mxu0
    %v6166 = vadd.f32 %v6093, %v6165
    %v6167 = vpop.f32.mrb[0].mxu0
    %v6168 = vadd.f32 %v6095, %v6167
    %v6169 = vpop.f32.mrb[0].mxu0
    %v6170 = vadd.f32 %v6097, %v6169
    %6171 = vmatprep.mubr.bf16.mxu0 %v3539
    %6172 = vmatmul.mubr.bf16.gmra.mrb[0].mxu0 %v3538
    %v6173 = vpop.f32.mrb[0].mxu0
    %v6174 = vadd.f32 %v6101, %v6173
    %v6175 = vpop.f32.mrb[0].mxu0
    %v6176 = vadd.f32 %v6103, %v6175
    %v6177 = vpop.f32.mrb[0].mxu0
    %v6178 = vadd.f32 %v6105, %v6177
    %v6179 = vpop.f32.mrb[0].mxu0
    %v6180 = vadd.f32 %v6107, %v6179
    %6181 = vmatprep.mubr.bf16.mxu0 %v3543
    %6182 = vmatmul.mubr.bf16.gmra.mrb[0].mxu0 %v3542
    %v6183 = vpop.f32.mrb[0].mxu0
    %v6184 = vadd.f32 %v6111, %v6183
    %v6185 = vpop.f32.mrb[0].mxu0
    %v6186 = vadd.f32 %v6113, %v6185
    %v6187 = vpop.f32.mrb[0].mxu0
    %v6188 = vadd.f32 %v6115, %v6187
    %v6189 = vpop.f32.mrb[0].mxu0
    %v6190 = vadd.f32 %v6117, %v6189
    %6191 = vdwg.mxu0
    %6192 = vmatprep.subr.bf16.mxu0 %v5249
    %6193 = vmatpush1.bf16.msra.mxu0 %v5248
    %6194 = vmatprep.subr.bf16.mxu0 %v5257
    %6195 = vmatpush1.bf16.msra.mxu0 %v5256
    %6196 = vmatprep.subr.bf16.mxu0 %v5265
    %6197 = vmatpush1.bf16.msra.mxu0 %v5264
    %6198 = vmatprep.subr.bf16.mxu0 %v5273
    %6199 = vmatpush1.bf16.msra.mxu0 %v5272
    %6200 = vmatprep.subr.bf16.mxu0 %v5281
    %6201 = vmatpush1.bf16.msra.mxu0 %v5280
    %6202 = vmatprep.subr.bf16.mxu0 %v5289
    %6203 = vmatpush1.bf16.msra.mxu0 %v5288
    %6204 = vmatprep.subr.bf16.mxu0 %v5297
    %6205 = vmatpush1.bf16.msra.mxu0 %v5296
    %6206 = vmatprep.subr.bf16.mxu0 %v5305
    %6207 = vmatpush1.bf16.msra.mxu0 %v5304
    %6208 = vmatprep.subr.bf16.mxu0 %v5313
    %6209 = vmatpush1.bf16.msra.mxu0 %v5312
    %6210 = vmatprep.subr.bf16.mxu0 %v5321
    %6211 = vmatpush1.bf16.msra.mxu0 %v5320
    %6212 = vmatprep.subr.bf16.mxu0 %v5329
    %6213 = vmatpush1.bf16.msra.mxu0 %v5328
    %6214 = vmatprep.subr.bf16.mxu0 %v5337
    %6215 = vmatpush1.bf16.msra.mxu0 %v5336
    %6216 = vmatprep.subr.bf16.mxu0 %v5345
    %6217 = vmatpush1.bf16.msra.mxu0 %v5344
    %6218 = vmatprep.subr.bf16.mxu0 %v5353
    %6219 = vmatpush1.bf16.msra.mxu0 %v5352
    %6220 = vmatprep.subr.bf16.mxu0 %v5361
    %6221 = vmatpush1.bf16.msra.mxu0 %v5360
    %6222 = vmatprep.subr.bf16.mxu0 %v5369
    %6223 = vmatpush1.bf16.msra.mxu0 %v5368
    %6224 = vmatprep.mubr.bf16.mxu0 %v3529
    %6225 = vmatmul.mubr.bf16.gmra.mrb[0].mxu0 %v3528
    %v6226 = vpop.f32.mrb[0].mxu0
    %v6227 = vadd.f32 %v4461, %v6226
    %v6228 = vpop.f32.mrb[0].mxu0
    %v6229 = vadd.f32 %v4465, %v6228
    %v6230 = vpop.f32.mrb[0].mxu0
    %v6231 = vadd.f32 %v4461, %v6230
    %v6232 = vpop.f32.mrb[0].mxu0
    %v6233 = vadd.f32 %v4465, %v6232
    %6234 = vmatprep.mubr.bf16.mxu0 %v3533
    %6235 = vmatmul.mubr.bf16.gmra.mrb[0].mxu0 %v3532
    %v6236 = vpop.f32.mrb[0].mxu0
    %v6237 = vadd.f32 %v4461, %v6236
    %v6238 = vpop.f32.mrb[0].mxu0
    %v6239 = vadd.f32 %v4465, %v6238
    %v6240 = vpop.f32.mrb[0].mxu0
    %v6241 = vadd.f32 %v4461, %v6240
    %v6242 = vpop.f32.mrb[0].mxu0
    %v6243 = vadd.f32 %v4465, %v6242
    %6244 = vmatprep.mubr.bf16.mxu0 %v3537
    %6245 = vmatmul.mubr.bf16.gmra.mrb[0].mxu0 %v3536
    %v6246 = vpop.f32.mrb[0].mxu0
    %v6247 = vadd.f32 %v4461, %v6246
    %v6248 = vpop.f32.mrb[0].mxu0
    %v6249 = vadd.f32 %v4465, %v6248
    %v6250 = vpop.f32.mrb[0].mxu0
    %v6251 = vadd.f32 %v4461, %v6250
    %v6252 = vpop.f32.mrb[0].mxu0
    %v6253 = vadd.f32 %v4465, %v6252
    %6254 = vmatprep.mubr.bf16.mxu0 %v3541
    %6255 = vmatmul.mubr.bf16.gmra.mrb[0].mxu0 %v3540
    %v6256 = vpop.f32.mrb[0].mxu0
    %v6257 = vadd.f32 %v4461, %v6256
    %v6258 = vpop.f32.mrb[0].mxu0
    %v6259 = vadd.f32 %v4465, %v6258
    %v6260 = vpop.f32.mrb[0].mxu0
    %v6261 = vadd.f32 %v4461, %v6260
    %v6262 = vpop.f32.mrb[0].mxu0
    %v6263 = vadd.f32 %v4465, %v6262
    %6264 = vdwg.mxu0
    %6265 = vmatprep.subr.bf16.mxu0 %v5377
    %6266 = vmatpush1.bf16.msra.mxu0 %v5376
    %6267 = vmatprep.subr.bf16.mxu0 %v5385
    %6268 = vmatpush1.bf16.msra.mxu0 %v5384
    %6269 = vmatprep.subr.bf16.mxu0 %v5393
    %6270 = vmatpush1.bf16.msra.mxu0 %v5392
    %6271 = vmatprep.subr.bf16.mxu0 %v5401
    %6272 = vmatpush1.bf16.msra.mxu0 %v5400
    %6273 = vmatprep.subr.bf16.mxu0 %v5409
    %6274 = vmatpush1.bf16.msra.mxu0 %v5408
    %6275 = vmatprep.subr.bf16.mxu0 %v5417
    %6276 = vmatpush1.bf16.msra.mxu0 %v5416
    %6277 = vmatprep.subr.bf16.mxu0 %v5425
    %6278 = vmatpush1.bf16.msra.mxu0 %v5424
    %6279 = vmatprep.subr.bf16.mxu0 %v5433
    %6280 = vmatpush1.bf16.msra.mxu0 %v5432
    %6281 = vmatprep.subr.bf16.mxu0 %v5441
    %6282 = vmatpush1.bf16.msra.mxu0 %v5440
    %6283 = vmatprep.subr.bf16.mxu0 %v5449
    %6284 = vmatpush1.bf16.msra.mxu0 %v5448
    %6285 = vmatprep.subr.bf16.mxu0 %v5457
    %6286 = vmatpush1.bf16.msra.mxu0 %v5456
    %6287 = vmatprep.subr.bf16.mxu0 %v5465
    %6288 = vmatpush1.bf16.msra.mxu0 %v5464
    %6289 = vmatprep.subr.bf16.mxu0 %v5473
    %6290 = vmatpush1.bf16.msra.mxu0 %v5472
    %6291 = vmatprep.subr.bf16.mxu0 %v5481
    %6292 = vmatpush1.bf16.msra.mxu0 %v5480
    %6293 = vmatprep.subr.bf16.mxu0 %v5489
    %6294 = vmatpush1.bf16.msra.mxu0 %v5488
    %6295 = vmatprep.subr.bf16.mxu0 %v5497
    %6296 = vmatpush1.bf16.msra.mxu0 %v5496
    %6297 = vmatprep.mubr.bf16.mxu0 %v3531
    %6298 = vmatmul.mubr.bf16.gmra.mrb[0].mxu0 %v3530
    %v6299 = vpop.f32.mrb[0].mxu0
    %v6300 = vadd.f32 %v6227, %v6299
    %v6301 = vpop.f32.mrb[0].mxu0
    %v6302 = vadd.f32 %v6229, %v6301
    %v6303 = vpop.f32.mrb[0].mxu0
    %v6304 = vadd.f32 %v6231, %v6303
    %v6305 = vpop.f32.mrb[0].mxu0
    %v6306 = vadd.f32 %v6233, %v6305
    %6307 = vmatprep.mubr.bf16.mxu0 %v3535
    %6308 = vmatmul.mubr.bf16.gmra.mrb[0].mxu0 %v3534
    %v6309 = vpop.f32.mrb[0].mxu0
    %v6310 = vadd.f32 %v6237, %v6309
    %v6311 = vpop.f32.mrb[0].mxu0
    %v6312 = vadd.f32 %v6239, %v6311
    %v6313 = vpop.f32.mrb[0].mxu0
    %v6314 = vadd.f32 %v6241, %v6313
    %v6315 = vpop.f32.mrb[0].mxu0
    %v6316 = vadd.f32 %v6243, %v6315
    %6317 = vmatprep.mubr.bf16.mxu0 %v3539
    %6318 = vmatmul.mubr.bf16.gmra.mrb[0].mxu0 %v3538
    %v6319 = vpop.f32.mrb[0].mxu0
    %v6320 = vadd.f32 %v6247, %v6319
    %v6321 = vpop.f32.mrb[0].mxu0
    %v6322 = vadd.f32 %v6249, %v6321
    %v6323 = vpop.f32.mrb[0].mxu0
    %v6324 = vadd.f32 %v6251, %v6323
    %v6325 = vpop.f32.mrb[0].mxu0
    %v6326 = vadd.f32 %v6253, %v6325
    %6327 = vmatprep.mubr.bf16.mxu0 %v3543
    %6328 = vmatmul.mubr.bf16.gmra.mrb[0].mxu0 %v3542
    %v6329 = vpop.f32.mrb[0].mxu0
    %v6330 = vadd.f32 %v6257, %v6329
    %v6331 = vpop.f32.mrb[0].mxu0
    %v6332 = vadd.f32 %v6259, %v6331
    %v6333 = vpop.f32.mrb[0].mxu0
    %v6334 = vadd.f32 %v6261, %v6333
    %v6335 = vpop.f32.mrb[0].mxu0
    %v6336 = vadd.f32 %v6263, %v6335
    %6337 = vdwg.mxu0
    %v6338 = vmax.f32 %v5862, 0.0
    %v6339 = vmax.f32 %v5864, 0.0
    %v6340 = vmax.f32 %v6008, 0.0
    %v6341 = vmax.f32 %v6010, 0.0
    %v6342 = vmax.f32 %v6154, 0.0
    %v6343 = vmax.f32 %v6156, 0.0
    %v6344 = vmax.f32 %v6300, 0.0
    %v6345 = vmax.f32 %v6302, 0.0
    %v6346 = vmax.f32 %v5866, 0.0
    %v6347 = vmax.f32 %v5868, 0.0
    %v6348 = vmax.f32 %v6012, 0.0
    %v6349 = vmax.f32 %v6014, 0.0
    %v6350 = vmax.f32 %v6158, 0.0
    %v6351 = vmax.f32 %v6160, 0.0
    %v6352 = vmax.f32 %v6304, 0.0
    %v6353 = vmax.f32 %v6306, 0.0
    %v6354 = vmax.f32 %v5872, 0.0
    %v6355 = vmax.f32 %v5874, 0.0
    %v6356 = vmax.f32 %v6018, 0.0
    %v6357 = vmax.f32 %v6020, 0.0
    %v6358 = vmax.f32 %v6164, 0.0
    %v6359 = vmax.f32 %v6166, 0.0
    %v6360 = vmax.f32 %v6310, 0.0
    %v6361 = vmax.f32 %v6312, 0.0
    %v6362 = vmax.f32 %v5876, 0.0
    %v6363 = vmax.f32 %v5878, 0.0
    %v6364 = vmax.f32 %v6022, 0.0
    %v6365 = vmax.f32 %v6024, 0.0
    %v6366 = vmax.f32 %v6168, 0.0
    %v6367 = vmax.f32 %v6170, 0.0
    %v6368 = vmax.f32 %v6314, 0.0
    %v6369 = vmax.f32 %v6316, 0.0
    %v6370 = vmax.f32 %v5882, 0.0
    %v6371 = vmax.f32 %v5884, 0.0
    %v6372 = vmax.f32 %v6028, 0.0
    %v6373 = vmax.f32 %v6030, 0.0
    %v6374 = vmax.f32 %v6174, 0.0
    %v6375 = vmax.f32 %v6176, 0.0
    %v6376 = vmax.f32 %v6320, 0.0
    %v6377 = vmax.f32 %v6322, 0.0
    %v6378 = vmax.f32 %v5886, 0.0
    %v6379 = vmax.f32 %v5888, 0.0
    %v6380 = vmax.f32 %v6032, 0.0
    %v6381 = vmax.f32 %v6034, 0.0
    %v6382 = vmax.f32 %v6178, 0.0
    %v6383 = vmax.f32 %v6180, 0.0
    %v6384 = vmax.f32 %v6324, 0.0
    %v6385 = vmax.f32 %v6326, 0.0
    %v6386 = vmax.f32 %v5892, 0.0
    %v6387 = vmax.f32 %v5894, 0.0
    %v6388 = vmax.f32 %v6038, 0.0
    %v6389 = vmax.f32 %v6040, 0.0
    %v6390 = vmax.f32 %v6184, 0.0
    %v6391 = vmax.f32 %v6186, 0.0
    %v6392 = vmax.f32 %v6330, 0.0
    %v6393 = vmax.f32 %v6332, 0.0
    %v6394 = vmax.f32 %v5896, 0.0
    %v6395 = vmax.f32 %v5898, 0.0
    %v6396 = vmax.f32 %v6042, 0.0
    %v6397 = vmax.f32 %v6044, 0.0
    %v6398 = vmax.f32 %v6188, 0.0
    %v6399 = vmax.f32 %v6190, 0.0
    %v6400 = vmax.f32 %v6334, 0.0
    %v6401 = vmax.f32 %v6336, 0.0
    %v6402 = vpack.c.bf16 %v6346, %v6338
    %v6403 = vpack.c.bf16 %v6347, %v6339
    %v6404 = vpack.c.bf16 %v6348, %v6340
    %v6405 = vpack.c.bf16 %v6349, %v6341
    %v6406 = vpack.c.bf16 %v6350, %v6342
    %v6407 = vpack.c.bf16 %v6351, %v6343
    %v6408 = vpack.c.bf16 %v6352, %v6344
    %v6409 = vpack.c.bf16 %v6353, %v6345
    %v6410 = vpack.c.bf16 %v6362, %v6354
    %v6411 = vpack.c.bf16 %v6363, %v6355
    %v6412 = vpack.c.bf16 %v6364, %v6356
    %v6413 = vpack.c.bf16 %v6365, %v6357
    %v6414 = vpack.c.bf16 %v6366, %v6358
    %v6415 = vpack.c.bf16 %v6367, %v6359
    %v6416 = vpack.c.bf16 %v6368, %v6360
    %v6417 = vpack.c.bf16 %v6369, %v6361
    %v6418 = vpack.c.bf16 %v6378, %v6370
    %v6419 = vpack.c.bf16 %v6379, %v6371
    %v6420 = vpack.c.bf16 %v6380, %v6372
    %v6421 = vpack.c.bf16 %v6381, %v6373
    %v6422 = vpack.c.bf16 %v6382, %v6374
    %v6423 = vpack.c.bf16 %v6383, %v6375
    %v6424 = vpack.c.bf16 %v6384, %v6376
    %v6425 = vpack.c.bf16 %v6385, %v6377
    %v6426 = vpack.c.bf16 %v6394, %v6386
    %v6427 = vpack.c.bf16 %v6395, %v6387
    %v6428 = vpack.c.bf16 %v6396, %v6388
    %v6429 = vpack.c.bf16 %v6397, %v6389
    %v6430 = vpack.c.bf16 %v6398, %v6390
    %v6431 = vpack.c.bf16 %v6399, %v6391
    %v6432 = vpack.c.bf16 %v6400, %v6392
    %v6433 = vpack.c.bf16 %v6401, %v6393
    %6434 = vmatprep.subr.bf16.mxu0 %v5243
    %6435 = vmatpush1.bf16.msra.mxu0 %v5242
    %6436 = vmatprep.subr.bf16.mxu0 %v5251
    %6437 = vmatpush1.bf16.msra.mxu0 %v5250
    %6438 = vmatprep.subr.bf16.mxu0 %v5259
    %6439 = vmatpush1.bf16.msra.mxu0 %v5258
    %6440 = vmatprep.subr.bf16.mxu0 %v5267
    %6441 = vmatpush1.bf16.msra.mxu0 %v5266
    %6442 = vmatprep.subr.bf16.mxu0 %v5275
    %6443 = vmatpush1.bf16.msra.mxu0 %v5274
    %6444 = vmatprep.subr.bf16.mxu0 %v5283
    %6445 = vmatpush1.bf16.msra.mxu0 %v5282
    %6446 = vmatprep.subr.bf16.mxu0 %v5291
    %6447 = vmatpush1.bf16.msra.mxu0 %v5290
    %6448 = vmatprep.subr.bf16.mxu0 %v5299
    %6449 = vmatpush1.bf16.msra.mxu0 %v5298
    %6450 = vmatprep.subr.bf16.mxu0 %v5307
    %6451 = vmatpush1.bf16.msra.mxu0 %v5306
    %6452 = vmatprep.subr.bf16.mxu0 %v5315
    %6453 = vmatpush1.bf16.msra.mxu0 %v5314
    %6454 = vmatprep.subr.bf16.mxu0 %v5323
    %6455 = vmatpush1.bf16.msra.mxu0 %v5322
    %6456 = vmatprep.subr.bf16.mxu0 %v5331
    %6457 = vmatpush1.bf16.msra.mxu0 %v5330
    %6458 = vmatprep.subr.bf16.mxu0 %v5339
    %6459 = vmatpush1.bf16.msra.mxu0 %v5338
    %6460 = vmatprep.subr.bf16.mxu0 %v5347
    %6461 = vmatpush1.bf16.msra.mxu0 %v5346
    %6462 = vmatprep.subr.bf16.mxu0 %v5355
    %6463 = vmatpush1.bf16.msra.mxu0 %v5354
    %6464 = vmatprep.subr.bf16.mxu0 %v5363
    %6465 = vmatpush1.bf16.msra.mxu0 %v5362
    %6466 = vmatprep.mubr.bf16.mxu0 %v4161
    %6467 = vmatmul.mubr.bf16.gmra.mrb[0].mxu0 %v4160
    %v6468 = vpop.f32.mrb[0].mxu0
    %v6469 = vadd.f32 %v4437, %v6468
    %v6470 = vpop.f32.mrb[0].mxu0
    %v6471 = vadd.f32 %v4441, %v6470
    %v6472 = vpop.f32.mrb[0].mxu0
    %v6473 = vadd.f32 %v4437, %v6472
    %v6474 = vpop.f32.mrb[0].mxu0
    %v6475 = vadd.f32 %v4441, %v6474
    %6476 = vmatprep.mubr.bf16.mxu0 %v4165
    %6477 = vmatmul.mubr.bf16.gmra.mrb[0].mxu0 %v4164
    %v6478 = vpop.f32.mrb[0].mxu0
    %v6479 = vadd.f32 %v4437, %v6478
    %v6480 = vpop.f32.mrb[0].mxu0
    %v6481 = vadd.f32 %v4441, %v6480
    %v6482 = vpop.f32.mrb[0].mxu0
    %v6483 = vadd.f32 %v4437, %v6482
    %v6484 = vpop.f32.mrb[0].mxu0
    %v6485 = vadd.f32 %v4441, %v6484
    %6486 = vmatprep.mubr.bf16.mxu0 %v4169
    %6487 = vmatmul.mubr.bf16.gmra.mrb[0].mxu0 %v4168
    %v6488 = vpop.f32.mrb[0].mxu0
    %v6489 = vadd.f32 %v4437, %v6488
    %v6490 = vpop.f32.mrb[0].mxu0
    %v6491 = vadd.f32 %v4441, %v6490
    %v6492 = vpop.f32.mrb[0].mxu0
    %v6493 = vadd.f32 %v4437, %v6492
    %v6494 = vpop.f32.mrb[0].mxu0
    %v6495 = vadd.f32 %v4441, %v6494
    %6496 = vmatprep.mubr.bf16.mxu0 %v4173
    %6497 = vmatmul.mubr.bf16.gmra.mrb[0].mxu0 %v4172
    %v6498 = vpop.f32.mrb[0].mxu0
    %v6499 = vadd.f32 %v4437, %v6498
    %v6500 = vpop.f32.mrb[0].mxu0
    %v6501 = vadd.f32 %v4441, %v6500
    %v6502 = vpop.f32.mrb[0].mxu0
    %v6503 = vadd.f32 %v4437, %v6502
    %v6504 = vpop.f32.mrb[0].mxu0
    %v6505 = vadd.f32 %v4441, %v6504
    %6506 = vdwg.mxu0
    %6507 = vmatprep.subr.bf16.mxu0 %v5371
    %6508 = vmatpush1.bf16.msra.mxu0 %v5370
    %6509 = vmatprep.subr.bf16.mxu0 %v5379
    %6510 = vmatpush1.bf16.msra.mxu0 %v5378
    %6511 = vmatprep.subr.bf16.mxu0 %v5387
    %6512 = vmatpush1.bf16.msra.mxu0 %v5386
    %6513 = vmatprep.subr.bf16.mxu0 %v5395
    %6514 = vmatpush1.bf16.msra.mxu0 %v5394
    %6515 = vmatprep.subr.bf16.mxu0 %v5403
    %6516 = vmatpush1.bf16.msra.mxu0 %v5402
    %6517 = vmatprep.subr.bf16.mxu0 %v5411
    %6518 = vmatpush1.bf16.msra.mxu0 %v5410
    %6519 = vmatprep.subr.bf16.mxu0 %v5419
    %6520 = vmatpush1.bf16.msra.mxu0 %v5418
    %6521 = vmatprep.subr.bf16.mxu0 %v5427
    %6522 = vmatpush1.bf16.msra.mxu0 %v5426
    %6523 = vmatprep.subr.bf16.mxu0 %v5435
    %6524 = vmatpush1.bf16.msra.mxu0 %v5434
    %6525 = vmatprep.subr.bf16.mxu0 %v5443
    %6526 = vmatpush1.bf16.msra.mxu0 %v5442
    %6527 = vmatprep.subr.bf16.mxu0 %v5451
    %6528 = vmatpush1.bf16.msra.mxu0 %v5450
    %6529 = vmatprep.subr.bf16.mxu0 %v5459
    %6530 = vmatpush1.bf16.msra.mxu0 %v5458
    %6531 = vmatprep.subr.bf16.mxu0 %v5467
    %6532 = vmatpush1.bf16.msra.mxu0 %v5466
    %6533 = vmatprep.subr.bf16.mxu0 %v5475
    %6534 = vmatpush1.bf16.msra.mxu0 %v5474
    %6535 = vmatprep.subr.bf16.mxu0 %v5483
    %6536 = vmatpush1.bf16.msra.mxu0 %v5482
    %6537 = vmatprep.subr.bf16.mxu0 %v5491
    %6538 = vmatpush1.bf16.msra.mxu0 %v5490
    %6539 = vmatprep.mubr.bf16.mxu0 %v4163
    %6540 = vmatmul.mubr.bf16.gmra.mrb[0].mxu0 %v4162
    %v6541 = vpop.f32.mrb[0].mxu0
    %v6542 = vadd.f32 %v6469, %v6541
    %v6543 = vpop.f32.mrb[0].mxu0
    %v6544 = vadd.f32 %v6471, %v6543
    %v6545 = vpop.f32.mrb[0].mxu0
    %v6546 = vadd.f32 %v6473, %v6545
    %v6547 = vpop.f32.mrb[0].mxu0
    %v6548 = vadd.f32 %v6475, %v6547
    %6549 = vmatprep.mubr.bf16.mxu0 %v4167
    %6550 = vmatmul.mubr.bf16.gmra.mrb[0].mxu0 %v4166
    %v6551 = vpop.f32.mrb[0].mxu0
    %v6552 = vadd.f32 %v6479, %v6551
    %v6553 = vpop.f32.mrb[0].mxu0
    %v6554 = vadd.f32 %v6481, %v6553
    %v6555 = vpop.f32.mrb[0].mxu0
    %v6556 = vadd.f32 %v6483, %v6555
    %v6557 = vpop.f32.mrb[0].mxu0
    %v6558 = vadd.f32 %v6485, %v6557
    %6559 = vmatprep.mubr.bf16.mxu0 %v4171
    %6560 = vmatmul.mubr.bf16.gmra.mrb[0].mxu0 %v4170
    %v6561 = vpop.f32.mrb[0].mxu0
    %v6562 = vadd.f32 %v6489, %v6561
    %v6563 = vpop.f32.mrb[0].mxu0
    %v6564 = vadd.f32 %v6491, %v6563
    %v6565 = vpop.f32.mrb[0].mxu0
    %v6566 = vadd.f32 %v6493, %v6565
    %v6567 = vpop.f32.mrb[0].mxu0
    %v6568 = vadd.f32 %v6495, %v6567
    %6569 = vmatprep.mubr.bf16.mxu0 %v4175
    %6570 = vmatmul.mubr.bf16.gmra.mrb[0].mxu0 %v4174
    %v6571 = vpop.f32.mrb[0].mxu0
    %v6572 = vadd.f32 %v6499, %v6571
    %v6573 = vpop.f32.mrb[0].mxu0
    %v6574 = vadd.f32 %v6501, %v6573
    %v6575 = vpop.f32.mrb[0].mxu0
    %v6576 = vadd.f32 %v6503, %v6575
    %v6577 = vpop.f32.mrb[0].mxu0
    %v6578 = vadd.f32 %v6505, %v6577
    %6579 = vdwg.mxu0
    %6580 = vmatprep.subr.bf16.mxu0 %v5245
    %6581 = vmatpush1.bf16.msra.mxu0 %v5244
    %6582 = vmatprep.subr.bf16.mxu0 %v5253
    %6583 = vmatpush1.bf16.msra.mxu0 %v5252
    %6584 = vmatprep.subr.bf16.mxu0 %v5261
    %6585 = vmatpush1.bf16.msra.mxu0 %v5260
    %6586 = vmatprep.subr.bf16.mxu0 %v5269
    %6587 = vmatpush1.bf16.msra.mxu0 %v5268
    %6588 = vmatprep.subr.bf16.mxu0 %v5277
    %6589 = vmatpush1.bf16.msra.mxu0 %v5276
    %6590 = vmatprep.subr.bf16.mxu0 %v5285
    %6591 = vmatpush1.bf16.msra.mxu0 %v5284
    %6592 = vmatprep.subr.bf16.mxu0 %v5293
    %6593 = vmatpush1.bf16.msra.mxu0 %v5292
    %6594 = vmatprep.subr.bf16.mxu0 %v5301
    %6595 = vmatpush1.bf16.msra.mxu0 %v5300
    %6596 = vmatprep.subr.bf16.mxu0 %v5309
    %6597 = vmatpush1.bf16.msra.mxu0 %v5308
    %6598 = vmatprep.subr.bf16.mxu0 %v5317
    %6599 = vmatpush1.bf16.msra.mxu0 %v5316
    %6600 = vmatprep.subr.bf16.mxu0 %v5325
    %6601 = vmatpush1.bf16.msra.mxu0 %v5324
    %6602 = vmatprep.subr.bf16.mxu0 %v5333
    %6603 = vmatpush1.bf16.msra.mxu0 %v5332
    %6604 = vmatprep.subr.bf16.mxu0 %v5341
    %6605 = vmatpush1.bf16.msra.mxu0 %v5340
    %6606 = vmatprep.subr.bf16.mxu0 %v5349
    %6607 = vmatpush1.bf16.msra.mxu0 %v5348
    %6608 = vmatprep.subr.bf16.mxu0 %v5357
    %6609 = vmatpush1.bf16.msra.mxu0 %v5356
    %6610 = vmatprep.subr.bf16.mxu0 %v5365
    %6611 = vmatpush1.bf16.msra.mxu0 %v5364
    %6612 = vmatprep.mubr.bf16.mxu0 %v4161
    %6613 = vmatmul.mubr.bf16.gmra.mrb[0].mxu0 %v4160
    %v6614 = vpop.f32.mrb[0].mxu0
    %v6615 = vadd.f32 %v4445, %v6614
    %v6616 = vpop.f32.mrb[0].mxu0
    %v6617 = vadd.f32 %v4449, %v6616
    %v6618 = vpop.f32.mrb[0].mxu0
    %v6619 = vadd.f32 %v4445, %v6618
    %v6620 = vpop.f32.mrb[0].mxu0
    %v6621 = vadd.f32 %v4449, %v6620
    %6622 = vmatprep.mubr.bf16.mxu0 %v4165
    %6623 = vmatmul.mubr.bf16.gmra.mrb[0].mxu0 %v4164
    %v6624 = vpop.f32.mrb[0].mxu0
    %v6625 = vadd.f32 %v4445, %v6624
    %v6626 = vpop.f32.mrb[0].mxu0
    %v6627 = vadd.f32 %v4449, %v6626
    %v6628 = vpop.f32.mrb[0].mxu0
    %v6629 = vadd.f32 %v4445, %v6628
    %v6630 = vpop.f32.mrb[0].mxu0
    %v6631 = vadd.f32 %v4449, %v6630
    %6632 = vmatprep.mubr.bf16.mxu0 %v4169
    %6633 = vmatmul.mubr.bf16.gmra.mrb[0].mxu0 %v4168
    %v6634 = vpop.f32.mrb[0].mxu0
    %v6635 = vadd.f32 %v4445, %v6634
    %v6636 = vpop.f32.mrb[0].mxu0
    %v6637 = vadd.f32 %v4449, %v6636
    %v6638 = vpop.f32.mrb[0].mxu0
    %v6639 = vadd.f32 %v4445, %v6638
    %v6640 = vpop.f32.mrb[0].mxu0
    %v6641 = vadd.f32 %v4449, %v6640
    %6642 = vmatprep.mubr.bf16.mxu0 %v4173
    %6643 = vmatmul.mubr.bf16.gmra.mrb[0].mxu0 %v4172
    %v6644 = vpop.f32.mrb[0].mxu0
    %v6645 = vadd.f32 %v4445, %v6644
    %v6646 = vpop.f32.mrb[0].mxu0
    %v6647 = vadd.f32 %v4449, %v6646
    %v6648 = vpop.f32.mrb[0].mxu0
    %v6649 = vadd.f32 %v4445, %v6648
    %v6650 = vpop.f32.mrb[0].mxu0
    %v6651 = vadd.f32 %v4449, %v6650
    %6652 = vdwg.mxu0
    %6653 = vmatprep.subr.bf16.mxu0 %v5373
    %6654 = vmatpush1.bf16.msra.mxu0 %v5372
    %6655 = vmatprep.subr.bf16.mxu0 %v5381
    %6656 = vmatpush1.bf16.msra.mxu0 %v5380
    %6657 = vmatprep.subr.bf16.mxu0 %v5389
    %6658 = vmatpush1.bf16.msra.mxu0 %v5388
    %6659 = vmatprep.subr.bf16.mxu0 %v5397
    %6660 = vmatpush1.bf16.msra.mxu0 %v5396
    %6661 = vmatprep.subr.bf16.mxu0 %v5405
    %6662 = vmatpush1.bf16.msra.mxu0 %v5404
    %6663 = vmatprep.subr.bf16.mxu0 %v5413
    %6664 = vmatpush1.bf16.msra.mxu0 %v5412
    %6665 = vmatprep.subr.bf16.mxu0 %v5421
    %6666 = vmatpush1.bf16.msra.mxu0 %v5420
    %6667 = vmatprep.subr.bf16.mxu0 %v5429
    %6668 = vmatpush1.bf16.msra.mxu0 %v5428
    %6669 = vmatprep.subr.bf16.mxu0 %v5437
    %6670 = vmatpush1.bf16.msra.mxu0 %v5436
    %6671 = vmatprep.subr.bf16.mxu0 %v5445
    %6672 = vmatpush1.bf16.msra.mxu0 %v5444
    %6673 = vmatprep.subr.bf16.mxu0 %v5453
    %6674 = vmatpush1.bf16.msra.mxu0 %v5452
    %6675 = vmatprep.subr.bf16.mxu0 %v5461
    %6676 = vmatpush1.bf16.msra.mxu0 %v5460
    %6677 = vmatprep.subr.bf16.mxu0 %v5469
    %6678 = vmatpush1.bf16.msra.mxu0 %v5468
    %6679 = vmatprep.subr.bf16.mxu0 %v5477
    %6680 = vmatpush1.bf16.msra.mxu0 %v5476
    %6681 = vmatprep.subr.bf16.mxu0 %v5485
    %6682 = vmatpush1.bf16.msra.mxu0 %v5484
    %6683 = vmatprep.subr.bf16.mxu0 %v5493
    %6684 = vmatpush1.bf16.msra.mxu0 %v5492
    %6685 = vmatprep.mubr.bf16.mxu0 %v4163
    %6686 = vmatmul.mubr.bf16.gmra.mrb[0].mxu0 %v4162
    %v6687 = vpop.f32.mrb[0].mxu0
    %v6688 = vadd.f32 %v6615, %v6687
    %v6689 = vpop.f32.mrb[0].mxu0
    %v6690 = vadd.f32 %v6617, %v6689
    %v6691 = vpop.f32.mrb[0].mxu0
    %v6692 = vadd.f32 %v6619, %v6691
    %v6693 = vpop.f32.mrb[0].mxu0
    %v6694 = vadd.f32 %v6621, %v6693
    %6695 = vmatprep.mubr.bf16.mxu0 %v4167
    %6696 = vmatmul.mubr.bf16.gmra.mrb[0].mxu0 %v4166
    %v6697 = vpop.f32.mrb[0].mxu0
    %v6698 = vadd.f32 %v6625, %v6697
    %v6699 = vpop.f32.mrb[0].mxu0
    %v6700 = vadd.f32 %v6627, %v6699
    %v6701 = vpop.f32.mrb[0].mxu0
    %v6702 = vadd.f32 %v6629, %v6701
    %v6703 = vpop.f32.mrb[0].mxu0
    %v6704 = vadd.f32 %v6631, %v6703
    %6705 = vmatprep.mubr.bf16.mxu0 %v4171
    %6706 = vmatmul.mubr.bf16.gmra.mrb[0].mxu0 %v4170
    %v6707 = vpop.f32.mrb[0].mxu0
    %v6708 = vadd.f32 %v6635, %v6707
    %v6709 = vpop.f32.mrb[0].mxu0
    %v6710 = vadd.f32 %v6637, %v6709
    %v6711 = vpop.f32.mrb[0].mxu0
    %v6712 = vadd.f32 %v6639, %v6711
    %v6713 = vpop.f32.mrb[0].mxu0
    %v6714 = vadd.f32 %v6641, %v6713
    %6715 = vmatprep.mubr.bf16.mxu0 %v4175
    %6716 = vmatmul.mubr.bf16.gmra.mrb[0].mxu0 %v4174
    %v6717 = vpop.f32.mrb[0].mxu0
    %v6718 = vadd.f32 %v6645, %v6717
    %v6719 = vpop.f32.mrb[0].mxu0
    %v6720 = vadd.f32 %v6647, %v6719
    %v6721 = vpop.f32.mrb[0].mxu0
    %v6722 = vadd.f32 %v6649, %v6721
    %v6723 = vpop.f32.mrb[0].mxu0
    %v6724 = vadd.f32 %v6651, %v6723
    %6725 = vdwg.mxu0
    %6726 = vmatprep.subr.bf16.mxu0 %v5247
    %6727 = vmatpush1.bf16.msra.mxu0 %v5246
    %6728 = vmatprep.subr.bf16.mxu0 %v5255
    %6729 = vmatpush1.bf16.msra.mxu0 %v5254
    %6730 = vmatprep.subr.bf16.mxu0 %v5263
    %6731 = vmatpush1.bf16.msra.mxu0 %v5262
    %6732 = vmatprep.subr.bf16.mxu0 %v5271
    %6733 = vmatpush1.bf16.msra.mxu0 %v5270
    %6734 = vmatprep.subr.bf16.mxu0 %v5279
    %6735 = vmatpush1.bf16.msra.mxu0 %v5278
    %6736 = vmatprep.subr.bf16.mxu0 %v5287
    %6737 = vmatpush1.bf16.msra.mxu0 %v5286
    %6738 = vmatprep.subr.bf16.mxu0 %v5295
    %6739 = vmatpush1.bf16.msra.mxu0 %v5294
    %6740 = vmatprep.subr.bf16.mxu0 %v5303
    %6741 = vmatpush1.bf16.msra.mxu0 %v5302
    %6742 = vmatprep.subr.bf16.mxu0 %v5311
    %6743 = vmatpush1.bf16.msra.mxu0 %v5310
    %6744 = vmatprep.subr.bf16.mxu0 %v5319
    %6745 = vmatpush1.bf16.msra.mxu0 %v5318
    %6746 = vmatprep.subr.bf16.mxu0 %v5327
    %6747 = vmatpush1.bf16.msra.mxu0 %v5326
    %6748 = vmatprep.subr.bf16.mxu0 %v5335
    %6749 = vmatpush1.bf16.msra.mxu0 %v5334
    %6750 = vmatprep.subr.bf16.mxu0 %v5343
    %6751 = vmatpush1.bf16.msra.mxu0 %v5342
    %6752 = vmatprep.subr.bf16.mxu0 %v5351
    %6753 = vmatpush1.bf16.msra.mxu0 %v5350
    %6754 = vmatprep.subr.bf16.mxu0 %v5359
    %6755 = vmatpush1.bf16.msra.mxu0 %v5358
    %6756 = vmatprep.subr.bf16.mxu0 %v5367
    %6757 = vmatpush1.bf16.msra.mxu0 %v5366
    %6758 = vmatprep.mubr.bf16.mxu0 %v4161
    %6759 = vmatmul.mubr.bf16.gmra.mrb[0].mxu0 %v4160
    %v6760 = vpop.f32.mrb[0].mxu0
    %v6761 = vadd.f32 %v4453, %v6760
    %v6762 = vpop.f32.mrb[0].mxu0
    %v6763 = vadd.f32 %v4457, %v6762
    %v6764 = vpop.f32.mrb[0].mxu0
    %v6765 = vadd.f32 %v4453, %v6764
    %v6766 = vpop.f32.mrb[0].mxu0
    %v6767 = vadd.f32 %v4457, %v6766
    %6768 = vmatprep.mubr.bf16.mxu0 %v4165
    %6769 = vmatmul.mubr.bf16.gmra.mrb[0].mxu0 %v4164
    %v6770 = vpop.f32.mrb[0].mxu0
    %v6771 = vadd.f32 %v4453, %v6770
    %v6772 = vpop.f32.mrb[0].mxu0
    %v6773 = vadd.f32 %v4457, %v6772
    %v6774 = vpop.f32.mrb[0].mxu0
    %v6775 = vadd.f32 %v4453, %v6774
    %v6776 = vpop.f32.mrb[0].mxu0
    %v6777 = vadd.f32 %v4457, %v6776
    %6778 = vmatprep.mubr.bf16.mxu0 %v4169
    %6779 = vmatmul.mubr.bf16.gmra.mrb[0].mxu0 %v4168
    %v6780 = vpop.f32.mrb[0].mxu0
    %v6781 = vadd.f32 %v4453, %v6780
    %v6782 = vpop.f32.mrb[0].mxu0
    %v6783 = vadd.f32 %v4457, %v6782
    %v6784 = vpop.f32.mrb[0].mxu0
    %v6785 = vadd.f32 %v4453, %v6784
    %v6786 = vpop.f32.mrb[0].mxu0
    %v6787 = vadd.f32 %v4457, %v6786
    %6788 = vmatprep.mubr.bf16.mxu0 %v4173
    %6789 = vmatmul.mubr.bf16.gmra.mrb[0].mxu0 %v4172
    %v6790 = vpop.f32.mrb[0].mxu0
    %v6791 = vadd.f32 %v4453, %v6790
    %v6792 = vpop.f32.mrb[0].mxu0
    %v6793 = vadd.f32 %v4457, %v6792
    %v6794 = vpop.f32.mrb[0].mxu0
    %v6795 = vadd.f32 %v4453, %v6794
    %v6796 = vpop.f32.mrb[0].mxu0
    %v6797 = vadd.f32 %v4457, %v6796
    %6798 = vdwg.mxu0
    %6799 = vmatprep.subr.bf16.mxu0 %v5375
    %6800 = vmatpush1.bf16.msra.mxu0 %v5374
    %6801 = vmatprep.subr.bf16.mxu0 %v5383
    %6802 = vmatpush1.bf16.msra.mxu0 %v5382
    %6803 = vmatprep.subr.bf16.mxu0 %v5391
    %6804 = vmatpush1.bf16.msra.mxu0 %v5390
    %6805 = vmatprep.subr.bf16.mxu0 %v5399
    %6806 = vmatpush1.bf16.msra.mxu0 %v5398
    %6807 = vmatprep.subr.bf16.mxu0 %v5407
    %6808 = vmatpush1.bf16.msra.mxu0 %v5406
    %6809 = vmatprep.subr.bf16.mxu0 %v5415
    %6810 = vmatpush1.bf16.msra.mxu0 %v5414
    %6811 = vmatprep.subr.bf16.mxu0 %v5423
    %6812 = vmatpush1.bf16.msra.mxu0 %v5422
    %6813 = vmatprep.subr.bf16.mxu0 %v5431
    %6814 = vmatpush1.bf16.msra.mxu0 %v5430
    %6815 = vmatprep.subr.bf16.mxu0 %v5439
    %6816 = vmatpush1.bf16.msra.mxu0 %v5438
    %6817 = vmatprep.subr.bf16.mxu0 %v5447
    %6818 = vmatpush1.bf16.msra.mxu0 %v5446
    %6819 = vmatprep.subr.bf16.mxu0 %v5455
    %6820 = vmatpush1.bf16.msra.mxu0 %v5454
    %6821 = vmatprep.subr.bf16.mxu0 %v5463
    %6822 = vmatpush1.bf16.msra.mxu0 %v5462
    %6823 = vmatprep.subr.bf16.mxu0 %v5471
    %6824 = vmatpush1.bf16.msra.mxu0 %v5470
    %6825 = vmatprep.subr.bf16.mxu0 %v5479
    %6826 = vmatpush1.bf16.msra.mxu0 %v5478
    %6827 = vmatprep.subr.bf16.mxu0 %v5487
    %6828 = vmatpush1.bf16.msra.mxu0 %v5486
    %6829 = vmatprep.subr.bf16.mxu0 %v5495
    %6830 = vmatpush1.bf16.msra.mxu0 %v5494
    %6831 = vmatprep.mubr.bf16.mxu0 %v4163
    %6832 = vmatmul.mubr.bf16.gmra.mrb[0].mxu0 %v4162
    %v6833 = vpop.f32.mrb[0].mxu0
    %v6834 = vadd.f32 %v6761, %v6833
    %v6835 = vpop.f32.mrb[0].mxu0
    %v6836 = vadd.f32 %v6763, %v6835
    %v6837 = vpop.f32.mrb[0].mxu0
    %v6838 = vadd.f32 %v6765, %v6837
    %v6839 = vpop.f32.mrb[0].mxu0
    %v6840 = vadd.f32 %v6767, %v6839
    %6841 = vmatprep.mubr.bf16.mxu0 %v4167
    %6842 = vmatmul.mubr.bf16.gmra.mrb[0].mxu0 %v4166
    %v6843 = vpop.f32.mrb[0].mxu0
    %v6844 = vadd.f32 %v6771, %v6843
    %v6845 = vpop.f32.mrb[0].mxu0
    %v6846 = vadd.f32 %v6773, %v6845
    %v6847 = vpop.f32.mrb[0].mxu0
    %v6848 = vadd.f32 %v6775, %v6847
    %v6849 = vpop.f32.mrb[0].mxu0
    %v6850 = vadd.f32 %v6777, %v6849
    %6851 = vmatprep.mubr.bf16.mxu0 %v4171
    %6852 = vmatmul.mubr.bf16.gmra.mrb[0].mxu0 %v4170
    %v6853 = vpop.f32.mrb[0].mxu0
    %v6854 = vadd.f32 %v6781, %v6853
    %v6855 = vpop.f32.mrb[0].mxu0
    %v6856 = vadd.f32 %v6783, %v6855
    %v6857 = vpop.f32.mrb[0].mxu0
    %v6858 = vadd.f32 %v6785, %v6857
    %v6859 = vpop.f32.mrb[0].mxu0
    %v6860 = vadd.f32 %v6787, %v6859
    %6861 = vmatprep.mubr.bf16.mxu0 %v4175
    %6862 = vmatmul.mubr.bf16.gmra.mrb[0].mxu0 %v4174
    %v6863 = vpop.f32.mrb[0].mxu0
    %v6864 = vadd.f32 %v6791, %v6863
    %v6865 = vpop.f32.mrb[0].mxu0
    %v6866 = vadd.f32 %v6793, %v6865
    %v6867 = vpop.f32.mrb[0].mxu0
    %v6868 = vadd.f32 %v6795, %v6867
    %v6869 = vpop.f32.mrb[0].mxu0
    %v6870 = vadd.f32 %v6797, %v6869
    %6871 = vdwg.mxu0
    %6872 = vmatprep.subr.bf16.mxu0 %v5249
    %6873 = vmatpush1.bf16.msra.mxu0 %v5248
    %6874 = vmatprep.subr.bf16.mxu0 %v5257
    %6875 = vmatpush1.bf16.msra.mxu0 %v5256
    %6876 = vmatprep.subr.bf16.mxu0 %v5265
    %6877 = vmatpush1.bf16.msra.mxu0 %v5264
    %6878 = vmatprep.subr.bf16.mxu0 %v5273
    %6879 = vmatpush1.bf16.msra.mxu0 %v5272
    %6880 = vmatprep.subr.bf16.mxu0 %v5281
    %6881 = vmatpush1.bf16.msra.mxu0 %v5280
    %6882 = vmatprep.subr.bf16.mxu0 %v5289
    %6883 = vmatpush1.bf16.msra.mxu0 %v5288
    %6884 = vmatprep.subr.bf16.mxu0 %v5297
    %6885 = vmatpush1.bf16.msra.mxu0 %v5296
    %6886 = vmatprep.subr.bf16.mxu0 %v5305
    %6887 = vmatpush1.bf16.msra.mxu0 %v5304
    %6888 = vmatprep.subr.bf16.mxu0 %v5313
    %6889 = vmatpush1.bf16.msra.mxu0 %v5312
    %6890 = vmatprep.subr.bf16.mxu0 %v5321
    %6891 = vmatpush1.bf16.msra.mxu0 %v5320
    %6892 = vmatprep.subr.bf16.mxu0 %v5329
    %6893 = vmatpush1.bf16.msra.mxu0 %v5328
    %6894 = vmatprep.subr.bf16.mxu0 %v5337
    %6895 = vmatpush1.bf16.msra.mxu0 %v5336
    %6896 = vmatprep.subr.bf16.mxu0 %v5345
    %6897 = vmatpush1.bf16.msra.mxu0 %v5344
    %6898 = vmatprep.subr.bf16.mxu0 %v5353
    %6899 = vmatpush1.bf16.msra.mxu0 %v5352
    %6900 = vmatprep.subr.bf16.mxu0 %v5361
    %6901 = vmatpush1.bf16.msra.mxu0 %v5360
    %6902 = vmatprep.subr.bf16.mxu0 %v5369
    %6903 = vmatpush1.bf16.msra.mxu0 %v5368
    %6904 = vmatprep.mubr.bf16.mxu0 %v4161
    %6905 = vmatmul.mubr.bf16.gmra.mrb[0].mxu0 %v4160
    %v6906 = vpop.f32.mrb[0].mxu0
    %v6907 = vadd.f32 %v4461, %v6906
    %v6908 = vpop.f32.mrb[0].mxu0
    %v6909 = vadd.f32 %v4465, %v6908
    %v6910 = vpop.f32.mrb[0].mxu0
    %v6911 = vadd.f32 %v4461, %v6910
    %v6912 = vpop.f32.mrb[0].mxu0
    %v6913 = vadd.f32 %v4465, %v6912
    %6914 = vmatprep.mubr.bf16.mxu0 %v4165
    %6915 = vmatmul.mubr.bf16.gmra.mrb[0].mxu0 %v4164
    %v6916 = vpop.f32.mrb[0].mxu0
    %v6917 = vadd.f32 %v4461, %v6916
    %v6918 = vpop.f32.mrb[0].mxu0
    %v6919 = vadd.f32 %v4465, %v6918
    %v6920 = vpop.f32.mrb[0].mxu0
    %v6921 = vadd.f32 %v4461, %v6920
    %v6922 = vpop.f32.mrb[0].mxu0
    %v6923 = vadd.f32 %v4465, %v6922
    %6924 = vmatprep.mubr.bf16.mxu0 %v4169
    %6925 = vmatmul.mubr.bf16.gmra.mrb[0].mxu0 %v4168
    %v6926 = vpop.f32.mrb[0].mxu0
    %v6927 = vadd.f32 %v4461, %v6926
    %v6928 = vpop.f32.mrb[0].mxu0
    %v6929 = vadd.f32 %v4465, %v6928
    %v6930 = vpop.f32.mrb[0].mxu0
    %v6931 = vadd.f32 %v4461, %v6930
    %v6932 = vpop.f32.mrb[0].mxu0
    %v6933 = vadd.f32 %v4465, %v6932
    %6934 = vmatprep.mubr.bf16.mxu0 %v4173
    %6935 = vmatmul.mubr.bf16.gmra.mrb[0].mxu0 %v4172
    %v6936 = vpop.f32.mrb[0].mxu0
    %v6937 = vadd.f32 %v4461, %v6936
    %v6938 = vpop.f32.mrb[0].mxu0
    %v6939 = vadd.f32 %v4465, %v6938
    %v6940 = vpop.f32.mrb[0].mxu0
    %v6941 = vadd.f32 %v4461, %v6940
    %v6942 = vpop.f32.mrb[0].mxu0
    %v6943 = vadd.f32 %v4465, %v6942
    %6944 = vdwg.mxu0
    %6945 = vmatprep.subr.bf16.mxu0 %v5377
    %6946 = vmatpush1.bf16.msra.mxu0 %v5376
    %6947 = vmatprep.subr.bf16.mxu0 %v5385
    %6948 = vmatpush1.bf16.msra.mxu0 %v5384
    %6949 = vmatprep.subr.bf16.mxu0 %v5393
    %6950 = vmatpush1.bf16.msra.mxu0 %v5392
    %6951 = vmatprep.subr.bf16.mxu0 %v5401
    %6952 = vmatpush1.bf16.msra.mxu0 %v5400
    %6953 = vmatprep.subr.bf16.mxu0 %v5409
    %6954 = vmatpush1.bf16.msra.mxu0 %v5408
    %6955 = vmatprep.subr.bf16.mxu0 %v5417
    %6956 = vmatpush1.bf16.msra.mxu0 %v5416
    %6957 = vmatprep.subr.bf16.mxu0 %v5425
    %6958 = vmatpush1.bf16.msra.mxu0 %v5424
    %6959 = vmatprep.subr.bf16.mxu0 %v5433
    %6960 = vmatpush1.bf16.msra.mxu0 %v5432
    %6961 = vmatprep.subr.bf16.mxu0 %v5441
    %6962 = vmatpush1.bf16.msra.mxu0 %v5440
    %6963 = vmatprep.subr.bf16.mxu0 %v5449
    %6964 = vmatpush1.bf16.msra.mxu0 %v5448
    %6965 = vmatprep.subr.bf16.mxu0 %v5457
    %6966 = vmatpush1.bf16.msra.mxu0 %v5456
    %6967 = vmatprep.subr.bf16.mxu0 %v5465
    %6968 = vmatpush1.bf16.msra.mxu0 %v5464
    %6969 = vmatprep.subr.bf16.mxu0 %v5473
    %6970 = vmatpush1.bf16.msra.mxu0 %v5472
    %6971 = vmatprep.subr.bf16.mxu0 %v5481
    %6972 = vmatpush1.bf16.msra.mxu0 %v5480
    %6973 = vmatprep.subr.bf16.mxu0 %v5489
    %6974 = vmatpush1.bf16.msra.mxu0 %v5488
    %6975 = vmatprep.subr.bf16.mxu0 %v5497
    %6976 = vmatpush1.bf16.msra.mxu0 %v5496
    %6977 = vmatprep.mubr.bf16.mxu0 %v4163
    %6978 = vmatmul.mubr.bf16.gmra.mrb[0].mxu0 %v4162
    %v6979 = vpop.f32.mrb[0].mxu0
    %v6980 = vadd.f32 %v6907, %v6979
    %v6981 = vpop.f32.mrb[0].mxu0
    %v6982 = vadd.f32 %v6909, %v6981
    %v6983 = vpop.f32.mrb[0].mxu0
    %v6984 = vadd.f32 %v6911, %v6983
    %v6985 = vpop.f32.mrb[0].mxu0
    %v6986 = vadd.f32 %v6913, %v6985
    %6987 = vmatprep.mubr.bf16.mxu0 %v4167
    %6988 = vmatmul.mubr.bf16.gmra.mrb[0].mxu0 %v4166
    %v6989 = vpop.f32.mrb[0].mxu0
    %v6990 = vadd.f32 %v6917, %v6989
    %v6991 = vpop.f32.mrb[0].mxu0
    %v6992 = vadd.f32 %v6919, %v6991
    %v6993 = vpop.f32.mrb[0].mxu0
    %v6994 = vadd.f32 %v6921, %v6993
    %v6995 = vpop.f32.mrb[0].mxu0
    %v6996 = vadd.f32 %v6923, %v6995
    %6997 = vmatprep.mubr.bf16.mxu0 %v4171
    %6998 = vmatmul.mubr.bf16.gmra.mrb[0].mxu0 %v4170
    %v6999 = vpop.f32.mrb[0].mxu0
    %v7000 = vadd.f32 %v6927, %v6999
    %v7001 = vpop.f32.mrb[0].mxu0
    %v7002 = vadd.f32 %v6929, %v7001
    %v7003 = vpop.f32.mrb[0].mxu0
    %v7004 = vadd.f32 %v6931, %v7003
    %v7005 = vpop.f32.mrb[0].mxu0
    %v7006 = vadd.f32 %v6933, %v7005
    %7007 = vmatprep.mubr.bf16.mxu0 %v4175
    %7008 = vmatmul.mubr.bf16.gmra.mrb[0].mxu0 %v4174
    %v7009 = vpop.f32.mrb[0].mxu0
    %v7010 = vadd.f32 %v6937, %v7009
    %v7011 = vpop.f32.mrb[0].mxu0
    %v7012 = vadd.f32 %v6939, %v7011
    %v7013 = vpop.f32.mrb[0].mxu0
    %v7014 = vadd.f32 %v6941, %v7013
    %v7015 = vpop.f32.mrb[0].mxu0
    %v7016 = vadd.f32 %v6943, %v7015
    %7017 = vdwg.mxu0
    %v7018 = vmax.f32 %v6542, 0.0
    %v7019 = vmax.f32 %v6544, 0.0
    %v7020 = vmax.f32 %v6688, 0.0
    %v7021 = vmax.f32 %v6690, 0.0
    %v7022 = vmax.f32 %v6834, 0.0
    %v7023 = vmax.f32 %v6836, 0.0
    %v7024 = vmax.f32 %v6980, 0.0
    %v7025 = vmax.f32 %v6982, 0.0
    %v7026 = vmax.f32 %v6546, 0.0
    %v7027 = vmax.f32 %v6548, 0.0
    %v7028 = vmax.f32 %v6692, 0.0
    %v7029 = vmax.f32 %v6694, 0.0
    %v7030 = vmax.f32 %v6838, 0.0
    %v7031 = vmax.f32 %v6840, 0.0
    %v7032 = vmax.f32 %v6984, 0.0
    %v7033 = vmax.f32 %v6986, 0.0
    %v7034 = vmax.f32 %v6552, 0.0
    %v7035 = vmax.f32 %v6554, 0.0
    %v7036 = vmax.f32 %v6698, 0.0
    %v7037 = vmax.f32 %v6700, 0.0
    %v7038 = vmax.f32 %v6844, 0.0
    %v7039 = vmax.f32 %v6846, 0.0
    %v7040 = vmax.f32 %v6990, 0.0
    %v7041 = vmax.f32 %v6992, 0.0
    %v7042 = vmax.f32 %v6556, 0.0
    %v7043 = vmax.f32 %v6558, 0.0
    %v7044 = vmax.f32 %v6702, 0.0
    %v7045 = vmax.f32 %v6704, 0.0
    %v7046 = vmax.f32 %v6848, 0.0
    %v7047 = vmax.f32 %v6850, 0.0
    %v7048 = vmax.f32 %v6994, 0.0
    %v7049 = vmax.f32 %v6996, 0.0
    %v7050 = vmax.f32 %v6562, 0.0
    %v7051 = vmax.f32 %v6564, 0.0
    %v7052 = vmax.f32 %v6708, 0.0
    %v7053 = vmax.f32 %v6710, 0.0
    %v7054 = vmax.f32 %v6854, 0.0
    %v7055 = vmax.f32 %v6856, 0.0
    %v7056 = vmax.f32 %v7000, 0.0
    %v7057 = vmax.f32 %v7002, 0.0
    %v7058 = vmax.f32 %v6566, 0.0
    %v7059 = vmax.f32 %v6568, 0.0
    %v7060 = vmax.f32 %v6712, 0.0
    %v7061 = vmax.f32 %v6714, 0.0
    %v7062 = vmax.f32 %v6858, 0.0
    %v7063 = vmax.f32 %v6860, 0.0
    %v7064 = vmax.f32 %v7004, 0.0
    %v7065 = vmax.f32 %v7006, 0.0
    %v7066 = vmax.f32 %v6572, 0.0
    %v7067 = vmax.f32 %v6574, 0.0
    %v7068 = vmax.f32 %v6718, 0.0
    %v7069 = vmax.f32 %v6720, 0.0
    %v7070 = vmax.f32 %v6864, 0.0
    %v7071 = vmax.f32 %v6866, 0.0
    %v7072 = vmax.f32 %v7010, 0.0
    %v7073 = vmax.f32 %v7012, 0.0
    %v7074 = vmax.f32 %v6576, 0.0
    %v7075 = vmax.f32 %v6578, 0.0
    %v7076 = vmax.f32 %v6722, 0.0
    %v7077 = vmax.f32 %v6724, 0.0
    %v7078 = vmax.f32 %v6868, 0.0
    %v7079 = vmax.f32 %v6870, 0.0
    %v7080 = vmax.f32 %v7014, 0.0
    %v7081 = vmax.f32 %v7016, 0.0
    %v7082 = vpack.c.bf16 %v7026, %v7018
    %v7083 = vpack.c.bf16 %v7027, %v7019
    %v7084 = vpack.c.bf16 %v7028, %v7020
    %v7085 = vpack.c.bf16 %v7029, %v7021
    %v7086 = vpack.c.bf16 %v7030, %v7022
    %v7087 = vpack.c.bf16 %v7031, %v7023
    %v7088 = vpack.c.bf16 %v7032, %v7024
    %v7089 = vpack.c.bf16 %v7033, %v7025
    %v7090 = vpack.c.bf16 %v7042, %v7034
    %v7091 = vpack.c.bf16 %v7043, %v7035
    %v7092 = vpack.c.bf16 %v7044, %v7036
    %v7093 = vpack.c.bf16 %v7045, %v7037
    %v7094 = vpack.c.bf16 %v7046, %v7038
    %v7095 = vpack.c.bf16 %v7047, %v7039
    %v7096 = vpack.c.bf16 %v7048, %v7040
    %v7097 = vpack.c.bf16 %v7049, %v7041
    %v7098 = vpack.c.bf16 %v7058, %v7050
    %v7099 = vpack.c.bf16 %v7059, %v7051
    %v7100 = vpack.c.bf16 %v7060, %v7052
    %v7101 = vpack.c.bf16 %v7061, %v7053
    %v7102 = vpack.c.bf16 %v7062, %v7054
    %v7103 = vpack.c.bf16 %v7063, %v7055
    %v7104 = vpack.c.bf16 %v7064, %v7056
    %v7105 = vpack.c.bf16 %v7065, %v7057
    %v7106 = vpack.c.bf16 %v7074, %v7066
    %v7107 = vpack.c.bf16 %v7075, %v7067
    %v7108 = vpack.c.bf16 %v7076, %v7068
    %v7109 = vpack.c.bf16 %v7077, %v7069
    %v7110 = vpack.c.bf16 %v7078, %v7070
    %v7111 = vpack.c.bf16 %v7079, %v7071
    %v7112 = vpack.c.bf16 %v7080, %v7072
    %v7113 = vpack.c.bf16 %v7081, %v7073
    %v7114 = vld [vmem:[#allocation7] sm:$0xf]
    %v7115 = vld [vmem:[#allocation7 + $0x4] sm:$0xf]
    %v7116 = vld [vmem:[#allocation7 + $0x8] sm:$0xf]
    %v7117 = vld [vmem:[#allocation7 + $0xc] sm:$0xf]
    %v7118 = vld [vmem:[#allocation7 + $0x10] sm:$0xf]
    %v7119 = vld [vmem:[#allocation7 + $0x14] sm:$0xf]
    %v7120 = vld [vmem:[#allocation7 + $0x18] sm:$0xf]
    %v7121 = vld [vmem:[#allocation7 + $0x1c] sm:$0xf]
    %v7122 = vld [vmem:[#allocation7 + $0x20] sm:$0xf]
    %v7123 = vld [vmem:[#allocation7 + $0x24] sm:$0xf]
    %v7124 = vld [vmem:[#allocation7 + $0x28] sm:$0xf]
    %v7125 = vld [vmem:[#allocation7 + $0x2c] sm:$0xf]
    %v7126 = vld [vmem:[#allocation7 + $0x30] sm:$0xf]
    %v7127 = vld [vmem:[#allocation7 + $0x34] sm:$0xf]
    %v7128 = vld [vmem:[#allocation7 + $0x38] sm:$0xf]
    %v7129 = vld [vmem:[#allocation7 + $0x3c] sm:$0xf]
    %v7130 = vld [vmem:[#allocation7 + $0x40] sm:$0xf]
    %v7131 = vld [vmem:[#allocation7 + $0x44] sm:$0xf]
    %v7132 = vld [vmem:[#allocation7 + $0x48] sm:$0xf]
    %v7133 = vld [vmem:[#allocation7 + $0x4c] sm:$0xf]
    %v7134 = vld [vmem:[#allocation7 + $0x50] sm:$0xf]
    %v7135 = vld [vmem:[#allocation7 + $0x54] sm:$0xf]
    %v7136 = vld [vmem:[#allocation7 + $0x58] sm:$0xf]
    %v7137 = vld [vmem:[#allocation7 + $0x5c] sm:$0xf]
    %v7138 = vld [vmem:[#allocation7 + $0x60] sm:$0xf]
    %v7139 = vld [vmem:[#allocation7 + $0x64] sm:$0xf]
    %v7140 = vld [vmem:[#allocation7 + $0x68] sm:$0xf]
    %v7141 = vld [vmem:[#allocation7 + $0x6c] sm:$0xf]
    %v7142 = vld [vmem:[#allocation7 + $0x70] sm:$0xf]
    %v7143 = vld [vmem:[#allocation7 + $0x74] sm:$0xf]
    %v7144 = vld [vmem:[#allocation7 + $0x78] sm:$0xf]
    %v7145 = vld [vmem:[#allocation7 + $0x7c] sm:$0xf]
    %v7146 = vld [vmem:[#allocation7 + $0x80] sm:$0xf]
    %v7147 = vld [vmem:[#allocation7 + $0x84] sm:$0xf]
    %v7148 = vld [vmem:[#allocation7 + $0x88] sm:$0xf]
    %v7149 = vld [vmem:[#allocation7 + $0x8c] sm:$0xf]
    %v7150 = vld [vmem:[#allocation7 + $0x90] sm:$0xf]
    %v7151 = vld [vmem:[#allocation7 + $0x94] sm:$0xf]
    %v7152 = vld [vmem:[#allocation7 + $0x98] sm:$0xf]
    %v7153 = vld [vmem:[#allocation7 + $0x9c] sm:$0xf]
    %v7154 = vld [vmem:[#allocation7 + $0xa0] sm:$0xf]
    %v7155 = vld [vmem:[#allocation7 + $0xa4] sm:$0xf]
    %v7156 = vld [vmem:[#allocation7 + $0xa8] sm:$0xf]
    %v7157 = vld [vmem:[#allocation7 + $0xac] sm:$0xf]
    %v7158 = vld [vmem:[#allocation7 + $0xb0] sm:$0xf]
    %v7159 = vld [vmem:[#allocation7 + $0xb4] sm:$0xf]
    %v7160 = vld [vmem:[#allocation7 + $0xb8] sm:$0xf]
    %v7161 = vld [vmem:[#allocation7 + $0xbc] sm:$0xf]
    %v7162 = vld [vmem:[#allocation7 + $0xc0] sm:$0xf]
    %v7163 = vld [vmem:[#allocation7 + $0xc4] sm:$0xf]
    %v7164 = vld [vmem:[#allocation7 + $0xc8] sm:$0xf]
    %v7165 = vld [vmem:[#allocation7 + $0xcc] sm:$0xf]
    %v7166 = vld [vmem:[#allocation7 + $0xd0] sm:$0xf]
    %v7167 = vld [vmem:[#allocation7 + $0xd4] sm:$0xf]
    %v7168 = vld [vmem:[#allocation7 + $0xd8] sm:$0xf]
    %v7169 = vld [vmem:[#allocation7 + $0xdc] sm:$0xf]
    %v7170 = vld [vmem:[#allocation7 + $0xe0] sm:$0xf]
    %v7171 = vld [vmem:[#allocation7 + $0xe4] sm:$0xf]
    %v7172 = vld [vmem:[#allocation7 + $0xe8] sm:$0xf]
    %v7173 = vld [vmem:[#allocation7 + $0xec] sm:$0xf]
    %v7174 = vld [vmem:[#allocation7 + $0xf0] sm:$0xf]
    %v7175 = vld [vmem:[#allocation7 + $0xf4] sm:$0xf]
    %v7176 = vld [vmem:[#allocation7 + $0xf8] sm:$0xf]
    %v7177 = vld [vmem:[#allocation7 + $0xfc] sm:$0xf]
    %v7178 = vld [vmem:[#allocation7 + $0x100] sm:$0xf]
    %v7179 = vld [vmem:[#allocation7 + $0x104] sm:$0xf]
    %v7180 = vld [vmem:[#allocation7 + $0x108] sm:$0xf]
    %v7181 = vld [vmem:[#allocation7 + $0x10c] sm:$0xf]
    %v7182 = vld [vmem:[#allocation7 + $0x110] sm:$0xf]
    %v7183 = vld [vmem:[#allocation7 + $0x114] sm:$0xf]
    %v7184 = vld [vmem:[#allocation7 + $0x118] sm:$0xf]
    %v7185 = vld [vmem:[#allocation7 + $0x11c] sm:$0xf]
    %v7186 = vld [vmem:[#allocation7 + $0x120] sm:$0xf]
    %v7187 = vld [vmem:[#allocation7 + $0x124] sm:$0xf]
    %v7188 = vld [vmem:[#allocation7 + $0x128] sm:$0xf]
    %v7189 = vld [vmem:[#allocation7 + $0x12c] sm:$0xf]
    %v7190 = vld [vmem:[#allocation7 + $0x130] sm:$0xf]
    %v7191 = vld [vmem:[#allocation7 + $0x134] sm:$0xf]
    %v7192 = vld [vmem:[#allocation7 + $0x138] sm:$0xf]
    %v7193 = vld [vmem:[#allocation7 + $0x13c] sm:$0xf]
    %v7194 = vld [vmem:[#allocation7 + $0x140] sm:$0xf]
    %v7195 = vld [vmem:[#allocation7 + $0x144] sm:$0xf]
    %v7196 = vld [vmem:[#allocation7 + $0x148] sm:$0xf]
    %v7197 = vld [vmem:[#allocation7 + $0x14c] sm:$0xf]
    %v7198 = vld [vmem:[#allocation7 + $0x150] sm:$0xf]
    %v7199 = vld [vmem:[#allocation7 + $0x154] sm:$0xf]
    %v7200 = vld [vmem:[#allocation7 + $0x158] sm:$0xf]
    %v7201 = vld [vmem:[#allocation7 + $0x15c] sm:$0xf]
    %v7202 = vld [vmem:[#allocation7 + $0x160] sm:$0xf]
    %v7203 = vld [vmem:[#allocation7 + $0x164] sm:$0xf]
    %v7204 = vld [vmem:[#allocation7 + $0x168] sm:$0xf]
    %v7205 = vld [vmem:[#allocation7 + $0x16c] sm:$0xf]
    %v7206 = vld [vmem:[#allocation7 + $0x170] sm:$0xf]
    %v7207 = vld [vmem:[#allocation7 + $0x174] sm:$0xf]
    %v7208 = vld [vmem:[#allocation7 + $0x178] sm:$0xf]
    %v7209 = vld [vmem:[#allocation7 + $0x17c] sm:$0xf]
    %v7210 = vld [vmem:[#allocation7 + $0x180] sm:$0xf]
    %v7211 = vld [vmem:[#allocation7 + $0x184] sm:$0xf]
    %v7212 = vld [vmem:[#allocation7 + $0x188] sm:$0xf]
    %v7213 = vld [vmem:[#allocation7 + $0x18c] sm:$0xf]
    %v7214 = vld [vmem:[#allocation7 + $0x190] sm:$0xf]
    %v7215 = vld [vmem:[#allocation7 + $0x194] sm:$0xf]
    %v7216 = vld [vmem:[#allocation7 + $0x198] sm:$0xf]
    %v7217 = vld [vmem:[#allocation7 + $0x19c] sm:$0xf]
    %v7218 = vld [vmem:[#allocation7 + $0x1a0] sm:$0xf]
    %v7219 = vld [vmem:[#allocation7 + $0x1a4] sm:$0xf]
    %v7220 = vld [vmem:[#allocation7 + $0x1a8] sm:$0xf]
    %v7221 = vld [vmem:[#allocation7 + $0x1ac] sm:$0xf]
    %v7222 = vld [vmem:[#allocation7 + $0x1b0] sm:$0xf]
    %v7223 = vld [vmem:[#allocation7 + $0x1b4] sm:$0xf]
    %v7224 = vld [vmem:[#allocation7 + $0x1b8] sm:$0xf]
    %v7225 = vld [vmem:[#allocation7 + $0x1bc] sm:$0xf]
    %v7226 = vld [vmem:[#allocation7 + $0x1c0] sm:$0xf]
    %v7227 = vld [vmem:[#allocation7 + $0x1c4] sm:$0xf]
    %v7228 = vld [vmem:[#allocation7 + $0x1c8] sm:$0xf]
    %v7229 = vld [vmem:[#allocation7 + $0x1cc] sm:$0xf]
    %v7230 = vld [vmem:[#allocation7 + $0x1d0] sm:$0xf]
    %v7231 = vld [vmem:[#allocation7 + $0x1d4] sm:$0xf]
    %v7232 = vld [vmem:[#allocation7 + $0x1d8] sm:$0xf]
    %v7233 = vld [vmem:[#allocation7 + $0x1dc] sm:$0xf]
    %v7234 = vld [vmem:[#allocation7 + $0x1e0] sm:$0xf]
    %v7235 = vld [vmem:[#allocation7 + $0x1e4] sm:$0xf]
    %v7236 = vld [vmem:[#allocation7 + $0x1e8] sm:$0xf]
    %v7237 = vld [vmem:[#allocation7 + $0x1ec] sm:$0xf]
    %v7238 = vld [vmem:[#allocation7 + $0x1f0] sm:$0xf]
    %v7239 = vld [vmem:[#allocation7 + $0x1f4] sm:$0xf]
    %v7240 = vld [vmem:[#allocation7 + $0x1f8] sm:$0xf]
    %v7241 = vld [vmem:[#allocation7 + $0x1fc] sm:$0xf]
    %v7242 = vld [vmem:[%s8] sm:$0x1]
    %v7244 = vlaneseq
    %v7245 = vshrl.u32 %v7244, 7
    %v7246 = vsub.s32 0, %v7245
    %v7247 = vrot.slane %v7242, %v7246
    %v7377 = vunpack.c.l.b16 %v7114
    %v7378 = vunpack.c.l.b16 %v7115
    %v7379 = vunpack.c.l.b16 %v7116
    %v7380 = vunpack.c.l.b16 %v7117
    %v7381 = vunpack.c.l.b16 %v7118
    %v7382 = vunpack.c.l.b16 %v7119
    %v7383 = vunpack.c.l.b16 %v7120
    %v7384 = vunpack.c.l.b16 %v7121
    %v7385 = vunpack.c.l.b16 %v7122
    %v7386 = vunpack.c.l.b16 %v7123
    %v7387 = vunpack.c.l.b16 %v7124
    %v7388 = vunpack.c.l.b16 %v7125
    %v7389 = vunpack.c.l.b16 %v7126
    %v7390 = vunpack.c.l.b16 %v7127
    %v7391 = vunpack.c.l.b16 %v7128
    %v7392 = vunpack.c.l.b16 %v7129
    %v7393 = vunpack.c.l.b16 %v7130
    %v7394 = vunpack.c.l.b16 %v7131
    %v7395 = vunpack.c.l.b16 %v7132
    %v7396 = vunpack.c.l.b16 %v7133
    %v7397 = vunpack.c.l.b16 %v7134
    %v7398 = vunpack.c.l.b16 %v7135
    %v7399 = vunpack.c.l.b16 %v7136
    %v7400 = vunpack.c.l.b16 %v7137
    %v7401 = vunpack.c.l.b16 %v7138
    %v7402 = vunpack.c.l.b16 %v7139
    %v7403 = vunpack.c.l.b16 %v7140
    %v7404 = vunpack.c.l.b16 %v7141
    %v7405 = vunpack.c.l.b16 %v7142
    %v7406 = vunpack.c.l.b16 %v7143
    %v7407 = vunpack.c.l.b16 %v7144
    %v7408 = vunpack.c.l.b16 %v7145
    %v7409 = vunpack.c.l.b16 %v7146
    %v7410 = vunpack.c.l.b16 %v7147
    %v7411 = vunpack.c.l.b16 %v7148
    %v7412 = vunpack.c.l.b16 %v7149
    %v7413 = vunpack.c.l.b16 %v7150
    %v7414 = vunpack.c.l.b16 %v7151
    %v7415 = vunpack.c.l.b16 %v7152
    %v7416 = vunpack.c.l.b16 %v7153
    %v7417 = vunpack.c.l.b16 %v7154
    %v7418 = vunpack.c.l.b16 %v7155
    %v7419 = vunpack.c.l.b16 %v7156
    %v7420 = vunpack.c.l.b16 %v7157
    %v7421 = vunpack.c.l.b16 %v7158
    %v7422 = vunpack.c.l.b16 %v7159
    %v7423 = vunpack.c.l.b16 %v7160
    %v7424 = vunpack.c.l.b16 %v7161
    %v7425 = vunpack.c.l.b16 %v7162
    %v7426 = vunpack.c.l.b16 %v7163
    %v7427 = vunpack.c.l.b16 %v7164
    %v7428 = vunpack.c.l.b16 %v7165
    %v7429 = vunpack.c.l.b16 %v7166
    %v7430 = vunpack.c.l.b16 %v7167
    %v7431 = vunpack.c.l.b16 %v7168
    %v7432 = vunpack.c.l.b16 %v7169
    %v7433 = vunpack.c.l.b16 %v7170
    %v7434 = vunpack.c.l.b16 %v7171
    %v7435 = vunpack.c.l.b16 %v7172
    %v7436 = vunpack.c.l.b16 %v7173
    %v7437 = vunpack.c.l.b16 %v7174
    %v7438 = vunpack.c.l.b16 %v7175
    %v7439 = vunpack.c.l.b16 %v7176
    %v7440 = vunpack.c.l.b16 %v7177
    %v7441 = vunpack.c.l.b16 %v7178
    %v7442 = vunpack.c.l.b16 %v7179
    %v7443 = vunpack.c.l.b16 %v7180
    %v7444 = vunpack.c.l.b16 %v7181
    %v7445 = vunpack.c.l.b16 %v7182
    %v7446 = vunpack.c.l.b16 %v7183
    %v7447 = vunpack.c.l.b16 %v7184
    %v7448 = vunpack.c.l.b16 %v7185
    %v7449 = vunpack.c.l.b16 %v7186
    %v7450 = vunpack.c.l.b16 %v7187
    %v7451 = vunpack.c.l.b16 %v7188
    %v7452 = vunpack.c.l.b16 %v7189
    %v7453 = vunpack.c.l.b16 %v7190
    %v7454 = vunpack.c.l.b16 %v7191
    %v7455 = vunpack.c.l.b16 %v7192
    %v7456 = vunpack.c.l.b16 %v7193
    %v7457 = vunpack.c.l.b16 %v7194
    %v7458 = vunpack.c.l.b16 %v7195
    %v7459 = vunpack.c.l.b16 %v7196
    %v7460 = vunpack.c.l.b16 %v7197
    %v7461 = vunpack.c.l.b16 %v7198
    %v7462 = vunpack.c.l.b16 %v7199
    %v7463 = vunpack.c.l.b16 %v7200
    %v7464 = vunpack.c.l.b16 %v7201
    %v7465 = vunpack.c.l.b16 %v7202
    %v7466 = vunpack.c.l.b16 %v7203
    %v7467 = vunpack.c.l.b16 %v7204
    %v7468 = vunpack.c.l.b16 %v7205
    %v7469 = vunpack.c.l.b16 %v7206
    %v7470 = vunpack.c.l.b16 %v7207
    %v7471 = vunpack.c.l.b16 %v7208
    %v7472 = vunpack.c.l.b16 %v7209
    %v7473 = vunpack.c.l.b16 %v7210
    %v7474 = vunpack.c.l.b16 %v7211
    %v7475 = vunpack.c.l.b16 %v7212
    %v7476 = vunpack.c.l.b16 %v7213
    %v7477 = vunpack.c.l.b16 %v7214
    %v7478 = vunpack.c.l.b16 %v7215
    %v7479 = vunpack.c.l.b16 %v7216
    %v7480 = vunpack.c.l.b16 %v7217
    %v7481 = vunpack.c.l.b16 %v7218
    %v7482 = vunpack.c.l.b16 %v7219
    %v7483 = vunpack.c.l.b16 %v7220
    %v7484 = vunpack.c.l.b16 %v7221
    %v7485 = vunpack.c.l.b16 %v7222
    %v7486 = vunpack.c.l.b16 %v7223
    %v7487 = vunpack.c.l.b16 %v7224
    %v7488 = vunpack.c.l.b16 %v7225
    %v7489 = vunpack.c.l.b16 %v7226
    %v7490 = vunpack.c.l.b16 %v7227
    %v7491 = vunpack.c.l.b16 %v7228
    %v7492 = vunpack.c.l.b16 %v7229
    %v7493 = vunpack.c.l.b16 %v7230
    %v7494 = vunpack.c.l.b16 %v7231
    %v7495 = vunpack.c.l.b16 %v7232
    %v7496 = vunpack.c.l.b16 %v7233
    %v7497 = vunpack.c.l.b16 %v7234
    %v7498 = vunpack.c.l.b16 %v7235
    %v7499 = vunpack.c.l.b16 %v7236
    %v7500 = vunpack.c.l.b16 %v7237
    %v7501 = vunpack.c.l.b16 %v7238
    %v7502 = vunpack.c.l.b16 %v7239
    %v7503 = vunpack.c.l.b16 %v7240
    %v7504 = vunpack.c.l.b16 %v7241
    %v7505 = vpack.c.b16 %v7378, %v7377
    %v7506 = vpack.c.b16 %v7380, %v7379
    %v7507 = vpack.c.b16 %v7382, %v7381
    %v7508 = vpack.c.b16 %v7384, %v7383
    %v7509 = vpack.c.b16 %v7386, %v7385
    %v7510 = vpack.c.b16 %v7388, %v7387
    %v7511 = vpack.c.b16 %v7390, %v7389
    %v7512 = vpack.c.b16 %v7392, %v7391
    %v7513 = vpack.c.b16 %v7394, %v7393
    %v7514 = vpack.c.b16 %v7396, %v7395
    %v7515 = vpack.c.b16 %v7398, %v7397
    %v7516 = vpack.c.b16 %v7400, %v7399
    %v7517 = vpack.c.b16 %v7402, %v7401
    %v7518 = vpack.c.b16 %v7404, %v7403
    %v7519 = vpack.c.b16 %v7406, %v7405
    %v7520 = vpack.c.b16 %v7408, %v7407
    %v7521 = vpack.c.b16 %v7410, %v7409
    %v7522 = vpack.c.b16 %v7412, %v7411
    %v7523 = vpack.c.b16 %v7414, %v7413
    %v7524 = vpack.c.b16 %v7416, %v7415
    %v7525 = vpack.c.b16 %v7418, %v7417
    %v7526 = vpack.c.b16 %v7420, %v7419
    %v7527 = vpack.c.b16 %v7422, %v7421
    %v7528 = vpack.c.b16 %v7424, %v7423
    %v7529 = vpack.c.b16 %v7426, %v7425
    %v7530 = vpack.c.b16 %v7428, %v7427
    %v7531 = vpack.c.b16 %v7430, %v7429
    %v7532 = vpack.c.b16 %v7432, %v7431
    %v7533 = vpack.c.b16 %v7434, %v7433
    %v7534 = vpack.c.b16 %v7436, %v7435
    %v7535 = vpack.c.b16 %v7438, %v7437
    %v7536 = vpack.c.b16 %v7440, %v7439
    %v7537 = vpack.c.b16 %v7442, %v7441
    %v7538 = vpack.c.b16 %v7444, %v7443
    %v7539 = vpack.c.b16 %v7446, %v7445
    %v7540 = vpack.c.b16 %v7448, %v7447
    %v7541 = vpack.c.b16 %v7450, %v7449
    %v7542 = vpack.c.b16 %v7452, %v7451
    %v7543 = vpack.c.b16 %v7454, %v7453
    %v7544 = vpack.c.b16 %v7456, %v7455
    %v7545 = vpack.c.b16 %v7458, %v7457
    %v7546 = vpack.c.b16 %v7460, %v7459
    %v7547 = vpack.c.b16 %v7462, %v7461
    %v7548 = vpack.c.b16 %v7464, %v7463
    %v7549 = vpack.c.b16 %v7466, %v7465
    %v7550 = vpack.c.b16 %v7468, %v7467
    %v7551 = vpack.c.b16 %v7470, %v7469
    %v7552 = vpack.c.b16 %v7472, %v7471
    %v7553 = vpack.c.b16 %v7474, %v7473
    %v7554 = vpack.c.b16 %v7476, %v7475
    %v7555 = vpack.c.b16 %v7478, %v7477
    %v7556 = vpack.c.b16 %v7480, %v7479
    %v7557 = vpack.c.b16 %v7482, %v7481
    %v7558 = vpack.c.b16 %v7484, %v7483
    %v7559 = vpack.c.b16 %v7486, %v7485
    %v7560 = vpack.c.b16 %v7488, %v7487
    %v7561 = vpack.c.b16 %v7490, %v7489
    %v7562 = vpack.c.b16 %v7492, %v7491
    %v7563 = vpack.c.b16 %v7494, %v7493
    %v7564 = vpack.c.b16 %v7496, %v7495
    %v7565 = vpack.c.b16 %v7498, %v7497
    %v7566 = vpack.c.b16 %v7500, %v7499
    %v7567 = vpack.c.b16 %v7502, %v7501
    %v7568 = vpack.c.b16 %v7504, %v7503
    %7633 = vmatprep.subr.bf16.mxu0 0
    %7634 = vmatpush1.bf16.msra.mxu0 %v7505
    %7635 = vmatprep.subr.bf16.mxu0 0
    %7636 = vmatpush1.bf16.msra.mxu0 %v7506
    %7637 = vmatprep.subr.bf16.mxu0 0
    %7638 = vmatpush1.bf16.msra.mxu0 %v7507
    %7639 = vmatprep.subr.bf16.mxu0 0
    %7640 = vmatpush1.bf16.msra.mxu0 %v7508
    %7641 = vmatprep.subr.bf16.mxu0 0
    %7642 = vmatpush1.bf16.msra.mxu0 %v7509
    %7643 = vmatprep.subr.bf16.mxu0 0
    %7644 = vmatpush1.bf16.msra.mxu0 %v7510
    %7645 = vmatprep.subr.bf16.mxu0 0
    %7646 = vmatpush1.bf16.msra.mxu0 %v7511
    %7647 = vmatprep.subr.bf16.mxu0 0
    %7648 = vmatpush1.bf16.msra.mxu0 %v7512
    %7649 = vmatprep.subr.bf16.mxu0 0
    %7650 = vmatpush1.bf16.msra.mxu0 %v7513
    %7651 = vmatprep.subr.bf16.mxu0 0
    %7652 = vmatpush1.bf16.msra.mxu0 %v7514
    %7653 = vmatprep.subr.bf16.mxu0 0
    %7654 = vmatpush1.bf16.msra.mxu0 %v7515
    %7655 = vmatprep.subr.bf16.mxu0 0
    %7656 = vmatpush1.bf16.msra.mxu0 %v7516
    %7657 = vmatprep.subr.bf16.mxu0 0
    %7658 = vmatpush1.bf16.msra.mxu0 %v7517
    %7659 = vmatprep.subr.bf16.mxu0 0
    %7660 = vmatpush1.bf16.msra.mxu0 %v7518
    %7661 = vmatprep.subr.bf16.mxu0 0
    %7662 = vmatpush1.bf16.msra.mxu0 %v7519
    %7663 = vmatprep.subr.bf16.mxu0 0
    %7664 = vmatpush1.bf16.msra.mxu0 %v7520
    %7665 = vmatprep.mubr.bf16.mxu0 %v6403
    %7666 = vmatmul.mubr.bf16.gmra.mrb[0].mxu0 %v6402
    %v7667 = vpop.f32.mrb[0].mxu0
    %v7668 = vadd.f32 %v7247, %v7667
    %v7669 = vpop.f32.mrb[0].mxu0
    %v7670 = vpop.f32.mrb[0].mxu0
    %v7671 = vadd.f32 %v7247, %v7670
    %v7672 = vpop.f32.mrb[0].mxu0
    %7673 = vmatprep.mubr.bf16.mxu0 %v6411
    %7674 = vmatmul.mubr.bf16.gmra.mrb[0].mxu0 %v6410
    %v7675 = vpop.f32.mrb[0].mxu0
    %v7676 = vadd.f32 %v7247, %v7675
    %v7677 = vpop.f32.mrb[0].mxu0
    %v7678 = vpop.f32.mrb[0].mxu0
    %v7679 = vadd.f32 %v7247, %v7678
    %v7680 = vpop.f32.mrb[0].mxu0
    %7681 = vmatprep.mubr.bf16.mxu0 %v6419
    %7682 = vmatmul.mubr.bf16.gmra.mrb[0].mxu0 %v6418
    %v7683 = vpop.f32.mrb[0].mxu0
    %v7684 = vadd.f32 %v7247, %v7683
    %v7685 = vpop.f32.mrb[0].mxu0
    %v7686 = vpop.f32.mrb[0].mxu0
    %v7687 = vadd.f32 %v7247, %v7686
    %v7688 = vpop.f32.mrb[0].mxu0
    %7689 = vmatprep.mubr.bf16.mxu0 %v6427
    %7690 = vmatmul.mubr.bf16.gmra.mrb[0].mxu0 %v6426
    %v7691 = vpop.f32.mrb[0].mxu0
    %v7692 = vadd.f32 %v7247, %v7691
    %v7693 = vpop.f32.mrb[0].mxu0
    %v7694 = vpop.f32.mrb[0].mxu0
    %v7695 = vadd.f32 %v7247, %v7694
    %v7696 = vpop.f32.mrb[0].mxu0
    %7697 = vdwg.mxu0
    %7698 = vmatprep.subr.bf16.mxu0 0
    %7699 = vmatpush1.bf16.msra.mxu0 %v7521
    %7700 = vmatprep.subr.bf16.mxu0 0
    %7701 = vmatpush1.bf16.msra.mxu0 %v7522
    %7702 = vmatprep.subr.bf16.mxu0 0
    %7703 = vmatpush1.bf16.msra.mxu0 %v7523
    %7704 = vmatprep.subr.bf16.mxu0 0
    %7705 = vmatpush1.bf16.msra.mxu0 %v7524
    %7706 = vmatprep.subr.bf16.mxu0 0
    %7707 = vmatpush1.bf16.msra.mxu0 %v7525
    %7708 = vmatprep.subr.bf16.mxu0 0
    %7709 = vmatpush1.bf16.msra.mxu0 %v7526
    %7710 = vmatprep.subr.bf16.mxu0 0
    %7711 = vmatpush1.bf16.msra.mxu0 %v7527
    %7712 = vmatprep.subr.bf16.mxu0 0
    %7713 = vmatpush1.bf16.msra.mxu0 %v7528
    %7714 = vmatprep.subr.bf16.mxu0 0
    %7715 = vmatpush1.bf16.msra.mxu0 %v7529
    %7716 = vmatprep.subr.bf16.mxu0 0
    %7717 = vmatpush1.bf16.msra.mxu0 %v7530
    %7718 = vmatprep.subr.bf16.mxu0 0
    %7719 = vmatpush1.bf16.msra.mxu0 %v7531
    %7720 = vmatprep.subr.bf16.mxu0 0
    %7721 = vmatpush1.bf16.msra.mxu0 %v7532
    %7722 = vmatprep.subr.bf16.mxu0 0
    %7723 = vmatpush1.bf16.msra.mxu0 %v7533
    %7724 = vmatprep.subr.bf16.mxu0 0
    %7725 = vmatpush1.bf16.msra.mxu0 %v7534
    %7726 = vmatprep.subr.bf16.mxu0 0
    %7727 = vmatpush1.bf16.msra.mxu0 %v7535
    %7728 = vmatprep.subr.bf16.mxu0 0
    %7729 = vmatpush1.bf16.msra.mxu0 %v7536
    %7730 = vmatprep.mubr.bf16.mxu0 %v6405
    %7731 = vmatmul.mubr.bf16.gmra.mrb[0].mxu0 %v6404
    %v7732 = vpop.f32.mrb[0].mxu0
    %v7733 = vadd.f32 %v7668, %v7732
    %v7734 = vpop.f32.mrb[0].mxu0
    %v7735 = vpop.f32.mrb[0].mxu0
    %v7736 = vadd.f32 %v7671, %v7735
    %v7737 = vpop.f32.mrb[0].mxu0
    %7738 = vmatprep.mubr.bf16.mxu0 %v6413
    %7739 = vmatmul.mubr.bf16.gmra.mrb[0].mxu0 %v6412
    %v7740 = vpop.f32.mrb[0].mxu0
    %v7741 = vadd.f32 %v7676, %v7740
    %v7742 = vpop.f32.mrb[0].mxu0
    %v7743 = vpop.f32.mrb[0].mxu0
    %v7744 = vadd.f32 %v7679, %v7743
    %v7745 = vpop.f32.mrb[0].mxu0
    %7746 = vmatprep.mubr.bf16.mxu0 %v6421
    %7747 = vmatmul.mubr.bf16.gmra.mrb[0].mxu0 %v6420
    %v7748 = vpop.f32.mrb[0].mxu0
    %v7749 = vadd.f32 %v7684, %v7748
    %v7750 = vpop.f32.mrb[0].mxu0
    %v7751 = vpop.f32.mrb[0].mxu0
    %v7752 = vadd.f32 %v7687, %v7751
    %v7753 = vpop.f32.mrb[0].mxu0
    %7754 = vmatprep.mubr.bf16.mxu0 %v6429
    %7755 = vmatmul.mubr.bf16.gmra.mrb[0].mxu0 %v6428
    %v7756 = vpop.f32.mrb[0].mxu0
    %v7757 = vadd.f32 %v7692, %v7756
    %v7758 = vpop.f32.mrb[0].mxu0
    %v7759 = vpop.f32.mrb[0].mxu0
    %v7760 = vadd.f32 %v7695, %v7759
    %v7761 = vpop.f32.mrb[0].mxu0
    %7762 = vdwg.mxu0
    %7763 = vmatprep.subr.bf16.mxu0 0
    %7764 = vmatpush1.bf16.msra.mxu0 %v7537
    %7765 = vmatprep.subr.bf16.mxu0 0
    %7766 = vmatpush1.bf16.msra.mxu0 %v7538
    %7767 = vmatprep.subr.bf16.mxu0 0
    %7768 = vmatpush1.bf16.msra.mxu0 %v7539
    %7769 = vmatprep.subr.bf16.mxu0 0
    %7770 = vmatpush1.bf16.msra.mxu0 %v7540
    %7771 = vmatprep.subr.bf16.mxu0 0
    %7772 = vmatpush1.bf16.msra.mxu0 %v7541
    %7773 = vmatprep.subr.bf16.mxu0 0
    %7774 = vmatpush1.bf16.msra.mxu0 %v7542
    %7775 = vmatprep.subr.bf16.mxu0 0
    %7776 = vmatpush1.bf16.msra.mxu0 %v7543
    %7777 = vmatprep.subr.bf16.mxu0 0
    %7778 = vmatpush1.bf16.msra.mxu0 %v7544
    %7779 = vmatprep.subr.bf16.mxu0 0
    %7780 = vmatpush1.bf16.msra.mxu0 %v7545
    %7781 = vmatprep.subr.bf16.mxu0 0
    %7782 = vmatpush1.bf16.msra.mxu0 %v7546
    %7783 = vmatprep.subr.bf16.mxu0 0
    %7784 = vmatpush1.bf16.msra.mxu0 %v7547
    %7785 = vmatprep.subr.bf16.mxu0 0
    %7786 = vmatpush1.bf16.msra.mxu0 %v7548
    %7787 = vmatprep.subr.bf16.mxu0 0
    %7788 = vmatpush1.bf16.msra.mxu0 %v7549
    %7789 = vmatprep.subr.bf16.mxu0 0
    %7790 = vmatpush1.bf16.msra.mxu0 %v7550
    %7791 = vmatprep.subr.bf16.mxu0 0
    %7792 = vmatpush1.bf16.msra.mxu0 %v7551
    %7793 = vmatprep.subr.bf16.mxu0 0
    %7794 = vmatpush1.bf16.msra.mxu0 %v7552
    %7795 = vmatprep.mubr.bf16.mxu0 %v6407
    %7796 = vmatmul.mubr.bf16.gmra.mrb[0].mxu0 %v6406
    %v7797 = vpop.f32.mrb[0].mxu0
    %v7798 = vadd.f32 %v7733, %v7797
    %v7799 = vpop.f32.mrb[0].mxu0
    %v7800 = vpop.f32.mrb[0].mxu0
    %v7801 = vadd.f32 %v7736, %v7800
    %v7802 = vpop.f32.mrb[0].mxu0
    %7803 = vmatprep.mubr.bf16.mxu0 %v6415
    %7804 = vmatmul.mubr.bf16.gmra.mrb[0].mxu0 %v6414
    %v7805 = vpop.f32.mrb[0].mxu0
    %v7806 = vadd.f32 %v7741, %v7805
    %v7807 = vpop.f32.mrb[0].mxu0
    %v7808 = vpop.f32.mrb[0].mxu0
    %v7809 = vadd.f32 %v7744, %v7808
    %v7810 = vpop.f32.mrb[0].mxu0
    %7811 = vmatprep.mubr.bf16.mxu0 %v6423
    %7812 = vmatmul.mubr.bf16.gmra.mrb[0].mxu0 %v6422
    %v7813 = vpop.f32.mrb[0].mxu0
    %v7814 = vadd.f32 %v7749, %v7813
    %v7815 = vpop.f32.mrb[0].mxu0
    %v7816 = vpop.f32.mrb[0].mxu0
    %v7817 = vadd.f32 %v7752, %v7816
    %v7818 = vpop.f32.mrb[0].mxu0
    %7819 = vmatprep.mubr.bf16.mxu0 %v6431
    %7820 = vmatmul.mubr.bf16.gmra.mrb[0].mxu0 %v6430
    %v7821 = vpop.f32.mrb[0].mxu0
    %v7822 = vadd.f32 %v7757, %v7821
    %v7823 = vpop.f32.mrb[0].mxu0
    %v7824 = vpop.f32.mrb[0].mxu0
    %v7825 = vadd.f32 %v7760, %v7824
    %v7826 = vpop.f32.mrb[0].mxu0
    %7827 = vdwg.mxu0
    %7828 = vmatprep.subr.bf16.mxu0 0
    %7829 = vmatpush1.bf16.msra.mxu0 %v7553
    %7830 = vmatprep.subr.bf16.mxu0 0
    %7831 = vmatpush1.bf16.msra.mxu0 %v7554
    %7832 = vmatprep.subr.bf16.mxu0 0
    %7833 = vmatpush1.bf16.msra.mxu0 %v7555
    %7834 = vmatprep.subr.bf16.mxu0 0
    %7835 = vmatpush1.bf16.msra.mxu0 %v7556
    %7836 = vmatprep.subr.bf16.mxu0 0
    %7837 = vmatpush1.bf16.msra.mxu0 %v7557
    %7838 = vmatprep.subr.bf16.mxu0 0
    %7839 = vmatpush1.bf16.msra.mxu0 %v7558
    %7840 = vmatprep.subr.bf16.mxu0 0
    %7841 = vmatpush1.bf16.msra.mxu0 %v7559
    %7842 = vmatprep.subr.bf16.mxu0 0
    %7843 = vmatpush1.bf16.msra.mxu0 %v7560
    %7844 = vmatprep.subr.bf16.mxu0 0
    %7845 = vmatpush1.bf16.msra.mxu0 %v7561
    %7846 = vmatprep.subr.bf16.mxu0 0
    %7847 = vmatpush1.bf16.msra.mxu0 %v7562
    %7848 = vmatprep.subr.bf16.mxu0 0
    %7849 = vmatpush1.bf16.msra.mxu0 %v7563
    %7850 = vmatprep.subr.bf16.mxu0 0
    %7851 = vmatpush1.bf16.msra.mxu0 %v7564
    %7852 = vmatprep.subr.bf16.mxu0 0
    %7853 = vmatpush1.bf16.msra.mxu0 %v7565
    %7854 = vmatprep.subr.bf16.mxu0 0
    %7855 = vmatpush1.bf16.msra.mxu0 %v7566
    %7856 = vmatprep.subr.bf16.mxu0 0
    %7857 = vmatpush1.bf16.msra.mxu0 %v7567
    %7858 = vmatprep.subr.bf16.mxu0 0
    %7859 = vmatpush1.bf16.msra.mxu0 %v7568
    %7860 = vmatprep.mubr.bf16.mxu0 %v6409
    %7861 = vmatmul.mubr.bf16.gmra.mrb[0].mxu0 %v6408
    %v7862 = vpop.f32.mrb[0].mxu0
    %v7863 = vadd.f32 %v7798, %v7862
    %v7864 = vpop.f32.mrb[0].mxu0
    %v7865 = vpop.f32.mrb[0].mxu0
    %v7866 = vadd.f32 %v7801, %v7865
    %v7867 = vpop.f32.mrb[0].mxu0
    %7868 = vmatprep.mubr.bf16.mxu0 %v6417
    %7869 = vmatmul.mubr.bf16.gmra.mrb[0].mxu0 %v6416
    %v7870 = vpop.f32.mrb[0].mxu0
    %v7871 = vadd.f32 %v7806, %v7870
    %v7872 = vpop.f32.mrb[0].mxu0
    %v7873 = vpop.f32.mrb[0].mxu0
    %v7874 = vadd.f32 %v7809, %v7873
    %v7875 = vpop.f32.mrb[0].mxu0
    %7876 = vmatprep.mubr.bf16.mxu0 %v6425
    %7877 = vmatmul.mubr.bf16.gmra.mrb[0].mxu0 %v6424
    %v7878 = vpop.f32.mrb[0].mxu0
    %v7879 = vadd.f32 %v7814, %v7878
    %v7880 = vpop.f32.mrb[0].mxu0
    %v7881 = vpop.f32.mrb[0].mxu0
    %v7882 = vadd.f32 %v7817, %v7881
    %v7883 = vpop.f32.mrb[0].mxu0
    %7884 = vmatprep.mubr.bf16.mxu0 %v6433
    %7885 = vmatmul.mubr.bf16.gmra.mrb[0].mxu0 %v6432
    %v7886 = vpop.f32.mrb[0].mxu0
    %v7887 = vadd.f32 %v7822, %v7886
    %v7888 = vpop.f32.mrb[0].mxu0
    %v7889 = vpop.f32.mrb[0].mxu0
    %v7890 = vadd.f32 %v7825, %v7889
    %v7891 = vpop.f32.mrb[0].mxu0
    %7892 = vdwg.mxu0
    %7893 = vmatprep.subr.bf16.mxu0 0
    %7894 = vmatpush1.bf16.msra.mxu0 %v7505
    %7895 = vmatprep.subr.bf16.mxu0 0
    %7896 = vmatpush1.bf16.msra.mxu0 %v7506
    %7897 = vmatprep.subr.bf16.mxu0 0
    %7898 = vmatpush1.bf16.msra.mxu0 %v7507
    %7899 = vmatprep.subr.bf16.mxu0 0
    %7900 = vmatpush1.bf16.msra.mxu0 %v7508
    %7901 = vmatprep.subr.bf16.mxu0 0
    %7902 = vmatpush1.bf16.msra.mxu0 %v7509
    %7903 = vmatprep.subr.bf16.mxu0 0
    %7904 = vmatpush1.bf16.msra.mxu0 %v7510
    %7905 = vmatprep.subr.bf16.mxu0 0
    %7906 = vmatpush1.bf16.msra.mxu0 %v7511
    %7907 = vmatprep.subr.bf16.mxu0 0
    %7908 = vmatpush1.bf16.msra.mxu0 %v7512
    %7909 = vmatprep.subr.bf16.mxu0 0
    %7910 = vmatpush1.bf16.msra.mxu0 %v7513
    %7911 = vmatprep.subr.bf16.mxu0 0
    %7912 = vmatpush1.bf16.msra.mxu0 %v7514
    %7913 = vmatprep.subr.bf16.mxu0 0
    %7914 = vmatpush1.bf16.msra.mxu0 %v7515
    %7915 = vmatprep.subr.bf16.mxu0 0
    %7916 = vmatpush1.bf16.msra.mxu0 %v7516
    %7917 = vmatprep.subr.bf16.mxu0 0
    %7918 = vmatpush1.bf16.msra.mxu0 %v7517
    %7919 = vmatprep.subr.bf16.mxu0 0
    %7920 = vmatpush1.bf16.msra.mxu0 %v7518
    %7921 = vmatprep.subr.bf16.mxu0 0
    %7922 = vmatpush1.bf16.msra.mxu0 %v7519
    %7923 = vmatprep.subr.bf16.mxu0 0
    %7924 = vmatpush1.bf16.msra.mxu0 %v7520
    %7925 = vmatprep.mubr.bf16.mxu0 %v7083
    %7926 = vmatmul.mubr.bf16.gmra.mrb[0].mxu0 %v7082
    %v7927 = vpop.f32.mrb[0].mxu0
    %v7928 = vadd.f32 %v7247, %v7927
    %v7929 = vpop.f32.mrb[0].mxu0
    %v7930 = vpop.f32.mrb[0].mxu0
    %v7931 = vadd.f32 %v7247, %v7930
    %v7932 = vpop.f32.mrb[0].mxu0
    %7933 = vmatprep.mubr.bf16.mxu0 %v7091
    %7934 = vmatmul.mubr.bf16.gmra.mrb[0].mxu0 %v7090
    %v7935 = vpop.f32.mrb[0].mxu0
    %v7936 = vadd.f32 %v7247, %v7935
    %v7937 = vpop.f32.mrb[0].mxu0
    %v7938 = vpop.f32.mrb[0].mxu0
    %v7939 = vadd.f32 %v7247, %v7938
    %v7940 = vpop.f32.mrb[0].mxu0
    %7941 = vmatprep.mubr.bf16.mxu0 %v7099
    %7942 = vmatmul.mubr.bf16.gmra.mrb[0].mxu0 %v7098
    %v7943 = vpop.f32.mrb[0].mxu0
    %v7944 = vadd.f32 %v7247, %v7943
    %v7945 = vpop.f32.mrb[0].mxu0
    %v7946 = vpop.f32.mrb[0].mxu0
    %v7947 = vadd.f32 %v7247, %v7946
    %v7948 = vpop.f32.mrb[0].mxu0
    %7949 = vmatprep.mubr.bf16.mxu0 %v7107
    %7950 = vmatmul.mubr.bf16.gmra.mrb[0].mxu0 %v7106
    %v7951 = vpop.f32.mrb[0].mxu0
    %v7952 = vadd.f32 %v7247, %v7951
    %v7953 = vpop.f32.mrb[0].mxu0
    %v7954 = vpop.f32.mrb[0].mxu0
    %v7955 = vadd.f32 %v7247, %v7954
    %v7956 = vpop.f32.mrb[0].mxu0
    %7957 = vdwg.mxu0
    %7958 = vmatprep.subr.bf16.mxu0 0
    %7959 = vmatpush1.bf16.msra.mxu0 %v7521
    %7960 = vmatprep.subr.bf16.mxu0 0
    %7961 = vmatpush1.bf16.msra.mxu0 %v7522
    %7962 = vmatprep.subr.bf16.mxu0 0
    %7963 = vmatpush1.bf16.msra.mxu0 %v7523
    %7964 = vmatprep.subr.bf16.mxu0 0
    %7965 = vmatpush1.bf16.msra.mxu0 %v7524
    %7966 = vmatprep.subr.bf16.mxu0 0
    %7967 = vmatpush1.bf16.msra.mxu0 %v7525
    %7968 = vmatprep.subr.bf16.mxu0 0
    %7969 = vmatpush1.bf16.msra.mxu0 %v7526
    %7970 = vmatprep.subr.bf16.mxu0 0
    %7971 = vmatpush1.bf16.msra.mxu0 %v7527
    %7972 = vmatprep.subr.bf16.mxu0 0
    %7973 = vmatpush1.bf16.msra.mxu0 %v7528
    %7974 = vmatprep.subr.bf16.mxu0 0
    %7975 = vmatpush1.bf16.msra.mxu0 %v7529
    %7976 = vmatprep.subr.bf16.mxu0 0
    %7977 = vmatpush1.bf16.msra.mxu0 %v7530
    %7978 = vmatprep.subr.bf16.mxu0 0
    %7979 = vmatpush1.bf16.msra.mxu0 %v7531
    %7980 = vmatprep.subr.bf16.mxu0 0
    %7981 = vmatpush1.bf16.msra.mxu0 %v7532
    %7982 = vmatprep.subr.bf16.mxu0 0
    %7983 = vmatpush1.bf16.msra.mxu0 %v7533
    %7984 = vmatprep.subr.bf16.mxu0 0
    %7985 = vmatpush1.bf16.msra.mxu0 %v7534
    %7986 = vmatprep.subr.bf16.mxu0 0
    %7987 = vmatpush1.bf16.msra.mxu0 %v7535
    %7988 = vmatprep.subr.bf16.mxu0 0
    %7989 = vmatpush1.bf16.msra.mxu0 %v7536
    %7990 = vmatprep.mubr.bf16.mxu0 %v7085
    %7991 = vmatmul.mubr.bf16.gmra.mrb[0].mxu0 %v7084
    %v7992 = vpop.f32.mrb[0].mxu0
    %v7993 = vadd.f32 %v7928, %v7992
    %v7994 = vpop.f32.mrb[0].mxu0
    %v7995 = vpop.f32.mrb[0].mxu0
    %v7996 = vadd.f32 %v7931, %v7995
    %v7997 = vpop.f32.mrb[0].mxu0
    %7998 = vmatprep.mubr.bf16.mxu0 %v7093
    %7999 = vmatmul.mubr.bf16.gmra.mrb[0].mxu0 %v7092
    %v8000 = vpop.f32.mrb[0].mxu0
    %v8001 = vadd.f32 %v7936, %v8000
    %v8002 = vpop.f32.mrb[0].mxu0
    %v8003 = vpop.f32.mrb[0].mxu0
    %v8004 = vadd.f32 %v7939, %v8003
    %v8005 = vpop.f32.mrb[0].mxu0
    %8006 = vmatprep.mubr.bf16.mxu0 %v7101
    %8007 = vmatmul.mubr.bf16.gmra.mrb[0].mxu0 %v7100
    %v8008 = vpop.f32.mrb[0].mxu0
    %v8009 = vadd.f32 %v7944, %v8008
    %v8010 = vpop.f32.mrb[0].mxu0
    %v8011 = vpop.f32.mrb[0].mxu0
    %v8012 = vadd.f32 %v7947, %v8011
    %v8013 = vpop.f32.mrb[0].mxu0
    %8014 = vmatprep.mubr.bf16.mxu0 %v7109
    %8015 = vmatmul.mubr.bf16.gmra.mrb[0].mxu0 %v7108
    %v8016 = vpop.f32.mrb[0].mxu0
    %v8017 = vadd.f32 %v7952, %v8016
    %v8018 = vpop.f32.mrb[0].mxu0
    %v8019 = vpop.f32.mrb[0].mxu0
    %v8020 = vadd.f32 %v7955, %v8019
    %v8021 = vpop.f32.mrb[0].mxu0
    %8022 = vdwg.mxu0
    %8023 = vmatprep.subr.bf16.mxu0 0
    %8024 = vmatpush1.bf16.msra.mxu0 %v7537
    %8025 = vmatprep.subr.bf16.mxu0 0
    %8026 = vmatpush1.bf16.msra.mxu0 %v7538
    %8027 = vmatprep.subr.bf16.mxu0 0
    %8028 = vmatpush1.bf16.msra.mxu0 %v7539
    %8029 = vmatprep.subr.bf16.mxu0 0
    %8030 = vmatpush1.bf16.msra.mxu0 %v7540
    %8031 = vmatprep.subr.bf16.mxu0 0
    %8032 = vmatpush1.bf16.msra.mxu0 %v7541
    %8033 = vmatprep.subr.bf16.mxu0 0
    %8034 = vmatpush1.bf16.msra.mxu0 %v7542
    %8035 = vmatprep.subr.bf16.mxu0 0
    %8036 = vmatpush1.bf16.msra.mxu0 %v7543
    %8037 = vmatprep.subr.bf16.mxu0 0
    %8038 = vmatpush1.bf16.msra.mxu0 %v7544
    %8039 = vmatprep.subr.bf16.mxu0 0
    %8040 = vmatpush1.bf16.msra.mxu0 %v7545
    %8041 = vmatprep.subr.bf16.mxu0 0
    %8042 = vmatpush1.bf16.msra.mxu0 %v7546
    %8043 = vmatprep.subr.bf16.mxu0 0
    %8044 = vmatpush1.bf16.msra.mxu0 %v7547
    %8045 = vmatprep.subr.bf16.mxu0 0
    %8046 = vmatpush1.bf16.msra.mxu0 %v7548
    %8047 = vmatprep.subr.bf16.mxu0 0
    %8048 = vmatpush1.bf16.msra.mxu0 %v7549
    %8049 = vmatprep.subr.bf16.mxu0 0
    %8050 = vmatpush1.bf16.msra.mxu0 %v7550
    %8051 = vmatprep.subr.bf16.mxu0 0
    %8052 = vmatpush1.bf16.msra.mxu0 %v7551
    %8053 = vmatprep.subr.bf16.mxu0 0
    %8054 = vmatpush1.bf16.msra.mxu0 %v7552
    %8055 = vmatprep.mubr.bf16.mxu0 %v7087
    %8056 = vmatmul.mubr.bf16.gmra.mrb[0].mxu0 %v7086
    %v8057 = vpop.f32.mrb[0].mxu0
    %v8058 = vadd.f32 %v7993, %v8057
    %v8059 = vpop.f32.mrb[0].mxu0
    %v8060 = vpop.f32.mrb[0].mxu0
    %v8061 = vadd.f32 %v7996, %v8060
    %v8062 = vpop.f32.mrb[0].mxu0
    %8063 = vmatprep.mubr.bf16.mxu0 %v7095
    %8064 = vmatmul.mubr.bf16.gmra.mrb[0].mxu0 %v7094
    %v8065 = vpop.f32.mrb[0].mxu0
    %v8066 = vadd.f32 %v8001, %v8065
    %v8067 = vpop.f32.mrb[0].mxu0
    %v8068 = vpop.f32.mrb[0].mxu0
    %v8069 = vadd.f32 %v8004, %v8068
    %v8070 = vpop.f32.mrb[0].mxu0
    %8071 = vmatprep.mubr.bf16.mxu0 %v7103
    %8072 = vmatmul.mubr.bf16.gmra.mrb[0].mxu0 %v7102
    %v8073 = vpop.f32.mrb[0].mxu0
    %v8074 = vadd.f32 %v8009, %v8073
    %v8075 = vpop.f32.mrb[0].mxu0
    %v8076 = vpop.f32.mrb[0].mxu0
    %v8077 = vadd.f32 %v8012, %v8076
    %v8078 = vpop.f32.mrb[0].mxu0
    %8079 = vmatprep.mubr.bf16.mxu0 %v7111
    %8080 = vmatmul.mubr.bf16.gmra.mrb[0].mxu0 %v7110
    %v8081 = vpop.f32.mrb[0].mxu0
    %v8082 = vadd.f32 %v8017, %v8081
    %v8083 = vpop.f32.mrb[0].mxu0
    %v8084 = vpop.f32.mrb[0].mxu0
    %v8085 = vadd.f32 %v8020, %v8084
    %v8086 = vpop.f32.mrb[0].mxu0
    %8087 = vdwg.mxu0
    %8088 = vmatprep.subr.bf16.mxu0 0
    %8089 = vmatpush1.bf16.msra.mxu0 %v7553
    %8090 = vmatprep.subr.bf16.mxu0 0
    %8091 = vmatpush1.bf16.msra.mxu0 %v7554
    %8092 = vmatprep.subr.bf16.mxu0 0
    %8093 = vmatpush1.bf16.msra.mxu0 %v7555
    %8094 = vmatprep.subr.bf16.mxu0 0
    %8095 = vmatpush1.bf16.msra.mxu0 %v7556
    %8096 = vmatprep.subr.bf16.mxu0 0
    %8097 = vmatpush1.bf16.msra.mxu0 %v7557
    %8098 = vmatprep.subr.bf16.mxu0 0
    %8099 = vmatpush1.bf16.msra.mxu0 %v7558
    %8100 = vmatprep.subr.bf16.mxu0 0
    %8101 = vmatpush1.bf16.msra.mxu0 %v7559
    %8102 = vmatprep.subr.bf16.mxu0 0
    %8103 = vmatpush1.bf16.msra.mxu0 %v7560
    %8104 = vmatprep.subr.bf16.mxu0 0
    %8105 = vmatpush1.bf16.msra.mxu0 %v7561
    %8106 = vmatprep.subr.bf16.mxu0 0
    %8107 = vmatpush1.bf16.msra.mxu0 %v7562
    %8108 = vmatprep.subr.bf16.mxu0 0
    %8109 = vmatpush1.bf16.msra.mxu0 %v7563
    %8110 = vmatprep.subr.bf16.mxu0 0
    %8111 = vmatpush1.bf16.msra.mxu0 %v7564
    %8112 = vmatprep.subr.bf16.mxu0 0
    %8113 = vmatpush1.bf16.msra.mxu0 %v7565
    %8114 = vmatprep.subr.bf16.mxu0 0
    %8115 = vmatpush1.bf16.msra.mxu0 %v7566
    %8116 = vmatprep.subr.bf16.mxu0 0
    %8117 = vmatpush1.bf16.msra.mxu0 %v7567
    %8118 = vmatprep.subr.bf16.mxu0 0
    %8119 = vmatpush1.bf16.msra.mxu0 %v7568
    %8120 = vmatprep.mubr.bf16.mxu0 %v7089
    %8121 = vmatmul.mubr.bf16.gmra.mrb[0].mxu0 %v7088
    %v8122 = vpop.f32.mrb[0].mxu0
    %v8123 = vadd.f32 %v8058, %v8122
    %v8124 = vpop.f32.mrb[0].mxu0
    %v8125 = vpop.f32.mrb[0].mxu0
    %v8126 = vadd.f32 %v8061, %v8125
    %v8127 = vpop.f32.mrb[0].mxu0
    %8128 = vmatprep.mubr.bf16.mxu0 %v7097
    %8129 = vmatmul.mubr.bf16.gmra.mrb[0].mxu0 %v7096
    %v8130 = vpop.f32.mrb[0].mxu0
    %v8131 = vadd.f32 %v8066, %v8130
    %v8132 = vpop.f32.mrb[0].mxu0
    %v8133 = vpop.f32.mrb[0].mxu0
    %v8134 = vadd.f32 %v8069, %v8133
    %v8135 = vpop.f32.mrb[0].mxu0
    %8136 = vmatprep.mubr.bf16.mxu0 %v7105
    %8137 = vmatmul.mubr.bf16.gmra.mrb[0].mxu0 %v7104
    %v8138 = vpop.f32.mrb[0].mxu0
    %v8139 = vadd.f32 %v8074, %v8138
    %v8140 = vpop.f32.mrb[0].mxu0
    %v8141 = vpop.f32.mrb[0].mxu0
    %v8142 = vadd.f32 %v8077, %v8141
    %v8143 = vpop.f32.mrb[0].mxu0
    %8144 = vmatprep.mubr.bf16.mxu0 %v7113
    %8145 = vmatmul.mubr.bf16.gmra.mrb[0].mxu0 %v7112
    %v8146 = vpop.f32.mrb[0].mxu0
    %v8147 = vadd.f32 %v8082, %v8146
    %v8148 = vpop.f32.mrb[0].mxu0
    %v8149 = vpop.f32.mrb[0].mxu0
    %v8150 = vadd.f32 %v8085, %v8149
    %v8151 = vpop.f32.mrb[0].mxu0
    %8152 = vdwg.mxu0
    %v8153 = vxor.u32 %v7863, 2147483648
    %v8154 = vxor.u32 %v7866, 2147483648
    %v8155 = vxor.u32 %v7871, 2147483648
    %v8156 = vxor.u32 %v7874, 2147483648
    %v8157 = vxor.u32 %v7879, 2147483648
    %v8158 = vxor.u32 %v7882, 2147483648
    %v8159 = vxor.u32 %v7887, 2147483648
    %v8160 = vxor.u32 %v7890, 2147483648
    %v8161 = vmul.f32 %v8153, 1.442695
    %v8162 = vpow.pop %v8161
    %v8163 = vmul.f32 %v8154, 1.442695
    %v8164 = vpow.pop %v8163
    %v8165 = vmul.f32 %v8155, 1.442695
    %v8166 = vpow.pop %v8165
    %v8167 = vmul.f32 %v8156, 1.442695
    %v8168 = vpow.pop %v8167
    %v8169 = vmul.f32 %v8157, 1.442695
    %v8170 = vpow.pop %v8169
    %v8171 = vmul.f32 %v8158, 1.442695
    %v8172 = vpow.pop %v8171
    %v8173 = vmul.f32 %v8159, 1.442695
    %v8174 = vpow.pop %v8173
    %v8175 = vmul.f32 %v8160, 1.442695
    %v8176 = vpow.pop %v8175
    %v8177 = vadd.f32 %v8162, 1.0
    %v8178 = vadd.f32 %v8164, 1.0
    %v8179 = vadd.f32 %v8166, 1.0
    %v8180 = vadd.f32 %v8168, 1.0
    %v8181 = vadd.f32 %v8170, 1.0
    %v8182 = vadd.f32 %v8172, 1.0
    %v8183 = vadd.f32 %v8174, 1.0
    %v8184 = vadd.f32 %v8176, 1.0
    %v8185 = vrcp.pop %v8177
    %v8186 = vmul.f32 1.0, %v8185
    %v8187 = vrcp.pop %v8178
    %v8188 = vmul.f32 1.0, %v8187
    %v8189 = vrcp.pop %v8179
    %v8190 = vmul.f32 1.0, %v8189
    %v8191 = vrcp.pop %v8180
    %v8192 = vmul.f32 1.0, %v8191
    %v8193 = vrcp.pop %v8181
    %v8194 = vmul.f32 1.0, %v8193
    %v8195 = vrcp.pop %v8182
    %v8196 = vmul.f32 1.0, %v8195
    %v8197 = vrcp.pop %v8183
    %v8198 = vmul.f32 1.0, %v8197
    %v8199 = vrcp.pop %v8184
    %v8200 = vmul.f32 1.0, %v8199
    %v8201 = vpack.c.bf16 %v8188, %v8186
    %v8202 = vpack.c.bf16 %v8192, %v8190
    %v8203 = vpack.c.bf16 %v8196, %v8194
    %v8204 = vpack.c.bf16 %v8200, %v8198
    %v8209 = vunpack.c.l.b16 %v8201
    %v8210 = vunpack.c.h.b16 %v8201
    %v8211 = vunpack.c.l.b16 %v8202
    %v8212 = vunpack.c.h.b16 %v8202
    %v8213 = vunpack.c.l.b16 %v8203
    %v8214 = vunpack.c.h.b16 %v8203
    %v8215 = vunpack.c.l.b16 %v8204
    %v8216 = vunpack.c.h.b16 %v8204
    %v8217 = vpack.c.b16 %v8209, %v8209
    %v8218 = vpack.c.b16 %v8210, %v8210
    %v8219 = vpack.c.b16 %v8211, %v8211
    %v8220 = vpack.c.b16 %v8212, %v8212
    %v8221 = vpack.c.b16 %v8213, %v8213
    %v8222 = vpack.c.b16 %v8214, %v8214
    %v8223 = vpack.c.b16 %v8215, %v8215
    %v8224 = vpack.c.b16 %v8216, %v8216
    %8233 = vst [vmem:[%s9] sm:$0xf] %v8217
    %8234 = vst [vmem:[%s9 + $0x4] sm:$0xf] %v8218
    %8235 = vst [vmem:[%s9 + $0x8] sm:$0xf] %v8219
    %8236 = vst [vmem:[%s9 + $0xc] sm:$0xf] %v8220
    %8237 = vst [vmem:[%s9 + $0x10] sm:$0xf] %v8221
    %8238 = vst [vmem:[%s9 + $0x14] sm:$0xf] %v8222
    %8239 = vst [vmem:[%s9 + $0x18] sm:$0xf] %v8223
    %8240 = vst [vmem:[%s9 + $0x1c] sm:$0xf] %v8224
    %v8241 = vxor.u32 %v8123, 2147483648
    %v8242 = vxor.u32 %v8126, 2147483648
    %v8243 = vxor.u32 %v8131, 2147483648
    %v8244 = vxor.u32 %v8134, 2147483648
    %v8245 = vxor.u32 %v8139, 2147483648
    %v8246 = vxor.u32 %v8142, 2147483648
    %v8247 = vxor.u32 %v8147, 2147483648
    %v8248 = vxor.u32 %v8150, 2147483648
    %v8249 = vmul.f32 %v8241, 1.442695
    %v8250 = vpow.pop %v8249
    %v8251 = vmul.f32 %v8242, 1.442695
    %v8252 = vpow.pop %v8251
    %v8253 = vmul.f32 %v8243, 1.442695
    %v8254 = vpow.pop %v8253
    %v8255 = vmul.f32 %v8244, 1.442695
    %v8256 = vpow.pop %v8255
    %v8257 = vmul.f32 %v8245, 1.442695
    %v8258 = vpow.pop %v8257
    %v8259 = vmul.f32 %v8246, 1.442695
    %v8260 = vpow.pop %v8259
    %v8261 = vmul.f32 %v8247, 1.442695
    %v8262 = vpow.pop %v8261
    %v8263 = vmul.f32 %v8248, 1.442695
    %v8264 = vpow.pop %v8263
    %v8265 = vadd.f32 %v8250, 1.0
    %v8266 = vadd.f32 %v8252, 1.0
    %v8267 = vadd.f32 %v8254, 1.0
    %v8268 = vadd.f32 %v8256, 1.0
    %v8269 = vadd.f32 %v8258, 1.0
    %v8270 = vadd.f32 %v8260, 1.0
    %v8271 = vadd.f32 %v8262, 1.0
    %v8272 = vadd.f32 %v8264, 1.0
    %v8273 = vrcp.pop %v8265
    %v8274 = vmul.f32 1.0, %v8273
    %v8275 = vrcp.pop %v8266
    %v8276 = vmul.f32 1.0, %v8275
    %v8277 = vrcp.pop %v8267
    %v8278 = vmul.f32 1.0, %v8277
    %v8279 = vrcp.pop %v8268
    %v8280 = vmul.f32 1.0, %v8279
    %v8281 = vrcp.pop %v8269
    %v8282 = vmul.f32 1.0, %v8281
    %v8283 = vrcp.pop %v8270
    %v8284 = vmul.f32 1.0, %v8283
    %v8285 = vrcp.pop %v8271
    %v8286 = vmul.f32 1.0, %v8285
    %v8287 = vrcp.pop %v8272
    %v8288 = vmul.f32 1.0, %v8287
    %v8289 = vpack.c.bf16 %v8276, %v8274
    %v8290 = vpack.c.bf16 %v8280, %v8278
    %v8291 = vpack.c.bf16 %v8284, %v8282
    %v8292 = vpack.c.bf16 %v8288, %v8286
    %v8297 = vunpack.c.l.b16 %v8289
    %v8298 = vunpack.c.h.b16 %v8289
    %v8299 = vunpack.c.l.b16 %v8290
    %v8300 = vunpack.c.h.b16 %v8290
    %v8301 = vunpack.c.l.b16 %v8291
    %v8302 = vunpack.c.h.b16 %v8291
    %v8303 = vunpack.c.l.b16 %v8292
    %v8304 = vunpack.c.h.b16 %v8292
    %v8305 = vpack.c.b16 %v8297, %v8297
    %v8306 = vpack.c.b16 %v8298, %v8298
    %v8307 = vpack.c.b16 %v8299, %v8299
    %v8308 = vpack.c.b16 %v8300, %v8300
    %v8309 = vpack.c.b16 %v8301, %v8301
    %v8310 = vpack.c.b16 %v8302, %v8302
    %v8311 = vpack.c.b16 %v8303, %v8303
    %v8312 = vpack.c.b16 %v8304, %v8304
    %8321 = vst [vmem:[%s9 + $0x20] sm:$0xf] %v8305
    %8322 = vst [vmem:[%s9 + $0x24] sm:$0xf] %v8306
    %8323 = vst [vmem:[%s9 + $0x28] sm:$0xf] %v8307
    %8324 = vst [vmem:[%s9 + $0x2c] sm:$0xf] %v8308
    %8325 = vst [vmem:[%s9 + $0x30] sm:$0xf] %v8309
    %8326 = vst [vmem:[%s9 + $0x34] sm:$0xf] %v8310
    %8327 = vst [vmem:[%s9 + $0x38] sm:$0xf] %v8311
    %8328 = vst [vmem:[%s9 + $0x3c] sm:$0xf] %v8312
    // Predicated region
    $region54: #{autoencoder_forward.1} parent=1 // pred_check
      _
    $region55: #{autoencoder_forward.1} parent=1 // pred_check_branch
      %8330 = sbr.rel (0) target = $region57
    $region56: #{autoencoder_forward.1} parent=1 // pred_region
      _
    $region57: #{autoencoder_forward.1} parent=1 // pred_fallthru
      _
    // Predicated region
    $region58: #{autoencoder_forward.1} parent=1 // pred_check
      _
    $region59: #{autoencoder_forward.1} parent=1 // pred_check_branch
      %8332 = sbr.rel (0) target = $region61
    $region60: #{autoencoder_forward.1} parent=1 // pred_region
      _
    $region61: #{autoencoder_forward.1} parent=1 // pred_fallthru
      _
    %8333 = vsyncpa [#allocation3], 1
    %8334 = vsyncpa [#allocation5], 1
    %8335 = vsyncpa [#allocation8], 1

</llo_original>
